<compile_context>
chip_gen: v6e
topology: v6e:2x2x1
jax: 0.10.0
libtpu: 0.0.40
codegen_flags: <defaults>
</compile_context>

<pallas_src>
import functools

import jax
import jax.numpy as jnp
from jax.experimental import pallas as pl
from jax.experimental.pallas import tpu as pltpu

BN_EPS = 1e-5


def _round_up(x, m):
    return (x + m - 1) // m * m


_PARALLEL = pltpu.CompilerParams(dimension_semantics=("parallel",))


# ----------------------------- Pallas kernels -----------------------------


def _conv3x3_kernel(x_ref, w_ref, b_ref, m_ref, o_ref, *, H, W, pool, gap):
    """Fused 3x3/s1/p1 conv (+folded-BN bias) + ReLU [+2x2 maxpool + decimation] [+global avg pool].

    x_ref : (ipb, Rin, Cin_p) bf16 -- ipb zero-padded images, spatial flattened row-major
                                      (row r = i*(W+2)+j), plus >=2 zero tail rows per image.
    w_ref : (9*Cin_p, Cout) bf16   -- 3x3 taps concatenated along K (tap t = kh*3+kw),
                                      BN scale folded in.
    b_ref : (1, Cout) f32          -- folded conv+BN bias.
    m_ref : (R, 1) f32             -- GAP averaging mask (read only when gap and not pool).
    o_ref : pool & !gap -> (ipb, (H/2)*(W/2), Cout) bf16     (compact, already decimated)
            gap         -> (ipb, 1, Cout) f32
    """
    ipb = x_ref.shape[0]
    Cin9, Cout = w_ref.shape
    W2 = W + 2
    R = H * W2

    x = x_ref[...]                                                  # (ipb, Rin, Cin_p)
    # In-VMEM im2col: 9 statically shifted slices concatenated along K -> ONE MXU pass with
    # K = 9*Cin_p (no serial 9-dot chain, no HBM im2col blow-up).  Every image's shifted reads
    # stay inside its own Rin-row slab (Rin >= (H+2)*(W+2) + 2).
    taps = []
    for t in range(9):
        off = (t // 3) * W2 + (t % 3)
        taps.append(x[:, off:off + R, :])
    xim = jnp.concatenate(taps, axis=-1).reshape(ipb * R, Cin9)     # (ipb*R, 9*Cin_p)
    acc = jnp.dot(xim, w_ref[...], preferred_element_type=jnp.float32)   # f32 accumulation
    y = jnp.maximum(acc + b_ref[...], 0.0)                          # folded BN bias + ReLU

    if pool:
        Hp, Wp = H // 2, W // 2
        # 2x2 max pool + stride-2 decimation, fully on VMEM values (no scratch round trip and
        # no post-kernel XLA slice).  The j>=W garbage columns form the last column pair and
        # never mix with kept outputs; they are dropped below.
        yh = y.reshape(ipb * H * (W2 // 2), 2, Cout)
        hmax = jnp.maximum(yh[:, 0, :], yh[:, 1, :])                # horizontal pair max
        hv = hmax.reshape(ipb * Hp, 2, W2 // 2, Cout)
        pooled = jnp.maximum(hv[:, 0], hv[:, 1])                    # vertical pair max
        pooled = pooled[:, :Wp, :]                                  # drop the j>=W pair
        pooled = pooled.reshape(ipb, Hp * Wp, Cout)
        if gap:
            o_ref[...] = jnp.mean(pooled, axis=1, keepdims=True).astype(o_ref.dtype)
        else:
            # TODO(synk): a further lever would be merging (Wp, Cout) into a 128-wide lane dim
            # for fully unmasked stores; skipped to keep the in-kernel relayout simple.
            o_ref[...] = pooled.astype(o_ref.dtype)
    else:
        # Global average pool via masked sum; the mask zeroes the j>=W garbage columns and
        # carries the 1/(H*W) averaging factor.
        ys = y.reshape(ipb, R, Cout) * m_ref[...][None, :, :]
        o_ref[...] = jnp.sum(ys, axis=1, keepdims=True).astype(o_ref.dtype)


def _tail_kernel(pf_ref, g_ref, wg_ref, bg_ref, w1a_ref, w1b_ref, b1_ref, w2_ref, b2_ref, o_ref):
    """Fused tail: patch-mean + global fc + Linear(192,128)+ReLU + Linear(128,C).

    The 192-wide concat([aggregated, global]) is never materialized: fc1's weight is pre-split
    into a 128-row (patch) part and a 64-row (global) part.  Dropout = identity (inference).
    """
    agg = jnp.mean(pf_ref[...].astype(jnp.float32), axis=1)                     # (B, 128)
    g = (jnp.dot(g_ref[...].astype(jnp.bfloat16), wg_ref[...],
                 preferred_element_type=jnp.float32) + bg_ref[...])             # (B, 64)
    h = (jnp.dot(agg.astype(jnp.bfloat16), w1a_ref[...], preferred_element_type=jnp.float32)
         + jnp.dot(g.astype(jnp.bfloat16), w1b_ref[...], preferred_element_type=jnp.float32)
         + b1_ref[...])
    h = jnp.maximum(h, 0.0)                                                     # (B, 128)
    o_ref[...] = (jnp.dot(h.astype(jnp.bfloat16), w2_ref[...],
                          preferred_element_type=jnp.float32) + b2_ref[...]).astype(o_ref.dtype)


# ----------------------------- layer wrappers -----------------------------


def conv_block(x, prep, *, pool=False, gap=False, max_rows_per_step=1024):
    """Conv2d(3x3,s1,p1)+BN(eval)+ReLU [+MaxPool2d(2)] [+AdaptiveAvgPool2d((1,1))] on NHWC."""
    assert pool or gap
    Np, H, W, Cin = x.shape
    w, b = prep["w"], prep["b"]                     # (9*Cin_p, Cout) bf16, (1, Cout) f32
    Cin9, Cout = w.shape
    Cin_p = Cin9 // 9
    if pool:
        assert H % 2 == 0 and W % 2 == 0

    W2 = W + 2
    R = H * W2
    Rnat = (H + 2) * W2
    Rin = _round_up(Rnat + 2, 8)                    # +2: halo rows for the garbage anchors

    # Images per grid step: batch several images into the matmul M dimension, but keep >= 2
    # grid steps whenever Np > 1 so both v7x TensorCores get work.
    # TODO(synk): for real (large) image sizes the whole-image block of the global branch
    # would need an extra row-tile grid axis to bound per-step VMEM on v7x (64 MiB).
    ipb = max(1, min(Np, max_rows_per_step // Rin))
    if Np > 1:
        ipb = min(ipb, (Np + 1) // 2)
    nb = -(-Np // ipb)
    Np_pad = nb * ipb

    # Zero-pad spatial (and channel alignment), flatten per image: row r = i*(W+2)+j.
    xp = jnp.pad(x.astype(jnp.bfloat16),
                 ((0, Np_pad - Np), (1, 1), (1, 1), (0, Cin_p - Cin)))
    xf = xp.reshape(Np_pad, Rnat, Cin_p)
    xf = jnp.pad(xf, ((0, 0), (0, Rin - Rnat), (0, 0)))

    if gap and not pool:
        r = jnp.arange(R)
        mask = jnp.where(r % W2 < W, 1.0 / (H * W), 0.0).astype(jnp.float32).reshape(R, 1)
    else:
        mask = jnp.zeros((8, 1), jnp.float32)       # placeholder, never read
    Rm = mask.shape[0]

    if gap:
        out_shape = jax.ShapeDtypeStruct((Np_pad, 1, Cout), jnp.float32)
        out_spec = pl.BlockSpec((ipb, 1, Cout), lambda n: (n, 0, 0))
    else:
        Hp, Wp = H // 2, W // 2
        out_shape = jax.ShapeDtypeStruct((Np_pad, Hp * Wp, Cout), jnp.bfloat16)
        out_spec = pl.BlockSpec((ipb, Hp * Wp, Cout), lambda n: (n, 0, 0))

    y = pl.pallas_call(
        functools.partial(_conv3x3_kernel, H=H, W=W, pool=pool, gap=gap),
        out_shape=out_shape,
        grid=(nb,),
        in_specs=[
            pl.BlockSpec((ipb, Rin, Cin_p), lambda n: (n, 0, 0)),
            pl.BlockSpec((Cin9, Cout), lambda n: (0, 0)),
            pl.BlockSpec((1, Cout), lambda n: (0, 0)),
            pl.BlockSpec((Rm, 1), lambda n: (0, 0)),
        ],
        out_specs=out_spec,
        compiler_params=_PARALLEL,
    )(xf, w, b, mask)

    y = y[:Np]
    if gap:
        return y.reshape(Np, Cout)                           # f32 features
    return y.reshape(Np, H // 2, W // 2, Cout)               # (Np, H/2, W/2, Cout) bf16


def classifier_tail(pf, g, params):
    """One fused pallas_call: mean over patches + gfc + fc1(+ReLU) + fc2."""
    B, L, Cf = pf.shape
    wg, bg = params["gfc"]["w"], params["gfc"]["b"]
    w1a, w1b, b1 = params["fc1"]["wa"], params["fc1"]["wb"], params["fc1"]["b"]
    w2, b2 = params["fc2"]["w"], params["fc2"]["b"]
    ncls = w2.shape[1]

    def full(shape):
        return pl.BlockSpec(tuple(shape), lambda *_: (0,) * len(shape))

    return pl.pallas_call(
        _tail_kernel,
        out_shape=jax.ShapeDtypeStruct((B, ncls), jnp.float32),
        grid=(1,),
        in_specs=[full(pf.shape), full(g.shape), full(wg.shape), full(bg.shape),
                  full(w1a.shape), full(w1b.shape), full(b1.shape),
                  full(w2.shape), full(b2.shape)],
        out_specs=full((B, ncls)),
    )(pf, g, wg, bg, w1a, w1b, b1, w2, b2)


# ----------------------------- parameters -----------------------------


def init_params(key, num_classes=4):
    keys = jax.random.split(key, 8)

    def conv_p(k, cin, cout):
        w = jax.random.normal(k, (cout, cin, 3, 3), jnp.float32) / jnp.sqrt(9.0 * cin)
        return dict(
            w=w, b=jnp.zeros((cout,), jnp.float32),
            # nn.BatchNorm2d fresh-__init__ defaults (eval mode uses running stats).
            gamma=jnp.ones((cout,), jnp.float32), beta=jnp.zeros((cout,), jnp.float32),
            mean=jnp.zeros((cout,), jnp.float32), var=jnp.ones((cout,), jnp.float32),
        )

    def lin_p(k, fin, fout):
        w = jax.random.normal(k, (fout, fin), jnp.float32) / jnp.sqrt(float(fin))
        return dict(w=w, b=jnp.zeros((fout,), jnp.float32))

    return dict(
        conv1=conv_p(keys[0], 3, 32),
        conv2=conv_p(keys[1], 32, 64),
        conv3=conv_p(keys[2], 64, 128),
        # TODO(synk): the pretrained torchvision ResNet50 (IMAGENET1K_V1, fc->64) cannot be
        # reproduced in-script; substituted with a small conv stem + pool + GAP + Linear(32->64)
        # built from the same Pallas kernels so global_features stays 64-dim.
        gconv=conv_p(keys[3], 3, 32),
        gfc=lin_p(keys[4], 32, 64),
        fc1=lin_p(keys[5], 192, 128),
        fc2=lin_p(keys[6], 128, num_classes),
    )


def prepare_params(params):
    """One-time prep (outside the forward): fold eval-BN into conv weights/bias, lay the 3x3
    taps out along K (matching the in-kernel im2col), pre-transpose/split the linears, and cast
    all matmul operands to bf16 (biases stay f32)."""
    prep = {}
    for name in ("conv1", "conv2", "conv3", "gconv"):
        p = params[name]
        cout, cin = p["w"].shape[0], p["w"].shape[1]
        cin_p = _round_up(cin, 8)
        scale = p["gamma"] / jnp.sqrt(p["var"] + BN_EPS)                     # (Cout,)
        w = jnp.transpose(p["w"], (2, 3, 1, 0)) * scale                      # (3,3,Cin,Cout)
        w = w.reshape(9, cin, cout)                                          # tap t = kh*3+kw
        w = jnp.pad(w, ((0, 0), (0, cin_p - cin), (0, 0))).reshape(9 * cin_p, cout)
        bias = (p["b"] - p["mean"]) * scale + p["beta"]
        prep[name] = dict(w=w.astype(jnp.bfloat16),
                          b=bias.reshape(1, cout).astype(jnp.float32))

    gfc = params["gfc"]
    prep["gfc"] = dict(w=gfc["w"].T.astype(jnp.bfloat16),
                       b=gfc["b"].reshape(1, -1).astype(jnp.float32))

    split = params["conv3"]["w"].shape[0]                                    # 128 patch features
    w1 = params["fc1"]["w"].T                                                # (192, 128)
    prep["fc1"] = dict(wa=w1[:split].astype(jnp.bfloat16),                   # patch half
                       wb=w1[split:].astype(jnp.bfloat16),                   # global half
                       b=params["fc1"]["b"].reshape(1, -1).astype(jnp.float32))

    prep["fc2"] = dict(w=params["fc2"]["w"].T.astype(jnp.bfloat16),
                       b=params["fc2"]["b"].reshape(1, -1).astype(jnp.float32))
    return prep


# ----------------------------- forward -----------------------------


def patchnet_forward(params, x_nchw, *, patch_size):
    B, C, H, W = x_nchw.shape
    assert H % patch_size == 0 and W % patch_size == 0
    gp, gq = H // patch_size, W // patch_size
    L = gp * gq

    # nn.Unfold(kernel_size=P, stride=P) + transpose + view -> [B*L, P, P, C] (row-major patch
    # enumeration, identical to PyTorch; NCHW -> NHWC folded into the same transpose).
    p = x_nchw.reshape(B, C, gp, patch_size, gq, patch_size)
    p = jnp.transpose(p, (0, 2, 4, 3, 5, 1)).reshape(B * L, patch_size, patch_size, C)

    # feature_extractor: (conv+BN+ReLU+pool) x2, then conv+BN+ReLU+GAP; Dropout = identity.
    p = conv_block(p, params["conv1"], pool=True)
    p = conv_block(p, params["conv2"], pool=True)
    pf = conv_block(p, params["conv3"], gap=True)               # [B*L, 128] f32

    # global branch (pretrained ResNet50 stand-in -> 64-d; see TODO in init_params).
    g = jnp.transpose(x_nchw, (0, 2, 3, 1))
    g = conv_block(g, params["gconv"], pool=True, gap=True)     # [B, 32] f32

    # fused tail: patch-mean + gfc + concat-free fc1(+ReLU) + fc2 in ONE pallas_call.
    return classifier_tail(pf.reshape(B, L, -1), g, params)     # [B, num_classes]


if __name__ == "__main__":
    key = jax.random.PRNGKey(0)
    pkey, xkey = jax.random.split(key)

    patch_size = 8
    x = jax.random.normal(xkey, (2, 3, 16, 16), jnp.float32)    # NCHW, like PyTorch
    params = prepare_params(init_params(pkey, num_classes=4))   # one-time weight prep/folding

    fwd = jax.jit(functools.partial(patchnet_forward, patch_size=patch_size))
    logits = fwd(params, x)
    jax.block_until_ready(logits)

    assert logits.shape == (2, 4), logits.shape
    assert bool(jnp.all(jnp.isfinite(logits)))
    print("KERNEL_OK")
</pallas_src>

<mosaic_0001>
module attributes {stable_mosaic.version = 11 : i64} {
  func.func @_conv3x3_kernel(%arg0: i32, %arg1: memref<4x104x8xbf16, #tpu.memory_space<vmem>>, %arg2: memref<72x32xbf16, #tpu.memory_space<vmem>>, %arg3: memref<1x32xf32, #tpu.memory_space<vmem>>, %arg4: memref<8x1xf32, #tpu.memory_space<vmem>>, %arg5: memref<4x16x32xbf16, #tpu.memory_space<vmem>>) attributes {dimension_semantics = [#tpu.dimension_semantics<parallel>], iteration_bounds = array<i64: 2>, scalar_prefetch = 0 : i64, scratch_operands = 0 : i64, tpu.core_type = #tpu.core_type<tc>, window_params = [{transform_indices = @transform_0, window_bounds = array<i64: 4, 104, 8>}, {pipeline_mode = #tpu.pipeline_mode<synchronous>, transform_indices = @transform_1, window_bounds = array<i64: 72, 32>}, {pipeline_mode = #tpu.pipeline_mode<synchronous>, transform_indices = @transform_2, window_bounds = array<i64: 1, 32>}, {pipeline_mode = #tpu.pipeline_mode<synchronous>, transform_indices = @transform_3, window_bounds = array<i64: 8, 1>}, {transform_indices = @transform_4, window_bounds = array<i64: 4, 16, 32>}]} {
    %c0 = arith.constant 0 : index
    %c0_0 = arith.constant 0 : index
    %c0_1 = arith.constant 0 : index
    %0 = vector.load %arg1[%c0, %c0_0, %c0_1] : memref<4x104x8xbf16, #tpu.memory_space<vmem>>, vector<4x104x8xbf16>
    %1 = vector.extract_strided_slice %0 {offsets = [0, 0, 0], sizes = [4, 80, 8], strides = [1, 1, 1]} : vector<4x104x8xbf16> to vector<4x80x8xbf16>
    %2 = vector.extract_strided_slice %0 {offsets = [0, 1, 0], sizes = [4, 80, 8], strides = [1, 1, 1]} : vector<4x104x8xbf16> to vector<4x80x8xbf16>
    %3 = vector.extract_strided_slice %0 {offsets = [0, 2, 0], sizes = [4, 80, 8], strides = [1, 1, 1]} : vector<4x104x8xbf16> to vector<4x80x8xbf16>
    %4 = vector.extract_strided_slice %0 {offsets = [0, 10, 0], sizes = [4, 80, 8], strides = [1, 1, 1]} : vector<4x104x8xbf16> to vector<4x80x8xbf16>
    %5 = vector.extract_strided_slice %0 {offsets = [0, 11, 0], sizes = [4, 80, 8], strides = [1, 1, 1]} : vector<4x104x8xbf16> to vector<4x80x8xbf16>
    %6 = vector.extract_strided_slice %0 {offsets = [0, 12, 0], sizes = [4, 80, 8], strides = [1, 1, 1]} : vector<4x104x8xbf16> to vector<4x80x8xbf16>
    %7 = vector.extract_strided_slice %0 {offsets = [0, 20, 0], sizes = [4, 80, 8], strides = [1, 1, 1]} : vector<4x104x8xbf16> to vector<4x80x8xbf16>
    %8 = vector.extract_strided_slice %0 {offsets = [0, 21, 0], sizes = [4, 80, 8], strides = [1, 1, 1]} : vector<4x104x8xbf16> to vector<4x80x8xbf16>
    %9 = vector.extract_strided_slice %0 {offsets = [0, 22, 0], sizes = [4, 80, 8], strides = [1, 1, 1]} : vector<4x104x8xbf16> to vector<4x80x8xbf16>
    %10 = tpu.concatenate %1, %2, %3, %4, %5, %6, %7, %8, %9 in 2 : vector<4x80x8xbf16>, vector<4x80x8xbf16>, vector<4x80x8xbf16>, vector<4x80x8xbf16>, vector<4x80x8xbf16>, vector<4x80x8xbf16>, vector<4x80x8xbf16>, vector<4x80x8xbf16>, vector<4x80x8xbf16> -> vector<4x80x72xbf16>
    %11 = vector.shape_cast %10 : vector<4x80x72xbf16> to vector<320x72xbf16>
    %c0_2 = arith.constant 0 : index
    %c0_3 = arith.constant 0 : index
    %12 = vector.load %arg2[%c0_2, %c0_3] : memref<72x32xbf16, #tpu.memory_space<vmem>>, vector<72x32xbf16>
    %cst = arith.constant dense<0.000000e+00> : vector<320x32xf32>
    %13 = tpu.matmul %11, %12, %cst {dimension_numbers = #tpu.dot_dimension_numbers<[1], [0], [0], [1], [0, 0, 1, 1], [], []>} : vector<320x72xbf16>, vector<72x32xbf16>, vector<320x32xf32> -> vector<320x32xf32>
    %c0_4 = arith.constant 0 : index
    %c0_5 = arith.constant 0 : index
    %14 = vector.load %arg3[%c0_4, %c0_5] : memref<1x32xf32, #tpu.memory_space<vmem>>, vector<1x32xf32>
    %15 = vector.broadcast %14 : vector<1x32xf32> to vector<320x32xf32>
    %16 = arith.addf %13, %15 : vector<320x32xf32>
    %cst_6 = arith.constant 0.000000e+00 : f32
    %17 = vector.broadcast %cst_6 : f32 to vector<320x32xf32>
    %18 = arith.maximumf %16, %17 : vector<320x32xf32>
    %19 = vector.shape_cast %18 : vector<320x32xf32> to vector<160x2x32xf32>
    %20 = vector.extract_strided_slice %19 {offsets = [0, 0, 0], sizes = [160, 1, 32], strides = [1, 1, 1]} : vector<160x2x32xf32> to vector<160x1x32xf32>
    %21 = vector.shape_cast %20 : vector<160x1x32xf32> to vector<160x32xf32>
    %22 = vector.extract_strided_slice %19 {offsets = [0, 1, 0], sizes = [160, 1, 32], strides = [1, 1, 1]} : vector<160x2x32xf32> to vector<160x1x32xf32>
    %23 = vector.shape_cast %22 : vector<160x1x32xf32> to vector<160x32xf32>
    %24 = arith.maximumf %21, %23 : vector<160x32xf32>
    %25 = vector.shape_cast %24 : vector<160x32xf32> to vector<16x2x5x32xf32>
    %26 = vector.extract_strided_slice %25 {offsets = [0, 0, 0, 0], sizes = [16, 1, 5, 32], strides = [1, 1, 1, 1]} : vector<16x2x5x32xf32> to vector<16x1x5x32xf32>
    %27 = vector.shape_cast %26 : vector<16x1x5x32xf32> to vector<16x5x32xf32>
    %28 = vector.extract_strided_slice %25 {offsets = [0, 1, 0, 0], sizes = [16, 1, 5, 32], strides = [1, 1, 1, 1]} : vector<16x2x5x32xf32> to vector<16x1x5x32xf32>
    %29 = vector.shape_cast %28 : vector<16x1x5x32xf32> to vector<16x5x32xf32>
    %30 = arith.maximumf %27, %29 : vector<16x5x32xf32>
    %31 = vector.extract_strided_slice %30 {offsets = [0, 0, 0], sizes = [16, 4, 32], strides = [1, 1, 1]} : vector<16x5x32xf32> to vector<16x4x32xf32>
    %32 = vector.shape_cast %31 : vector<16x4x32xf32> to vector<4x16x32xf32>
    %33 = arith.truncf %32 : vector<4x16x32xf32> to vector<4x16x32xbf16>
    %c0_7 = arith.constant 0 : index
    %c0_8 = arith.constant 0 : index
    %c0_9 = arith.constant 0 : index
    %34 = vector.load %arg5[%c0_7, %c0_8, %c0_9] : memref<4x16x32xbf16, #tpu.memory_space<vmem>>, vector<4x16x32xbf16>
    tpu.vector_store %arg5[%c0_7, %c0_8, %c0_9], %33 {strides = array<i32>} : memref<4x16x32xbf16, #tpu.memory_space<vmem>>, vector<4x16x32xbf16>,
    return
  }
  func.func @transform_0(%arg0: i32) -> (i32, i32, i32) {
    %c0_i32 = arith.constant 0 : i32
    %c0_i32_0 = arith.constant 0 : i32
    %c0_i32_1 = arith.constant 0 : i32
    return %arg0, %c0_i32, %c0_i32_0 : i32, i32, i32
  }
  func.func @transform_1(%arg0: i32) -> (i32, i32) {
    %c0_i32 = arith.constant 0 : i32
    %c0_i32_0 = arith.constant 0 : i32
    %c0_i32_1 = arith.constant 0 : i32
    return %c0_i32, %c0_i32_0 : i32, i32
  }
  func.func @transform_2(%arg0: i32) -> (i32, i32) {
    %c0_i32 = arith.constant 0 : i32
    %c0_i32_0 = arith.constant 0 : i32
    %c0_i32_1 = arith.constant 0 : i32
    return %c0_i32, %c0_i32_0 : i32, i32
  }
  func.func @transform_3(%arg0: i32) -> (i32, i32) {
    %c0_i32 = arith.constant 0 : i32
    %c0_i32_0 = arith.constant 0 : i32
    %c0_i32_1 = arith.constant 0 : i32
    return %c0_i32, %c0_i32_0 : i32, i32
  }
  func.func @transform_4(%arg0: i32) -> (i32, i32, i32) {
    %c0_i32 = arith.constant 0 : i32
    %c0_i32_0 = arith.constant 0 : i32
    %c0_i32_1 = arith.constant 0 : i32
    return %arg0, %c0_i32, %c0_i32_0 : i32, i32, i32
  }
}

module attributes {stable_mosaic.version = 11 : i64} {
  func.func @_conv3x3_kernel(%arg0: i32, %arg1: memref<4x40x32xbf16, #tpu.memory_space<vmem>>, %arg2: memref<288x64xbf16, #tpu.memory_space<vmem>>, %arg3: memref<1x64xf32, #tpu.memory_space<vmem>>, %arg4: memref<8x1xf32, #tpu.memory_space<vmem>>, %arg5: memref<4x4x64xbf16, #tpu.memory_space<vmem>>) attributes {dimension_semantics = [#tpu.dimension_semantics<parallel>], iteration_bounds = array<i64: 2>, scalar_prefetch = 0 : i64, scratch_operands = 0 : i64, tpu.core_type = #tpu.core_type<tc>, window_params = [{transform_indices = @transform_0, window_bounds = array<i64: 4, 40, 32>}, {pipeline_mode = #tpu.pipeline_mode<synchronous>, transform_indices = @transform_1, window_bounds = array<i64: 288, 64>}, {pipeline_mode = #tpu.pipeline_mode<synchronous>, transform_indices = @transform_2, window_bounds = array<i64: 1, 64>}, {pipeline_mode = #tpu.pipeline_mode<synchronous>, transform_indices = @transform_3, window_bounds = array<i64: 8, 1>}, {transform_indices = @transform_4, window_bounds = array<i64: 4, 4, 64>}]} {
    %c0 = arith.constant 0 : index
    %c0_0 = arith.constant 0 : index
    %c0_1 = arith.constant 0 : index
    %0 = vector.load %arg1[%c0, %c0_0, %c0_1] : memref<4x40x32xbf16, #tpu.memory_space<vmem>>, vector<4x40x32xbf16>
    %1 = vector.extract_strided_slice %0 {offsets = [0, 0, 0], sizes = [4, 24, 32], strides = [1, 1, 1]} : vector<4x40x32xbf16> to vector<4x24x32xbf16>
    %2 = vector.extract_strided_slice %0 {offsets = [0, 1, 0], sizes = [4, 24, 32], strides = [1, 1, 1]} : vector<4x40x32xbf16> to vector<4x24x32xbf16>
    %3 = vector.extract_strided_slice %0 {offsets = [0, 2, 0], sizes = [4, 24, 32], strides = [1, 1, 1]} : vector<4x40x32xbf16> to vector<4x24x32xbf16>
    %4 = vector.extract_strided_slice %0 {offsets = [0, 6, 0], sizes = [4, 24, 32], strides = [1, 1, 1]} : vector<4x40x32xbf16> to vector<4x24x32xbf16>
    %5 = vector.extract_strided_slice %0 {offsets = [0, 7, 0], sizes = [4, 24, 32], strides = [1, 1, 1]} : vector<4x40x32xbf16> to vector<4x24x32xbf16>
    %6 = vector.extract_strided_slice %0 {offsets = [0, 8, 0], sizes = [4, 24, 32], strides = [1, 1, 1]} : vector<4x40x32xbf16> to vector<4x24x32xbf16>
    %7 = vector.extract_strided_slice %0 {offsets = [0, 12, 0], sizes = [4, 24, 32], strides = [1, 1, 1]} : vector<4x40x32xbf16> to vector<4x24x32xbf16>
    %8 = vector.extract_strided_slice %0 {offsets = [0, 13, 0], sizes = [4, 24, 32], strides = [1, 1, 1]} : vector<4x40x32xbf16> to vector<4x24x32xbf16>
    %9 = vector.extract_strided_slice %0 {offsets = [0, 14, 0], sizes = [4, 24, 32], strides = [1, 1, 1]} : vector<4x40x32xbf16> to vector<4x24x32xbf16>
    %10 = tpu.concatenate %1, %2, %3, %4, %5, %6, %7, %8, %9 in 2 : vector<4x24x32xbf16>, vector<4x24x32xbf16>, vector<4x24x32xbf16>, vector<4x24x32xbf16>, vector<4x24x32xbf16>, vector<4x24x32xbf16>, vector<4x24x32xbf16>, vector<4x24x32xbf16>, vector<4x24x32xbf16> -> vector<4x24x288xbf16>
    %11 = vector.shape_cast %10 : vector<4x24x288xbf16> to vector<96x288xbf16>
    %c0_2 = arith.constant 0 : index
    %c0_3 = arith.constant 0 : index
    %12 = vector.load %arg2[%c0_2, %c0_3] : memref<288x64xbf16, #tpu.memory_space<vmem>>, vector<288x64xbf16>
    %cst = arith.constant dense<0.000000e+00> : vector<96x64xf32>
    %13 = tpu.matmul %11, %12, %cst {dimension_numbers = #tpu.dot_dimension_numbers<[1], [0], [0], [1], [0, 0, 1, 1], [], []>} : vector<96x288xbf16>, vector<288x64xbf16>, vector<96x64xf32> -> vector<96x64xf32>
    %c0_4 = arith.constant 0 : index
    %c0_5 = arith.constant 0 : index
    %14 = vector.load %arg3[%c0_4, %c0_5] : memref<1x64xf32, #tpu.memory_space<vmem>>, vector<1x64xf32>
    %15 = vector.broadcast %14 : vector<1x64xf32> to vector<96x64xf32>
    %16 = arith.addf %13, %15 : vector<96x64xf32>
    %cst_6 = arith.constant 0.000000e+00 : f32
    %17 = vector.broadcast %cst_6 : f32 to vector<96x64xf32>
    %18 = arith.maximumf %16, %17 : vector<96x64xf32>
    %19 = vector.shape_cast %18 : vector<96x64xf32> to vector<48x2x64xf32>
    %20 = vector.extract_strided_slice %19 {offsets = [0, 0, 0], sizes = [48, 1, 64], strides = [1, 1, 1]} : vector<48x2x64xf32> to vector<48x1x64xf32>
    %21 = vector.shape_cast %20 : vector<48x1x64xf32> to vector<48x64xf32>
    %22 = vector.extract_strided_slice %19 {offsets = [0, 1, 0], sizes = [48, 1, 64], strides = [1, 1, 1]} : vector<48x2x64xf32> to vector<48x1x64xf32>
    %23 = vector.shape_cast %22 : vector<48x1x64xf32> to vector<48x64xf32>
    %24 = arith.maximumf %21, %23 : vector<48x64xf32>
    %25 = vector.shape_cast %24 : vector<48x64xf32> to vector<8x2x3x64xf32>
    %26 = vector.extract_strided_slice %25 {offsets = [0, 0, 0, 0], sizes = [8, 1, 3, 64], strides = [1, 1, 1, 1]} : vector<8x2x3x64xf32> to vector<8x1x3x64xf32>
    %27 = vector.shape_cast %26 : vector<8x1x3x64xf32> to vector<8x3x64xf32>
    %28 = vector.extract_strided_slice %25 {offsets = [0, 1, 0, 0], sizes = [8, 1, 3, 64], strides = [1, 1, 1, 1]} : vector<8x2x3x64xf32> to vector<8x1x3x64xf32>
    %29 = vector.shape_cast %28 : vector<8x1x3x64xf32> to vector<8x3x64xf32>
    %30 = arith.maximumf %27, %29 : vector<8x3x64xf32>
    %31 = vector.extract_strided_slice %30 {offsets = [0, 0, 0], sizes = [8, 2, 64], strides = [1, 1, 1]} : vector<8x3x64xf32> to vector<8x2x64xf32>
    %32 = vector.shape_cast %31 : vector<8x2x64xf32> to vector<4x4x64xf32>
    %33 = arith.truncf %32 : vector<4x4x64xf32> to vector<4x4x64xbf16>
    %c0_7 = arith.constant 0 : index
    %c0_8 = arith.constant 0 : index
    %c0_9 = arith.constant 0 : index
    %34 = vector.load %arg5[%c0_7, %c0_8, %c0_9] : memref<4x4x64xbf16, #tpu.memory_space<vmem>>, vector<4x4x64xbf16>
    tpu.vector_store %arg5[%c0_7, %c0_8, %c0_9], %33 {strides = array<i32>} : memref<4x4x64xbf16, #tpu.memory_space<vmem>>, vector<4x4x64xbf16>,
    return
  }
  func.func @transform_0(%arg0: i32) -> (i32, i32, i32) {
    %c0_i32 = arith.constant 0 : i32
    %c0_i32_0 = arith.constant 0 : i32
    %c0_i32_1 = arith.constant 0 : i32
    return %arg0, %c0_i32, %c0_i32_0 : i32, i32, i32
  }
  func.func @transform_1(%arg0: i32) -> (i32, i32) {
    %c0_i32 = arith.constant 0 : i32
    %c0_i32_0 = arith.constant 0 : i32
    %c0_i32_1 = arith.constant 0 : i32
    return %c0_i32, %c0_i32_0 : i32, i32
  }
  func.func @transform_2(%arg0: i32) -> (i32, i32) {
    %c0_i32 = arith.constant 0 : i32
    %c0_i32_0 = arith.constant 0 : i32
    %c0_i32_1 = arith.constant 0 : i32
    return %c0_i32, %c0_i32_0 : i32, i32
  }
  func.func @transform_3(%arg0: i32) -> (i32, i32) {
    %c0_i32 = arith.constant 0 : i32
    %c0_i32_0 = arith.constant 0 : i32
    %c0_i32_1 = arith.constant 0 : i32
    return %c0_i32, %c0_i32_0 : i32, i32
  }
  func.func @transform_4(%arg0: i32) -> (i32, i32, i32) {
    %c0_i32 = arith.constant 0 : i32
    %c0_i32_0 = arith.constant 0 : i32
    %c0_i32_1 = arith.constant 0 : i32
    return %arg0, %c0_i32, %c0_i32_0 : i32, i32, i32
  }
}

module attributes {stable_mosaic.version = 11 : i64} {
  func.func @_conv3x3_kernel(%arg0: i32, %arg1: memref<4x24x64xbf16, #tpu.memory_space<vmem>>, %arg2: memref<576x128xbf16, #tpu.memory_space<vmem>>, %arg3: memref<1x128xf32, #tpu.memory_space<vmem>>, %arg4: memref<8x1xf32, #tpu.memory_space<vmem>>, %arg5: memref<4x1x128xf32, #tpu.memory_space<vmem>>) attributes {dimension_semantics = [#tpu.dimension_semantics<parallel>], iteration_bounds = array<i64: 2>, scalar_prefetch = 0 : i64, scratch_operands = 0 : i64, tpu.core_type = #tpu.core_type<tc>, window_params = [{transform_indices = @transform_0, window_bounds = array<i64: 4, 24, 64>}, {pipeline_mode = #tpu.pipeline_mode<synchronous>, transform_indices = @transform_1, window_bounds = array<i64: 576, 128>}, {pipeline_mode = #tpu.pipeline_mode<synchronous>, transform_indices = @transform_2, window_bounds = array<i64: 1, 128>}, {pipeline_mode = #tpu.pipeline_mode<synchronous>, transform_indices = @transform_3, window_bounds = array<i64: 8, 1>}, {transform_indices = @transform_4, window_bounds = array<i64: 4, 1, 128>}]} {
    %c0 = arith.constant 0 : index
    %c0_0 = arith.constant 0 : index
    %c0_1 = arith.constant 0 : index
    %0 = vector.load %arg1[%c0, %c0_0, %c0_1] : memref<4x24x64xbf16, #tpu.memory_space<vmem>>, vector<4x24x64xbf16>
    %1 = vector.extract_strided_slice %0 {offsets = [0, 0, 0], sizes = [4, 8, 64], strides = [1, 1, 1]} : vector<4x24x64xbf16> to vector<4x8x64xbf16>
    %2 = vector.extract_strided_slice %0 {offsets = [0, 1, 0], sizes = [4, 8, 64], strides = [1, 1, 1]} : vector<4x24x64xbf16> to vector<4x8x64xbf16>
    %3 = vector.extract_strided_slice %0 {offsets = [0, 2, 0], sizes = [4, 8, 64], strides = [1, 1, 1]} : vector<4x24x64xbf16> to vector<4x8x64xbf16>
    %4 = vector.extract_strided_slice %0 {offsets = [0, 4, 0], sizes = [4, 8, 64], strides = [1, 1, 1]} : vector<4x24x64xbf16> to vector<4x8x64xbf16>
    %5 = vector.extract_strided_slice %0 {offsets = [0, 5, 0], sizes = [4, 8, 64], strides = [1, 1, 1]} : vector<4x24x64xbf16> to vector<4x8x64xbf16>
    %6 = vector.extract_strided_slice %0 {offsets = [0, 6, 0], sizes = [4, 8, 64], strides = [1, 1, 1]} : vector<4x24x64xbf16> to vector<4x8x64xbf16>
    %7 = vector.extract_strided_slice %0 {offsets = [0, 8, 0], sizes = [4, 8, 64], strides = [1, 1, 1]} : vector<4x24x64xbf16> to vector<4x8x64xbf16>
    %8 = vector.extract_strided_slice %0 {offsets = [0, 9, 0], sizes = [4, 8, 64], strides = [1, 1, 1]} : vector<4x24x64xbf16> to vector<4x8x64xbf16>
    %9 = vector.extract_strided_slice %0 {offsets = [0, 10, 0], sizes = [4, 8, 64], strides = [1, 1, 1]} : vector<4x24x64xbf16> to vector<4x8x64xbf16>
    %10 = tpu.concatenate %1, %2, %3, %4, %5, %6, %7, %8, %9 in 2 : vector<4x8x64xbf16>, vector<4x8x64xbf16>, vector<4x8x64xbf16>, vector<4x8x64xbf16>, vector<4x8x64xbf16>, vector<4x8x64xbf16>, vector<4x8x64xbf16>, vector<4x8x64xbf16>, vector<4x8x64xbf16> -> vector<4x8x576xbf16>
    %11 = vector.shape_cast %10 : vector<4x8x576xbf16> to vector<32x576xbf16>
    %c0_2 = arith.constant 0 : index
    %c0_3 = arith.constant 0 : index
    %12 = vector.load %arg2[%c0_2, %c0_3] : memref<576x128xbf16, #tpu.memory_space<vmem>>, vector<576x128xbf16>
    %cst = arith.constant dense<0.000000e+00> : vector<32x128xf32>
    %13 = tpu.matmul %11, %12, %cst {dimension_numbers = #tpu.dot_dimension_numbers<[1], [0], [0], [1], [0, 0, 1, 1], [], []>} : vector<32x576xbf16>, vector<576x128xbf16>, vector<32x128xf32> -> vector<32x128xf32>
    %c0_4 = arith.constant 0 : index
    %c0_5 = arith.constant 0 : index
    %14 = vector.load %arg3[%c0_4, %c0_5] : memref<1x128xf32, #tpu.memory_space<vmem>>, vector<1x128xf32>
    %15 = vector.broadcast %14 : vector<1x128xf32> to vector<32x128xf32>
    %16 = arith.addf %13, %15 : vector<32x128xf32>
    %cst_6 = arith.constant 0.000000e+00 : f32
    %17 = vector.broadcast %cst_6 : f32 to vector<32x128xf32>
    %18 = arith.maximumf %16, %17 : vector<32x128xf32>
    %19 = vector.shape_cast %18 : vector<32x128xf32> to vector<4x8x128xf32>
    %c0_7 = arith.constant 0 : index
    %c0_8 = arith.constant 0 : index
    %20 = vector.load %arg4[%c0_7, %c0_8] : memref<8x1xf32, #tpu.memory_space<vmem>>, vector<8x1xf32>
    %21 = vector.shape_cast %20 : vector<8x1xf32> to vector<1x8x1xf32>
    %22 = vector.broadcast %21 : vector<1x8x1xf32> to vector<4x8x128xf32>
    %23 = arith.mulf %19, %22 : vector<4x8x128xf32>
    %cst_9 = arith.constant dense<0.000000e+00> : vector<4x128xf32>
    %24 = vector.multi_reduction <add>, %23, %cst_9 [1] : vector<4x8x128xf32> to vector<4x128xf32>
    %25 = vector.shape_cast %24 : vector<4x128xf32> to vector<4x1x128xf32>
    %c0_10 = arith.constant 0 : index
    %c0_11 = arith.constant 0 : index
    %c0_12 = arith.constant 0 : index
    %26 = vector.load %arg5[%c0_10, %c0_11, %c0_12] : memref<4x1x128xf32, #tpu.memory_space<vmem>>, vector<4x1x128xf32>
    tpu.vector_store %arg5[%c0_10, %c0_11, %c0_12], %25 {strides = array<i32>} : memref<4x1x128xf32, #tpu.memory_space<vmem>>, vector<4x1x128xf32>,
    return
  }
  func.func @transform_0(%arg0: i32) -> (i32, i32, i32) {
    %c0_i32 = arith.constant 0 : i32
    %c0_i32_0 = arith.constant 0 : i32
    %c0_i32_1 = arith.constant 0 : i32
    return %arg0, %c0_i32, %c0_i32_0 : i32, i32, i32
  }
  func.func @transform_1(%arg0: i32) -> (i32, i32) {
    %c0_i32 = arith.constant 0 : i32
    %c0_i32_0 = arith.constant 0 : i32
    %c0_i32_1 = arith.constant 0 : i32
    return %c0_i32, %c0_i32_0 : i32, i32
  }
  func.func @transform_2(%arg0: i32) -> (i32, i32) {
    %c0_i32 = arith.constant 0 : i32
    %c0_i32_0 = arith.constant 0 : i32
    %c0_i32_1 = arith.constant 0 : i32
    return %c0_i32, %c0_i32_0 : i32, i32
  }
  func.func @transform_3(%arg0: i32) -> (i32, i32) {
    %c0_i32 = arith.constant 0 : i32
    %c0_i32_0 = arith.constant 0 : i32
    %c0_i32_1 = arith.constant 0 : i32
    return %c0_i32, %c0_i32_0 : i32, i32
  }
  func.func @transform_4(%arg0: i32) -> (i32, i32, i32) {
    %c0_i32 = arith.constant 0 : i32
    %c0_i32_0 = arith.constant 0 : i32
    %c0_i32_1 = arith.constant 0 : i32
    return %arg0, %c0_i32, %c0_i32_0 : i32, i32, i32
  }
}

module attributes {stable_mosaic.version = 11 : i64} {
  func.func @_conv3x3_kernel(%arg0: i32, %arg1: memref<1x328x8xbf16, #tpu.memory_space<vmem>>, %arg2: memref<72x32xbf16, #tpu.memory_space<vmem>>, %arg3: memref<1x32xf32, #tpu.memory_space<vmem>>, %arg4: memref<8x1xf32, #tpu.memory_space<vmem>>, %arg5: memref<1x1x32xf32, #tpu.memory_space<vmem>>) attributes {dimension_semantics = [#tpu.dimension_semantics<parallel>], iteration_bounds = array<i64: 2>, scalar_prefetch = 0 : i64, scratch_operands = 0 : i64, tpu.core_type = #tpu.core_type<tc>, window_params = [{transform_indices = @transform_0, window_bounds = array<i64: 1, 328, 8>}, {pipeline_mode = #tpu.pipeline_mode<synchronous>, transform_indices = @transform_1, window_bounds = array<i64: 72, 32>}, {pipeline_mode = #tpu.pipeline_mode<synchronous>, transform_indices = @transform_2, window_bounds = array<i64: 1, 32>}, {pipeline_mode = #tpu.pipeline_mode<synchronous>, transform_indices = @transform_3, window_bounds = array<i64: 8, 1>}, {transform_indices = @transform_4, window_bounds = array<i64: 1, 1, 32>}]} {
    %c0 = arith.constant 0 : index
    %c0_0 = arith.constant 0 : index
    %c0_1 = arith.constant 0 : index
    %0 = vector.load %arg1[%c0, %c0_0, %c0_1] : memref<1x328x8xbf16, #tpu.memory_space<vmem>>, vector<1x328x8xbf16>
    %1 = vector.extract_strided_slice %0 {offsets = [0, 0, 0], sizes = [1, 288, 8], strides = [1, 1, 1]} : vector<1x328x8xbf16> to vector<1x288x8xbf16>
    %2 = vector.extract_strided_slice %0 {offsets = [0, 1, 0], sizes = [1, 288, 8], strides = [1, 1, 1]} : vector<1x328x8xbf16> to vector<1x288x8xbf16>
    %3 = vector.extract_strided_slice %0 {offsets = [0, 2, 0], sizes = [1, 288, 8], strides = [1, 1, 1]} : vector<1x328x8xbf16> to vector<1x288x8xbf16>
    %4 = vector.extract_strided_slice %0 {offsets = [0, 18, 0], sizes = [1, 288, 8], strides = [1, 1, 1]} : vector<1x328x8xbf16> to vector<1x288x8xbf16>
    %5 = vector.extract_strided_slice %0 {offsets = [0, 19, 0], sizes = [1, 288, 8], strides = [1, 1, 1]} : vector<1x328x8xbf16> to vector<1x288x8xbf16>
    %6 = vector.extract_strided_slice %0 {offsets = [0, 20, 0], sizes = [1, 288, 8], strides = [1, 1, 1]} : vector<1x328x8xbf16> to vector<1x288x8xbf16>
    %7 = vector.extract_strided_slice %0 {offsets = [0, 36, 0], sizes = [1, 288, 8], strides = [1, 1, 1]} : vector<1x328x8xbf16> to vector<1x288x8xbf16>
    %8 = vector.extract_strided_slice %0 {offsets = [0, 37, 0], sizes = [1, 288, 8], strides = [1, 1, 1]} : vector<1x328x8xbf16> to vector<1x288x8xbf16>
    %9 = vector.extract_strided_slice %0 {offsets = [0, 38, 0], sizes = [1, 288, 8], strides = [1, 1, 1]} : vector<1x328x8xbf16> to vector<1x288x8xbf16>
    %10 = tpu.concatenate %1, %2, %3, %4, %5, %6, %7, %8, %9 in 2 : vector<1x288x8xbf16>, vector<1x288x8xbf16>, vector<1x288x8xbf16>, vector<1x288x8xbf16>, vector<1x288x8xbf16>, vector<1x288x8xbf16>, vector<1x288x8xbf16>, vector<1x288x8xbf16>, vector<1x288x8xbf16> -> vector<1x288x72xbf16>
    %11 = vector.shape_cast %10 : vector<1x288x72xbf16> to vector<288x72xbf16>
    %c0_2 = arith.constant 0 : index
    %c0_3 = arith.constant 0 : index
    %12 = vector.load %arg2[%c0_2, %c0_3] : memref<72x32xbf16, #tpu.memory_space<vmem>>, vector<72x32xbf16>
    %cst = arith.constant dense<0.000000e+00> : vector<288x32xf32>
    %13 = tpu.matmul %11, %12, %cst {dimension_numbers = #tpu.dot_dimension_numbers<[1], [0], [0], [1], [0, 0, 1, 1], [], []>} : vector<288x72xbf16>, vector<72x32xbf16>, vector<288x32xf32> -> vector<288x32xf32>
    %c0_4 = arith.constant 0 : index
    %c0_5 = arith.constant 0 : index
    %14 = vector.load %arg3[%c0_4, %c0_5] : memref<1x32xf32, #tpu.memory_space<vmem>>, vector<1x32xf32>
    %15 = vector.broadcast %14 : vector<1x32xf32> to vector<288x32xf32>
    %16 = arith.addf %13, %15 : vector<288x32xf32>
    %cst_6 = arith.constant 0.000000e+00 : f32
    %17 = vector.broadcast %cst_6 : f32 to vector<288x32xf32>
    %18 = arith.maximumf %16, %17 : vector<288x32xf32>
    %19 = vector.shape_cast %18 : vector<288x32xf32> to vector<144x2x32xf32>
    %20 = vector.extract_strided_slice %19 {offsets = [0, 0, 0], sizes = [144, 1, 32], strides = [1, 1, 1]} : vector<144x2x32xf32> to vector<144x1x32xf32>
    %21 = vector.shape_cast %20 : vector<144x1x32xf32> to vector<144x32xf32>
    %22 = vector.extract_strided_slice %19 {offsets = [0, 1, 0], sizes = [144, 1, 32], strides = [1, 1, 1]} : vector<144x2x32xf32> to vector<144x1x32xf32>
    %23 = vector.shape_cast %22 : vector<144x1x32xf32> to vector<144x32xf32>
    %24 = arith.maximumf %21, %23 : vector<144x32xf32>
    %25 = vector.shape_cast %24 : vector<144x32xf32> to vector<8x2x9x32xf32>
    %26 = vector.extract_strided_slice %25 {offsets = [0, 0, 0, 0], sizes = [8, 1, 9, 32], strides = [1, 1, 1, 1]} : vector<8x2x9x32xf32> to vector<8x1x9x32xf32>
    %27 = vector.shape_cast %26 : vector<8x1x9x32xf32> to vector<8x9x32xf32>
    %28 = vector.extract_strided_slice %25 {offsets = [0, 1, 0, 0], sizes = [8, 1, 9, 32], strides = [1, 1, 1, 1]} : vector<8x2x9x32xf32> to vector<8x1x9x32xf32>
    %29 = vector.shape_cast %28 : vector<8x1x9x32xf32> to vector<8x9x32xf32>
    %30 = arith.maximumf %27, %29 : vector<8x9x32xf32>
    %31 = vector.extract_strided_slice %30 {offsets = [0, 0, 0], sizes = [8, 8, 32], strides = [1, 1, 1]} : vector<8x9x32xf32> to vector<8x8x32xf32>
    %32 = vector.shape_cast %31 : vector<8x8x32xf32> to vector<1x64x32xf32>
    %cst_7 = arith.constant dense<0.000000e+00> : vector<1x32xf32>
    %33 = vector.multi_reduction <add>, %32, %cst_7 [1] : vector<1x64x32xf32> to vector<1x32xf32>
    %34 = vector.shape_cast %33 : vector<1x32xf32> to vector<1x1x32xf32>
    %cst_8 = arith.constant 6.400000e+01 : f32
    %35 = vector.broadcast %cst_8 : f32 to vector<1x1x32xf32>
    %36 = arith.divf %34, %35 : vector<1x1x32xf32>
    %c0_9 = arith.constant 0 : index
    %c0_10 = arith.constant 0 : index
    %c0_11 = arith.constant 0 : index
    %37 = vector.load %arg5[%c0_9, %c0_10, %c0_11] : memref<1x1x32xf32, #tpu.memory_space<vmem>>, vector<1x1x32xf32>
    tpu.vector_store %arg5[%c0_9, %c0_10, %c0_11], %36 {strides = array<i32>} : memref<1x1x32xf32, #tpu.memory_space<vmem>>, vector<1x1x32xf32>,
    return
  }
  func.func @transform_0(%arg0: i32) -> (i32, i32, i32) {
    %c0_i32 = arith.constant 0 : i32
    %c0_i32_0 = arith.constant 0 : i32
    %c0_i32_1 = arith.constant 0 : i32
    return %arg0, %c0_i32, %c0_i32_0 : i32, i32, i32
  }
  func.func @transform_1(%arg0: i32) -> (i32, i32) {
    %c0_i32 = arith.constant 0 : i32
    %c0_i32_0 = arith.constant 0 : i32
    %c0_i32_1 = arith.constant 0 : i32
    return %c0_i32, %c0_i32_0 : i32, i32
  }
  func.func @transform_2(%arg0: i32) -> (i32, i32) {
    %c0_i32 = arith.constant 0 : i32
    %c0_i32_0 = arith.constant 0 : i32
    %c0_i32_1 = arith.constant 0 : i32
    return %c0_i32, %c0_i32_0 : i32, i32
  }
  func.func @transform_3(%arg0: i32) -> (i32, i32) {
    %c0_i32 = arith.constant 0 : i32
    %c0_i32_0 = arith.constant 0 : i32
    %c0_i32_1 = arith.constant 0 : i32
    return %c0_i32, %c0_i32_0 : i32, i32
  }
  func.func @transform_4(%arg0: i32) -> (i32, i32, i32) {
    %c0_i32 = arith.constant 0 : i32
    %c0_i32_0 = arith.constant 0 : i32
    %c0_i32_1 = arith.constant 0 : i32
    return %arg0, %c0_i32, %c0_i32_0 : i32, i32, i32
  }
}

module attributes {stable_mosaic.version = 11 : i64} {
  func.func @_tail_kernel(%arg0: i32, %arg1: memref<2x4x128xf32, #tpu.memory_space<vmem>>, %arg2: memref<2x32xf32, #tpu.memory_space<vmem>>, %arg3: memref<32x64xbf16, #tpu.memory_space<vmem>>, %arg4: memref<1x64xf32, #tpu.memory_space<vmem>>, %arg5: memref<128x128xbf16, #tpu.memory_space<vmem>>, %arg6: memref<64x128xbf16, #tpu.memory_space<vmem>>, %arg7: memref<1x128xf32, #tpu.memory_space<vmem>>, %arg8: memref<128x4xbf16, #tpu.memory_space<vmem>>, %arg9: memref<1x4xf32, #tpu.memory_space<vmem>>, %arg10: memref<2x4xf32, #tpu.memory_space<vmem>>) attributes {dimension_semantics = [#tpu.dimension_semantics<arbitrary>], iteration_bounds = array<i64: 1>, scalar_prefetch = 0 : i64, scratch_operands = 0 : i64, tpu.core_type = #tpu.core_type<tc>, window_params = [{pipeline_mode = #tpu.pipeline_mode<synchronous>, transform_indices = @transform_0, window_bounds = array<i64: 2, 4, 128>}, {pipeline_mode = #tpu.pipeline_mode<synchronous>, transform_indices = @transform_1, window_bounds = array<i64: 2, 32>}, {pipeline_mode = #tpu.pipeline_mode<synchronous>, transform_indices = @transform_2, window_bounds = array<i64: 32, 64>}, {pipeline_mode = #tpu.pipeline_mode<synchronous>, transform_indices = @transform_3, window_bounds = array<i64: 1, 64>}, {pipeline_mode = #tpu.pipeline_mode<synchronous>, transform_indices = @transform_4, window_bounds = array<i64: 128, 128>}, {pipeline_mode = #tpu.pipeline_mode<synchronous>, transform_indices = @transform_5, window_bounds = array<i64: 64, 128>}, {pipeline_mode = #tpu.pipeline_mode<synchronous>, transform_indices = @transform_6, window_bounds = array<i64: 1, 128>}, {pipeline_mode = #tpu.pipeline_mode<synchronous>, transform_indices = @transform_7, window_bounds = array<i64: 128, 4>}, {pipeline_mode = #tpu.pipeline_mode<synchronous>, transform_indices = @transform_8, window_bounds = array<i64: 1, 4>}, {pipeline_mode = #tpu.pipeline_mode<synchronous>, transform_indices = @transform_9, window_bounds = array<i64: 2, 4>}]} {
    %c0 = arith.constant 0 : index
    %c0_0 = arith.constant 0 : index
    %c0_1 = arith.constant 0 : index
    %0 = vector.load %arg1[%c0, %c0_0, %c0_1] : memref<2x4x128xf32, #tpu.memory_space<vmem>>, vector<2x4x128xf32>
    %cst = arith.constant dense<0.000000e+00> : vector<2x128xf32>
    %1 = vector.multi_reduction <add>, %0, %cst [1] : vector<2x4x128xf32> to vector<2x128xf32>
    %cst_2 = arith.constant 4.000000e+00 : f32
    %2 = vector.broadcast %cst_2 : f32 to vector<2x128xf32>
    %3 = arith.divf %1, %2 : vector<2x128xf32>
    %c0_3 = arith.constant 0 : index
    %c0_4 = arith.constant 0 : index
    %4 = vector.load %arg2[%c0_3, %c0_4] : memref<2x32xf32, #tpu.memory_space<vmem>>, vector<2x32xf32>
    %5 = arith.truncf %4 : vector<2x32xf32> to vector<2x32xbf16>
    %c0_5 = arith.constant 0 : index
    %c0_6 = arith.constant 0 : index
    %6 = vector.load %arg3[%c0_5, %c0_6] : memref<32x64xbf16, #tpu.memory_space<vmem>>, vector<32x64xbf16>
    %cst_7 = arith.constant dense<0.000000e+00> : vector<2x64xf32>
    %7 = tpu.matmul %5, %6, %cst_7 {dimension_numbers = #tpu.dot_dimension_numbers<[1], [0], [0], [1], [0, 0, 1, 1], [], []>} : vector<2x32xbf16>, vector<32x64xbf16>, vector<2x64xf32> -> vector<2x64xf32>
    %c0_8 = arith.constant 0 : index
    %c0_9 = arith.constant 0 : index
    %8 = vector.load %arg4[%c0_8, %c0_9] : memref<1x64xf32, #tpu.memory_space<vmem>>, vector<1x64xf32>
    %9 = vector.broadcast %8 : vector<1x64xf32> to vector<2x64xf32>
    %10 = arith.addf %7, %9 : vector<2x64xf32>
    %11 = arith.truncf %3 : vector<2x128xf32> to vector<2x128xbf16>
    %c0_10 = arith.constant 0 : index
    %c0_11 = arith.constant 0 : index
    %12 = vector.load %arg5[%c0_10, %c0_11] : memref<128x128xbf16, #tpu.memory_space<vmem>>, vector<128x128xbf16>
    %cst_12 = arith.constant dense<0.000000e+00> : vector<2x128xf32>
    %13 = tpu.matmul %11, %12, %cst_12 {dimension_numbers = #tpu.dot_dimension_numbers<[1], [0], [0], [1], [0, 0, 1, 1], [], []>} : vector<2x128xbf16>, vector<128x128xbf16>, vector<2x128xf32> -> vector<2x128xf32>
    %14 = arith.truncf %10 : vector<2x64xf32> to vector<2x64xbf16>
    %c0_13 = arith.constant 0 : index
    %c0_14 = arith.constant 0 : index
    %15 = vector.load %arg6[%c0_13, %c0_14] : memref<64x128xbf16, #tpu.memory_space<vmem>>, vector<64x128xbf16>
    %cst_15 = arith.constant dense<0.000000e+00> : vector<2x128xf32>
    %16 = tpu.matmul %14, %15, %cst_15 {dimension_numbers = #tpu.dot_dimension_numbers<[1], [0], [0], [1], [0, 0, 1, 1], [], []>} : vector<2x64xbf16>, vector<64x128xbf16>, vector<2x128xf32> -> vector<2x128xf32>
    %17 = arith.addf %13, %16 : vector<2x128xf32>
    %c0_16 = arith.constant 0 : index
    %c0_17 = arith.constant 0 : index
    %18 = vector.load %arg7[%c0_16, %c0_17] : memref<1x128xf32, #tpu.memory_space<vmem>>, vector<1x128xf32>
    %19 = vector.broadcast %18 : vector<1x128xf32> to vector<2x128xf32>
    %20 = arith.addf %17, %19 : vector<2x128xf32>
    %cst_18 = arith.constant 0.000000e+00 : f32
    %21 = vector.broadcast %cst_18 : f32 to vector<2x128xf32>
    %22 = arith.maximumf %20, %21 : vector<2x128xf32>
    %23 = arith.truncf %22 : vector<2x128xf32> to vector<2x128xbf16>
    %c0_19 = arith.constant 0 : index
    %c0_20 = arith.constant 0 : index
    %24 = vector.load %arg8[%c0_19, %c0_20] : memref<128x4xbf16, #tpu.memory_space<vmem>>, vector<128x4xbf16>
    %cst_21 = arith.constant dense<0.000000e+00> : vector<2x4xf32>
    %25 = tpu.matmul %23, %24, %cst_21 {dimension_numbers = #tpu.dot_dimension_numbers<[1], [0], [0], [1], [0, 0, 1, 1], [], []>} : vector<2x128xbf16>, vector<128x4xbf16>, vector<2x4xf32> -> vector<2x4xf32>
    %c0_22 = arith.constant 0 : index
    %c0_23 = arith.constant 0 : index
    %26 = vector.load %arg9[%c0_22, %c0_23] : memref<1x4xf32, #tpu.memory_space<vmem>>, vector<1x4xf32>
    %27 = vector.broadcast %26 : vector<1x4xf32> to vector<2x4xf32>
    %28 = arith.addf %25, %27 : vector<2x4xf32>
    %c0_24 = arith.constant 0 : index
    %c0_25 = arith.constant 0 : index
    %29 = vector.load %arg10[%c0_24, %c0_25] : memref<2x4xf32, #tpu.memory_space<vmem>>, vector<2x4xf32>
    tpu.vector_store %arg10[%c0_24, %c0_25], %28 {strides = array<i32>} : memref<2x4xf32, #tpu.memory_space<vmem>>, vector<2x4xf32>,
    return
  }
  func.func @transform_0(%arg0: i32) -> (i32, i32, i32) {
    %c0_i32 = arith.constant 0 : i32
    %c0_i32_0 = arith.constant 0 : i32
    %c0_i32_1 = arith.constant 0 : i32
    %c0_i32_2 = arith.constant 0 : i32
    return %c0_i32, %c0_i32_0, %c0_i32_1 : i32, i32, i32
  }
  func.func @transform_1(%arg0: i32) -> (i32, i32) {
    %c0_i32 = arith.constant 0 : i32
    %c0_i32_0 = arith.constant 0 : i32
    %c0_i32_1 = arith.constant 0 : i32
    return %c0_i32, %c0_i32_0 : i32, i32
  }
  func.func @transform_2(%arg0: i32) -> (i32, i32) {
    %c0_i32 = arith.constant 0 : i32
    %c0_i32_0 = arith.constant 0 : i32
    %c0_i32_1 = arith.constant 0 : i32
    return %c0_i32, %c0_i32_0 : i32, i32
  }
  func.func @transform_3(%arg0: i32) -> (i32, i32) {
    %c0_i32 = arith.constant 0 : i32
    %c0_i32_0 = arith.constant 0 : i32
    %c0_i32_1 = arith.constant 0 : i32
    return %c0_i32, %c0_i32_0 : i32, i32
  }
  func.func @transform_4(%arg0: i32) -> (i32, i32) {
    %c0_i32 = arith.constant 0 : i32
    %c0_i32_0 = arith.constant 0 : i32
    %c0_i32_1 = arith.constant 0 : i32
    return %c0_i32, %c0_i32_0 : i32, i32
  }
  func.func @transform_5(%arg0: i32) -> (i32, i32) {
    %c0_i32 = arith.constant 0 : i32
    %c0_i32_0 = arith.constant 0 : i32
    %c0_i32_1 = arith.constant 0 : i32
    return %c0_i32, %c0_i32_0 : i32, i32
  }
  func.func @transform_6(%arg0: i32) -> (i32, i32) {
    %c0_i32 = arith.constant 0 : i32
    %c0_i32_0 = arith.constant 0 : i32
    %c0_i32_1 = arith.constant 0 : i32
    return %c0_i32, %c0_i32_0 : i32, i32
  }
  func.func @transform_7(%arg0: i32) -> (i32, i32) {
    %c0_i32 = arith.constant 0 : i32
    %c0_i32_0 = arith.constant 0 : i32
    %c0_i32_1 = arith.constant 0 : i32
    return %c0_i32, %c0_i32_0 : i32, i32
  }
  func.func @transform_8(%arg0: i32) -> (i32, i32) {
    %c0_i32 = arith.constant 0 : i32
    %c0_i32_0 = arith.constant 0 : i32
    %c0_i32_1 = arith.constant 0 : i32
    return %c0_i32, %c0_i32_0 : i32, i32
  }
  func.func @transform_9(%arg0: i32) -> (i32, i32) {
    %c0_i32 = arith.constant 0 : i32
    %c0_i32_0 = arith.constant 0 : i32
    %c0_i32_1 = arith.constant 0 : i32
    return %c0_i32, %c0_i32_0 : i32, i32
  }
}

</mosaic_0001>

<llo_original>
// kernel: patchnet_forward.7
$region0: #{patchnet_forward.7}
  #allocation0 [shape = 'u32[]', space=smem, size = 0x4, offset = 0x4, fixed_abs, tag = 'smem constant byte address 0x4 - core index']
  #allocation1 [shape = 'u32[144,128]{1,0:T(1,128)}', space=vmem, size = 0x12000, scoped, tag = 'internal scratch']
  %s0 = inlined_call_operand.vmem [shape: bf16[8,24,64], index: 0, kind: input, shape index: {}]
  %s1 = inlined_call_operand.vmem [shape: bf16[576,128], index: 1, kind: input, shape index: {}]
  %s2 = inlined_call_operand.vmem [shape: f32[1,128], index: 2, kind: input, shape index: {}]
  %s3 = inlined_call_operand.vmem [shape: f32[8,1], index: 3, kind: input, shape index: {}]
  %s4 = inlined_call_operand.vmem [shape: f32[8,1,128], index: 4, kind: output, shape index: {}]
  %s5 = sld [smem:[#allocation0]]
  $region49: #{patchnet_forward.7} parent=0
    _
  %s7 = ssub.s32 1, %s5
  %s8 = scalar_select 0, %s7, %s5
  loop: start=0, step=1, limit=4
  $region2: #{patchnet_forward.7} parent=0 // loop_pre_header
    _
  $region3: #{patchnet_forward.7} parent=0 // loop_header
    %s10 = sphi 0, %s14
    %p11 = scmp.ge.s32.totalorder %s10, 4
    %s20 = sphi 0, %s22
    %s23 = sphi 0, %s20
    %s24 = sphi 0, %s23
    %s40 = sphi 0, %s24
    %s44 = sphi 0, %s44
    %s46 = sphi 0, %s44
    %s47 = sphi 0, %s46
    %s61 = sphi 0, %s47
    %s65 = sphi 0, %s65
    %s67 = sphi 0, %s65
    %s68 = sphi 0, %s67
    %s82 = sphi 0, %s68
    %s86 = sphi 0, %s86
    %s88 = sphi 0, %s86
    %s89 = sphi 0, %s88
    %s103 = sphi 0, %s89
    %s109 = sphi 0, %s111
    %s112 = sphi 0, %s109
    %s113 = sphi 0, %s112
    %s129 = sphi 0, %s113
  $region4: #{patchnet_forward.7} parent=0 // loop_header_branch
    %13 = sbr.rel (%p11) target = $region8
  $region5: #{patchnet_forward.7} parent=0 // loop_body
    %s15 = ssub.s32 %s10, 1
    %s16 = ssub.s32 %s10, 2
    %s17 = sadd.s32 %s10, 1
    %s18 = ssub.s32 %s10, %s17
    %p19 = scmp.eq.s32.totalorder %s18, 0
    %s21 = sadd.s32 %s20, 1
    %s22 = scalar_select %p19, %s20, %s21
    %p25 = pneg %p19
    %p26 = scmp.eq.s32.totalorder %s10, 1
    %p27 = por %p25, %p26
    %p28 = scmp.ne.s32.totalorder %s20, %s23
    %p29 = scmp.eq.s32.totalorder %s10, 0
    %p30 = por %p28, %p29
    %p31 = scmp.ne.s32.totalorder %s20, %s23
    %p32 = scmp.eq.s32.totalorder %s15, 1
    %p33 = por %p31, %p32
    %p34 = scmp.ne.s32.totalorder %s23, %s24
    %p35 = scmp.eq.s32.totalorder %s15, 0
    %p36 = por %p34, %p35
    %p37 = scmp.ne.s32.totalorder %s23, %s24
    %p38 = scmp.eq.s32.totalorder %s16, 1
    %p39 = por %p37, %p38
    %p41 = scmp.ne.s32.totalorder %s24, %s40
    %p42 = scmp.eq.s32.totalorder %s16, 0
    %p43 = por %p41, %p42
    %s45 = sadd.s32 %s44, 1
    %p48 = scmp.eq.s32.totalorder %s10, 1
    %p49 = scmp.ne.s32.totalorder %s44, %s46
    %p50 = scmp.eq.s32.totalorder %s10, 0
    %p51 = por %p49, %p50
    %p52 = scmp.ne.s32.totalorder %s44, %s46
    %p53 = scmp.eq.s32.totalorder %s15, 1
    %p54 = por %p52, %p53
    %p55 = scmp.ne.s32.totalorder %s46, %s47
    %p56 = scmp.eq.s32.totalorder %s15, 0
    %p57 = por %p55, %p56
    %p58 = scmp.ne.s32.totalorder %s46, %s47
    %p59 = scmp.eq.s32.totalorder %s16, 1
    %p60 = por %p58, %p59
    %p62 = scmp.ne.s32.totalorder %s47, %s61
    %p63 = scmp.eq.s32.totalorder %s16, 0
    %p64 = por %p62, %p63
    %s66 = sadd.s32 %s65, 1
    %p69 = scmp.eq.s32.totalorder %s10, 1
    %p70 = scmp.ne.s32.totalorder %s65, %s67
    %p71 = scmp.eq.s32.totalorder %s10, 0
    %p72 = por %p70, %p71
    %p73 = scmp.ne.s32.totalorder %s65, %s67
    %p74 = scmp.eq.s32.totalorder %s15, 1
    %p75 = por %p73, %p74
    %p76 = scmp.ne.s32.totalorder %s67, %s68
    %p77 = scmp.eq.s32.totalorder %s15, 0
    %p78 = por %p76, %p77
    %p79 = scmp.ne.s32.totalorder %s67, %s68
    %p80 = scmp.eq.s32.totalorder %s16, 1
    %p81 = por %p79, %p80
    %p83 = scmp.ne.s32.totalorder %s68, %s82
    %p84 = scmp.eq.s32.totalorder %s16, 0
    %p85 = por %p83, %p84
    %s87 = sadd.s32 %s86, 1
    %p90 = scmp.eq.s32.totalorder %s10, 1
    %p91 = scmp.ne.s32.totalorder %s86, %s88
    %p92 = scmp.eq.s32.totalorder %s10, 0
    %p93 = por %p91, %p92
    %p94 = scmp.ne.s32.totalorder %s86, %s88
    %p95 = scmp.eq.s32.totalorder %s15, 1
    %p96 = por %p94, %p95
    %p97 = scmp.ne.s32.totalorder %s88, %s89
    %p98 = scmp.eq.s32.totalorder %s15, 0
    %p99 = por %p97, %p98
    %p100 = scmp.ne.s32.totalorder %s88, %s89
    %p101 = scmp.eq.s32.totalorder %s16, 1
    %p102 = por %p100, %p101
    %p104 = scmp.ne.s32.totalorder %s89, %s103
    %p105 = scmp.eq.s32.totalorder %s16, 0
    %p106 = por %p104, %p105
    %s107 = ssub.s32 %s10, %s17
    %p108 = scmp.eq.s32.totalorder %s107, 0
    %s110 = sadd.s32 %s109, 1
    %s111 = scalar_select %p108, %s109, %s110
    %p114 = pneg %p108
    %p115 = scmp.eq.s32.totalorder %s10, 1
    %p116 = por %p114, %p115
    %p117 = scmp.ne.s32.totalorder %s109, %s112
    %p118 = scmp.eq.s32.totalorder %s10, 0
    %p119 = por %p117, %p118
    %p120 = scmp.ne.s32.totalorder %s109, %s112
    %p121 = scmp.eq.s32.totalorder %s15, 1
    %p122 = por %p120, %p121
    %p123 = scmp.ne.s32.totalorder %s112, %s113
    %p124 = scmp.eq.s32.totalorder %s15, 0
    %p125 = por %p123, %p124
    %p126 = scmp.ne.s32.totalorder %s112, %s113
    %p127 = scmp.eq.s32.totalorder %s16, 1
    %p128 = por %p126, %p127
    %p130 = scmp.ne.s32.totalorder %s113, %s129
    %p131 = scmp.eq.s32.totalorder %s16, 0
    %p132 = por %p130, %p131
    %p133 = scmp.le.s32.totalorder 1, %s10
    %p134 = scmp.lt.s32.totalorder %s10, 3
    %p135 = pnand %p133, %p134
    %p136 = pneg %p135
    // Predicated region
    $region9: #{patchnet_forward.7} parent=5 // pred_check
      _
    $region10: #{patchnet_forward.7} parent=5 // pred_check_branch
      %138 = sbr.rel (%p135) target = $region12
    $region11: #{patchnet_forward.7} parent=5 // pred_region
      %s139 = ssub.s32 %s10, 1
      // Predicated region
      $region13: #{patchnet_forward.7} parent=11 // pred_check
        %p140 = pneg %p57
      $region14: #{patchnet_forward.7} parent=11 // pred_check_branch
        %142 = sbr.rel (%p140) target = $region16
      $region15: #{patchnet_forward.7} parent=11 // pred_region
        _
      $region16: #{patchnet_forward.7} parent=11 // pred_fallthru
        _
      // Predicated region
      $region17: #{patchnet_forward.7} parent=11 // pred_check
        %p143 = pneg %p78
      $region18: #{patchnet_forward.7} parent=11 // pred_check_branch
        %145 = sbr.rel (%p143) target = $region20
      $region19: #{patchnet_forward.7} parent=11 // pred_region
        _
      $region20: #{patchnet_forward.7} parent=11 // pred_fallthru
        _
      // Predicated region
      $region21: #{patchnet_forward.7} parent=11 // pred_check
        %p146 = pneg %p99
      $region22: #{patchnet_forward.7} parent=11 // pred_check_branch
        %148 = sbr.rel (%p146) target = $region24
      $region23: #{patchnet_forward.7} parent=11 // pred_region
        _
      $region24: #{patchnet_forward.7} parent=11 // pred_fallthru
        _
    $region12: #{patchnet_forward.7} parent=5 // pred_fallthru
      _
    %p149 = scmp.lt.s32.totalorder %s10, 2
    // Predicated region
    $region25: #{patchnet_forward.7} parent=5 // pred_check
      %p150 = pneg %p149
    $region26: #{patchnet_forward.7} parent=5 // pred_check_branch
      %152 = sbr.rel (%p150) target = $region28
    $region27: #{patchnet_forward.7} parent=5 // pred_region
      // Predicated region
      $region29: #{patchnet_forward.7} parent=27 // pred_check
        %p153 = pneg %p30
      $region30: #{patchnet_forward.7} parent=27 // pred_check_branch
        %155 = sbr.rel (%p153) target = $region32
      $region31: #{patchnet_forward.7} parent=27 // pred_region
        %s156 = smul.u32 4, %s10
        %p157 = scmp.lt.s32.totalorder %s156, 7
        %s158 = scalar_select %p157, %s156, 7
        %s159 = smul.addr %s158, 3
        %s160 = smul.addr %s159, 4
        %s161 = scalar_lea.vmem %s0, %s160
        %s162 = smul.u32 4, %s10
      $region32: #{patchnet_forward.7} parent=27 // pred_fallthru
        _
    $region28: #{patchnet_forward.7} parent=5 // pred_fallthru
      _
    %p163 = scmp.le.s32.totalorder 1, %s10
    %p164 = scmp.lt.s32.totalorder %s10, 3
    %p165 = pnand %p163, %p164
    %p166 = pneg %p165
    // Predicated region
    $region33: #{patchnet_forward.7} parent=5 // pred_check
      _
    $region34: #{patchnet_forward.7} parent=5 // pred_check_branch
      %168 = sbr.rel (%p165) target = $region36
    $region35: #{patchnet_forward.7} parent=5 // pred_region
      %s169 = ssub.s32 %s10, 1
      %s170 = smul.u32 4, %s15
      %p171 = scmp.lt.s32.totalorder %s170, 7
      %s172 = scalar_select %p171, %s170, 7
      %s173 = smul.addr %s172, 3
      %s174 = smul.addr %s173, 4
      %s175 = scalar_lea.vmem %s0, %s174
      %p176 = pneg %p36
      %p177 = pneg %p33
      %p178 = pneg %p57
      %p179 = pneg %p54
      %p180 = pneg %p78
      %p181 = pneg %p75
      %p182 = pneg %p99
      %p183 = pneg %p96
      %p184 = pneg %p125
      %p185 = pneg %p122
      %s186 = smul.u32 4, %s15
      %p187 = scmp.lt.s32.totalorder %s186, 7
      %s188 = scalar_select %p187, %s186, 7
      %s189 = scalar_lea.vmem %s4, %s188
      %s190 = smul.u32 4, %s15
      %p191 = scmp.lt.s32.totalorder %s190, 7
      %s192 = scalar_select %p191, %s190, 7
      %s193 = smul.addr %s192, 3
      %s194 = smul.addr %s193, 4
      %s195 = scalar_lea.vmem %s0, %s194
      %s196 = smul.u32 4, %s15
      %s197 = smul.u32 4, %s15
      %p198 = scmp.lt.s32.totalorder %s197, 7
      %s199 = scalar_select %p198, %s197, 7
      %s200 = scalar_lea.vmem %s4, %s199
      %s201 = smul.u32 4, %s15
      %v203 = vld [vmem:[%s195] sm:$0xf]
      %v204 = vld [vmem:[%s195 + $0x4] sm:$0xf]
      %v205 = vld [vmem:[%s195 + $0x8] sm:$0xf]
      %v206 = vld [vmem:[%s195 + $0xc] sm:$0xf]
      %v207 = vld [vmem:[%s195 + $0x10] sm:$0xf]
      %v208 = vld [vmem:[%s195 + $0x14] sm:$0xf]
      %v209 = vld [vmem:[%s195 + $0x18] sm:$0xf]
      %v210 = vld [vmem:[%s195 + $0x1c] sm:$0xf]
      %v211 = vld [vmem:[%s195 + $0x20] sm:$0xf]
      %v212 = vld [vmem:[%s195 + $0x24] sm:$0xf]
      %v213 = vld [vmem:[%s195 + $0x28] sm:$0xf]
      %v214 = vld [vmem:[%s195 + $0x2c] sm:$0xf]
      %v223 = vunpack.c.l.b16 %v203
      %v224 = vunpack.c.l.b16 %v204
      %v225 = vunpack.c.l.b16 %v206
      %v226 = vunpack.c.l.b16 %v207
      %v227 = vunpack.c.l.b16 %v209
      %v228 = vunpack.c.l.b16 %v210
      %v229 = vunpack.c.l.b16 %v212
      %v230 = vunpack.c.l.b16 %v213
      %v231 = vpack.c.b16 %v224, %v223
      %v232 = vpack.c.b16 %v226, %v225
      %v233 = vpack.c.b16 %v228, %v227
      %v234 = vpack.c.b16 %v230, %v229
      %v236 = vshrl.u32 %v231, 16
      %v238 = vshll.u32 %v231, 16
      %v240 = vrot.slane %v238, 1
      %v241 = vor.u32 %v236, %v240
      %v243 = vshrl.u32 %v232, 16
      %v245 = vshll.u32 %v232, 16
      %v247 = vrot.slane %v245, 1
      %v248 = vor.u32 %v243, %v247
      %v250 = vshrl.u32 %v233, 16
      %v252 = vshll.u32 %v233, 16
      %v254 = vrot.slane %v252, 1
      %v255 = vor.u32 %v250, %v254
      %v257 = vshrl.u32 %v234, 16
      %v259 = vshll.u32 %v234, 16
      %v261 = vrot.slane %v259, 1
      %v262 = vor.u32 %v257, %v261
      %263 = vrot.lane.b32.xlu0 %v241, 64
      %v264 = vpop.permute.xlu0 %263
      %265 = vrot.lane.b32.xlu0 %v248, 64
      %v266 = vpop.permute.xlu0 %265
      %267 = vrot.lane.b32.xlu0 %v255, 64
      %v268 = vpop.permute.xlu0 %267
      %269 = vrot.lane.b32.xlu0 %v262, 64
      %v270 = vpop.permute.xlu0 %269
      %v271 = vrot.slane %v231, 1
      %v272 = vrot.slane %v232, 1
      %v273 = vrot.slane %v233, 1
      %v274 = vrot.slane %v234, 1
      %v275 = vrot.slane %v231, 2
      %v276 = vrot.slane %v232, 2
      %v277 = vrot.slane %v233, 2
      %v278 = vrot.slane %v234, 2
      %279 = vrot.lane.b32.xlu0 %v275, 64
      %v280 = vpop.permute.xlu0 %279
      %281 = vrot.lane.b32.xlu0 %v276, 64
      %v282 = vpop.permute.xlu0 %281
      %283 = vrot.lane.b32.xlu0 %v277, 64
      %v284 = vpop.permute.xlu0 %283
      %285 = vrot.lane.b32.xlu0 %v278, 64
      %v286 = vpop.permute.xlu0 %285
      %v287 = vrot.slane %v236, 2
      %v288 = vrot.slane %v238, 3
      %v289 = vor.u32 %v287, %v288
      %v290 = vrot.slane %v243, 2
      %v291 = vrot.slane %v245, 3
      %v292 = vor.u32 %v290, %v291
      %v293 = vrot.slane %v250, 2
      %v294 = vrot.slane %v252, 3
      %v295 = vor.u32 %v293, %v294
      %v296 = vrot.slane %v257, 2
      %v297 = vrot.slane %v259, 3
      %v298 = vor.u32 %v296, %v297
      %v299 = vrot.slane %v231, 3
      %v300 = vrot.slane %v232, 3
      %v301 = vrot.slane %v233, 3
      %v302 = vrot.slane %v234, 3
      %303 = vrot.lane.b32.xlu0 %v299, 64
      %v304 = vpop.permute.xlu0 %303
      %305 = vrot.lane.b32.xlu0 %v300, 64
      %v306 = vpop.permute.xlu0 %305
      %307 = vrot.lane.b32.xlu0 %v301, 64
      %v308 = vpop.permute.xlu0 %307
      %309 = vrot.lane.b32.xlu0 %v302, 64
      %v310 = vpop.permute.xlu0 %309
      %v315 = vunpack.c.l.b16 %v205
      %v316 = vunpack.c.l.b16 %v208
      %v317 = vunpack.c.l.b16 %v211
      %v318 = vunpack.c.l.b16 %v214
      %v319 = vpack.c.b16 %v315, %v224
      %v320 = vpack.c.b16 %v316, %v226
      %v321 = vpack.c.b16 %v317, %v228
      %v322 = vpack.c.b16 %v318, %v230
      %v324 = vshrl.u32 %v319, 16
      %v326 = vshll.u32 %v319, 16
      %v328 = vrot.slane %v326, 1
      %v329 = vor.u32 %v324, %v328
      %v331 = vshrl.u32 %v320, 16
      %v333 = vshll.u32 %v320, 16
      %v335 = vrot.slane %v333, 1
      %v336 = vor.u32 %v331, %v335
      %v338 = vshrl.u32 %v321, 16
      %v340 = vshll.u32 %v321, 16
      %v342 = vrot.slane %v340, 1
      %v343 = vor.u32 %v338, %v342
      %v345 = vshrl.u32 %v322, 16
      %v347 = vshll.u32 %v322, 16
      %v349 = vrot.slane %v347, 1
      %v350 = vor.u32 %v345, %v349
      %351 = vrot.lane.b32.xlu0 %v329, 64
      %v352 = vpop.permute.xlu0 %351
      %353 = vrot.lane.b32.xlu0 %v336, 64
      %v354 = vpop.permute.xlu0 %353
      %355 = vrot.lane.b32.xlu0 %v343, 64
      %v356 = vpop.permute.xlu0 %355
      %357 = vrot.lane.b32.xlu0 %v350, 64
      %v358 = vpop.permute.xlu0 %357
      %v359 = vrot.slane %v319, 1
      %v360 = vrot.slane %v320, 1
      %v361 = vrot.slane %v321, 1
      %v362 = vrot.slane %v322, 1
      %vm363 = vcmask 523264
      %v366 = vsel %vm363, %v203, %v264
      %v369 = vsel %vm363, %v206, %v266
      %v372 = vsel %vm363, %v209, %v268
      %v375 = vsel %vm363, %v212, %v270
      %v378 = vsel %vm363, %v271, %v280
      %v381 = vsel %vm363, %v272, %v282
      %v384 = vsel %vm363, %v273, %v284
      %v387 = vsel %vm363, %v274, %v286
      %v390 = vsel %vm363, %v289, %v304
      %v393 = vsel %vm363, %v292, %v306
      %v396 = vsel %vm363, %v295, %v308
      %v399 = vsel %vm363, %v298, %v310
      %v402 = vsel %vm363, %v204, %v352
      %v405 = vsel %vm363, %v207, %v354
      %v408 = vsel %vm363, %v210, %v356
      %v411 = vsel %vm363, %v213, %v358
      %v428 = vunpack.c.l.b16 %v366
      %v429 = vunpack.c.l.b16 %v378
      %v430 = vunpack.c.l.b16 %v390
      %v431 = vunpack.c.l.b16 %v402
      %v432 = vunpack.c.l.b16 %v359
      %v433 = vunpack.c.l.b16 %v369
      %v434 = vunpack.c.l.b16 %v381
      %v435 = vunpack.c.l.b16 %v393
      %v436 = vunpack.c.l.b16 %v405
      %v437 = vunpack.c.l.b16 %v360
      %v438 = vunpack.c.l.b16 %v372
      %v439 = vunpack.c.l.b16 %v384
      %v440 = vunpack.c.l.b16 %v396
      %v441 = vunpack.c.l.b16 %v408
      %v442 = vunpack.c.l.b16 %v361
      %v443 = vunpack.c.l.b16 %v375
      %v444 = vunpack.c.l.b16 %v387
      %v445 = vunpack.c.l.b16 %v399
      %v446 = vunpack.c.l.b16 %v411
      %v447 = vunpack.c.l.b16 %v362
      %v448 = vld [vmem:[%s1] sm:$0xf]
      %v449 = vld [vmem:[%s1 + $0x4] sm:$0xf]
      %v450 = vld [vmem:[%s1 + $0x8] sm:$0xf]
      %v451 = vld [vmem:[%s1 + $0xc] sm:$0xf]
      %v452 = vld [vmem:[%s1 + $0x10] sm:$0xf]
      %v453 = vld [vmem:[%s1 + $0x14] sm:$0xf]
      %v454 = vld [vmem:[%s1 + $0x18] sm:$0xf]
      %v455 = vld [vmem:[%s1 + $0x1c] sm:$0xf]
      %v456 = vld [vmem:[%s1 + $0x20] sm:$0xf]
      %v457 = vld [vmem:[%s1 + $0x24] sm:$0xf]
      %v458 = vld [vmem:[%s1 + $0x28] sm:$0xf]
      %v459 = vld [vmem:[%s1 + $0x2c] sm:$0xf]
      %v460 = vld [vmem:[%s1 + $0x30] sm:$0xf]
      %v461 = vld [vmem:[%s1 + $0x34] sm:$0xf]
      %v462 = vld [vmem:[%s1 + $0x38] sm:$0xf]
      %v463 = vld [vmem:[%s1 + $0x3c] sm:$0xf]
      %v464 = vld [vmem:[%s1 + $0x40] sm:$0xf]
      %v465 = vld [vmem:[%s1 + $0x44] sm:$0xf]
      %v466 = vld [vmem:[%s1 + $0x48] sm:$0xf]
      %v467 = vld [vmem:[%s1 + $0x4c] sm:$0xf]
      %v468 = vld [vmem:[%s1 + $0x50] sm:$0xf]
      %v469 = vld [vmem:[%s1 + $0x54] sm:$0xf]
      %v470 = vld [vmem:[%s1 + $0x58] sm:$0xf]
      %v471 = vld [vmem:[%s1 + $0x5c] sm:$0xf]
      %v472 = vld [vmem:[%s1 + $0x60] sm:$0xf]
      %v473 = vld [vmem:[%s1 + $0x64] sm:$0xf]
      %v474 = vld [vmem:[%s1 + $0x68] sm:$0xf]
      %v475 = vld [vmem:[%s1 + $0x6c] sm:$0xf]
      %v476 = vld [vmem:[%s1 + $0x70] sm:$0xf]
      %v477 = vld [vmem:[%s1 + $0x74] sm:$0xf]
      %v478 = vld [vmem:[%s1 + $0x78] sm:$0xf]
      %v479 = vld [vmem:[%s1 + $0x7c] sm:$0xf]
      %v480 = vld [vmem:[%s1 + $0x80] sm:$0xf]
      %v481 = vld [vmem:[%s1 + $0x84] sm:$0xf]
      %v482 = vld [vmem:[%s1 + $0x88] sm:$0xf]
      %v483 = vld [vmem:[%s1 + $0x8c] sm:$0xf]
      %v484 = vld [vmem:[%s1 + $0x90] sm:$0xf]
      %v485 = vld [vmem:[%s1 + $0x94] sm:$0xf]
      %v486 = vld [vmem:[%s1 + $0x98] sm:$0xf]
      %v487 = vld [vmem:[%s1 + $0x9c] sm:$0xf]
      %v488 = vld [vmem:[%s1 + $0xa0] sm:$0xf]
      %v489 = vld [vmem:[%s1 + $0xa4] sm:$0xf]
      %v490 = vld [vmem:[%s1 + $0xa8] sm:$0xf]
      %v491 = vld [vmem:[%s1 + $0xac] sm:$0xf]
      %v492 = vld [vmem:[%s1 + $0xb0] sm:$0xf]
      %v493 = vld [vmem:[%s1 + $0xb4] sm:$0xf]
      %v494 = vld [vmem:[%s1 + $0xb8] sm:$0xf]
      %v495 = vld [vmem:[%s1 + $0xbc] sm:$0xf]
      %v496 = vld [vmem:[%s1 + $0xc0] sm:$0xf]
      %v497 = vld [vmem:[%s1 + $0xc4] sm:$0xf]
      %v498 = vld [vmem:[%s1 + $0xc8] sm:$0xf]
      %v499 = vld [vmem:[%s1 + $0xcc] sm:$0xf]
      %v500 = vld [vmem:[%s1 + $0xd0] sm:$0xf]
      %v501 = vld [vmem:[%s1 + $0xd4] sm:$0xf]
      %v502 = vld [vmem:[%s1 + $0xd8] sm:$0xf]
      %v503 = vld [vmem:[%s1 + $0xdc] sm:$0xf]
      %v504 = vld [vmem:[%s1 + $0xe0] sm:$0xf]
      %v505 = vld [vmem:[%s1 + $0xe4] sm:$0xf]
      %v506 = vld [vmem:[%s1 + $0xe8] sm:$0xf]
      %v507 = vld [vmem:[%s1 + $0xec] sm:$0xf]
      %v508 = vld [vmem:[%s1 + $0xf0] sm:$0xf]
      %v509 = vld [vmem:[%s1 + $0xf4] sm:$0xf]
      %v510 = vld [vmem:[%s1 + $0xf8] sm:$0xf]
      %v511 = vld [vmem:[%s1 + $0xfc] sm:$0xf]
      %v512 = vld [vmem:[%s1 + $0x100] sm:$0xf]
      %v513 = vld [vmem:[%s1 + $0x104] sm:$0xf]
      %v514 = vld [vmem:[%s1 + $0x108] sm:$0xf]
      %v515 = vld [vmem:[%s1 + $0x10c] sm:$0xf]
      %v516 = vld [vmem:[%s1 + $0x110] sm:$0xf]
      %v517 = vld [vmem:[%s1 + $0x114] sm:$0xf]
      %v518 = vld [vmem:[%s1 + $0x118] sm:$0xf]
      %v519 = vld [vmem:[%s1 + $0x11c] sm:$0xf]
      %v520 = vld [vmem:[%s2] sm:$0x1]
      %v522 = vlaneseq
      %v523 = vshrl.u32 %v522, 7
      %v524 = vsub.s32 0, %v523
      %v525 = vrot.slane %v520, %v524
      %v527 = vpack.c.b16 %v433, %v428
      %v528 = vpack.c.b16 %v434, %v429
      %v529 = vpack.c.b16 %v435, %v430
      %v530 = vpack.c.b16 %v436, %v431
      %v531 = vpack.c.b16 %v437, %v432
      %v532 = vpack.c.b16 %v443, %v438
      %v533 = vpack.c.b16 %v444, %v439
      %v534 = vpack.c.b16 %v445, %v440
      %v535 = vpack.c.b16 %v446, %v441
      %v536 = vpack.c.b16 %v447, %v442
      %v617 = vunpack.c.l.b16 %v448
      %v618 = vunpack.c.l.b16 %v449
      %v619 = vunpack.c.l.b16 %v450
      %v620 = vunpack.c.l.b16 %v451
      %v621 = vunpack.c.l.b16 %v452
      %v622 = vunpack.c.l.b16 %v453
      %v623 = vunpack.c.l.b16 %v454
      %v624 = vunpack.c.l.b16 %v455
      %v625 = vunpack.c.l.b16 %v456
      %v626 = vunpack.c.l.b16 %v457
      %v627 = vunpack.c.l.b16 %v458
      %v628 = vunpack.c.l.b16 %v459
      %v629 = vunpack.c.l.b16 %v460
      %v630 = vunpack.c.l.b16 %v461
      %v631 = vunpack.c.l.b16 %v462
      %v632 = vunpack.c.l.b16 %v463
      %v633 = vunpack.c.l.b16 %v464
      %v634 = vunpack.c.l.b16 %v465
      %v635 = vunpack.c.l.b16 %v466
      %v636 = vunpack.c.l.b16 %v467
      %v637 = vunpack.c.l.b16 %v468
      %v638 = vunpack.c.l.b16 %v469
      %v639 = vunpack.c.l.b16 %v470
      %v640 = vunpack.c.l.b16 %v471
      %v641 = vunpack.c.l.b16 %v472
      %v642 = vunpack.c.l.b16 %v473
      %v643 = vunpack.c.l.b16 %v474
      %v644 = vunpack.c.l.b16 %v475
      %v645 = vunpack.c.l.b16 %v476
      %v646 = vunpack.c.l.b16 %v477
      %v647 = vunpack.c.l.b16 %v478
      %v648 = vunpack.c.l.b16 %v479
      %v649 = vunpack.c.l.b16 %v480
      %v650 = vunpack.c.l.b16 %v481
      %v651 = vunpack.c.l.b16 %v482
      %v652 = vunpack.c.l.b16 %v483
      %v653 = vunpack.c.l.b16 %v484
      %v654 = vunpack.c.l.b16 %v485
      %v655 = vunpack.c.l.b16 %v486
      %v656 = vunpack.c.l.b16 %v487
      %v657 = vunpack.c.l.b16 %v488
      %v658 = vunpack.c.l.b16 %v489
      %v659 = vunpack.c.l.b16 %v490
      %v660 = vunpack.c.l.b16 %v491
      %v661 = vunpack.c.l.b16 %v492
      %v662 = vunpack.c.l.b16 %v493
      %v663 = vunpack.c.l.b16 %v494
      %v664 = vunpack.c.l.b16 %v495
      %v665 = vunpack.c.l.b16 %v496
      %v666 = vunpack.c.l.b16 %v497
      %v667 = vunpack.c.l.b16 %v498
      %v668 = vunpack.c.l.b16 %v499
      %v669 = vunpack.c.l.b16 %v500
      %v670 = vunpack.c.l.b16 %v501
      %v671 = vunpack.c.l.b16 %v502
      %v672 = vunpack.c.l.b16 %v503
      %v673 = vunpack.c.l.b16 %v504
      %v674 = vunpack.c.l.b16 %v505
      %v675 = vunpack.c.l.b16 %v506
      %v676 = vunpack.c.l.b16 %v507
      %v677 = vunpack.c.l.b16 %v508
      %v678 = vunpack.c.l.b16 %v509
      %v679 = vunpack.c.l.b16 %v510
      %v680 = vunpack.c.l.b16 %v511
      %v681 = vunpack.c.l.b16 %v512
      %v682 = vunpack.c.l.b16 %v513
      %v683 = vunpack.c.l.b16 %v514
      %v684 = vunpack.c.l.b16 %v515
      %v685 = vunpack.c.l.b16 %v516
      %v686 = vunpack.c.l.b16 %v517
      %v687 = vunpack.c.l.b16 %v518
      %v688 = vunpack.c.l.b16 %v519
      %v689 = vpack.c.b16 %v618, %v617
      %v690 = vpack.c.b16 %v620, %v619
      %v691 = vpack.c.b16 %v622, %v621
      %v692 = vpack.c.b16 %v624, %v623
      %v693 = vpack.c.b16 %v626, %v625
      %v694 = vpack.c.b16 %v628, %v627
      %v695 = vpack.c.b16 %v630, %v629
      %v696 = vpack.c.b16 %v632, %v631
      %v697 = vpack.c.b16 %v634, %v633
      %v698 = vpack.c.b16 %v636, %v635
      %v699 = vpack.c.b16 %v638, %v637
      %v700 = vpack.c.b16 %v640, %v639
      %v701 = vpack.c.b16 %v642, %v641
      %v702 = vpack.c.b16 %v644, %v643
      %v703 = vpack.c.b16 %v646, %v645
      %v704 = vpack.c.b16 %v648, %v647
      %v705 = vpack.c.b16 %v650, %v649
      %v706 = vpack.c.b16 %v652, %v651
      %v707 = vpack.c.b16 %v654, %v653
      %v708 = vpack.c.b16 %v656, %v655
      %v709 = vpack.c.b16 %v658, %v657
      %v710 = vpack.c.b16 %v660, %v659
      %v711 = vpack.c.b16 %v662, %v661
      %v712 = vpack.c.b16 %v664, %v663
      %v713 = vpack.c.b16 %v666, %v665
      %v714 = vpack.c.b16 %v668, %v667
      %v715 = vpack.c.b16 %v670, %v669
      %v716 = vpack.c.b16 %v672, %v671
      %v717 = vpack.c.b16 %v674, %v673
      %v718 = vpack.c.b16 %v676, %v675
      %v719 = vpack.c.b16 %v678, %v677
      %v720 = vpack.c.b16 %v680, %v679
      %v721 = vpack.c.b16 %v682, %v681
      %v722 = vpack.c.b16 %v684, %v683
      %v723 = vpack.c.b16 %v686, %v685
      %v724 = vpack.c.b16 %v688, %v687
      %v762 = vsel %vm363, %v531, 0
      %v765 = vsel %vm363, %v536, 0
      %767 = vmatprep.subr.bf16.mxu0 0
      %768 = vmatpush1.bf16.msra.mxu0 %v696
      %769 = vmatprep.subr.bf16.mxu0 0
      %770 = vmatpush1.bf16.msra.mxu0 %v695
      %771 = vmatprep.subr.bf16.mxu0 0
      %772 = vmatpush1.bf16.msra.mxu0 %v694
      %773 = vmatprep.subr.bf16.mxu0 0
      %774 = vmatpush1.bf16.msra.mxu0 %v693
      %775 = vmatprep.subr.bf16.mxu0 0
      %776 = vmatpush1.bf16.msra.mxu0 %v692
      %777 = vmatprep.subr.bf16.mxu0 0
      %778 = vmatpush1.bf16.msra.mxu0 %v691
      %779 = vmatprep.subr.bf16.mxu0 0
      %780 = vmatpush1.bf16.msra.mxu0 %v690
      %781 = vmatprep.subr.bf16.mxu0 0
      %782 = vmatpush1.bf16.msra.mxu0 %v689
      %783 = vmatprep.subr.bf16.mxu0 0
      %784 = vmatpush2.bf16.msra.mxu0 %v704
      %785 = vmatprep.subr.bf16.mxu0 0
      %786 = vmatpush2.bf16.msra.mxu0 %v703
      %787 = vmatprep.subr.bf16.mxu0 0
      %788 = vmatpush2.bf16.msra.mxu0 %v702
      %789 = vmatprep.subr.bf16.mxu0 0
      %790 = vmatpush2.bf16.msra.mxu0 %v701
      %791 = vmatprep.subr.bf16.mxu0 0
      %792 = vmatpush2.bf16.msra.mxu0 %v700
      %793 = vmatprep.subr.bf16.mxu0 0
      %794 = vmatpush2.bf16.msra.mxu0 %v699
      %795 = vmatprep.subr.bf16.mxu0 0
      %796 = vmatpush2.bf16.msra.mxu0 %v698
      %797 = vmatprep.subr.bf16.mxu0 0
      %798 = vmatpush2.bf16.msra.mxu0 %v697
      %799 = vmatprep.mubr.bf16.mxu0 %v528
      %800 = vmatmul.mubr.bf16.gmra.mxu0 %v527
      %v801 = vpop.f32.mrf.mxu0
      %v802 = vadd.f32 %v525, %v801
      %v803 = vpop.f32.mrf.mxu0
      %v804 = vpop.f32.mrf.mxu0
      %v805 = vadd.f32 %v525, %v804
      %v806 = vpop.f32.mrf.mxu0
      %807 = vmatprep.mubr.bf16.mxu0 %v533
      %808 = vmatmul.mubr.bf16.gmra.mxu0 %v532
      %v809 = vpop.f32.mrf.mxu0
      %v810 = vadd.f32 %v525, %v809
      %v811 = vpop.f32.mrf.mxu0
      %v812 = vpop.f32.mrf.mxu0
      %v813 = vadd.f32 %v525, %v812
      %v814 = vpop.f32.mrf.mxu0
      %815 = vdwg.mxu0
      %816 = vmatprep.subr.bf16.mxu0 0
      %817 = vmatpush1.bf16.msra.mxu0 %v712
      %818 = vmatprep.subr.bf16.mxu0 0
      %819 = vmatpush1.bf16.msra.mxu0 %v711
      %820 = vmatprep.subr.bf16.mxu0 0
      %821 = vmatpush1.bf16.msra.mxu0 %v710
      %822 = vmatprep.subr.bf16.mxu0 0
      %823 = vmatpush1.bf16.msra.mxu0 %v709
      %824 = vmatprep.subr.bf16.mxu0 0
      %825 = vmatpush1.bf16.msra.mxu0 %v708
      %826 = vmatprep.subr.bf16.mxu0 0
      %827 = vmatpush1.bf16.msra.mxu0 %v707
      %828 = vmatprep.subr.bf16.mxu0 0
      %829 = vmatpush1.bf16.msra.mxu0 %v706
      %830 = vmatprep.subr.bf16.mxu0 0
      %831 = vmatpush1.bf16.msra.mxu0 %v705
      %832 = vmatprep.subr.bf16.mxu0 0
      %833 = vmatpush2.bf16.msra.mxu0 %v720
      %834 = vmatprep.subr.bf16.mxu0 0
      %835 = vmatpush2.bf16.msra.mxu0 %v719
      %836 = vmatprep.subr.bf16.mxu0 0
      %837 = vmatpush2.bf16.msra.mxu0 %v718
      %838 = vmatprep.subr.bf16.mxu0 0
      %839 = vmatpush2.bf16.msra.mxu0 %v717
      %840 = vmatprep.subr.bf16.mxu0 0
      %841 = vmatpush2.bf16.msra.mxu0 %v716
      %842 = vmatprep.subr.bf16.mxu0 0
      %843 = vmatpush2.bf16.msra.mxu0 %v715
      %844 = vmatprep.subr.bf16.mxu0 0
      %845 = vmatpush2.bf16.msra.mxu0 %v714
      %846 = vmatprep.subr.bf16.mxu0 0
      %847 = vmatpush2.bf16.msra.mxu0 %v713
      %848 = vmatprep.mubr.bf16.mxu0 %v530
      %849 = vmatmul.mubr.bf16.gmra.mxu0 %v529
      %v850 = vpop.f32.mrf.mxu0
      %v851 = vadd.f32 %v802, %v850
      %v852 = vpop.f32.mrf.mxu0
      %v853 = vpop.f32.mrf.mxu0
      %v854 = vadd.f32 %v805, %v853
      %v855 = vpop.f32.mrf.mxu0
      %856 = vmatprep.mubr.bf16.mxu0 %v535
      %857 = vmatmul.mubr.bf16.gmra.mxu0 %v534
      %v858 = vpop.f32.mrf.mxu0
      %v859 = vadd.f32 %v810, %v858
      %v860 = vpop.f32.mrf.mxu0
      %v861 = vpop.f32.mrf.mxu0
      %v862 = vadd.f32 %v813, %v861
      %v863 = vpop.f32.mrf.mxu0
      %864 = vdwg.mxu0
      %865 = vmatprep.subr.bf16.mxu0 0
      %866 = vmatpush1.bf16.msra.mxu0 0
      %867 = vmatprep.subr.bf16.mxu0 0
      %868 = vmatpush1.bf16.msra.mxu0 0
      %869 = vmatprep.subr.bf16.mxu0 0
      %870 = vmatpush1.bf16.msra.mxu0 0
      %871 = vmatprep.subr.bf16.mxu0 0
      %872 = vmatpush1.bf16.msra.mxu0 0
      %873 = vmatprep.subr.bf16.mxu0 0
      %874 = vmatpush1.bf16.msra.mxu0 %v724
      %875 = vmatprep.subr.bf16.mxu0 0
      %876 = vmatpush1.bf16.msra.mxu0 %v723
      %877 = vmatprep.subr.bf16.mxu0 0
      %878 = vmatpush1.bf16.msra.mxu0 %v722
      %879 = vmatprep.subr.bf16.mxu0 0
      %880 = vmatpush1.bf16.msra.mxu0 %v721
      %881 = vmatprep.subr.bf16.mxu0 0
      %882 = vmatpush2.bf16.msra.mxu0 0
      %883 = vmatprep.subr.bf16.mxu0 0
      %884 = vmatpush2.bf16.msra.mxu0 0
      %885 = vmatprep.subr.bf16.mxu0 0
      %886 = vmatpush2.bf16.msra.mxu0 0
      %887 = vmatprep.subr.bf16.mxu0 0
      %888 = vmatpush2.bf16.msra.mxu0 0
      %889 = vmatprep.subr.bf16.mxu0 0
      %890 = vmatpush2.bf16.msra.mxu0 0
      %891 = vmatprep.subr.bf16.mxu0 0
      %892 = vmatpush2.bf16.msra.mxu0 0
      %893 = vmatprep.subr.bf16.mxu0 0
      %894 = vmatpush2.bf16.msra.mxu0 0
      %895 = vmatprep.subr.bf16.mxu0 0
      %896 = vmatpush2.bf16.msra.mxu0 0
      %897 = vmatprep.mubr.bf16.mxu0 0
      %898 = vmatmul.mubr.bf16.gmra.mxu0 %v762
      %v899 = vpop.f32.mrf.mxu0
      %v900 = vadd.f32 %v851, %v899
      %v901 = vpop.f32.mrf.mxu0
      %v902 = vpop.f32.mrf.mxu0
      %v903 = vadd.f32 %v854, %v902
      %v904 = vpop.f32.mrf.mxu0
      %905 = vmatprep.mubr.bf16.mxu0 0
      %906 = vmatmul.mubr.bf16.gmra.mxu0 %v765
      %v907 = vpop.f32.mrf.mxu0
      %v908 = vadd.f32 %v859, %v907
      %v909 = vpop.f32.mrf.mxu0
      %v910 = vpop.f32.mrf.mxu0
      %v911 = vadd.f32 %v862, %v910
      %v912 = vpop.f32.mrf.mxu0
      %913 = vdwg.mxu0
      %v914 = vmax.f32 %v900, 0.0
      %v915 = vmax.f32 %v903, 0.0
      %v916 = vmax.f32 %v908, 0.0
      %v917 = vmax.f32 %v911, 0.0
      %v918 = vld [vmem:[%s3] sm:$0xff]
      %920 = vset.pattern.permute.xlu0 0
      %921 = vperm.xlu0 %920, %v918
      %v922 = vpop.permute.xlu0 %921
      %v924 = vmul.f32 %v914, %v922
      %v925 = vmul.f32 %v915, %v922
      %v926 = vmul.f32 %v916, %v922
      %v927 = vmul.f32 %v917, %v922
      %v928 = vrot.slane %v924, 4
      %v929 = vadd.f32 %v924, %v928
      %v930 = vrot.slane %v929, 2
      %v931 = vadd.f32 %v929, %v930
      %v932 = vrot.slane %v931, 1
      %v933 = vadd.f32 %v931, %v932
      %v934 = vrot.slane %v925, 4
      %v935 = vadd.f32 %v925, %v934
      %v936 = vrot.slane %v935, 2
      %v937 = vadd.f32 %v935, %v936
      %v938 = vrot.slane %v937, 1
      %v939 = vadd.f32 %v937, %v938
      %v940 = vrot.slane %v926, 4
      %v941 = vadd.f32 %v926, %v940
      %v942 = vrot.slane %v941, 2
      %v943 = vadd.f32 %v941, %v942
      %v944 = vrot.slane %v943, 1
      %v945 = vadd.f32 %v943, %v944
      %v946 = vrot.slane %v927, 4
      %v947 = vadd.f32 %v927, %v946
      %v948 = vrot.slane %v947, 2
      %v949 = vadd.f32 %v947, %v948
      %v950 = vrot.slane %v949, 1
      %v951 = vadd.f32 %v949, %v950
      %952 = vst [vmem:[%s200] sm:$0x1] %v933
      %953 = vst [vmem:[%s200 + $0x1] sm:$0x1] %v939
      %954 = vst [vmem:[%s200 + $0x2] sm:$0x1] %v945
      %955 = vst [vmem:[%s200 + $0x3] sm:$0x1] %v951
      %s956 = smul.u32 4, %s15
      %p957 = scmp.lt.s32.totalorder %s956, 7
      %s958 = scalar_select %p957, %s956, 7
      %s959 = scalar_lea.vmem %s4, %s958
      // Predicated region
      $region37: #{patchnet_forward.7} parent=35 // pred_check
        %p960 = pneg %p122
      $region38: #{patchnet_forward.7} parent=35 // pred_check_branch
        %962 = sbr.rel (%p960) target = $region40
      $region39: #{patchnet_forward.7} parent=35 // pred_region
        %s963 = smul.u32 4, %s15
      $region40: #{patchnet_forward.7} parent=35 // pred_fallthru
        _
    $region36: #{patchnet_forward.7} parent=5 // pred_fallthru
      _
    %p964 = scmp.le.s32.totalorder 2, %s10
    // Predicated region
    $region41: #{patchnet_forward.7} parent=5 // pred_check
      %p965 = pneg %p964
    $region42: #{patchnet_forward.7} parent=5 // pred_check_branch
      %967 = sbr.rel (%p965) target = $region44
    $region43: #{patchnet_forward.7} parent=5 // pred_region
      %s968 = ssub.s32 %s10, 2
      // Predicated region
      $region45: #{patchnet_forward.7} parent=43 // pred_check
        %p969 = pneg %p128
      $region46: #{patchnet_forward.7} parent=43 // pred_check_branch
        %971 = sbr.rel (%p969) target = $region48
      $region47: #{patchnet_forward.7} parent=43 // pred_region
        %s972 = smul.u32 4, %s16
        %p973 = scmp.lt.s32.totalorder %s972, 7
        %s974 = scalar_select %p973, %s972, 7
        %s975 = scalar_lea.vmem %s4, %s974
      $region48: #{patchnet_forward.7} parent=43 // pred_fallthru
        _
    $region44: #{patchnet_forward.7} parent=5 // pred_fallthru
      _
  $region6: #{patchnet_forward.7} parent=0 // loop_footer
    %s14 = sadd.s32 1, %s10
  $region7: #{patchnet_forward.7} parent=0 // loop_footer_branch
    %9 = sbr.rel target = $region3
  $region8: #{patchnet_forward.7} parent=0 // loop_exit
    _

// kernel: patchnet_forward.6
$region0: #{patchnet_forward.6}
  #allocation0 [shape = 'u32[]', space=smem, size = 0x4, offset = 0x4, fixed_abs, tag = 'smem constant byte address 0x4 - core index']
  #allocation1 [shape = 'u32[144,128]{1,0:T(1,128)}', space=vmem, size = 0x12000, scoped, tag = 'internal scratch']
  %s0 = inlined_call_operand.vmem [shape: bf16[8,40,32], index: 0, kind: input, shape index: {}]
  %s1 = inlined_call_operand.vmem [shape: bf16[288,64], index: 1, kind: input, shape index: {}]
  %s2 = inlined_call_operand.vmem [shape: f32[1,64], index: 2, kind: input, shape index: {}]
  %s3 = inlined_call_operand.vmem [shape: f32[8,1], index: 3, kind: input, shape index: {}]
  %s4 = inlined_call_operand.vmem [shape: bf16[8,4,64], index: 4, kind: output, shape index: {}]
  %s5 = sld [smem:[#allocation0]]
  $region49: #{patchnet_forward.6} parent=0
    _
  %s7 = ssub.s32 1, %s5
  %s8 = scalar_select 0, %s7, %s5
  loop: start=0, step=1, limit=4
  $region2: #{patchnet_forward.6} parent=0 // loop_pre_header
    _
  $region3: #{patchnet_forward.6} parent=0 // loop_header
    %s10 = sphi 0, %s14
    %p11 = scmp.ge.s32.totalorder %s10, 4
    %s20 = sphi 0, %s22
    %s23 = sphi 0, %s20
    %s24 = sphi 0, %s23
    %s40 = sphi 0, %s24
    %s44 = sphi 0, %s44
    %s46 = sphi 0, %s44
    %s47 = sphi 0, %s46
    %s61 = sphi 0, %s47
    %s65 = sphi 0, %s65
    %s67 = sphi 0, %s65
    %s68 = sphi 0, %s67
    %s82 = sphi 0, %s68
    %s86 = sphi 0, %s86
    %s88 = sphi 0, %s86
    %s89 = sphi 0, %s88
    %s103 = sphi 0, %s89
    %s109 = sphi 0, %s111
    %s112 = sphi 0, %s109
    %s113 = sphi 0, %s112
    %s129 = sphi 0, %s113
  $region4: #{patchnet_forward.6} parent=0 // loop_header_branch
    %13 = sbr.rel (%p11) target = $region8
  $region5: #{patchnet_forward.6} parent=0 // loop_body
    %s15 = ssub.s32 %s10, 1
    %s16 = ssub.s32 %s10, 2
    %s17 = sadd.s32 %s10, 1
    %s18 = ssub.s32 %s10, %s17
    %p19 = scmp.eq.s32.totalorder %s18, 0
    %s21 = sadd.s32 %s20, 1
    %s22 = scalar_select %p19, %s20, %s21
    %p25 = pneg %p19
    %p26 = scmp.eq.s32.totalorder %s10, 1
    %p27 = por %p25, %p26
    %p28 = scmp.ne.s32.totalorder %s20, %s23
    %p29 = scmp.eq.s32.totalorder %s10, 0
    %p30 = por %p28, %p29
    %p31 = scmp.ne.s32.totalorder %s20, %s23
    %p32 = scmp.eq.s32.totalorder %s15, 1
    %p33 = por %p31, %p32
    %p34 = scmp.ne.s32.totalorder %s23, %s24
    %p35 = scmp.eq.s32.totalorder %s15, 0
    %p36 = por %p34, %p35
    %p37 = scmp.ne.s32.totalorder %s23, %s24
    %p38 = scmp.eq.s32.totalorder %s16, 1
    %p39 = por %p37, %p38
    %p41 = scmp.ne.s32.totalorder %s24, %s40
    %p42 = scmp.eq.s32.totalorder %s16, 0
    %p43 = por %p41, %p42
    %s45 = sadd.s32 %s44, 1
    %p48 = scmp.eq.s32.totalorder %s10, 1
    %p49 = scmp.ne.s32.totalorder %s44, %s46
    %p50 = scmp.eq.s32.totalorder %s10, 0
    %p51 = por %p49, %p50
    %p52 = scmp.ne.s32.totalorder %s44, %s46
    %p53 = scmp.eq.s32.totalorder %s15, 1
    %p54 = por %p52, %p53
    %p55 = scmp.ne.s32.totalorder %s46, %s47
    %p56 = scmp.eq.s32.totalorder %s15, 0
    %p57 = por %p55, %p56
    %p58 = scmp.ne.s32.totalorder %s46, %s47
    %p59 = scmp.eq.s32.totalorder %s16, 1
    %p60 = por %p58, %p59
    %p62 = scmp.ne.s32.totalorder %s47, %s61
    %p63 = scmp.eq.s32.totalorder %s16, 0
    %p64 = por %p62, %p63
    %s66 = sadd.s32 %s65, 1
    %p69 = scmp.eq.s32.totalorder %s10, 1
    %p70 = scmp.ne.s32.totalorder %s65, %s67
    %p71 = scmp.eq.s32.totalorder %s10, 0
    %p72 = por %p70, %p71
    %p73 = scmp.ne.s32.totalorder %s65, %s67
    %p74 = scmp.eq.s32.totalorder %s15, 1
    %p75 = por %p73, %p74
    %p76 = scmp.ne.s32.totalorder %s67, %s68
    %p77 = scmp.eq.s32.totalorder %s15, 0
    %p78 = por %p76, %p77
    %p79 = scmp.ne.s32.totalorder %s67, %s68
    %p80 = scmp.eq.s32.totalorder %s16, 1
    %p81 = por %p79, %p80
    %p83 = scmp.ne.s32.totalorder %s68, %s82
    %p84 = scmp.eq.s32.totalorder %s16, 0
    %p85 = por %p83, %p84
    %s87 = sadd.s32 %s86, 1
    %p90 = scmp.eq.s32.totalorder %s10, 1
    %p91 = scmp.ne.s32.totalorder %s86, %s88
    %p92 = scmp.eq.s32.totalorder %s10, 0
    %p93 = por %p91, %p92
    %p94 = scmp.ne.s32.totalorder %s86, %s88
    %p95 = scmp.eq.s32.totalorder %s15, 1
    %p96 = por %p94, %p95
    %p97 = scmp.ne.s32.totalorder %s88, %s89
    %p98 = scmp.eq.s32.totalorder %s15, 0
    %p99 = por %p97, %p98
    %p100 = scmp.ne.s32.totalorder %s88, %s89
    %p101 = scmp.eq.s32.totalorder %s16, 1
    %p102 = por %p100, %p101
    %p104 = scmp.ne.s32.totalorder %s89, %s103
    %p105 = scmp.eq.s32.totalorder %s16, 0
    %p106 = por %p104, %p105
    %s107 = ssub.s32 %s10, %s17
    %p108 = scmp.eq.s32.totalorder %s107, 0
    %s110 = sadd.s32 %s109, 1
    %s111 = scalar_select %p108, %s109, %s110
    %p114 = pneg %p108
    %p115 = scmp.eq.s32.totalorder %s10, 1
    %p116 = por %p114, %p115
    %p117 = scmp.ne.s32.totalorder %s109, %s112
    %p118 = scmp.eq.s32.totalorder %s10, 0
    %p119 = por %p117, %p118
    %p120 = scmp.ne.s32.totalorder %s109, %s112
    %p121 = scmp.eq.s32.totalorder %s15, 1
    %p122 = por %p120, %p121
    %p123 = scmp.ne.s32.totalorder %s112, %s113
    %p124 = scmp.eq.s32.totalorder %s15, 0
    %p125 = por %p123, %p124
    %p126 = scmp.ne.s32.totalorder %s112, %s113
    %p127 = scmp.eq.s32.totalorder %s16, 1
    %p128 = por %p126, %p127
    %p130 = scmp.ne.s32.totalorder %s113, %s129
    %p131 = scmp.eq.s32.totalorder %s16, 0
    %p132 = por %p130, %p131
    %p133 = scmp.le.s32.totalorder 1, %s10
    %p134 = scmp.lt.s32.totalorder %s10, 3
    %p135 = pnand %p133, %p134
    %p136 = pneg %p135
    // Predicated region
    $region9: #{patchnet_forward.6} parent=5 // pred_check
      _
    $region10: #{patchnet_forward.6} parent=5 // pred_check_branch
      %138 = sbr.rel (%p135) target = $region12
    $region11: #{patchnet_forward.6} parent=5 // pred_region
      %s139 = ssub.s32 %s10, 1
      // Predicated region
      $region13: #{patchnet_forward.6} parent=11 // pred_check
        %p140 = pneg %p57
      $region14: #{patchnet_forward.6} parent=11 // pred_check_branch
        %142 = sbr.rel (%p140) target = $region16
      $region15: #{patchnet_forward.6} parent=11 // pred_region
        _
      $region16: #{patchnet_forward.6} parent=11 // pred_fallthru
        _
      // Predicated region
      $region17: #{patchnet_forward.6} parent=11 // pred_check
        %p143 = pneg %p78
      $region18: #{patchnet_forward.6} parent=11 // pred_check_branch
        %145 = sbr.rel (%p143) target = $region20
      $region19: #{patchnet_forward.6} parent=11 // pred_region
        _
      $region20: #{patchnet_forward.6} parent=11 // pred_fallthru
        _
      // Predicated region
      $region21: #{patchnet_forward.6} parent=11 // pred_check
        %p146 = pneg %p99
      $region22: #{patchnet_forward.6} parent=11 // pred_check_branch
        %148 = sbr.rel (%p146) target = $region24
      $region23: #{patchnet_forward.6} parent=11 // pred_region
        _
      $region24: #{patchnet_forward.6} parent=11 // pred_fallthru
        _
    $region12: #{patchnet_forward.6} parent=5 // pred_fallthru
      _
    %p149 = scmp.lt.s32.totalorder %s10, 2
    // Predicated region
    $region25: #{patchnet_forward.6} parent=5 // pred_check
      %p150 = pneg %p149
    $region26: #{patchnet_forward.6} parent=5 // pred_check_branch
      %152 = sbr.rel (%p150) target = $region28
    $region27: #{patchnet_forward.6} parent=5 // pred_region
      // Predicated region
      $region29: #{patchnet_forward.6} parent=27 // pred_check
        %p153 = pneg %p30
      $region30: #{patchnet_forward.6} parent=27 // pred_check_branch
        %155 = sbr.rel (%p153) target = $region32
      $region31: #{patchnet_forward.6} parent=27 // pred_region
        %s156 = smul.u32 4, %s10
        %p157 = scmp.lt.s32.totalorder %s156, 7
        %s158 = scalar_select %p157, %s156, 7
        %s159 = smul.addr %s158, 5
        %s160 = smul.addr %s159, 4
        %s161 = scalar_lea.vmem %s0, %s160
        %s162 = smul.u32 4, %s10
      $region32: #{patchnet_forward.6} parent=27 // pred_fallthru
        _
    $region28: #{patchnet_forward.6} parent=5 // pred_fallthru
      _
    %p163 = scmp.le.s32.totalorder 1, %s10
    %p164 = scmp.lt.s32.totalorder %s10, 3
    %p165 = pnand %p163, %p164
    %p166 = pneg %p165
    // Predicated region
    $region33: #{patchnet_forward.6} parent=5 // pred_check
      _
    $region34: #{patchnet_forward.6} parent=5 // pred_check_branch
      %168 = sbr.rel (%p165) target = $region36
    $region35: #{patchnet_forward.6} parent=5 // pred_region
      %s169 = ssub.s32 %s10, 1
      %s170 = smul.u32 4, %s15
      %p171 = scmp.lt.s32.totalorder %s170, 7
      %s172 = scalar_select %p171, %s170, 7
      %s173 = smul.addr %s172, 5
      %s174 = smul.addr %s173, 4
      %s175 = scalar_lea.vmem %s0, %s174
      %p176 = pneg %p36
      %p177 = pneg %p33
      %p178 = pneg %p57
      %p179 = pneg %p54
      %p180 = pneg %p78
      %p181 = pneg %p75
      %p182 = pneg %p99
      %p183 = pneg %p96
      %p184 = pneg %p125
      %p185 = pneg %p122
      %s186 = smul.u32 4, %s15
      %p187 = scmp.lt.s32.totalorder %s186, 7
      %s188 = scalar_select %p187, %s186, 7
      %s189 = smul.addr %s188, 2
      %s190 = scalar_lea.vmem %s4, %s189
      %s191 = smul.u32 4, %s15
      %p192 = scmp.lt.s32.totalorder %s191, 7
      %s193 = scalar_select %p192, %s191, 7
      %s194 = smul.addr %s193, 5
      %s195 = smul.addr %s194, 4
      %s196 = scalar_lea.vmem %s0, %s195
      %s197 = smul.u32 4, %s15
      %s198 = smul.u32 4, %s15
      %p199 = scmp.lt.s32.totalorder %s198, 7
      %s200 = scalar_select %p199, %s198, 7
      %s201 = smul.addr %s200, 2
      %s202 = scalar_lea.vmem %s4, %s201
      %s203 = smul.u32 4, %s15
      %v205 = vld [vmem:[%s196] sm:$0xf]
      %v206 = vld [vmem:[%s196 + $0x4] sm:$0xf]
      %v207 = vld [vmem:[%s196 + $0x8] sm:$0xf]
      %v208 = vld [vmem:[%s196 + $0xc] sm:$0xf]
      %v209 = vld [vmem:[%s196 + $0x10] sm:$0xf]
      %v210 = vld [vmem:[%s196 + $0x14] sm:$0xf]
      %v211 = vld [vmem:[%s196 + $0x18] sm:$0xf]
      %v212 = vld [vmem:[%s196 + $0x1c] sm:$0xf]
      %v213 = vld [vmem:[%s196 + $0x20] sm:$0xf]
      %v214 = vld [vmem:[%s196 + $0x24] sm:$0xf]
      %v215 = vld [vmem:[%s196 + $0x28] sm:$0xf]
      %v216 = vld [vmem:[%s196 + $0x2c] sm:$0xf]
      %v217 = vld [vmem:[%s196 + $0x30] sm:$0xf]
      %v218 = vld [vmem:[%s196 + $0x34] sm:$0xf]
      %v219 = vld [vmem:[%s196 + $0x38] sm:$0xf]
      %v220 = vld [vmem:[%s196 + $0x3c] sm:$0xf]
      %v221 = vld [vmem:[%s196 + $0x40] sm:$0xf]
      %v222 = vld [vmem:[%s196 + $0x44] sm:$0xf]
      %v223 = vld [vmem:[%s196 + $0x48] sm:$0xf]
      %v224 = vld [vmem:[%s196 + $0x4c] sm:$0xf]
      %v237 = vunpack.c.l.b16 %v205
      %v238 = vunpack.c.l.b16 %v206
      %v239 = vunpack.c.l.b16 %v207
      %v240 = vunpack.c.l.b16 %v210
      %v241 = vunpack.c.l.b16 %v211
      %v242 = vunpack.c.l.b16 %v212
      %v243 = vunpack.c.l.b16 %v215
      %v244 = vunpack.c.l.b16 %v216
      %v245 = vunpack.c.l.b16 %v217
      %v246 = vunpack.c.l.b16 %v220
      %v247 = vunpack.c.l.b16 %v221
      %v248 = vunpack.c.l.b16 %v222
      %v249 = vpack.c.b16 %v238, %v237
      %v250 = vpack.c.b16 %v239, %v239
      %v251 = vpack.c.b16 %v241, %v240
      %v252 = vpack.c.b16 %v242, %v242
      %v253 = vpack.c.b16 %v244, %v243
      %v254 = vpack.c.b16 %v245, %v245
      %v255 = vpack.c.b16 %v247, %v246
      %v256 = vpack.c.b16 %v248, %v248
      %v261 = vunpack.c.l.b16 %v208
      %v262 = vunpack.c.l.b16 %v213
      %v263 = vunpack.c.l.b16 %v218
      %v264 = vunpack.c.l.b16 %v223
      %v265 = vpack.c.b16 %v261, %v239
      %v266 = vpack.c.b16 %v262, %v242
      %v267 = vpack.c.b16 %v263, %v245
      %v268 = vpack.c.b16 %v264, %v248
      %vm269 = vsmask.f32 7424
      %v271 = vshrl.u32 %v249, 16
      %v273 = vshll.u32 %v249, 16
      %v275 = vrot.slane %v273, 1
      %v276 = vor.u32 %v271, %v275
      %v278 = vshll.u32 %v265, 16
      %v280 = vrot.slane %v278, 1
      %v281 = vsel %vm269, %v276, %v280
      %v282 = vshrl.u32 %v265, 16
      %v284 = vor.u32 %v282, %v280
      %v286 = vshrl.u32 %v251, 16
      %v288 = vshll.u32 %v251, 16
      %v290 = vrot.slane %v288, 1
      %v291 = vor.u32 %v286, %v290
      %v293 = vshll.u32 %v266, 16
      %v295 = vrot.slane %v293, 1
      %v296 = vsel %vm269, %v291, %v295
      %v297 = vshrl.u32 %v266, 16
      %v299 = vor.u32 %v297, %v295
      %v301 = vshrl.u32 %v253, 16
      %v303 = vshll.u32 %v253, 16
      %v305 = vrot.slane %v303, 1
      %v306 = vor.u32 %v301, %v305
      %v308 = vshll.u32 %v267, 16
      %v310 = vrot.slane %v308, 1
      %v311 = vsel %vm269, %v306, %v310
      %v312 = vshrl.u32 %v267, 16
      %v314 = vor.u32 %v312, %v310
      %v316 = vshrl.u32 %v255, 16
      %v318 = vshll.u32 %v255, 16
      %v320 = vrot.slane %v318, 1
      %v321 = vor.u32 %v316, %v320
      %v323 = vshll.u32 %v268, 16
      %v325 = vrot.slane %v323, 1
      %v326 = vsel %vm269, %v321, %v325
      %v327 = vshrl.u32 %v268, 16
      %v329 = vor.u32 %v327, %v325
      %330 = vrot.lane.b32.xlu0 %v281, 32
      %v331 = vpop.permute.xlu0 %330
      %332 = vrot.lane.b32.xlu0 %v284, 32
      %v333 = vpop.permute.xlu0 %332
      %334 = vrot.lane.b32.xlu0 %v296, 32
      %v335 = vpop.permute.xlu0 %334
      %336 = vrot.lane.b32.xlu0 %v299, 32
      %v337 = vpop.permute.xlu0 %336
      %338 = vrot.lane.b32.xlu0 %v311, 32
      %v339 = vpop.permute.xlu0 %338
      %340 = vrot.lane.b32.xlu0 %v314, 32
      %v341 = vpop.permute.xlu0 %340
      %342 = vrot.lane.b32.xlu0 %v326, 32
      %v343 = vpop.permute.xlu0 %342
      %344 = vrot.lane.b32.xlu0 %v329, 32
      %v345 = vpop.permute.xlu0 %344
      %vm346 = vcmask 1046528
      %v347 = vrot.slane %v249, 1
      %v348 = vrot.slane %v265, 1
      %v349 = vsel %vm346, %v347, %v348
      %v350 = vrot.slane %v251, 1
      %v351 = vrot.slane %v266, 1
      %v352 = vsel %vm346, %v350, %v351
      %v353 = vrot.slane %v253, 1
      %v354 = vrot.slane %v267, 1
      %v355 = vsel %vm346, %v353, %v354
      %v356 = vrot.slane %v255, 1
      %v357 = vrot.slane %v268, 1
      %v358 = vsel %vm346, %v356, %v357
      %359 = vrot.lane.b32.xlu0 %v349, 64
      %v360 = vpop.permute.xlu0 %359
      %361 = vrot.lane.b32.xlu0 %v348, 64
      %v362 = vpop.permute.xlu0 %361
      %363 = vrot.lane.b32.xlu0 %v352, 64
      %v364 = vpop.permute.xlu0 %363
      %365 = vrot.lane.b32.xlu0 %v351, 64
      %v366 = vpop.permute.xlu0 %365
      %367 = vrot.lane.b32.xlu0 %v355, 64
      %v368 = vpop.permute.xlu0 %367
      %369 = vrot.lane.b32.xlu0 %v354, 64
      %v370 = vpop.permute.xlu0 %369
      %371 = vrot.lane.b32.xlu0 %v358, 64
      %v372 = vpop.permute.xlu0 %371
      %373 = vrot.lane.b32.xlu0 %v357, 64
      %v374 = vpop.permute.xlu0 %373
      %vm375 = vcmask 1044480
      %v376 = vrot.slane %v249, 3
      %v377 = vrot.slane %v265, 3
      %v378 = vsel %vm375, %v376, %v377
      %v379 = vrot.slane %v251, 3
      %v380 = vrot.slane %v266, 3
      %v381 = vsel %vm375, %v379, %v380
      %v382 = vrot.slane %v253, 3
      %v383 = vrot.slane %v267, 3
      %v384 = vsel %vm375, %v382, %v383
      %v385 = vrot.slane %v255, 3
      %v386 = vrot.slane %v268, 3
      %v387 = vsel %vm375, %v385, %v386
      %388 = vrot.lane.b32.xlu0 %v378, 96
      %v389 = vpop.permute.xlu0 %388
      %390 = vrot.lane.b32.xlu0 %v377, 96
      %v391 = vpop.permute.xlu0 %390
      %392 = vrot.lane.b32.xlu0 %v381, 96
      %v393 = vpop.permute.xlu0 %392
      %394 = vrot.lane.b32.xlu0 %v380, 96
      %v395 = vpop.permute.xlu0 %394
      %396 = vrot.lane.b32.xlu0 %v384, 96
      %v397 = vpop.permute.xlu0 %396
      %398 = vrot.lane.b32.xlu0 %v383, 96
      %v399 = vpop.permute.xlu0 %398
      %400 = vrot.lane.b32.xlu0 %v387, 96
      %v401 = vpop.permute.xlu0 %400
      %402 = vrot.lane.b32.xlu0 %v386, 96
      %v403 = vpop.permute.xlu0 %402
      %vm404 = vsmask.f32 4352
      %v405 = vrot.slane %v271, 3
      %v406 = vrot.slane %v273, 4
      %v407 = vor.u32 %v405, %v406
      %v408 = vrot.slane %v282, 3
      %v409 = vrot.slane %v278, 4
      %v410 = vor.u32 %v408, %v409
      %v411 = vsel %vm404, %v407, %v410
      %v412 = vrot.slane %v286, 3
      %v413 = vrot.slane %v288, 4
      %v414 = vor.u32 %v412, %v413
      %v415 = vrot.slane %v297, 3
      %v416 = vrot.slane %v293, 4
      %v417 = vor.u32 %v415, %v416
      %v418 = vsel %vm404, %v414, %v417
      %v419 = vrot.slane %v301, 3
      %v420 = vrot.slane %v303, 4
      %v421 = vor.u32 %v419, %v420
      %v422 = vrot.slane %v312, 3
      %v423 = vrot.slane %v308, 4
      %v424 = vor.u32 %v422, %v423
      %v425 = vsel %vm404, %v421, %v424
      %v426 = vrot.slane %v316, 3
      %v427 = vrot.slane %v318, 4
      %v428 = vor.u32 %v426, %v427
      %v429 = vrot.slane %v327, 3
      %v430 = vrot.slane %v323, 4
      %v431 = vor.u32 %v429, %v430
      %v432 = vsel %vm404, %v428, %v431
      %v433 = vpack.c.b16 %v239, %v238
      %v434 = vpack.c.b16 %v261, %v261
      %v435 = vpack.c.b16 %v242, %v241
      %v436 = vpack.c.b16 %v262, %v262
      %v437 = vpack.c.b16 %v245, %v244
      %v438 = vpack.c.b16 %v263, %v263
      %v439 = vpack.c.b16 %v248, %v247
      %v440 = vpack.c.b16 %v264, %v264
      %441 = vrot.lane.b32.xlu0 %v433, 32
      %v442 = vpop.permute.xlu0 %441
      %443 = vrot.lane.b32.xlu0 %v434, 32
      %v444 = vpop.permute.xlu0 %443
      %445 = vrot.lane.b32.xlu0 %v435, 32
      %v446 = vpop.permute.xlu0 %445
      %447 = vrot.lane.b32.xlu0 %v436, 32
      %v448 = vpop.permute.xlu0 %447
      %449 = vrot.lane.b32.xlu0 %v437, 32
      %v450 = vpop.permute.xlu0 %449
      %451 = vrot.lane.b32.xlu0 %v438, 32
      %v452 = vpop.permute.xlu0 %451
      %453 = vrot.lane.b32.xlu0 %v439, 32
      %v454 = vpop.permute.xlu0 %453
      %455 = vrot.lane.b32.xlu0 %v440, 32
      %v456 = vpop.permute.xlu0 %455
      %v461 = vunpack.c.l.b16 %v209
      %v462 = vunpack.c.l.b16 %v214
      %v463 = vunpack.c.l.b16 %v219
      %v464 = vunpack.c.l.b16 %v224
      %v465 = vpack.c.b16 %v461, %v261
      %v466 = vpack.c.b16 %v462, %v262
      %v467 = vpack.c.b16 %v463, %v263
      %v468 = vpack.c.b16 %v464, %v264
      %vm469 = vcmask 1045504
      %v470 = vrot.slane %v433, 2
      %v471 = vrot.slane %v465, 2
      %v472 = vsel %vm469, %v470, %v471
      %v473 = vrot.slane %v435, 2
      %v474 = vrot.slane %v466, 2
      %v475 = vsel %vm469, %v473, %v474
      %v476 = vrot.slane %v437, 2
      %v477 = vrot.slane %v467, 2
      %v478 = vsel %vm469, %v476, %v477
      %v479 = vrot.slane %v439, 2
      %v480 = vrot.slane %v468, 2
      %v481 = vsel %vm469, %v479, %v480
      %482 = vrot.lane.b32.xlu0 %v472, 64
      %v483 = vpop.permute.xlu0 %482
      %484 = vrot.lane.b32.xlu0 %v471, 64
      %v485 = vpop.permute.xlu0 %484
      %486 = vrot.lane.b32.xlu0 %v475, 64
      %v487 = vpop.permute.xlu0 %486
      %488 = vrot.lane.b32.xlu0 %v474, 64
      %v489 = vpop.permute.xlu0 %488
      %490 = vrot.lane.b32.xlu0 %v478, 64
      %v491 = vpop.permute.xlu0 %490
      %492 = vrot.lane.b32.xlu0 %v477, 64
      %v493 = vpop.permute.xlu0 %492
      %494 = vrot.lane.b32.xlu0 %v481, 64
      %v495 = vpop.permute.xlu0 %494
      %496 = vrot.lane.b32.xlu0 %v480, 64
      %v497 = vpop.permute.xlu0 %496
      %vm498 = vsmask.f32 5376
      %v500 = vshrl.u32 %v433, 16
      %v502 = vrot.slane %v500, 2
      %v503 = vshll.u32 %v433, 16
      %v505 = vrot.slane %v503, 3
      %v506 = vor.u32 %v502, %v505
      %v508 = vshrl.u32 %v465, 16
      %v510 = vrot.slane %v508, 2
      %v511 = vshll.u32 %v465, 16
      %v513 = vrot.slane %v511, 3
      %v514 = vor.u32 %v510, %v513
      %v515 = vsel %vm498, %v506, %v514
      %v517 = vshrl.u32 %v435, 16
      %v519 = vrot.slane %v517, 2
      %v520 = vshll.u32 %v435, 16
      %v522 = vrot.slane %v520, 3
      %v523 = vor.u32 %v519, %v522
      %v525 = vshrl.u32 %v466, 16
      %v527 = vrot.slane %v525, 2
      %v528 = vshll.u32 %v466, 16
      %v530 = vrot.slane %v528, 3
      %v531 = vor.u32 %v527, %v530
      %v532 = vsel %vm498, %v523, %v531
      %v534 = vshrl.u32 %v437, 16
      %v536 = vrot.slane %v534, 2
      %v537 = vshll.u32 %v437, 16
      %v539 = vrot.slane %v537, 3
      %v540 = vor.u32 %v536, %v539
      %v542 = vshrl.u32 %v467, 16
      %v544 = vrot.slane %v542, 2
      %v545 = vshll.u32 %v467, 16
      %v547 = vrot.slane %v545, 3
      %v548 = vor.u32 %v544, %v547
      %v549 = vsel %vm498, %v540, %v548
      %v551 = vshrl.u32 %v439, 16
      %v553 = vrot.slane %v551, 2
      %v554 = vshll.u32 %v439, 16
      %v556 = vrot.slane %v554, 3
      %v557 = vor.u32 %v553, %v556
      %v559 = vshrl.u32 %v468, 16
      %v561 = vrot.slane %v559, 2
      %v562 = vshll.u32 %v468, 16
      %v564 = vrot.slane %v562, 3
      %v565 = vor.u32 %v561, %v564
      %v566 = vsel %vm498, %v557, %v565
      %567 = vrot.lane.b32.xlu0 %v515, 96
      %v568 = vpop.permute.xlu0 %567
      %569 = vrot.lane.b32.xlu0 %v514, 96
      %v570 = vpop.permute.xlu0 %569
      %571 = vrot.lane.b32.xlu0 %v532, 96
      %v572 = vpop.permute.xlu0 %571
      %573 = vrot.lane.b32.xlu0 %v531, 96
      %v574 = vpop.permute.xlu0 %573
      %575 = vrot.lane.b32.xlu0 %v549, 96
      %v576 = vpop.permute.xlu0 %575
      %577 = vrot.lane.b32.xlu0 %v548, 96
      %v578 = vpop.permute.xlu0 %577
      %579 = vrot.lane.b32.xlu0 %v566, 96
      %v580 = vpop.permute.xlu0 %579
      %581 = vrot.lane.b32.xlu0 %v565, 96
      %v582 = vpop.permute.xlu0 %581
      %v583 = vrot.slane %v433, 3
      %v584 = vrot.slane %v465, 3
      %v585 = vsel %vm375, %v583, %v584
      %v586 = vrot.slane %v435, 3
      %v587 = vrot.slane %v466, 3
      %v588 = vsel %vm375, %v586, %v587
      %v589 = vrot.slane %v437, 3
      %v590 = vrot.slane %v467, 3
      %v591 = vsel %vm375, %v589, %v590
      %v592 = vrot.slane %v439, 3
      %v593 = vrot.slane %v468, 3
      %v594 = vsel %vm375, %v592, %v593
      %vm595 = vcmask 261120
      %v597 = vsel %vm595, %v249, %v331
      %v600 = vsel %vm595, %v250, %v333
      %v602 = vsel %vm595, %v251, %v335
      %v605 = vsel %vm595, %v252, %v337
      %v607 = vsel %vm595, %v253, %v339
      %v610 = vsel %vm595, %v254, %v341
      %v612 = vsel %vm595, %v255, %v343
      %v615 = vsel %vm595, %v256, %v345
      %vm616 = vcmask 523264
      %v618 = vsel %vm616, %v597, %v360
      %v620 = vsel %vm616, %v600, %v362
      %v622 = vsel %vm616, %v602, %v364
      %v624 = vsel %vm616, %v605, %v366
      %v626 = vsel %vm616, %v607, %v368
      %v628 = vsel %vm616, %v610, %v370
      %v630 = vsel %vm616, %v612, %v372
      %v632 = vsel %vm616, %v615, %v374
      %vm633 = vcmask 785408
      %v635 = vsel %vm633, %v618, %v389
      %v637 = vsel %vm633, %v620, %v391
      %v639 = vsel %vm633, %v622, %v393
      %v641 = vsel %vm633, %v624, %v395
      %v643 = vsel %vm633, %v626, %v397
      %v645 = vsel %vm633, %v628, %v399
      %v647 = vsel %vm633, %v630, %v401
      %v649 = vsel %vm633, %v632, %v403
      %v652 = vsel %vm595, %v411, %v442
      %v655 = vsel %vm595, %v410, %v444
      %v658 = vsel %vm595, %v418, %v446
      %v661 = vsel %vm595, %v417, %v448
      %v664 = vsel %vm595, %v425, %v450
      %v667 = vsel %vm595, %v424, %v452
      %v670 = vsel %vm595, %v432, %v454
      %v673 = vsel %vm595, %v431, %v456
      %v675 = vsel %vm616, %v652, %v483
      %v677 = vsel %vm616, %v655, %v485
      %v679 = vsel %vm616, %v658, %v487
      %v681 = vsel %vm616, %v661, %v489
      %v683 = vsel %vm616, %v664, %v491
      %v685 = vsel %vm616, %v667, %v493
      %v687 = vsel %vm616, %v670, %v495
      %v689 = vsel %vm616, %v673, %v497
      %v691 = vsel %vm633, %v675, %v568
      %v693 = vsel %vm633, %v677, %v570
      %v695 = vsel %vm633, %v679, %v572
      %v697 = vsel %vm633, %v681, %v574
      %v699 = vsel %vm633, %v683, %v576
      %v701 = vsel %vm633, %v685, %v578
      %v703 = vsel %vm633, %v687, %v580
      %v705 = vsel %vm633, %v689, %v582
      %v722 = vunpack.c.l.b16 %v635
      %v723 = vunpack.c.l.b16 %v691
      %v724 = vunpack.c.l.b16 %v585
      %v725 = vunpack.c.h.b16 %v635
      %v726 = vunpack.c.h.b16 %v691
      %v727 = vunpack.c.h.b16 %v585
      %v728 = vunpack.c.l.b16 %v637
      %v729 = vunpack.c.l.b16 %v693
      %v730 = vunpack.c.l.b16 %v584
      %v731 = vunpack.c.l.b16 %v639
      %v732 = vunpack.c.l.b16 %v695
      %v733 = vunpack.c.l.b16 %v588
      %v734 = vunpack.c.h.b16 %v639
      %v735 = vunpack.c.h.b16 %v695
      %v736 = vunpack.c.h.b16 %v588
      %v737 = vunpack.c.l.b16 %v641
      %v738 = vunpack.c.l.b16 %v697
      %v739 = vunpack.c.l.b16 %v587
      %v740 = vunpack.c.l.b16 %v643
      %v741 = vunpack.c.l.b16 %v699
      %v742 = vunpack.c.l.b16 %v591
      %v743 = vunpack.c.h.b16 %v643
      %v744 = vunpack.c.h.b16 %v699
      %v745 = vunpack.c.h.b16 %v591
      %v746 = vunpack.c.l.b16 %v645
      %v747 = vunpack.c.l.b16 %v701
      %v748 = vunpack.c.l.b16 %v590
      %v749 = vunpack.c.l.b16 %v647
      %v750 = vunpack.c.l.b16 %v703
      %v751 = vunpack.c.l.b16 %v594
      %v752 = vunpack.c.h.b16 %v647
      %v753 = vunpack.c.h.b16 %v703
      %v754 = vunpack.c.h.b16 %v594
      %v755 = vunpack.c.l.b16 %v649
      %v756 = vunpack.c.l.b16 %v705
      %v757 = vunpack.c.l.b16 %v593
      %v758 = vld [vmem:[%s1] sm:$0xf]
      %v759 = vld [vmem:[%s1 + $0x4] sm:$0xf]
      %v760 = vld [vmem:[%s1 + $0x8] sm:$0xf]
      %v761 = vld [vmem:[%s1 + $0xc] sm:$0xf]
      %v762 = vld [vmem:[%s1 + $0x10] sm:$0xf]
      %v763 = vld [vmem:[%s1 + $0x14] sm:$0xf]
      %v764 = vld [vmem:[%s1 + $0x18] sm:$0xf]
      %v765 = vld [vmem:[%s1 + $0x1c] sm:$0xf]
      %v766 = vld [vmem:[%s1 + $0x20] sm:$0xf]
      %v767 = vld [vmem:[%s1 + $0x24] sm:$0xf]
      %v768 = vld [vmem:[%s1 + $0x28] sm:$0xf]
      %v769 = vld [vmem:[%s1 + $0x2c] sm:$0xf]
      %v770 = vld [vmem:[%s1 + $0x30] sm:$0xf]
      %v771 = vld [vmem:[%s1 + $0x34] sm:$0xf]
      %v772 = vld [vmem:[%s1 + $0x38] sm:$0xf]
      %v773 = vld [vmem:[%s1 + $0x3c] sm:$0xf]
      %v774 = vld [vmem:[%s1 + $0x40] sm:$0xf]
      %v775 = vld [vmem:[%s1 + $0x44] sm:$0xf]
      %v776 = vld [vmem:[%s1 + $0x48] sm:$0xf]
      %v777 = vld [vmem:[%s1 + $0x4c] sm:$0xf]
      %v778 = vld [vmem:[%s1 + $0x50] sm:$0xf]
      %v779 = vld [vmem:[%s1 + $0x54] sm:$0xf]
      %v780 = vld [vmem:[%s1 + $0x58] sm:$0xf]
      %v781 = vld [vmem:[%s1 + $0x5c] sm:$0xf]
      %v782 = vld [vmem:[%s1 + $0x60] sm:$0xf]
      %v783 = vld [vmem:[%s1 + $0x64] sm:$0xf]
      %v784 = vld [vmem:[%s1 + $0x68] sm:$0xf]
      %v785 = vld [vmem:[%s1 + $0x6c] sm:$0xf]
      %v786 = vld [vmem:[%s1 + $0x70] sm:$0xf]
      %v787 = vld [vmem:[%s1 + $0x74] sm:$0xf]
      %v788 = vld [vmem:[%s1 + $0x78] sm:$0xf]
      %v789 = vld [vmem:[%s1 + $0x7c] sm:$0xf]
      %v790 = vld [vmem:[%s1 + $0x80] sm:$0xf]
      %v791 = vld [vmem:[%s1 + $0x84] sm:$0xf]
      %v792 = vld [vmem:[%s1 + $0x88] sm:$0xf]
      %v793 = vld [vmem:[%s1 + $0x8c] sm:$0xf]
      %v794 = vld [vmem:[%s2] sm:$0x1]
      %v796 = vlaneseq
      %v797 = vshrl.u32 %v796, 7
      %v798 = vsub.s32 0, %v797
      %v799 = vrot.slane %v794, %v798
      %v801 = vpack.c.b16 %v725, %v722
      %v802 = vpack.c.b16 %v726, %v723
      %v803 = vpack.c.b16 %v727, %v724
      %v804 = vpack.c.b16 %v731, %v728
      %v805 = vpack.c.b16 %v732, %v729
      %v806 = vpack.c.b16 %v733, %v730
      %v807 = vpack.c.b16 %v737, %v734
      %v808 = vpack.c.b16 %v738, %v735
      %v809 = vpack.c.b16 %v739, %v736
      %v810 = vpack.c.b16 %v743, %v740
      %v811 = vpack.c.b16 %v744, %v741
      %v812 = vpack.c.b16 %v745, %v742
      %v813 = vpack.c.b16 %v749, %v746
      %v814 = vpack.c.b16 %v750, %v747
      %v815 = vpack.c.b16 %v751, %v748
      %v816 = vpack.c.b16 %v755, %v752
      %v817 = vpack.c.b16 %v756, %v753
      %v818 = vpack.c.b16 %v757, %v754
      %v867 = vunpack.c.l.b16 %v758
      %v868 = vunpack.c.l.b16 %v759
      %v869 = vunpack.c.l.b16 %v760
      %v870 = vunpack.c.l.b16 %v761
      %v871 = vunpack.c.l.b16 %v762
      %v872 = vunpack.c.l.b16 %v763
      %v873 = vunpack.c.l.b16 %v764
      %v874 = vunpack.c.l.b16 %v765
      %v875 = vunpack.c.l.b16 %v766
      %v876 = vunpack.c.l.b16 %v767
      %v877 = vunpack.c.l.b16 %v768
      %v878 = vunpack.c.l.b16 %v769
      %v879 = vunpack.c.l.b16 %v770
      %v880 = vunpack.c.l.b16 %v771
      %v881 = vunpack.c.l.b16 %v772
      %v882 = vunpack.c.l.b16 %v773
      %v883 = vunpack.c.l.b16 %v774
      %v884 = vunpack.c.l.b16 %v775
      %v885 = vunpack.c.l.b16 %v776
      %v886 = vunpack.c.l.b16 %v777
      %v887 = vunpack.c.l.b16 %v778
      %v888 = vunpack.c.l.b16 %v779
      %v889 = vunpack.c.l.b16 %v780
      %v890 = vunpack.c.l.b16 %v781
      %v891 = vunpack.c.l.b16 %v782
      %v892 = vunpack.c.l.b16 %v783
      %v893 = vunpack.c.l.b16 %v784
      %v894 = vunpack.c.l.b16 %v785
      %v895 = vunpack.c.l.b16 %v786
      %v896 = vunpack.c.l.b16 %v787
      %v897 = vunpack.c.l.b16 %v788
      %v898 = vunpack.c.l.b16 %v789
      %v899 = vunpack.c.l.b16 %v790
      %v900 = vunpack.c.l.b16 %v791
      %v901 = vunpack.c.l.b16 %v792
      %v902 = vunpack.c.l.b16 %v793
      %v903 = vpack.c.b16 %v868, %v867
      %v904 = vpack.c.b16 %v870, %v869
      %v905 = vpack.c.b16 %v872, %v871
      %v906 = vpack.c.b16 %v874, %v873
      %v907 = vpack.c.b16 %v876, %v875
      %v908 = vpack.c.b16 %v878, %v877
      %v909 = vpack.c.b16 %v880, %v879
      %v910 = vpack.c.b16 %v882, %v881
      %v911 = vpack.c.b16 %v884, %v883
      %v912 = vpack.c.b16 %v886, %v885
      %v913 = vpack.c.b16 %v888, %v887
      %v914 = vpack.c.b16 %v890, %v889
      %v915 = vpack.c.b16 %v892, %v891
      %v916 = vpack.c.b16 %v894, %v893
      %v917 = vpack.c.b16 %v896, %v895
      %v918 = vpack.c.b16 %v898, %v897
      %v919 = vpack.c.b16 %v900, %v899
      %v920 = vpack.c.b16 %v902, %v901
      %v940 = vsel %vm595, %v803, 0
      %v943 = vsel %vm595, %v806, 0
      %v946 = vsel %vm595, %v809, 0
      %v949 = vsel %vm595, %v812, 0
      %v952 = vsel %vm595, %v815, 0
      %v955 = vsel %vm595, %v818, 0
      %957 = vmatprep.subr.bf16.mxu0 0
      %958 = vmatpush1.bf16.msra.mxu0 %v910
      %959 = vmatprep.subr.bf16.mxu0 0
      %960 = vmatpush1.bf16.msra.mxu0 %v909
      %961 = vmatprep.subr.bf16.mxu0 0
      %962 = vmatpush1.bf16.msra.mxu0 %v908
      %963 = vmatprep.subr.bf16.mxu0 0
      %964 = vmatpush1.bf16.msra.mxu0 %v907
      %965 = vmatprep.subr.bf16.mxu0 0
      %966 = vmatpush1.bf16.msra.mxu0 %v906
      %967 = vmatprep.subr.bf16.mxu0 0
      %968 = vmatpush1.bf16.msra.mxu0 %v905
      %969 = vmatprep.subr.bf16.mxu0 0
      %970 = vmatpush1.bf16.msra.mxu0 %v904
      %971 = vmatprep.subr.bf16.mxu0 0
      %972 = vmatpush1.bf16.msra.mxu0 %v903
      %973 = vmatprep.subr.bf16.mxu0 0
      %974 = vmatpush2.bf16.msra.mxu0 %v918
      %975 = vmatprep.subr.bf16.mxu0 0
      %976 = vmatpush2.bf16.msra.mxu0 %v917
      %977 = vmatprep.subr.bf16.mxu0 0
      %978 = vmatpush2.bf16.msra.mxu0 %v916
      %979 = vmatprep.subr.bf16.mxu0 0
      %980 = vmatpush2.bf16.msra.mxu0 %v915
      %981 = vmatprep.subr.bf16.mxu0 0
      %982 = vmatpush2.bf16.msra.mxu0 %v914
      %983 = vmatprep.subr.bf16.mxu0 0
      %984 = vmatpush2.bf16.msra.mxu0 %v913
      %985 = vmatprep.subr.bf16.mxu0 0
      %986 = vmatpush2.bf16.msra.mxu0 %v912
      %987 = vmatprep.subr.bf16.mxu0 0
      %988 = vmatpush2.bf16.msra.mxu0 %v911
      %989 = vmatprep.mubr.bf16.mxu0 %v802
      %990 = vmatmul.mubr.bf16.gmra.mxu0 %v801
      %v991 = vpop.f32.mrf.mxu0
      %v992 = vadd.f32 %v799, %v991
      %v993 = vpop.f32.mrf.mxu0
      %v994 = vpop.f32.mrf.mxu0
      %v995 = vadd.f32 %v799, %v994
      %v996 = vpop.f32.mrf.mxu0
      %997 = vmatprep.mubr.bf16.mxu0 %v805
      %998 = vmatmul.mubr.bf16.gmra.mxu0 %v804
      %v999 = vpop.f32.mrf.mxu0
      %v1000 = vadd.f32 %v799, %v999
      %v1001 = vpop.f32.mrf.mxu0
      %v1002 = vpop.f32.mrf.mxu0
      %v1003 = vadd.f32 %v799, %v1002
      %v1004 = vpop.f32.mrf.mxu0
      %1005 = vmatprep.mubr.bf16.mxu0 %v808
      %1006 = vmatmul.mubr.bf16.gmra.mxu0 %v807
      %v1007 = vpop.f32.mrf.mxu0
      %v1008 = vadd.f32 %v799, %v1007
      %v1009 = vpop.f32.mrf.mxu0
      %v1010 = vpop.f32.mrf.mxu0
      %v1011 = vadd.f32 %v799, %v1010
      %v1012 = vpop.f32.mrf.mxu0
      %1013 = vmatprep.mubr.bf16.mxu0 %v811
      %1014 = vmatmul.mubr.bf16.gmra.mxu0 %v810
      %v1015 = vpop.f32.mrf.mxu0
      %v1016 = vadd.f32 %v799, %v1015
      %v1017 = vpop.f32.mrf.mxu0
      %v1018 = vpop.f32.mrf.mxu0
      %v1019 = vadd.f32 %v799, %v1018
      %v1020 = vpop.f32.mrf.mxu0
      %1021 = vmatprep.mubr.bf16.mxu0 %v814
      %1022 = vmatmul.mubr.bf16.gmra.mxu0 %v813
      %v1023 = vpop.f32.mrf.mxu0
      %v1024 = vadd.f32 %v799, %v1023
      %v1025 = vpop.f32.mrf.mxu0
      %v1026 = vpop.f32.mrf.mxu0
      %v1027 = vadd.f32 %v799, %v1026
      %v1028 = vpop.f32.mrf.mxu0
      %1029 = vmatprep.mubr.bf16.mxu0 %v817
      %1030 = vmatmul.mubr.bf16.gmra.mxu0 %v816
      %v1031 = vpop.f32.mrf.mxu0
      %v1032 = vadd.f32 %v799, %v1031
      %v1033 = vpop.f32.mrf.mxu0
      %v1034 = vpop.f32.mrf.mxu0
      %v1035 = vadd.f32 %v799, %v1034
      %v1036 = vpop.f32.mrf.mxu0
      %1037 = vdwg.mxu0
      %1038 = vmatprep.subr.bf16.mxu0 0
      %1039 = vmatpush1.bf16.msra.mxu0 0
      %1040 = vmatprep.subr.bf16.mxu0 0
      %1041 = vmatpush1.bf16.msra.mxu0 0
      %1042 = vmatprep.subr.bf16.mxu0 0
      %1043 = vmatpush1.bf16.msra.mxu0 0
      %1044 = vmatprep.subr.bf16.mxu0 0
      %1045 = vmatpush1.bf16.msra.mxu0 0
      %1046 = vmatprep.subr.bf16.mxu0 0
      %1047 = vmatpush1.bf16.msra.mxu0 0
      %1048 = vmatprep.subr.bf16.mxu0 0
      %1049 = vmatpush1.bf16.msra.mxu0 0
      %1050 = vmatprep.subr.bf16.mxu0 0
      %1051 = vmatpush1.bf16.msra.mxu0 %v920
      %1052 = vmatprep.subr.bf16.mxu0 0
      %1053 = vmatpush1.bf16.msra.mxu0 %v919
      %1054 = vmatprep.subr.bf16.mxu0 0
      %1055 = vmatpush2.bf16.msra.mxu0 0
      %1056 = vmatprep.subr.bf16.mxu0 0
      %1057 = vmatpush2.bf16.msra.mxu0 0
      %1058 = vmatprep.subr.bf16.mxu0 0
      %1059 = vmatpush2.bf16.msra.mxu0 0
      %1060 = vmatprep.subr.bf16.mxu0 0
      %1061 = vmatpush2.bf16.msra.mxu0 0
      %1062 = vmatprep.subr.bf16.mxu0 0
      %1063 = vmatpush2.bf16.msra.mxu0 0
      %1064 = vmatprep.subr.bf16.mxu0 0
      %1065 = vmatpush2.bf16.msra.mxu0 0
      %1066 = vmatprep.subr.bf16.mxu0 0
      %1067 = vmatpush2.bf16.msra.mxu0 0
      %1068 = vmatprep.subr.bf16.mxu0 0
      %1069 = vmatpush2.bf16.msra.mxu0 0
      %1070 = vmatprep.mubr.bf16.mxu0 0
      %1071 = vmatmul.mubr.bf16.gmra.mxu0 %v940
      %v1072 = vpop.f32.mrf.mxu0
      %v1073 = vadd.f32 %v992, %v1072
      %v1074 = vpop.f32.mrf.mxu0
      %v1075 = vpop.f32.mrf.mxu0
      %v1076 = vadd.f32 %v995, %v1075
      %v1077 = vpop.f32.mrf.mxu0
      %1078 = vmatprep.mubr.bf16.mxu0 0
      %1079 = vmatmul.mubr.bf16.gmra.mxu0 %v943
      %v1080 = vpop.f32.mrf.mxu0
      %v1081 = vadd.f32 %v1000, %v1080
      %v1082 = vpop.f32.mrf.mxu0
      %v1083 = vpop.f32.mrf.mxu0
      %v1084 = vadd.f32 %v1003, %v1083
      %v1085 = vpop.f32.mrf.mxu0
      %1086 = vmatprep.mubr.bf16.mxu0 0
      %1087 = vmatmul.mubr.bf16.gmra.mxu0 %v946
      %v1088 = vpop.f32.mrf.mxu0
      %v1089 = vadd.f32 %v1008, %v1088
      %v1090 = vpop.f32.mrf.mxu0
      %v1091 = vpop.f32.mrf.mxu0
      %v1092 = vadd.f32 %v1011, %v1091
      %v1093 = vpop.f32.mrf.mxu0
      %1094 = vmatprep.mubr.bf16.mxu0 0
      %1095 = vmatmul.mubr.bf16.gmra.mxu0 %v949
      %v1096 = vpop.f32.mrf.mxu0
      %v1097 = vadd.f32 %v1016, %v1096
      %v1098 = vpop.f32.mrf.mxu0
      %v1099 = vpop.f32.mrf.mxu0
      %v1100 = vadd.f32 %v1019, %v1099
      %v1101 = vpop.f32.mrf.mxu0
      %1102 = vmatprep.mubr.bf16.mxu0 0
      %1103 = vmatmul.mubr.bf16.gmra.mxu0 %v952
      %v1104 = vpop.f32.mrf.mxu0
      %v1105 = vadd.f32 %v1024, %v1104
      %v1106 = vpop.f32.mrf.mxu0
      %v1107 = vpop.f32.mrf.mxu0
      %v1108 = vadd.f32 %v1027, %v1107
      %v1109 = vpop.f32.mrf.mxu0
      %1110 = vmatprep.mubr.bf16.mxu0 0
      %1111 = vmatmul.mubr.bf16.gmra.mxu0 %v955
      %v1112 = vpop.f32.mrf.mxu0
      %v1113 = vadd.f32 %v1032, %v1112
      %v1114 = vpop.f32.mrf.mxu0
      %v1115 = vpop.f32.mrf.mxu0
      %v1116 = vadd.f32 %v1035, %v1115
      %v1117 = vpop.f32.mrf.mxu0
      %1118 = vdwg.mxu0
      %v1119 = vmax.f32 %v1073, 0.0
      %v1120 = vmax.f32 %v1076, 0.0
      %v1121 = vmax.f32 %v1081, 0.0
      %v1122 = vmax.f32 %v1084, 0.0
      %v1123 = vmax.f32 %v1089, 0.0
      %v1124 = vmax.f32 %v1092, 0.0
      %v1125 = vmax.f32 %v1097, 0.0
      %v1126 = vmax.f32 %v1100, 0.0
      %v1127 = vmax.f32 %v1105, 0.0
      %v1128 = vmax.f32 %v1108, 0.0
      %v1129 = vmax.f32 %v1113, 0.0
      %v1130 = vmax.f32 %v1116, 0.0
      %v1143 = vcombine.high %v1119, %v1119
      %v1145 = vunpack.c.l.s4 1983009808
      %v1146 = vunpack.c.0.s8 %v1145
      %v1147 = vlaneseq
      %v1148 = vshrl.u32 %v1147, 7
      %v1149 = vsub.s32 %v1146, %v1148
      %v1150 = vrot.slane %v1119, %v1149
      %v1152 = vunpack.c.l.s4 1983009808
      %v1153 = vunpack.c.0.s8 %v1152
      %v1154 = vlaneseq
      %v1155 = vshrl.u32 %v1154, 7
      %v1156 = vsub.s32 %v1153, %v1155
      %v1157 = vrot.slane %v1143, %v1156
      %v1158 = vcombine.high %v1150, %v1150
      %v1159 = vcombine.high %v1157, %v1157
      %v1160 = vcombine.high %v1120, %v1120
      %v1162 = vunpack.c.l.s4 1983009808
      %v1163 = vunpack.c.0.s8 %v1162
      %v1164 = vlaneseq
      %v1165 = vshrl.u32 %v1164, 7
      %v1166 = vsub.s32 %v1163, %v1165
      %v1167 = vrot.slane %v1120, %v1166
      %v1169 = vunpack.c.l.s4 1983009808
      %v1170 = vunpack.c.0.s8 %v1169
      %v1171 = vlaneseq
      %v1172 = vshrl.u32 %v1171, 7
      %v1173 = vsub.s32 %v1170, %v1172
      %v1174 = vrot.slane %v1160, %v1173
      %v1175 = vcombine.high %v1174, %v1174
      %v1176 = vcombine.high %v1121, %v1121
      %v1178 = vunpack.c.l.s4 1983009808
      %v1179 = vunpack.c.0.s8 %v1178
      %v1180 = vlaneseq
      %v1181 = vshrl.u32 %v1180, 7
      %v1182 = vsub.s32 %v1179, %v1181
      %v1183 = vrot.slane %v1121, %v1182
      %v1185 = vunpack.c.l.s4 1983009808
      %v1186 = vunpack.c.0.s8 %v1185
      %v1187 = vlaneseq
      %v1188 = vshrl.u32 %v1187, 7
      %v1189 = vsub.s32 %v1186, %v1188
      %v1190 = vrot.slane %v1176, %v1189
      %v1191 = vcombine.high %v1183, %v1183
      %v1192 = vcombine.high %v1122, %v1122
      %v1194 = vunpack.c.l.s4 1983009808
      %v1195 = vunpack.c.0.s8 %v1194
      %v1196 = vlaneseq
      %v1197 = vshrl.u32 %v1196, 7
      %v1198 = vsub.s32 %v1195, %v1197
      %v1199 = vrot.slane %v1122, %v1198
      %v1201 = vunpack.c.l.s4 1983009808
      %v1202 = vunpack.c.0.s8 %v1201
      %v1203 = vlaneseq
      %v1204 = vshrl.u32 %v1203, 7
      %v1205 = vsub.s32 %v1202, %v1204
      %v1206 = vrot.slane %v1192, %v1205
      %v1207 = vcombine.high %v1199, %v1199
      %v1208 = vcombine.high %v1206, %v1206
      %v1209 = vcombine.high %v1123, %v1123
      %v1211 = vunpack.c.l.s4 1983009808
      %v1212 = vunpack.c.0.s8 %v1211
      %v1213 = vlaneseq
      %v1214 = vshrl.u32 %v1213, 7
      %v1215 = vsub.s32 %v1212, %v1214
      %v1216 = vrot.slane %v1123, %v1215
      %v1218 = vunpack.c.l.s4 1983009808
      %v1219 = vunpack.c.0.s8 %v1218
      %v1220 = vlaneseq
      %v1221 = vshrl.u32 %v1220, 7
      %v1222 = vsub.s32 %v1219, %v1221
      %v1223 = vrot.slane %v1209, %v1222
      %v1224 = vcombine.high %v1223, %v1223
      %v1225 = vcombine.high %v1124, %v1124
      %v1227 = vunpack.c.l.s4 1983009808
      %v1228 = vunpack.c.0.s8 %v1227
      %v1229 = vlaneseq
      %v1230 = vshrl.u32 %v1229, 7
      %v1231 = vsub.s32 %v1228, %v1230
      %v1232 = vrot.slane %v1124, %v1231
      %v1234 = vunpack.c.l.s4 1983009808
      %v1235 = vunpack.c.0.s8 %v1234
      %v1236 = vlaneseq
      %v1237 = vshrl.u32 %v1236, 7
      %v1238 = vsub.s32 %v1235, %v1237
      %v1239 = vrot.slane %v1225, %v1238
      %v1240 = vcombine.high %v1232, %v1232
      %v1241 = vcombine.high %v1125, %v1125
      %v1243 = vunpack.c.l.s4 1983009808
      %v1244 = vunpack.c.0.s8 %v1243
      %v1245 = vlaneseq
      %v1246 = vshrl.u32 %v1245, 7
      %v1247 = vsub.s32 %v1244, %v1246
      %v1248 = vrot.slane %v1125, %v1247
      %v1250 = vunpack.c.l.s4 1983009808
      %v1251 = vunpack.c.0.s8 %v1250
      %v1252 = vlaneseq
      %v1253 = vshrl.u32 %v1252, 7
      %v1254 = vsub.s32 %v1251, %v1253
      %v1255 = vrot.slane %v1241, %v1254
      %v1256 = vcombine.high %v1248, %v1248
      %v1257 = vcombine.high %v1255, %v1255
      %v1258 = vcombine.high %v1126, %v1126
      %v1260 = vunpack.c.l.s4 1983009808
      %v1261 = vunpack.c.0.s8 %v1260
      %v1262 = vlaneseq
      %v1263 = vshrl.u32 %v1262, 7
      %v1264 = vsub.s32 %v1261, %v1263
      %v1265 = vrot.slane %v1126, %v1264
      %v1267 = vunpack.c.l.s4 1983009808
      %v1268 = vunpack.c.0.s8 %v1267
      %v1269 = vlaneseq
      %v1270 = vshrl.u32 %v1269, 7
      %v1271 = vsub.s32 %v1268, %v1270
      %v1272 = vrot.slane %v1258, %v1271
      %v1273 = vcombine.high %v1272, %v1272
      %v1274 = vcombine.high %v1127, %v1127
      %v1276 = vunpack.c.l.s4 1983009808
      %v1277 = vunpack.c.0.s8 %v1276
      %v1278 = vlaneseq
      %v1279 = vshrl.u32 %v1278, 7
      %v1280 = vsub.s32 %v1277, %v1279
      %v1281 = vrot.slane %v1127, %v1280
      %v1283 = vunpack.c.l.s4 1983009808
      %v1284 = vunpack.c.0.s8 %v1283
      %v1285 = vlaneseq
      %v1286 = vshrl.u32 %v1285, 7
      %v1287 = vsub.s32 %v1284, %v1286
      %v1288 = vrot.slane %v1274, %v1287
      %v1289 = vcombine.high %v1281, %v1281
      %v1290 = vcombine.high %v1128, %v1128
      %v1292 = vunpack.c.l.s4 1983009808
      %v1293 = vunpack.c.0.s8 %v1292
      %v1294 = vlaneseq
      %v1295 = vshrl.u32 %v1294, 7
      %v1296 = vsub.s32 %v1293, %v1295
      %v1297 = vrot.slane %v1128, %v1296
      %v1299 = vunpack.c.l.s4 1983009808
      %v1300 = vunpack.c.0.s8 %v1299
      %v1301 = vlaneseq
      %v1302 = vshrl.u32 %v1301, 7
      %v1303 = vsub.s32 %v1300, %v1302
      %v1304 = vrot.slane %v1290, %v1303
      %v1305 = vcombine.high %v1297, %v1297
      %v1306 = vcombine.high %v1304, %v1304
      %v1307 = vcombine.high %v1129, %v1129
      %v1309 = vunpack.c.l.s4 1983009808
      %v1310 = vunpack.c.0.s8 %v1309
      %v1311 = vlaneseq
      %v1312 = vshrl.u32 %v1311, 7
      %v1313 = vsub.s32 %v1310, %v1312
      %v1314 = vrot.slane %v1129, %v1313
      %v1316 = vunpack.c.l.s4 1983009808
      %v1317 = vunpack.c.0.s8 %v1316
      %v1318 = vlaneseq
      %v1319 = vshrl.u32 %v1318, 7
      %v1320 = vsub.s32 %v1317, %v1319
      %v1321 = vrot.slane %v1307, %v1320
      %v1322 = vcombine.high %v1321, %v1321
      %v1323 = vcombine.high %v1130, %v1130
      %v1325 = vunpack.c.l.s4 1983009808
      %v1326 = vunpack.c.0.s8 %v1325
      %v1327 = vlaneseq
      %v1328 = vshrl.u32 %v1327, 7
      %v1329 = vsub.s32 %v1326, %v1328
      %v1330 = vrot.slane %v1130, %v1329
      %v1332 = vunpack.c.l.s4 1983009808
      %v1333 = vunpack.c.0.s8 %v1332
      %v1334 = vlaneseq
      %v1335 = vshrl.u32 %v1334, 7
      %v1336 = vsub.s32 %v1333, %v1335
      %v1337 = vrot.slane %v1323, %v1336
      %v1338 = vcombine.high %v1330, %v1330
      %v1371 = vrot.slane %v1150, 7
      %v1372 = vrot.slane %v1371, 2
      %v1373 = vrot.slane %v1158, 7
      %v1374 = vrot.slane %v1373, 2
      %v1375 = vrot.slane %v1159, 7
      %v1376 = vrot.slane %v1375, 2
      %v1377 = vrot.slane %v1167, 7
      %v1378 = vrot.slane %v1377, 2
      %v1379 = vrot.slane %v1174, 7
      %v1380 = vrot.slane %v1379, 2
      %v1381 = vrot.slane %v1175, 7
      %v1382 = vrot.slane %v1381, 2
      %v1383 = vrot.slane %v1191, 7
      %v1384 = vrot.slane %v1383, 2
      %v1385 = vrot.slane %v1190, 7
      %v1386 = vrot.slane %v1385, 2
      %v1387 = vrot.slane %v1199, 7
      %v1388 = vrot.slane %v1387, 2
      %v1389 = vrot.slane %v1207, 7
      %v1390 = vrot.slane %v1389, 2
      %v1391 = vrot.slane %v1208, 7
      %v1392 = vrot.slane %v1391, 2
      %v1393 = vrot.slane %v1216, 7
      %v1394 = vrot.slane %v1393, 2
      %v1395 = vrot.slane %v1223, 7
      %v1396 = vrot.slane %v1395, 2
      %v1397 = vrot.slane %v1224, 7
      %v1398 = vrot.slane %v1397, 2
      %v1399 = vrot.slane %v1240, 7
      %v1400 = vrot.slane %v1399, 2
      %v1401 = vrot.slane %v1239, 7
      %v1402 = vrot.slane %v1401, 2
      %v1403 = vrot.slane %v1248, 7
      %v1404 = vrot.slane %v1403, 2
      %v1405 = vrot.slane %v1256, 7
      %v1406 = vrot.slane %v1405, 2
      %v1407 = vrot.slane %v1257, 7
      %v1408 = vrot.slane %v1407, 2
      %v1409 = vrot.slane %v1265, 7
      %v1410 = vrot.slane %v1409, 2
      %v1411 = vrot.slane %v1272, 7
      %v1412 = vrot.slane %v1411, 2
      %v1413 = vrot.slane %v1273, 7
      %v1414 = vrot.slane %v1413, 2
      %v1415 = vrot.slane %v1289, 7
      %v1416 = vrot.slane %v1415, 2
      %v1417 = vrot.slane %v1288, 7
      %v1418 = vrot.slane %v1417, 2
      %v1419 = vrot.slane %v1297, 7
      %v1420 = vrot.slane %v1419, 2
      %v1421 = vrot.slane %v1305, 7
      %v1422 = vrot.slane %v1421, 2
      %v1423 = vrot.slane %v1306, 7
      %v1424 = vrot.slane %v1423, 2
      %v1425 = vrot.slane %v1314, 7
      %v1426 = vrot.slane %v1425, 2
      %v1427 = vrot.slane %v1321, 7
      %v1428 = vrot.slane %v1427, 2
      %v1429 = vrot.slane %v1322, 7
      %v1430 = vrot.slane %v1429, 2
      %v1431 = vrot.slane %v1338, 7
      %v1432 = vrot.slane %v1431, 2
      %v1433 = vrot.slane %v1337, 7
      %v1434 = vrot.slane %v1433, 2
      %v1467 = vmax.f32 %v1150, %v1372
      %v1468 = vmax.f32 %v1158, %v1374
      %v1469 = vmax.f32 %v1159, %v1376
      %v1470 = vmax.f32 %v1167, %v1378
      %v1471 = vmax.f32 %v1174, %v1380
      %v1472 = vmax.f32 %v1175, %v1382
      %v1473 = vmax.f32 %v1191, %v1384
      %v1474 = vmax.f32 %v1190, %v1386
      %v1475 = vmax.f32 %v1199, %v1388
      %v1476 = vmax.f32 %v1207, %v1390
      %v1477 = vmax.f32 %v1208, %v1392
      %v1478 = vmax.f32 %v1216, %v1394
      %v1479 = vmax.f32 %v1223, %v1396
      %v1480 = vmax.f32 %v1224, %v1398
      %v1481 = vmax.f32 %v1240, %v1400
      %v1482 = vmax.f32 %v1239, %v1402
      %v1483 = vmax.f32 %v1248, %v1404
      %v1484 = vmax.f32 %v1256, %v1406
      %v1485 = vmax.f32 %v1257, %v1408
      %v1486 = vmax.f32 %v1265, %v1410
      %v1487 = vmax.f32 %v1272, %v1412
      %v1488 = vmax.f32 %v1273, %v1414
      %v1489 = vmax.f32 %v1289, %v1416
      %v1490 = vmax.f32 %v1288, %v1418
      %v1491 = vmax.f32 %v1297, %v1420
      %v1492 = vmax.f32 %v1305, %v1422
      %v1493 = vmax.f32 %v1306, %v1424
      %v1494 = vmax.f32 %v1314, %v1426
      %v1495 = vmax.f32 %v1321, %v1428
      %v1496 = vmax.f32 %v1322, %v1430
      %v1497 = vmax.f32 %v1338, %v1432
      %v1498 = vmax.f32 %v1337, %v1434
      %v1499 = vmax.f32 %v1467, %v1469
      %v1500 = vmax.f32 %v1468, %v1470
      %v1501 = vmax.f32 %v1471, %v1473
      %v1502 = vmax.f32 %v1472, %v1474
      %v1503 = vmax.f32 %v1475, %v1477
      %v1504 = vmax.f32 %v1476, %v1478
      %v1505 = vmax.f32 %v1479, %v1481
      %v1506 = vmax.f32 %v1480, %v1482
      %v1507 = vmax.f32 %v1483, %v1485
      %v1508 = vmax.f32 %v1484, %v1486
      %v1509 = vmax.f32 %v1487, %v1489
      %v1510 = vmax.f32 %v1488, %v1490
      %v1511 = vmax.f32 %v1491, %v1493
      %v1512 = vmax.f32 %v1492, %v1494
      %v1513 = vmax.f32 %v1495, %v1497
      %v1514 = vmax.f32 %v1496, %v1498
      %v1515 = vpack.c.bf16 %v1499, %v1499
      %v1516 = vpack.c.bf16 %v1500, %v1500
      %v1517 = vpack.c.bf16 %v1501, %v1501
      %v1518 = vpack.c.bf16 %v1502, %v1502
      %v1519 = vpack.c.bf16 %v1503, %v1503
      %v1520 = vpack.c.bf16 %v1504, %v1504
      %v1521 = vpack.c.bf16 %v1505, %v1505
      %v1522 = vpack.c.bf16 %v1506, %v1506
      %v1523 = vpack.c.bf16 %v1507, %v1507
      %v1524 = vpack.c.bf16 %v1508, %v1508
      %v1525 = vpack.c.bf16 %v1509, %v1509
      %v1526 = vpack.c.bf16 %v1510, %v1510
      %v1527 = vpack.c.bf16 %v1511, %v1511
      %v1528 = vpack.c.bf16 %v1512, %v1512
      %v1529 = vpack.c.bf16 %v1513, %v1513
      %v1530 = vpack.c.bf16 %v1514, %v1514
      %v1548 = vunpack.c.l.s4 1983009808
      %v1549 = vunpack.c.0.s8 %v1548
      %v1550 = vlaneseq
      %v1551 = vshrl.u32 %v1550, 7
      %v1552 = vsub.s32 %v1549, %v1551
      %v1553 = vrot.slane %v1515, %v1552
      %v1555 = vunpack.c.l.s4 1983009808
      %v1556 = vunpack.c.0.s8 %v1555
      %v1557 = vlaneseq
      %v1558 = vshrl.u32 %v1557, 7
      %v1559 = vsub.s32 %v1556, %v1558
      %v1560 = vrot.slane %v1516, %v1559
      %v1562 = vunpack.c.l.s4 1983009808
      %v1563 = vunpack.c.0.s8 %v1562
      %v1564 = vlaneseq
      %v1565 = vshrl.u32 %v1564, 7
      %v1566 = vsub.s32 %v1563, %v1565
      %v1567 = vrot.slane %v1517, %v1566
      %v1569 = vunpack.c.l.s4 1983009808
      %v1570 = vunpack.c.0.s8 %v1569
      %v1571 = vlaneseq
      %v1572 = vshrl.u32 %v1571, 7
      %v1573 = vsub.s32 %v1570, %v1572
      %v1574 = vrot.slane %v1518, %v1573
      %v1576 = vunpack.c.l.s4 1983009808
      %v1577 = vunpack.c.0.s8 %v1576
      %v1578 = vlaneseq
      %v1579 = vshrl.u32 %v1578, 7
      %v1580 = vsub.s32 %v1577, %v1579
      %v1581 = vrot.slane %v1519, %v1580
      %v1583 = vunpack.c.l.s4 1983009808
      %v1584 = vunpack.c.0.s8 %v1583
      %v1585 = vlaneseq
      %v1586 = vshrl.u32 %v1585, 7
      %v1587 = vsub.s32 %v1584, %v1586
      %v1588 = vrot.slane %v1520, %v1587
      %v1590 = vunpack.c.l.s4 1983009808
      %v1591 = vunpack.c.0.s8 %v1590
      %v1592 = vlaneseq
      %v1593 = vshrl.u32 %v1592, 7
      %v1594 = vsub.s32 %v1591, %v1593
      %v1595 = vrot.slane %v1521, %v1594
      %v1597 = vunpack.c.l.s4 1983009808
      %v1598 = vunpack.c.0.s8 %v1597
      %v1599 = vlaneseq
      %v1600 = vshrl.u32 %v1599, 7
      %v1601 = vsub.s32 %v1598, %v1600
      %v1602 = vrot.slane %v1522, %v1601
      %v1604 = vunpack.c.l.s4 1983009808
      %v1605 = vunpack.c.0.s8 %v1604
      %v1606 = vlaneseq
      %v1607 = vshrl.u32 %v1606, 7
      %v1608 = vsub.s32 %v1605, %v1607
      %v1609 = vrot.slane %v1523, %v1608
      %v1611 = vunpack.c.l.s4 1983009808
      %v1612 = vunpack.c.0.s8 %v1611
      %v1613 = vlaneseq
      %v1614 = vshrl.u32 %v1613, 7
      %v1615 = vsub.s32 %v1612, %v1614
      %v1616 = vrot.slane %v1524, %v1615
      %v1618 = vunpack.c.l.s4 1983009808
      %v1619 = vunpack.c.0.s8 %v1618
      %v1620 = vlaneseq
      %v1621 = vshrl.u32 %v1620, 7
      %v1622 = vsub.s32 %v1619, %v1621
      %v1623 = vrot.slane %v1525, %v1622
      %v1625 = vunpack.c.l.s4 1983009808
      %v1626 = vunpack.c.0.s8 %v1625
      %v1627 = vlaneseq
      %v1628 = vshrl.u32 %v1627, 7
      %v1629 = vsub.s32 %v1626, %v1628
      %v1630 = vrot.slane %v1526, %v1629
      %v1632 = vunpack.c.l.s4 1983009808
      %v1633 = vunpack.c.0.s8 %v1632
      %v1634 = vlaneseq
      %v1635 = vshrl.u32 %v1634, 7
      %v1636 = vsub.s32 %v1633, %v1635
      %v1637 = vrot.slane %v1527, %v1636
      %v1639 = vunpack.c.l.s4 1983009808
      %v1640 = vunpack.c.0.s8 %v1639
      %v1641 = vlaneseq
      %v1642 = vshrl.u32 %v1641, 7
      %v1643 = vsub.s32 %v1640, %v1642
      %v1644 = vrot.slane %v1528, %v1643
      %v1646 = vunpack.c.l.s4 1983009808
      %v1647 = vunpack.c.0.s8 %v1646
      %v1648 = vlaneseq
      %v1649 = vshrl.u32 %v1648, 7
      %v1650 = vsub.s32 %v1647, %v1649
      %v1651 = vrot.slane %v1529, %v1650
      %v1653 = vunpack.c.l.s4 1983009808
      %v1654 = vunpack.c.0.s8 %v1653
      %v1655 = vlaneseq
      %v1656 = vshrl.u32 %v1655, 7
      %v1657 = vsub.s32 %v1654, %v1656
      %v1658 = vrot.slane %v1530, %v1657
      %v1660 = vunpack.c.l.s4 1983009808
      %v1661 = vunpack.c.0.s8 %v1660
      %v1662 = vlaneseq
      %v1663 = vshrl.u32 %v1662, 7
      %v1664 = vsub.s32 %v1661, %v1663
      %v1665 = vrot.slane %v1553, %v1664
      %v1667 = vunpack.c.l.s4 1983009808
      %v1668 = vunpack.c.0.s8 %v1667
      %v1669 = vlaneseq
      %v1670 = vshrl.u32 %v1669, 7
      %v1671 = vsub.s32 %v1668, %v1670
      %v1672 = vrot.slane %v1560, %v1671
      %v1674 = vunpack.c.l.s4 1983009808
      %v1675 = vunpack.c.0.s8 %v1674
      %v1676 = vlaneseq
      %v1677 = vshrl.u32 %v1676, 7
      %v1678 = vsub.s32 %v1675, %v1677
      %v1679 = vrot.slane %v1567, %v1678
      %v1681 = vunpack.c.l.s4 1983009808
      %v1682 = vunpack.c.0.s8 %v1681
      %v1683 = vlaneseq
      %v1684 = vshrl.u32 %v1683, 7
      %v1685 = vsub.s32 %v1682, %v1684
      %v1686 = vrot.slane %v1574, %v1685
      %v1688 = vunpack.c.l.s4 1983009808
      %v1689 = vunpack.c.0.s8 %v1688
      %v1690 = vlaneseq
      %v1691 = vshrl.u32 %v1690, 7
      %v1692 = vsub.s32 %v1689, %v1691
      %v1693 = vrot.slane %v1581, %v1692
      %v1695 = vunpack.c.l.s4 1983009808
      %v1696 = vunpack.c.0.s8 %v1695
      %v1697 = vlaneseq
      %v1698 = vshrl.u32 %v1697, 7
      %v1699 = vsub.s32 %v1696, %v1698
      %v1700 = vrot.slane %v1588, %v1699
      %v1702 = vunpack.c.l.s4 1983009808
      %v1703 = vunpack.c.0.s8 %v1702
      %v1704 = vlaneseq
      %v1705 = vshrl.u32 %v1704, 7
      %v1706 = vsub.s32 %v1703, %v1705
      %v1707 = vrot.slane %v1595, %v1706
      %v1709 = vunpack.c.l.s4 1983009808
      %v1710 = vunpack.c.0.s8 %v1709
      %v1711 = vlaneseq
      %v1712 = vshrl.u32 %v1711, 7
      %v1713 = vsub.s32 %v1710, %v1712
      %v1714 = vrot.slane %v1602, %v1713
      %v1716 = vunpack.c.l.s4 1983009808
      %v1717 = vunpack.c.0.s8 %v1716
      %v1718 = vlaneseq
      %v1719 = vshrl.u32 %v1718, 7
      %v1720 = vsub.s32 %v1717, %v1719
      %v1721 = vrot.slane %v1609, %v1720
      %v1723 = vunpack.c.l.s4 1983009808
      %v1724 = vunpack.c.0.s8 %v1723
      %v1725 = vlaneseq
      %v1726 = vshrl.u32 %v1725, 7
      %v1727 = vsub.s32 %v1724, %v1726
      %v1728 = vrot.slane %v1616, %v1727
      %v1730 = vunpack.c.l.s4 1983009808
      %v1731 = vunpack.c.0.s8 %v1730
      %v1732 = vlaneseq
      %v1733 = vshrl.u32 %v1732, 7
      %v1734 = vsub.s32 %v1731, %v1733
      %v1735 = vrot.slane %v1623, %v1734
      %v1737 = vunpack.c.l.s4 1983009808
      %v1738 = vunpack.c.0.s8 %v1737
      %v1739 = vlaneseq
      %v1740 = vshrl.u32 %v1739, 7
      %v1741 = vsub.s32 %v1738, %v1740
      %v1742 = vrot.slane %v1630, %v1741
      %v1744 = vunpack.c.l.s4 1983009808
      %v1745 = vunpack.c.0.s8 %v1744
      %v1746 = vlaneseq
      %v1747 = vshrl.u32 %v1746, 7
      %v1748 = vsub.s32 %v1745, %v1747
      %v1749 = vrot.slane %v1637, %v1748
      %v1751 = vunpack.c.l.s4 1983009808
      %v1752 = vunpack.c.0.s8 %v1751
      %v1753 = vlaneseq
      %v1754 = vshrl.u32 %v1753, 7
      %v1755 = vsub.s32 %v1752, %v1754
      %v1756 = vrot.slane %v1644, %v1755
      %v1758 = vunpack.c.l.s4 1983009808
      %v1759 = vunpack.c.0.s8 %v1758
      %v1760 = vlaneseq
      %v1761 = vshrl.u32 %v1760, 7
      %v1762 = vsub.s32 %v1759, %v1761
      %v1763 = vrot.slane %v1651, %v1762
      %v1765 = vunpack.c.l.s4 1983009808
      %v1766 = vunpack.c.0.s8 %v1765
      %v1767 = vlaneseq
      %v1768 = vshrl.u32 %v1767, 7
      %v1769 = vsub.s32 %v1766, %v1768
      %v1770 = vrot.slane %v1658, %v1769
      %v1771 = vunpack.c.l.b16 %v1665
      %v1772 = vunpack.c.l.b16 %v1672
      %v1773 = vunpack.c.l.b16 %v1679
      %v1774 = vunpack.c.l.b16 %v1686
      %v1775 = vunpack.c.l.b16 %v1693
      %v1776 = vunpack.c.l.b16 %v1700
      %v1777 = vunpack.c.l.b16 %v1707
      %v1778 = vunpack.c.l.b16 %v1714
      %v1779 = vunpack.c.l.b16 %v1721
      %v1780 = vunpack.c.l.b16 %v1728
      %v1781 = vunpack.c.l.b16 %v1735
      %v1782 = vunpack.c.l.b16 %v1742
      %v1783 = vunpack.c.l.b16 %v1749
      %v1784 = vunpack.c.l.b16 %v1756
      %v1785 = vunpack.c.l.b16 %v1763
      %v1786 = vunpack.c.l.b16 %v1770
      %v1787 = vrot.slane %v1772, 7
      %vm1788 = vcmask 1041409
      %v1789 = vsel %vm1788, %v1787, %v1771
      %v1790 = vrot.slane %v1773, 6
      %vm1791 = vcmask 1042434
      %v1792 = vsel %vm1791, %v1790, %v1789
      %v1793 = vrot.slane %v1774, 5
      %vm1794 = vcmask 1043459
      %v1795 = vsel %vm1794, %v1793, %v1792
      %v1796 = vrot.slane %v1776, 7
      %v1797 = vsel %vm1788, %v1796, %v1775
      %v1798 = vrot.slane %v1777, 6
      %v1799 = vsel %vm1791, %v1798, %v1797
      %v1800 = vrot.slane %v1778, 5
      %v1801 = vsel %vm1794, %v1800, %v1799
      %v1802 = vrot.slane %v1780, 7
      %v1803 = vsel %vm1788, %v1802, %v1779
      %v1804 = vrot.slane %v1781, 6
      %v1805 = vsel %vm1791, %v1804, %v1803
      %v1806 = vrot.slane %v1782, 5
      %v1807 = vsel %vm1794, %v1806, %v1805
      %v1808 = vrot.slane %v1784, 7
      %v1809 = vsel %vm1788, %v1808, %v1783
      %v1810 = vrot.slane %v1785, 6
      %v1811 = vsel %vm1791, %v1810, %v1809
      %v1812 = vrot.slane %v1786, 5
      %v1813 = vsel %vm1794, %v1812, %v1811
      %v1814 = vpack.c.b16 %v1795, %v1795
      %v1815 = vpack.c.b16 %v1801, %v1801
      %v1816 = vpack.c.b16 %v1807, %v1807
      %v1817 = vpack.c.b16 %v1813, %v1813
      %v1819 = vunpack.c.l.s4 1983009808
      %v1820 = vunpack.c.0.s8 %v1819
      %v1821 = vlaneseq
      %v1822 = vshrl.u32 %v1821, 7
      %v1823 = vsub.s32 %v1820, %v1822
      %v1824 = vrot.slane %v1814, %v1823
      %v1826 = vunpack.c.l.s4 1983009808
      %v1827 = vunpack.c.0.s8 %v1826
      %v1828 = vlaneseq
      %v1829 = vshrl.u32 %v1828, 7
      %v1830 = vsub.s32 %v1827, %v1829
      %v1831 = vrot.slane %v1815, %v1830
      %v1833 = vunpack.c.l.s4 1983009808
      %v1834 = vunpack.c.0.s8 %v1833
      %v1835 = vlaneseq
      %v1836 = vshrl.u32 %v1835, 7
      %v1837 = vsub.s32 %v1834, %v1836
      %v1838 = vrot.slane %v1816, %v1837
      %v1840 = vunpack.c.l.s4 1983009808
      %v1841 = vunpack.c.0.s8 %v1840
      %v1842 = vlaneseq
      %v1843 = vshrl.u32 %v1842, 7
      %v1844 = vsub.s32 %v1841, %v1843
      %v1845 = vrot.slane %v1817, %v1844
      %vm1850 = vcmask 517120
      %1851 = vst.msk [vmem:[%s202] sm:$0x3] %vm1850, %v1824
      %1852 = vst.msk [vmem:[%s202 + $0x2] sm:$0x3] %vm1850, %v1831
      %1853 = vst.msk [vmem:[%s202 + $0x4] sm:$0x3] %vm1850, %v1838
      %1854 = vst.msk [vmem:[%s202 + $0x6] sm:$0x3] %vm1850, %v1845
      %s1855 = smul.u32 4, %s15
      %p1856 = scmp.lt.s32.totalorder %s1855, 7
      %s1857 = scalar_select %p1856, %s1855, 7
      %s1858 = smul.addr %s1857, 2
      %s1859 = scalar_lea.vmem %s4, %s1858
      // Predicated region
      $region37: #{patchnet_forward.6} parent=35 // pred_check
        %p1860 = pneg %p122
      $region38: #{patchnet_forward.6} parent=35 // pred_check_branch
        %1862 = sbr.rel (%p1860) target = $region40
      $region39: #{patchnet_forward.6} parent=35 // pred_region
        %s1863 = smul.u32 4, %s15
      $region40: #{patchnet_forward.6} parent=35 // pred_fallthru
        _
    $region36: #{patchnet_forward.6} parent=5 // pred_fallthru
      _
    %p1864 = scmp.le.s32.totalorder 2, %s10
    // Predicated region
    $region41: #{patchnet_forward.6} parent=5 // pred_check
      %p1865 = pneg %p1864
    $region42: #{patchnet_forward.6} parent=5 // pred_check_branch
      %1867 = sbr.rel (%p1865) target = $region44
    $region43: #{patchnet_forward.6} parent=5 // pred_region
      %s1868 = ssub.s32 %s10, 2
      // Predicated region
      $region45: #{patchnet_forward.6} parent=43 // pred_check
        %p1869 = pneg %p128
      $region46: #{patchnet_forward.6} parent=43 // pred_check_branch
        %1871 = sbr.rel (%p1869) target = $region48
      $region47: #{patchnet_forward.6} parent=43 // pred_region
        %s1872 = smul.u32 4, %s16
        %p1873 = scmp.lt.s32.totalorder %s1872, 7
        %s1874 = scalar_select %p1873, %s1872, 7
        %s1875 = smul.addr %s1874, 2
        %s1876 = scalar_lea.vmem %s4, %s1875
      $region48: #{patchnet_forward.6} parent=43 // pred_fallthru
        _
    $region44: #{patchnet_forward.6} parent=5 // pred_fallthru
      _
  $region6: #{patchnet_forward.6} parent=0 // loop_footer
    %s14 = sadd.s32 1, %s10
  $region7: #{patchnet_forward.6} parent=0 // loop_footer_branch
    %9 = sbr.rel target = $region3
  $region8: #{patchnet_forward.6} parent=0 // loop_exit
    _

// kernel: patchnet_forward.5
$region0: #{patchnet_forward.5}
  #allocation0 [shape = 'u32[]', space=smem, size = 0x4, offset = 0x4, fixed_abs, tag = 'smem constant byte address 0x4 - core index']
  #allocation1 [shape = 'u32[144,128]{1,0:T(1,128)}', space=vmem, size = 0x12000, scoped, tag = 'internal scratch']
  %s0 = inlined_call_operand.vmem [shape: bf16[8,104,8], index: 0, kind: input, shape index: {}]
  %s1 = inlined_call_operand.vmem [shape: bf16[72,32], index: 1, kind: input, shape index: {}]
  %s2 = inlined_call_operand.vmem [shape: f32[1,32], index: 2, kind: input, shape index: {}]
  %s3 = inlined_call_operand.vmem [shape: f32[8,1], index: 3, kind: input, shape index: {}]
  %s4 = inlined_call_operand.vmem [shape: bf16[8,16,32], index: 4, kind: output, shape index: {}]
  %s5 = sld [smem:[#allocation0]]
  $region49: #{patchnet_forward.5} parent=0
    _
  %s7 = ssub.s32 1, %s5
  %s8 = scalar_select 0, %s7, %s5
  loop: start=0, step=1, limit=4
  $region2: #{patchnet_forward.5} parent=0 // loop_pre_header
    _
  $region3: #{patchnet_forward.5} parent=0 // loop_header
    %s10 = sphi 0, %s14
    %p11 = scmp.ge.s32.totalorder %s10, 4
    %s20 = sphi 0, %s22
    %s23 = sphi 0, %s20
    %s24 = sphi 0, %s23
    %s40 = sphi 0, %s24
    %s44 = sphi 0, %s44
    %s46 = sphi 0, %s44
    %s47 = sphi 0, %s46
    %s61 = sphi 0, %s47
    %s65 = sphi 0, %s65
    %s67 = sphi 0, %s65
    %s68 = sphi 0, %s67
    %s82 = sphi 0, %s68
    %s86 = sphi 0, %s86
    %s88 = sphi 0, %s86
    %s89 = sphi 0, %s88
    %s103 = sphi 0, %s89
    %s109 = sphi 0, %s111
    %s112 = sphi 0, %s109
    %s113 = sphi 0, %s112
    %s129 = sphi 0, %s113
  $region4: #{patchnet_forward.5} parent=0 // loop_header_branch
    %13 = sbr.rel (%p11) target = $region8
  $region5: #{patchnet_forward.5} parent=0 // loop_body
    %s15 = ssub.s32 %s10, 1
    %s16 = ssub.s32 %s10, 2
    %s17 = sadd.s32 %s10, 1
    %s18 = ssub.s32 %s10, %s17
    %p19 = scmp.eq.s32.totalorder %s18, 0
    %s21 = sadd.s32 %s20, 1
    %s22 = scalar_select %p19, %s20, %s21
    %p25 = pneg %p19
    %p26 = scmp.eq.s32.totalorder %s10, 1
    %p27 = por %p25, %p26
    %p28 = scmp.ne.s32.totalorder %s20, %s23
    %p29 = scmp.eq.s32.totalorder %s10, 0
    %p30 = por %p28, %p29
    %p31 = scmp.ne.s32.totalorder %s20, %s23
    %p32 = scmp.eq.s32.totalorder %s15, 1
    %p33 = por %p31, %p32
    %p34 = scmp.ne.s32.totalorder %s23, %s24
    %p35 = scmp.eq.s32.totalorder %s15, 0
    %p36 = por %p34, %p35
    %p37 = scmp.ne.s32.totalorder %s23, %s24
    %p38 = scmp.eq.s32.totalorder %s16, 1
    %p39 = por %p37, %p38
    %p41 = scmp.ne.s32.totalorder %s24, %s40
    %p42 = scmp.eq.s32.totalorder %s16, 0
    %p43 = por %p41, %p42
    %s45 = sadd.s32 %s44, 1
    %p48 = scmp.eq.s32.totalorder %s10, 1
    %p49 = scmp.ne.s32.totalorder %s44, %s46
    %p50 = scmp.eq.s32.totalorder %s10, 0
    %p51 = por %p49, %p50
    %p52 = scmp.ne.s32.totalorder %s44, %s46
    %p53 = scmp.eq.s32.totalorder %s15, 1
    %p54 = por %p52, %p53
    %p55 = scmp.ne.s32.totalorder %s46, %s47
    %p56 = scmp.eq.s32.totalorder %s15, 0
    %p57 = por %p55, %p56
    %p58 = scmp.ne.s32.totalorder %s46, %s47
    %p59 = scmp.eq.s32.totalorder %s16, 1
    %p60 = por %p58, %p59
    %p62 = scmp.ne.s32.totalorder %s47, %s61
    %p63 = scmp.eq.s32.totalorder %s16, 0
    %p64 = por %p62, %p63
    %s66 = sadd.s32 %s65, 1
    %p69 = scmp.eq.s32.totalorder %s10, 1
    %p70 = scmp.ne.s32.totalorder %s65, %s67
    %p71 = scmp.eq.s32.totalorder %s10, 0
    %p72 = por %p70, %p71
    %p73 = scmp.ne.s32.totalorder %s65, %s67
    %p74 = scmp.eq.s32.totalorder %s15, 1
    %p75 = por %p73, %p74
    %p76 = scmp.ne.s32.totalorder %s67, %s68
    %p77 = scmp.eq.s32.totalorder %s15, 0
    %p78 = por %p76, %p77
    %p79 = scmp.ne.s32.totalorder %s67, %s68
    %p80 = scmp.eq.s32.totalorder %s16, 1
    %p81 = por %p79, %p80
    %p83 = scmp.ne.s32.totalorder %s68, %s82
    %p84 = scmp.eq.s32.totalorder %s16, 0
    %p85 = por %p83, %p84
    %s87 = sadd.s32 %s86, 1
    %p90 = scmp.eq.s32.totalorder %s10, 1
    %p91 = scmp.ne.s32.totalorder %s86, %s88
    %p92 = scmp.eq.s32.totalorder %s10, 0
    %p93 = por %p91, %p92
    %p94 = scmp.ne.s32.totalorder %s86, %s88
    %p95 = scmp.eq.s32.totalorder %s15, 1
    %p96 = por %p94, %p95
    %p97 = scmp.ne.s32.totalorder %s88, %s89
    %p98 = scmp.eq.s32.totalorder %s15, 0
    %p99 = por %p97, %p98
    %p100 = scmp.ne.s32.totalorder %s88, %s89
    %p101 = scmp.eq.s32.totalorder %s16, 1
    %p102 = por %p100, %p101
    %p104 = scmp.ne.s32.totalorder %s89, %s103
    %p105 = scmp.eq.s32.totalorder %s16, 0
    %p106 = por %p104, %p105
    %s107 = ssub.s32 %s10, %s17
    %p108 = scmp.eq.s32.totalorder %s107, 0
    %s110 = sadd.s32 %s109, 1
    %s111 = scalar_select %p108, %s109, %s110
    %p114 = pneg %p108
    %p115 = scmp.eq.s32.totalorder %s10, 1
    %p116 = por %p114, %p115
    %p117 = scmp.ne.s32.totalorder %s109, %s112
    %p118 = scmp.eq.s32.totalorder %s10, 0
    %p119 = por %p117, %p118
    %p120 = scmp.ne.s32.totalorder %s109, %s112
    %p121 = scmp.eq.s32.totalorder %s15, 1
    %p122 = por %p120, %p121
    %p123 = scmp.ne.s32.totalorder %s112, %s113
    %p124 = scmp.eq.s32.totalorder %s15, 0
    %p125 = por %p123, %p124
    %p126 = scmp.ne.s32.totalorder %s112, %s113
    %p127 = scmp.eq.s32.totalorder %s16, 1
    %p128 = por %p126, %p127
    %p130 = scmp.ne.s32.totalorder %s113, %s129
    %p131 = scmp.eq.s32.totalorder %s16, 0
    %p132 = por %p130, %p131
    %p133 = scmp.le.s32.totalorder 1, %s10
    %p134 = scmp.lt.s32.totalorder %s10, 3
    %p135 = pnand %p133, %p134
    %p136 = pneg %p135
    // Predicated region
    $region9: #{patchnet_forward.5} parent=5 // pred_check
      _
    $region10: #{patchnet_forward.5} parent=5 // pred_check_branch
      %138 = sbr.rel (%p135) target = $region12
    $region11: #{patchnet_forward.5} parent=5 // pred_region
      %s139 = ssub.s32 %s10, 1
      // Predicated region
      $region13: #{patchnet_forward.5} parent=11 // pred_check
        %p140 = pneg %p57
      $region14: #{patchnet_forward.5} parent=11 // pred_check_branch
        %142 = sbr.rel (%p140) target = $region16
      $region15: #{patchnet_forward.5} parent=11 // pred_region
        _
      $region16: #{patchnet_forward.5} parent=11 // pred_fallthru
        _
      // Predicated region
      $region17: #{patchnet_forward.5} parent=11 // pred_check
        %p143 = pneg %p78
      $region18: #{patchnet_forward.5} parent=11 // pred_check_branch
        %145 = sbr.rel (%p143) target = $region20
      $region19: #{patchnet_forward.5} parent=11 // pred_region
        _
      $region20: #{patchnet_forward.5} parent=11 // pred_fallthru
        _
      // Predicated region
      $region21: #{patchnet_forward.5} parent=11 // pred_check
        %p146 = pneg %p99
      $region22: #{patchnet_forward.5} parent=11 // pred_check_branch
        %148 = sbr.rel (%p146) target = $region24
      $region23: #{patchnet_forward.5} parent=11 // pred_region
        _
      $region24: #{patchnet_forward.5} parent=11 // pred_fallthru
        _
    $region12: #{patchnet_forward.5} parent=5 // pred_fallthru
      _
    %p149 = scmp.lt.s32.totalorder %s10, 2
    // Predicated region
    $region25: #{patchnet_forward.5} parent=5 // pred_check
      %p150 = pneg %p149
    $region26: #{patchnet_forward.5} parent=5 // pred_check_branch
      %152 = sbr.rel (%p150) target = $region28
    $region27: #{patchnet_forward.5} parent=5 // pred_region
      // Predicated region
      $region29: #{patchnet_forward.5} parent=27 // pred_check
        %p153 = pneg %p30
      $region30: #{patchnet_forward.5} parent=27 // pred_check_branch
        %155 = sbr.rel (%p153) target = $region32
      $region31: #{patchnet_forward.5} parent=27 // pred_region
        %s156 = smul.u32 4, %s10
        %p157 = scmp.lt.s32.totalorder %s156, 7
        %s158 = scalar_select %p157, %s156, 7
        %s159 = smul.addr %s158, 13
        %s160 = smul.addr %s159, 4
        %s161 = scalar_lea.vmem %s0, %s160
        %s162 = smul.u32 4, %s10
      $region32: #{patchnet_forward.5} parent=27 // pred_fallthru
        _
    $region28: #{patchnet_forward.5} parent=5 // pred_fallthru
      _
    %p163 = scmp.le.s32.totalorder 1, %s10
    %p164 = scmp.lt.s32.totalorder %s10, 3
    %p165 = pnand %p163, %p164
    %p166 = pneg %p165
    // Predicated region
    $region33: #{patchnet_forward.5} parent=5 // pred_check
      _
    $region34: #{patchnet_forward.5} parent=5 // pred_check_branch
      %168 = sbr.rel (%p165) target = $region36
    $region35: #{patchnet_forward.5} parent=5 // pred_region
      %s169 = ssub.s32 %s10, 1
      %s170 = smul.u32 4, %s15
      %p171 = scmp.lt.s32.totalorder %s170, 7
      %s172 = scalar_select %p171, %s170, 7
      %s173 = smul.addr %s172, 13
      %s174 = smul.addr %s173, 4
      %s175 = scalar_lea.vmem %s0, %s174
      %p176 = pneg %p36
      %p177 = pneg %p33
      %p178 = pneg %p57
      %p179 = pneg %p54
      %p180 = pneg %p78
      %p181 = pneg %p75
      %p182 = pneg %p99
      %p183 = pneg %p96
      %p184 = pneg %p125
      %p185 = pneg %p122
      %s186 = smul.u32 4, %s15
      %p187 = scmp.lt.s32.totalorder %s186, 7
      %s188 = scalar_select %p187, %s186, 7
      %s189 = smul.addr %s188, 2
      %s190 = smul.addr %s189, 4
      %s191 = scalar_lea.vmem %s4, %s190
      %s192 = smul.u32 4, %s15
      %p193 = scmp.lt.s32.totalorder %s192, 7
      %s194 = scalar_select %p193, %s192, 7
      %s195 = smul.addr %s194, 13
      %s196 = smul.addr %s195, 4
      %s197 = scalar_lea.vmem %s0, %s196
      %s198 = smul.u32 4, %s15
      %s199 = smul.u32 4, %s15
      %p200 = scmp.lt.s32.totalorder %s199, 7
      %s201 = scalar_select %p200, %s199, 7
      %s202 = smul.addr %s201, 2
      %s203 = smul.addr %s202, 4
      %s204 = scalar_lea.vmem %s4, %s203
      %s205 = smul.u32 4, %s15
      %v207 = vld [vmem:[%s197] sm:$0xf]
      %v208 = vld [vmem:[%s197 + $0x4] sm:$0xf]
      %v209 = vld [vmem:[%s197 + $0x8] sm:$0xf]
      %v210 = vld [vmem:[%s197 + $0xc] sm:$0xf]
      %v211 = vld [vmem:[%s197 + $0x10] sm:$0xf]
      %v212 = vld [vmem:[%s197 + $0x14] sm:$0xf]
      %v213 = vld [vmem:[%s197 + $0x18] sm:$0xf]
      %v214 = vld [vmem:[%s197 + $0x1c] sm:$0xf]
      %v215 = vld [vmem:[%s197 + $0x20] sm:$0xf]
      %v216 = vld [vmem:[%s197 + $0x24] sm:$0xf]
      %v217 = vld [vmem:[%s197 + $0x28] sm:$0xf]
      %v218 = vld [vmem:[%s197 + $0x2c] sm:$0xf]
      %v219 = vld [vmem:[%s197 + $0x30] sm:$0xf]
      %v220 = vld [vmem:[%s197 + $0x34] sm:$0xf]
      %v221 = vld [vmem:[%s197 + $0x38] sm:$0xf]
      %v222 = vld [vmem:[%s197 + $0x3c] sm:$0xf]
      %v223 = vld [vmem:[%s197 + $0x40] sm:$0xf]
      %v224 = vld [vmem:[%s197 + $0x44] sm:$0xf]
      %v225 = vld [vmem:[%s197 + $0x48] sm:$0xf]
      %v226 = vld [vmem:[%s197 + $0x4c] sm:$0xf]
      %v227 = vld [vmem:[%s197 + $0x50] sm:$0xf]
      %v228 = vld [vmem:[%s197 + $0x54] sm:$0xf]
      %v229 = vld [vmem:[%s197 + $0x58] sm:$0xf]
      %v230 = vld [vmem:[%s197 + $0x5c] sm:$0xf]
      %v231 = vld [vmem:[%s197 + $0x60] sm:$0xf]
      %v232 = vld [vmem:[%s197 + $0x64] sm:$0xf]
      %v233 = vld [vmem:[%s197 + $0x68] sm:$0xf]
      %v234 = vld [vmem:[%s197 + $0x6c] sm:$0xf]
      %v235 = vld [vmem:[%s197 + $0x70] sm:$0xf]
      %v236 = vld [vmem:[%s197 + $0x74] sm:$0xf]
      %v237 = vld [vmem:[%s197 + $0x78] sm:$0xf]
      %v238 = vld [vmem:[%s197 + $0x7c] sm:$0xf]
      %v239 = vld [vmem:[%s197 + $0x80] sm:$0xf]
      %v240 = vld [vmem:[%s197 + $0x84] sm:$0xf]
      %v241 = vld [vmem:[%s197 + $0x88] sm:$0xf]
      %v242 = vld [vmem:[%s197 + $0x8c] sm:$0xf]
      %v243 = vld [vmem:[%s197 + $0x90] sm:$0xf]
      %v244 = vld [vmem:[%s197 + $0x94] sm:$0xf]
      %v245 = vld [vmem:[%s197 + $0x98] sm:$0xf]
      %v246 = vld [vmem:[%s197 + $0x9c] sm:$0xf]
      %v247 = vld [vmem:[%s197 + $0xa0] sm:$0xf]
      %v248 = vld [vmem:[%s197 + $0xa4] sm:$0xf]
      %v249 = vld [vmem:[%s197 + $0xa8] sm:$0xf]
      %v250 = vld [vmem:[%s197 + $0xac] sm:$0xf]
      %v251 = vld [vmem:[%s197 + $0xb0] sm:$0xf]
      %v252 = vld [vmem:[%s197 + $0xb4] sm:$0xf]
      %v253 = vld [vmem:[%s197 + $0xb8] sm:$0xf]
      %v254 = vld [vmem:[%s197 + $0xbc] sm:$0xf]
      %v255 = vld [vmem:[%s197 + $0xc0] sm:$0xf]
      %v256 = vld [vmem:[%s197 + $0xc4] sm:$0xf]
      %v257 = vld [vmem:[%s197 + $0xc8] sm:$0xf]
      %v258 = vld [vmem:[%s197 + $0xcc] sm:$0xf]
      %v299 = vunpack.c.l.b16 %v207
      %v300 = vunpack.c.l.b16 %v208
      %v301 = vunpack.c.l.b16 %v209
      %v302 = vunpack.c.l.b16 %v210
      %v303 = vunpack.c.l.b16 %v211
      %v304 = vunpack.c.l.b16 %v212
      %v305 = vunpack.c.l.b16 %v213
      %v306 = vunpack.c.l.b16 %v214
      %v307 = vunpack.c.l.b16 %v215
      %v308 = vunpack.c.l.b16 %v216
      %v309 = vunpack.c.l.b16 %v220
      %v310 = vunpack.c.l.b16 %v221
      %v311 = vunpack.c.l.b16 %v222
      %v312 = vunpack.c.l.b16 %v223
      %v313 = vunpack.c.l.b16 %v224
      %v314 = vunpack.c.l.b16 %v225
      %v315 = vunpack.c.l.b16 %v226
      %v316 = vunpack.c.l.b16 %v227
      %v317 = vunpack.c.l.b16 %v228
      %v318 = vunpack.c.l.b16 %v229
      %v319 = vunpack.c.l.b16 %v233
      %v320 = vunpack.c.l.b16 %v234
      %v321 = vunpack.c.l.b16 %v235
      %v322 = vunpack.c.l.b16 %v236
      %v323 = vunpack.c.l.b16 %v237
      %v324 = vunpack.c.l.b16 %v238
      %v325 = vunpack.c.l.b16 %v239
      %v326 = vunpack.c.l.b16 %v240
      %v327 = vunpack.c.l.b16 %v241
      %v328 = vunpack.c.l.b16 %v242
      %v329 = vunpack.c.l.b16 %v246
      %v330 = vunpack.c.l.b16 %v247
      %v331 = vunpack.c.l.b16 %v248
      %v332 = vunpack.c.l.b16 %v249
      %v333 = vunpack.c.l.b16 %v250
      %v334 = vunpack.c.l.b16 %v251
      %v335 = vunpack.c.l.b16 %v252
      %v336 = vunpack.c.l.b16 %v253
      %v337 = vunpack.c.l.b16 %v254
      %v338 = vunpack.c.l.b16 %v255
      %v339 = vpack.c.b16 %v300, %v299
      %v340 = vpack.c.b16 %v302, %v301
      %v341 = vpack.c.b16 %v304, %v303
      %v342 = vpack.c.b16 %v306, %v305
      %v343 = vpack.c.b16 %v308, %v307
      %v344 = vpack.c.b16 %v310, %v309
      %v345 = vpack.c.b16 %v312, %v311
      %v346 = vpack.c.b16 %v314, %v313
      %v347 = vpack.c.b16 %v316, %v315
      %v348 = vpack.c.b16 %v318, %v317
      %v349 = vpack.c.b16 %v320, %v319
      %v350 = vpack.c.b16 %v322, %v321
      %v351 = vpack.c.b16 %v324, %v323
      %v352 = vpack.c.b16 %v326, %v325
      %v353 = vpack.c.b16 %v328, %v327
      %v354 = vpack.c.b16 %v330, %v329
      %v355 = vpack.c.b16 %v332, %v331
      %v356 = vpack.c.b16 %v334, %v333
      %v357 = vpack.c.b16 %v336, %v335
      %v358 = vpack.c.b16 %v338, %v337
      %v363 = vunpack.c.l.b16 %v217
      %v364 = vunpack.c.l.b16 %v230
      %v365 = vunpack.c.l.b16 %v243
      %v366 = vunpack.c.l.b16 %v256
      %v367 = vpack.c.b16 %v363, %v363
      %v368 = vpack.c.b16 %v364, %v364
      %v369 = vpack.c.b16 %v365, %v365
      %v370 = vpack.c.b16 %v366, %v366
      %vm371 = vsmask.f32 7424
      %v373 = vshrl.u32 %v339, 16
      %v375 = vshll.u32 %v339, 16
      %v377 = vrot.slane %v375, 1
      %v378 = vor.u32 %v373, %v377
      %v380 = vshll.u32 %v340, 16
      %v382 = vrot.slane %v380, 1
      %v383 = vsel %vm371, %v378, %v382
      %v384 = vshrl.u32 %v340, 16
      %v386 = vor.u32 %v384, %v382
      %v388 = vshll.u32 %v341, 16
      %v390 = vrot.slane %v388, 1
      %v391 = vsel %vm371, %v386, %v390
      %v392 = vshrl.u32 %v341, 16
      %v394 = vor.u32 %v392, %v390
      %v396 = vshll.u32 %v342, 16
      %v398 = vrot.slane %v396, 1
      %v399 = vsel %vm371, %v394, %v398
      %v400 = vshrl.u32 %v342, 16
      %v402 = vor.u32 %v400, %v398
      %v404 = vshll.u32 %v343, 16
      %v406 = vrot.slane %v404, 1
      %v407 = vsel %vm371, %v402, %v406
      %v408 = vshrl.u32 %v343, 16
      %v410 = vor.u32 %v408, %v406
      %v412 = vshll.u32 %v367, 16
      %v414 = vrot.slane %v412, 1
      %v415 = vsel %vm371, %v410, %v414
      %v417 = vshrl.u32 %v344, 16
      %v419 = vshll.u32 %v344, 16
      %v421 = vrot.slane %v419, 1
      %v422 = vor.u32 %v417, %v421
      %v424 = vshll.u32 %v345, 16
      %v426 = vrot.slane %v424, 1
      %v427 = vsel %vm371, %v422, %v426
      %v428 = vshrl.u32 %v345, 16
      %v430 = vor.u32 %v428, %v426
      %v432 = vshll.u32 %v346, 16
      %v434 = vrot.slane %v432, 1
      %v435 = vsel %vm371, %v430, %v434
      %v436 = vshrl.u32 %v346, 16
      %v438 = vor.u32 %v436, %v434
      %v440 = vshll.u32 %v347, 16
      %v442 = vrot.slane %v440, 1
      %v443 = vsel %vm371, %v438, %v442
      %v444 = vshrl.u32 %v347, 16
      %v446 = vor.u32 %v444, %v442
      %v448 = vshll.u32 %v348, 16
      %v450 = vrot.slane %v448, 1
      %v451 = vsel %vm371, %v446, %v450
      %v452 = vshrl.u32 %v348, 16
      %v454 = vor.u32 %v452, %v450
      %v456 = vshll.u32 %v368, 16
      %v458 = vrot.slane %v456, 1
      %v459 = vsel %vm371, %v454, %v458
      %v461 = vshrl.u32 %v349, 16
      %v463 = vshll.u32 %v349, 16
      %v465 = vrot.slane %v463, 1
      %v466 = vor.u32 %v461, %v465
      %v468 = vshll.u32 %v350, 16
      %v470 = vrot.slane %v468, 1
      %v471 = vsel %vm371, %v466, %v470
      %v472 = vshrl.u32 %v350, 16
      %v474 = vor.u32 %v472, %v470
      %v476 = vshll.u32 %v351, 16
      %v478 = vrot.slane %v476, 1
      %v479 = vsel %vm371, %v474, %v478
      %v480 = vshrl.u32 %v351, 16
      %v482 = vor.u32 %v480, %v478
      %v484 = vshll.u32 %v352, 16
      %v486 = vrot.slane %v484, 1
      %v487 = vsel %vm371, %v482, %v486
      %v488 = vshrl.u32 %v352, 16
      %v490 = vor.u32 %v488, %v486
      %v492 = vshll.u32 %v353, 16
      %v494 = vrot.slane %v492, 1
      %v495 = vsel %vm371, %v490, %v494
      %v496 = vshrl.u32 %v353, 16
      %v498 = vor.u32 %v496, %v494
      %v500 = vshll.u32 %v369, 16
      %v502 = vrot.slane %v500, 1
      %v503 = vsel %vm371, %v498, %v502
      %v505 = vshrl.u32 %v354, 16
      %v507 = vshll.u32 %v354, 16
      %v509 = vrot.slane %v507, 1
      %v510 = vor.u32 %v505, %v509
      %v512 = vshll.u32 %v355, 16
      %v514 = vrot.slane %v512, 1
      %v515 = vsel %vm371, %v510, %v514
      %v516 = vshrl.u32 %v355, 16
      %v518 = vor.u32 %v516, %v514
      %v520 = vshll.u32 %v356, 16
      %v522 = vrot.slane %v520, 1
      %v523 = vsel %vm371, %v518, %v522
      %v524 = vshrl.u32 %v356, 16
      %v526 = vor.u32 %v524, %v522
      %v528 = vshll.u32 %v357, 16
      %v530 = vrot.slane %v528, 1
      %v531 = vsel %vm371, %v526, %v530
      %v532 = vshrl.u32 %v357, 16
      %v534 = vor.u32 %v532, %v530
      %v536 = vshll.u32 %v358, 16
      %v538 = vrot.slane %v536, 1
      %v539 = vsel %vm371, %v534, %v538
      %v540 = vshrl.u32 %v358, 16
      %v542 = vor.u32 %v540, %v538
      %v544 = vshll.u32 %v370, 16
      %v546 = vrot.slane %v544, 1
      %v547 = vsel %vm371, %v542, %v546
      %548 = vrot.lane.b32.xlu0 %v383, 8
      %v549 = vpop.permute.xlu0 %548
      %550 = vrot.lane.b32.xlu0 %v391, 8
      %v551 = vpop.permute.xlu0 %550
      %552 = vrot.lane.b32.xlu0 %v399, 8
      %v553 = vpop.permute.xlu0 %552
      %554 = vrot.lane.b32.xlu0 %v407, 8
      %v555 = vpop.permute.xlu0 %554
      %556 = vrot.lane.b32.xlu0 %v415, 8
      %v557 = vpop.permute.xlu0 %556
      %558 = vrot.lane.b32.xlu0 %v427, 8
      %v559 = vpop.permute.xlu0 %558
      %560 = vrot.lane.b32.xlu0 %v435, 8
      %v561 = vpop.permute.xlu0 %560
      %562 = vrot.lane.b32.xlu0 %v443, 8
      %v563 = vpop.permute.xlu0 %562
      %564 = vrot.lane.b32.xlu0 %v451, 8
      %v565 = vpop.permute.xlu0 %564
      %566 = vrot.lane.b32.xlu0 %v459, 8
      %v567 = vpop.permute.xlu0 %566
      %568 = vrot.lane.b32.xlu0 %v471, 8
      %v569 = vpop.permute.xlu0 %568
      %570 = vrot.lane.b32.xlu0 %v479, 8
      %v571 = vpop.permute.xlu0 %570
      %572 = vrot.lane.b32.xlu0 %v487, 8
      %v573 = vpop.permute.xlu0 %572
      %574 = vrot.lane.b32.xlu0 %v495, 8
      %v575 = vpop.permute.xlu0 %574
      %576 = vrot.lane.b32.xlu0 %v503, 8
      %v577 = vpop.permute.xlu0 %576
      %578 = vrot.lane.b32.xlu0 %v515, 8
      %v579 = vpop.permute.xlu0 %578
      %580 = vrot.lane.b32.xlu0 %v523, 8
      %v581 = vpop.permute.xlu0 %580
      %582 = vrot.lane.b32.xlu0 %v531, 8
      %v583 = vpop.permute.xlu0 %582
      %584 = vrot.lane.b32.xlu0 %v539, 8
      %v585 = vpop.permute.xlu0 %584
      %586 = vrot.lane.b32.xlu0 %v547, 8
      %v587 = vpop.permute.xlu0 %586
      %vm588 = vcmask 1046528
      %v589 = vrot.slane %v339, 1
      %v590 = vrot.slane %v340, 1
      %v591 = vsel %vm588, %v589, %v590
      %v592 = vrot.slane %v341, 1
      %v593 = vsel %vm588, %v590, %v592
      %v594 = vrot.slane %v342, 1
      %v595 = vsel %vm588, %v592, %v594
      %v596 = vrot.slane %v343, 1
      %v597 = vsel %vm588, %v594, %v596
      %v598 = vrot.slane %v367, 1
      %v599 = vsel %vm588, %v596, %v598
      %v600 = vrot.slane %v344, 1
      %v601 = vrot.slane %v345, 1
      %v602 = vsel %vm588, %v600, %v601
      %v603 = vrot.slane %v346, 1
      %v604 = vsel %vm588, %v601, %v603
      %v605 = vrot.slane %v347, 1
      %v606 = vsel %vm588, %v603, %v605
      %v607 = vrot.slane %v348, 1
      %v608 = vsel %vm588, %v605, %v607
      %v609 = vrot.slane %v368, 1
      %v610 = vsel %vm588, %v607, %v609
      %v611 = vrot.slane %v349, 1
      %v612 = vrot.slane %v350, 1
      %v613 = vsel %vm588, %v611, %v612
      %v614 = vrot.slane %v351, 1
      %v615 = vsel %vm588, %v612, %v614
      %v616 = vrot.slane %v352, 1
      %v617 = vsel %vm588, %v614, %v616
      %v618 = vrot.slane %v353, 1
      %v619 = vsel %vm588, %v616, %v618
      %v620 = vrot.slane %v369, 1
      %v621 = vsel %vm588, %v618, %v620
      %v622 = vrot.slane %v354, 1
      %v623 = vrot.slane %v355, 1
      %v624 = vsel %vm588, %v622, %v623
      %v625 = vrot.slane %v356, 1
      %v626 = vsel %vm588, %v623, %v625
      %v627 = vrot.slane %v357, 1
      %v628 = vsel %vm588, %v625, %v627
      %v629 = vrot.slane %v358, 1
      %v630 = vsel %vm588, %v627, %v629
      %v631 = vrot.slane %v370, 1
      %v632 = vsel %vm588, %v629, %v631
      %633 = vrot.lane.b32.xlu0 %v591, 16
      %v634 = vpop.permute.xlu0 %633
      %635 = vrot.lane.b32.xlu0 %v593, 16
      %v636 = vpop.permute.xlu0 %635
      %637 = vrot.lane.b32.xlu0 %v595, 16
      %v638 = vpop.permute.xlu0 %637
      %639 = vrot.lane.b32.xlu0 %v597, 16
      %v640 = vpop.permute.xlu0 %639
      %641 = vrot.lane.b32.xlu0 %v599, 16
      %v642 = vpop.permute.xlu0 %641
      %643 = vrot.lane.b32.xlu0 %v602, 16
      %v644 = vpop.permute.xlu0 %643
      %645 = vrot.lane.b32.xlu0 %v604, 16
      %v646 = vpop.permute.xlu0 %645
      %647 = vrot.lane.b32.xlu0 %v606, 16
      %v648 = vpop.permute.xlu0 %647
      %649 = vrot.lane.b32.xlu0 %v608, 16
      %v650 = vpop.permute.xlu0 %649
      %651 = vrot.lane.b32.xlu0 %v610, 16
      %v652 = vpop.permute.xlu0 %651
      %653 = vrot.lane.b32.xlu0 %v613, 16
      %v654 = vpop.permute.xlu0 %653
      %655 = vrot.lane.b32.xlu0 %v615, 16
      %v656 = vpop.permute.xlu0 %655
      %657 = vrot.lane.b32.xlu0 %v617, 16
      %v658 = vpop.permute.xlu0 %657
      %659 = vrot.lane.b32.xlu0 %v619, 16
      %v660 = vpop.permute.xlu0 %659
      %661 = vrot.lane.b32.xlu0 %v621, 16
      %v662 = vpop.permute.xlu0 %661
      %663 = vrot.lane.b32.xlu0 %v624, 16
      %v664 = vpop.permute.xlu0 %663
      %665 = vrot.lane.b32.xlu0 %v626, 16
      %v666 = vpop.permute.xlu0 %665
      %667 = vrot.lane.b32.xlu0 %v628, 16
      %v668 = vpop.permute.xlu0 %667
      %669 = vrot.lane.b32.xlu0 %v630, 16
      %v670 = vpop.permute.xlu0 %669
      %671 = vrot.lane.b32.xlu0 %v632, 16
      %v672 = vpop.permute.xlu0 %671
      %v677 = vunpack.c.l.b16 %v218
      %v678 = vunpack.c.l.b16 %v231
      %v679 = vunpack.c.l.b16 %v244
      %v680 = vunpack.c.l.b16 %v257
      %v681 = vpack.c.b16 %v301, %v300
      %v682 = vpack.c.b16 %v303, %v302
      %v683 = vpack.c.b16 %v305, %v304
      %v684 = vpack.c.b16 %v307, %v306
      %v685 = vpack.c.b16 %v363, %v308
      %v686 = vpack.c.b16 %v677, %v677
      %v687 = vpack.c.b16 %v311, %v310
      %v688 = vpack.c.b16 %v313, %v312
      %v689 = vpack.c.b16 %v315, %v314
      %v690 = vpack.c.b16 %v317, %v316
      %v691 = vpack.c.b16 %v364, %v318
      %v692 = vpack.c.b16 %v678, %v678
      %v693 = vpack.c.b16 %v321, %v320
      %v694 = vpack.c.b16 %v323, %v322
      %v695 = vpack.c.b16 %v325, %v324
      %v696 = vpack.c.b16 %v327, %v326
      %v697 = vpack.c.b16 %v365, %v328
      %v698 = vpack.c.b16 %v679, %v679
      %v699 = vpack.c.b16 %v331, %v330
      %v700 = vpack.c.b16 %v333, %v332
      %v701 = vpack.c.b16 %v335, %v334
      %v702 = vpack.c.b16 %v337, %v336
      %v703 = vpack.c.b16 %v366, %v338
      %v704 = vpack.c.b16 %v680, %v680
      %v705 = vrot.slane %v681, 1
      %v706 = vrot.slane %v682, 1
      %v707 = vsel %vm588, %v705, %v706
      %v708 = vrot.slane %v683, 1
      %v709 = vsel %vm588, %v706, %v708
      %v710 = vrot.slane %v684, 1
      %v711 = vsel %vm588, %v708, %v710
      %v712 = vrot.slane %v685, 1
      %v713 = vsel %vm588, %v710, %v712
      %v714 = vrot.slane %v686, 1
      %v715 = vsel %vm588, %v712, %v714
      %v716 = vrot.slane %v687, 1
      %v717 = vrot.slane %v688, 1
      %v718 = vsel %vm588, %v716, %v717
      %v719 = vrot.slane %v689, 1
      %v720 = vsel %vm588, %v717, %v719
      %v721 = vrot.slane %v690, 1
      %v722 = vsel %vm588, %v719, %v721
      %v723 = vrot.slane %v691, 1
      %v724 = vsel %vm588, %v721, %v723
      %v725 = vrot.slane %v692, 1
      %v726 = vsel %vm588, %v723, %v725
      %v727 = vrot.slane %v693, 1
      %v728 = vrot.slane %v694, 1
      %v729 = vsel %vm588, %v727, %v728
      %v730 = vrot.slane %v695, 1
      %v731 = vsel %vm588, %v728, %v730
      %v732 = vrot.slane %v696, 1
      %v733 = vsel %vm588, %v730, %v732
      %v734 = vrot.slane %v697, 1
      %v735 = vsel %vm588, %v732, %v734
      %v736 = vrot.slane %v698, 1
      %v737 = vsel %vm588, %v734, %v736
      %v738 = vrot.slane %v699, 1
      %v739 = vrot.slane %v700, 1
      %v740 = vsel %vm588, %v738, %v739
      %v741 = vrot.slane %v701, 1
      %v742 = vsel %vm588, %v739, %v741
      %v743 = vrot.slane %v702, 1
      %v744 = vsel %vm588, %v741, %v743
      %v745 = vrot.slane %v703, 1
      %v746 = vsel %vm588, %v743, %v745
      %v747 = vrot.slane %v704, 1
      %v748 = vsel %vm588, %v745, %v747
      %749 = vrot.lane.b32.xlu0 %v707, 24
      %v750 = vpop.permute.xlu0 %749
      %751 = vrot.lane.b32.xlu0 %v709, 24
      %v752 = vpop.permute.xlu0 %751
      %753 = vrot.lane.b32.xlu0 %v711, 24
      %v754 = vpop.permute.xlu0 %753
      %755 = vrot.lane.b32.xlu0 %v713, 24
      %v756 = vpop.permute.xlu0 %755
      %757 = vrot.lane.b32.xlu0 %v715, 24
      %v758 = vpop.permute.xlu0 %757
      %759 = vrot.lane.b32.xlu0 %v718, 24
      %v760 = vpop.permute.xlu0 %759
      %761 = vrot.lane.b32.xlu0 %v720, 24
      %v762 = vpop.permute.xlu0 %761
      %763 = vrot.lane.b32.xlu0 %v722, 24
      %v764 = vpop.permute.xlu0 %763
      %765 = vrot.lane.b32.xlu0 %v724, 24
      %v766 = vpop.permute.xlu0 %765
      %767 = vrot.lane.b32.xlu0 %v726, 24
      %v768 = vpop.permute.xlu0 %767
      %769 = vrot.lane.b32.xlu0 %v729, 24
      %v770 = vpop.permute.xlu0 %769
      %771 = vrot.lane.b32.xlu0 %v731, 24
      %v772 = vpop.permute.xlu0 %771
      %773 = vrot.lane.b32.xlu0 %v733, 24
      %v774 = vpop.permute.xlu0 %773
      %775 = vrot.lane.b32.xlu0 %v735, 24
      %v776 = vpop.permute.xlu0 %775
      %777 = vrot.lane.b32.xlu0 %v737, 24
      %v778 = vpop.permute.xlu0 %777
      %779 = vrot.lane.b32.xlu0 %v740, 24
      %v780 = vpop.permute.xlu0 %779
      %781 = vrot.lane.b32.xlu0 %v742, 24
      %v782 = vpop.permute.xlu0 %781
      %783 = vrot.lane.b32.xlu0 %v744, 24
      %v784 = vpop.permute.xlu0 %783
      %785 = vrot.lane.b32.xlu0 %v746, 24
      %v786 = vpop.permute.xlu0 %785
      %787 = vrot.lane.b32.xlu0 %v748, 24
      %v788 = vpop.permute.xlu0 %787
      %vm789 = vsmask.f32 6400
      %v791 = vshrl.u32 %v681, 16
      %v793 = vrot.slane %v791, 1
      %v794 = vshll.u32 %v681, 16
      %v796 = vrot.slane %v794, 2
      %v797 = vor.u32 %v793, %v796
      %v799 = vshrl.u32 %v682, 16
      %v801 = vrot.slane %v799, 1
      %v802 = vshll.u32 %v682, 16
      %v804 = vrot.slane %v802, 2
      %v805 = vor.u32 %v801, %v804
      %v806 = vsel %vm789, %v797, %v805
      %v808 = vshrl.u32 %v683, 16
      %v810 = vrot.slane %v808, 1
      %v811 = vshll.u32 %v683, 16
      %v813 = vrot.slane %v811, 2
      %v814 = vor.u32 %v810, %v813
      %v815 = vsel %vm789, %v805, %v814
      %v817 = vshrl.u32 %v684, 16
      %v819 = vrot.slane %v817, 1
      %v820 = vshll.u32 %v684, 16
      %v822 = vrot.slane %v820, 2
      %v823 = vor.u32 %v819, %v822
      %v824 = vsel %vm789, %v814, %v823
      %v826 = vshrl.u32 %v685, 16
      %v828 = vrot.slane %v826, 1
      %v829 = vshll.u32 %v685, 16
      %v831 = vrot.slane %v829, 2
      %v832 = vor.u32 %v828, %v831
      %v833 = vsel %vm789, %v823, %v832
      %v835 = vshrl.u32 %v686, 16
      %v837 = vrot.slane %v835, 1
      %v838 = vshll.u32 %v686, 16
      %v840 = vrot.slane %v838, 2
      %v841 = vor.u32 %v837, %v840
      %v842 = vsel %vm789, %v832, %v841
      %v844 = vshrl.u32 %v687, 16
      %v846 = vrot.slane %v844, 1
      %v847 = vshll.u32 %v687, 16
      %v849 = vrot.slane %v847, 2
      %v850 = vor.u32 %v846, %v849
      %v852 = vshrl.u32 %v688, 16
      %v854 = vrot.slane %v852, 1
      %v855 = vshll.u32 %v688, 16
      %v857 = vrot.slane %v855, 2
      %v858 = vor.u32 %v854, %v857
      %v859 = vsel %vm789, %v850, %v858
      %v861 = vshrl.u32 %v689, 16
      %v863 = vrot.slane %v861, 1
      %v864 = vshll.u32 %v689, 16
      %v866 = vrot.slane %v864, 2
      %v867 = vor.u32 %v863, %v866
      %v868 = vsel %vm789, %v858, %v867
      %v870 = vshrl.u32 %v690, 16
      %v872 = vrot.slane %v870, 1
      %v873 = vshll.u32 %v690, 16
      %v875 = vrot.slane %v873, 2
      %v876 = vor.u32 %v872, %v875
      %v877 = vsel %vm789, %v867, %v876
      %v879 = vshrl.u32 %v691, 16
      %v881 = vrot.slane %v879, 1
      %v882 = vshll.u32 %v691, 16
      %v884 = vrot.slane %v882, 2
      %v885 = vor.u32 %v881, %v884
      %v886 = vsel %vm789, %v876, %v885
      %v888 = vshrl.u32 %v692, 16
      %v890 = vrot.slane %v888, 1
      %v891 = vshll.u32 %v692, 16
      %v893 = vrot.slane %v891, 2
      %v894 = vor.u32 %v890, %v893
      %v895 = vsel %vm789, %v885, %v894
      %v897 = vshrl.u32 %v693, 16
      %v899 = vrot.slane %v897, 1
      %v900 = vshll.u32 %v693, 16
      %v902 = vrot.slane %v900, 2
      %v903 = vor.u32 %v899, %v902
      %v905 = vshrl.u32 %v694, 16
      %v907 = vrot.slane %v905, 1
      %v908 = vshll.u32 %v694, 16
      %v910 = vrot.slane %v908, 2
      %v911 = vor.u32 %v907, %v910
      %v912 = vsel %vm789, %v903, %v911
      %v914 = vshrl.u32 %v695, 16
      %v916 = vrot.slane %v914, 1
      %v917 = vshll.u32 %v695, 16
      %v919 = vrot.slane %v917, 2
      %v920 = vor.u32 %v916, %v919
      %v921 = vsel %vm789, %v911, %v920
      %v923 = vshrl.u32 %v696, 16
      %v925 = vrot.slane %v923, 1
      %v926 = vshll.u32 %v696, 16
      %v928 = vrot.slane %v926, 2
      %v929 = vor.u32 %v925, %v928
      %v930 = vsel %vm789, %v920, %v929
      %v932 = vshrl.u32 %v697, 16
      %v934 = vrot.slane %v932, 1
      %v935 = vshll.u32 %v697, 16
      %v937 = vrot.slane %v935, 2
      %v938 = vor.u32 %v934, %v937
      %v939 = vsel %vm789, %v929, %v938
      %v941 = vshrl.u32 %v698, 16
      %v943 = vrot.slane %v941, 1
      %v944 = vshll.u32 %v698, 16
      %v946 = vrot.slane %v944, 2
      %v947 = vor.u32 %v943, %v946
      %v948 = vsel %vm789, %v938, %v947
      %v950 = vshrl.u32 %v699, 16
      %v952 = vrot.slane %v950, 1
      %v953 = vshll.u32 %v699, 16
      %v955 = vrot.slane %v953, 2
      %v956 = vor.u32 %v952, %v955
      %v958 = vshrl.u32 %v700, 16
      %v960 = vrot.slane %v958, 1
      %v961 = vshll.u32 %v700, 16
      %v963 = vrot.slane %v961, 2
      %v964 = vor.u32 %v960, %v963
      %v965 = vsel %vm789, %v956, %v964
      %v967 = vshrl.u32 %v701, 16
      %v969 = vrot.slane %v967, 1
      %v970 = vshll.u32 %v701, 16
      %v972 = vrot.slane %v970, 2
      %v973 = vor.u32 %v969, %v972
      %v974 = vsel %vm789, %v964, %v973
      %v976 = vshrl.u32 %v702, 16
      %v978 = vrot.slane %v976, 1
      %v979 = vshll.u32 %v702, 16
      %v981 = vrot.slane %v979, 2
      %v982 = vor.u32 %v978, %v981
      %v983 = vsel %vm789, %v973, %v982
      %v985 = vshrl.u32 %v703, 16
      %v987 = vrot.slane %v985, 1
      %v988 = vshll.u32 %v703, 16
      %v990 = vrot.slane %v988, 2
      %v991 = vor.u32 %v987, %v990
      %v992 = vsel %vm789, %v982, %v991
      %v994 = vshrl.u32 %v704, 16
      %v996 = vrot.slane %v994, 1
      %v997 = vshll.u32 %v704, 16
      %v999 = vrot.slane %v997, 2
      %v1000 = vor.u32 %v996, %v999
      %v1001 = vsel %vm789, %v991, %v1000
      %1002 = vrot.lane.b32.xlu0 %v806, 32
      %v1003 = vpop.permute.xlu0 %1002
      %1004 = vrot.lane.b32.xlu0 %v815, 32
      %v1005 = vpop.permute.xlu0 %1004
      %1006 = vrot.lane.b32.xlu0 %v824, 32
      %v1007 = vpop.permute.xlu0 %1006
      %1008 = vrot.lane.b32.xlu0 %v833, 32
      %v1009 = vpop.permute.xlu0 %1008
      %1010 = vrot.lane.b32.xlu0 %v842, 32
      %v1011 = vpop.permute.xlu0 %1010
      %1012 = vrot.lane.b32.xlu0 %v859, 32
      %v1013 = vpop.permute.xlu0 %1012
      %1014 = vrot.lane.b32.xlu0 %v868, 32
      %v1015 = vpop.permute.xlu0 %1014
      %1016 = vrot.lane.b32.xlu0 %v877, 32
      %v1017 = vpop.permute.xlu0 %1016
      %1018 = vrot.lane.b32.xlu0 %v886, 32
      %v1019 = vpop.permute.xlu0 %1018
      %1020 = vrot.lane.b32.xlu0 %v895, 32
      %v1021 = vpop.permute.xlu0 %1020
      %1022 = vrot.lane.b32.xlu0 %v912, 32
      %v1023 = vpop.permute.xlu0 %1022
      %1024 = vrot.lane.b32.xlu0 %v921, 32
      %v1025 = vpop.permute.xlu0 %1024
      %1026 = vrot.lane.b32.xlu0 %v930, 32
      %v1027 = vpop.permute.xlu0 %1026
      %1028 = vrot.lane.b32.xlu0 %v939, 32
      %v1029 = vpop.permute.xlu0 %1028
      %1030 = vrot.lane.b32.xlu0 %v948, 32
      %v1031 = vpop.permute.xlu0 %1030
      %1032 = vrot.lane.b32.xlu0 %v965, 32
      %v1033 = vpop.permute.xlu0 %1032
      %1034 = vrot.lane.b32.xlu0 %v974, 32
      %v1035 = vpop.permute.xlu0 %1034
      %1036 = vrot.lane.b32.xlu0 %v983, 32
      %v1037 = vpop.permute.xlu0 %1036
      %1038 = vrot.lane.b32.xlu0 %v992, 32
      %v1039 = vpop.permute.xlu0 %1038
      %1040 = vrot.lane.b32.xlu0 %v1001, 32
      %v1041 = vpop.permute.xlu0 %1040
      %vm1042 = vcmask 1045504
      %v1043 = vrot.slane %v681, 2
      %v1044 = vrot.slane %v682, 2
      %v1045 = vsel %vm1042, %v1043, %v1044
      %v1046 = vrot.slane %v683, 2
      %v1047 = vsel %vm1042, %v1044, %v1046
      %v1048 = vrot.slane %v684, 2
      %v1049 = vsel %vm1042, %v1046, %v1048
      %v1050 = vrot.slane %v685, 2
      %v1051 = vsel %vm1042, %v1048, %v1050
      %v1052 = vrot.slane %v686, 2
      %v1053 = vsel %vm1042, %v1050, %v1052
      %v1054 = vrot.slane %v687, 2
      %v1055 = vrot.slane %v688, 2
      %v1056 = vsel %vm1042, %v1054, %v1055
      %v1057 = vrot.slane %v689, 2
      %v1058 = vsel %vm1042, %v1055, %v1057
      %v1059 = vrot.slane %v690, 2
      %v1060 = vsel %vm1042, %v1057, %v1059
      %v1061 = vrot.slane %v691, 2
      %v1062 = vsel %vm1042, %v1059, %v1061
      %v1063 = vrot.slane %v692, 2
      %v1064 = vsel %vm1042, %v1061, %v1063
      %v1065 = vrot.slane %v693, 2
      %v1066 = vrot.slane %v694, 2
      %v1067 = vsel %vm1042, %v1065, %v1066
      %v1068 = vrot.slane %v695, 2
      %v1069 = vsel %vm1042, %v1066, %v1068
      %v1070 = vrot.slane %v696, 2
      %v1071 = vsel %vm1042, %v1068, %v1070
      %v1072 = vrot.slane %v697, 2
      %v1073 = vsel %vm1042, %v1070, %v1072
      %v1074 = vrot.slane %v698, 2
      %v1075 = vsel %vm1042, %v1072, %v1074
      %v1076 = vrot.slane %v699, 2
      %v1077 = vrot.slane %v700, 2
      %v1078 = vsel %vm1042, %v1076, %v1077
      %v1079 = vrot.slane %v701, 2
      %v1080 = vsel %vm1042, %v1077, %v1079
      %v1081 = vrot.slane %v702, 2
      %v1082 = vsel %vm1042, %v1079, %v1081
      %v1083 = vrot.slane %v703, 2
      %v1084 = vsel %vm1042, %v1081, %v1083
      %v1085 = vrot.slane %v704, 2
      %v1086 = vsel %vm1042, %v1083, %v1085
      %1087 = vrot.lane.b32.xlu0 %v1045, 40
      %v1088 = vpop.permute.xlu0 %1087
      %1089 = vrot.lane.b32.xlu0 %v1047, 40
      %v1090 = vpop.permute.xlu0 %1089
      %1091 = vrot.lane.b32.xlu0 %v1049, 40
      %v1092 = vpop.permute.xlu0 %1091
      %1093 = vrot.lane.b32.xlu0 %v1051, 40
      %v1094 = vpop.permute.xlu0 %1093
      %1095 = vrot.lane.b32.xlu0 %v1053, 40
      %v1096 = vpop.permute.xlu0 %1095
      %1097 = vrot.lane.b32.xlu0 %v1056, 40
      %v1098 = vpop.permute.xlu0 %1097
      %1099 = vrot.lane.b32.xlu0 %v1058, 40
      %v1100 = vpop.permute.xlu0 %1099
      %1101 = vrot.lane.b32.xlu0 %v1060, 40
      %v1102 = vpop.permute.xlu0 %1101
      %1103 = vrot.lane.b32.xlu0 %v1062, 40
      %v1104 = vpop.permute.xlu0 %1103
      %1105 = vrot.lane.b32.xlu0 %v1064, 40
      %v1106 = vpop.permute.xlu0 %1105
      %1107 = vrot.lane.b32.xlu0 %v1067, 40
      %v1108 = vpop.permute.xlu0 %1107
      %1109 = vrot.lane.b32.xlu0 %v1069, 40
      %v1110 = vpop.permute.xlu0 %1109
      %1111 = vrot.lane.b32.xlu0 %v1071, 40
      %v1112 = vpop.permute.xlu0 %1111
      %1113 = vrot.lane.b32.xlu0 %v1073, 40
      %v1114 = vpop.permute.xlu0 %1113
      %1115 = vrot.lane.b32.xlu0 %v1075, 40
      %v1116 = vpop.permute.xlu0 %1115
      %1117 = vrot.lane.b32.xlu0 %v1078, 40
      %v1118 = vpop.permute.xlu0 %1117
      %1119 = vrot.lane.b32.xlu0 %v1080, 40
      %v1120 = vpop.permute.xlu0 %1119
      %1121 = vrot.lane.b32.xlu0 %v1082, 40
      %v1122 = vpop.permute.xlu0 %1121
      %1123 = vrot.lane.b32.xlu0 %v1084, 40
      %v1124 = vpop.permute.xlu0 %1123
      %1125 = vrot.lane.b32.xlu0 %v1086, 40
      %v1126 = vpop.permute.xlu0 %1125
      %v1131 = vunpack.c.l.b16 %v219
      %v1132 = vunpack.c.l.b16 %v232
      %v1133 = vunpack.c.l.b16 %v245
      %v1134 = vunpack.c.l.b16 %v258
      %v1135 = vpack.c.b16 %v677, %v363
      %v1136 = vpack.c.b16 %v1131, %v1131
      %v1137 = vpack.c.b16 %v678, %v364
      %v1138 = vpack.c.b16 %v1132, %v1132
      %v1139 = vpack.c.b16 %v679, %v365
      %v1140 = vpack.c.b16 %v1133, %v1133
      %v1141 = vpack.c.b16 %v680, %v366
      %v1142 = vpack.c.b16 %v1134, %v1134
      %v1143 = vrot.slane %v340, 2
      %v1144 = vrot.slane %v341, 2
      %v1145 = vsel %vm1042, %v1143, %v1144
      %v1146 = vrot.slane %v342, 2
      %v1147 = vsel %vm1042, %v1144, %v1146
      %v1148 = vrot.slane %v343, 2
      %v1149 = vsel %vm1042, %v1146, %v1148
      %v1150 = vrot.slane %v1135, 2
      %v1151 = vsel %vm1042, %v1148, %v1150
      %v1152 = vrot.slane %v1136, 2
      %v1153 = vsel %vm1042, %v1150, %v1152
      %v1154 = vrot.slane %v345, 2
      %v1155 = vrot.slane %v346, 2
      %v1156 = vsel %vm1042, %v1154, %v1155
      %v1157 = vrot.slane %v347, 2
      %v1158 = vsel %vm1042, %v1155, %v1157
      %v1159 = vrot.slane %v348, 2
      %v1160 = vsel %vm1042, %v1157, %v1159
      %v1161 = vrot.slane %v1137, 2
      %v1162 = vsel %vm1042, %v1159, %v1161
      %v1163 = vrot.slane %v1138, 2
      %v1164 = vsel %vm1042, %v1161, %v1163
      %v1165 = vrot.slane %v350, 2
      %v1166 = vrot.slane %v351, 2
      %v1167 = vsel %vm1042, %v1165, %v1166
      %v1168 = vrot.slane %v352, 2
      %v1169 = vsel %vm1042, %v1166, %v1168
      %v1170 = vrot.slane %v353, 2
      %v1171 = vsel %vm1042, %v1168, %v1170
      %v1172 = vrot.slane %v1139, 2
      %v1173 = vsel %vm1042, %v1170, %v1172
      %v1174 = vrot.slane %v1140, 2
      %v1175 = vsel %vm1042, %v1172, %v1174
      %v1176 = vrot.slane %v355, 2
      %v1177 = vrot.slane %v356, 2
      %v1178 = vsel %vm1042, %v1176, %v1177
      %v1179 = vrot.slane %v357, 2
      %v1180 = vsel %vm1042, %v1177, %v1179
      %v1181 = vrot.slane %v358, 2
      %v1182 = vsel %vm1042, %v1179, %v1181
      %v1183 = vrot.slane %v1141, 2
      %v1184 = vsel %vm1042, %v1181, %v1183
      %v1185 = vrot.slane %v1142, 2
      %v1186 = vsel %vm1042, %v1183, %v1185
      %1187 = vrot.lane.b32.xlu0 %v1145, 48
      %v1188 = vpop.permute.xlu0 %1187
      %1189 = vrot.lane.b32.xlu0 %v1147, 48
      %v1190 = vpop.permute.xlu0 %1189
      %1191 = vrot.lane.b32.xlu0 %v1149, 48
      %v1192 = vpop.permute.xlu0 %1191
      %1193 = vrot.lane.b32.xlu0 %v1151, 48
      %v1194 = vpop.permute.xlu0 %1193
      %1195 = vrot.lane.b32.xlu0 %v1153, 48
      %v1196 = vpop.permute.xlu0 %1195
      %1197 = vrot.lane.b32.xlu0 %v1156, 48
      %v1198 = vpop.permute.xlu0 %1197
      %1199 = vrot.lane.b32.xlu0 %v1158, 48
      %v1200 = vpop.permute.xlu0 %1199
      %1201 = vrot.lane.b32.xlu0 %v1160, 48
      %v1202 = vpop.permute.xlu0 %1201
      %1203 = vrot.lane.b32.xlu0 %v1162, 48
      %v1204 = vpop.permute.xlu0 %1203
      %1205 = vrot.lane.b32.xlu0 %v1164, 48
      %v1206 = vpop.permute.xlu0 %1205
      %1207 = vrot.lane.b32.xlu0 %v1167, 48
      %v1208 = vpop.permute.xlu0 %1207
      %1209 = vrot.lane.b32.xlu0 %v1169, 48
      %v1210 = vpop.permute.xlu0 %1209
      %1211 = vrot.lane.b32.xlu0 %v1171, 48
      %v1212 = vpop.permute.xlu0 %1211
      %1213 = vrot.lane.b32.xlu0 %v1173, 48
      %v1214 = vpop.permute.xlu0 %1213
      %1215 = vrot.lane.b32.xlu0 %v1175, 48
      %v1216 = vpop.permute.xlu0 %1215
      %1217 = vrot.lane.b32.xlu0 %v1178, 48
      %v1218 = vpop.permute.xlu0 %1217
      %1219 = vrot.lane.b32.xlu0 %v1180, 48
      %v1220 = vpop.permute.xlu0 %1219
      %1221 = vrot.lane.b32.xlu0 %v1182, 48
      %v1222 = vpop.permute.xlu0 %1221
      %1223 = vrot.lane.b32.xlu0 %v1184, 48
      %v1224 = vpop.permute.xlu0 %1223
      %1225 = vrot.lane.b32.xlu0 %v1186, 48
      %v1226 = vpop.permute.xlu0 %1225
      %vm1227 = vsmask.f32 5376
      %v1228 = vrot.slane %v384, 2
      %v1229 = vrot.slane %v380, 3
      %v1230 = vor.u32 %v1228, %v1229
      %v1231 = vrot.slane %v392, 2
      %v1232 = vrot.slane %v388, 3
      %v1233 = vor.u32 %v1231, %v1232
      %v1234 = vsel %vm1227, %v1230, %v1233
      %v1235 = vrot.slane %v400, 2
      %v1236 = vrot.slane %v396, 3
      %v1237 = vor.u32 %v1235, %v1236
      %v1238 = vsel %vm1227, %v1233, %v1237
      %v1239 = vrot.slane %v408, 2
      %v1240 = vrot.slane %v404, 3
      %v1241 = vor.u32 %v1239, %v1240
      %v1242 = vsel %vm1227, %v1237, %v1241
      %v1244 = vshrl.u32 %v1135, 16
      %v1246 = vrot.slane %v1244, 2
      %v1247 = vshll.u32 %v1135, 16
      %v1249 = vrot.slane %v1247, 3
      %v1250 = vor.u32 %v1246, %v1249
      %v1251 = vsel %vm1227, %v1241, %v1250
      %v1253 = vshrl.u32 %v1136, 16
      %v1255 = vrot.slane %v1253, 2
      %v1256 = vshll.u32 %v1136, 16
      %v1258 = vrot.slane %v1256, 3
      %v1259 = vor.u32 %v1255, %v1258
      %v1260 = vsel %vm1227, %v1250, %v1259
      %v1261 = vrot.slane %v428, 2
      %v1262 = vrot.slane %v424, 3
      %v1263 = vor.u32 %v1261, %v1262
      %v1264 = vrot.slane %v436, 2
      %v1265 = vrot.slane %v432, 3
      %v1266 = vor.u32 %v1264, %v1265
      %v1267 = vsel %vm1227, %v1263, %v1266
      %v1268 = vrot.slane %v444, 2
      %v1269 = vrot.slane %v440, 3
      %v1270 = vor.u32 %v1268, %v1269
      %v1271 = vsel %vm1227, %v1266, %v1270
      %v1272 = vrot.slane %v452, 2
      %v1273 = vrot.slane %v448, 3
      %v1274 = vor.u32 %v1272, %v1273
      %v1275 = vsel %vm1227, %v1270, %v1274
      %v1277 = vshrl.u32 %v1137, 16
      %v1279 = vrot.slane %v1277, 2
      %v1280 = vshll.u32 %v1137, 16
      %v1282 = vrot.slane %v1280, 3
      %v1283 = vor.u32 %v1279, %v1282
      %v1284 = vsel %vm1227, %v1274, %v1283
      %v1286 = vshrl.u32 %v1138, 16
      %v1288 = vrot.slane %v1286, 2
      %v1289 = vshll.u32 %v1138, 16
      %v1291 = vrot.slane %v1289, 3
      %v1292 = vor.u32 %v1288, %v1291
      %v1293 = vsel %vm1227, %v1283, %v1292
      %v1294 = vrot.slane %v472, 2
      %v1295 = vrot.slane %v468, 3
      %v1296 = vor.u32 %v1294, %v1295
      %v1297 = vrot.slane %v480, 2
      %v1298 = vrot.slane %v476, 3
      %v1299 = vor.u32 %v1297, %v1298
      %v1300 = vsel %vm1227, %v1296, %v1299
      %v1301 = vrot.slane %v488, 2
      %v1302 = vrot.slane %v484, 3
      %v1303 = vor.u32 %v1301, %v1302
      %v1304 = vsel %vm1227, %v1299, %v1303
      %v1305 = vrot.slane %v496, 2
      %v1306 = vrot.slane %v492, 3
      %v1307 = vor.u32 %v1305, %v1306
      %v1308 = vsel %vm1227, %v1303, %v1307
      %v1310 = vshrl.u32 %v1139, 16
      %v1312 = vrot.slane %v1310, 2
      %v1313 = vshll.u32 %v1139, 16
      %v1315 = vrot.slane %v1313, 3
      %v1316 = vor.u32 %v1312, %v1315
      %v1317 = vsel %vm1227, %v1307, %v1316
      %v1319 = vshrl.u32 %v1140, 16
      %v1321 = vrot.slane %v1319, 2
      %v1322 = vshll.u32 %v1140, 16
      %v1324 = vrot.slane %v1322, 3
      %v1325 = vor.u32 %v1321, %v1324
      %v1326 = vsel %vm1227, %v1316, %v1325
      %v1327 = vrot.slane %v516, 2
      %v1328 = vrot.slane %v512, 3
      %v1329 = vor.u32 %v1327, %v1328
      %v1330 = vrot.slane %v524, 2
      %v1331 = vrot.slane %v520, 3
      %v1332 = vor.u32 %v1330, %v1331
      %v1333 = vsel %vm1227, %v1329, %v1332
      %v1334 = vrot.slane %v532, 2
      %v1335 = vrot.slane %v528, 3
      %v1336 = vor.u32 %v1334, %v1335
      %v1337 = vsel %vm1227, %v1332, %v1336
      %v1338 = vrot.slane %v540, 2
      %v1339 = vrot.slane %v536, 3
      %v1340 = vor.u32 %v1338, %v1339
      %v1341 = vsel %vm1227, %v1336, %v1340
      %v1343 = vshrl.u32 %v1141, 16
      %v1345 = vrot.slane %v1343, 2
      %v1346 = vshll.u32 %v1141, 16
      %v1348 = vrot.slane %v1346, 3
      %v1349 = vor.u32 %v1345, %v1348
      %v1350 = vsel %vm1227, %v1340, %v1349
      %v1352 = vshrl.u32 %v1142, 16
      %v1354 = vrot.slane %v1352, 2
      %v1355 = vshll.u32 %v1142, 16
      %v1357 = vrot.slane %v1355, 3
      %v1358 = vor.u32 %v1354, %v1357
      %v1359 = vsel %vm1227, %v1349, %v1358
      %1360 = vrot.lane.b32.xlu0 %v1234, 56
      %v1361 = vpop.permute.xlu0 %1360
      %1362 = vrot.lane.b32.xlu0 %v1238, 56
      %v1363 = vpop.permute.xlu0 %1362
      %1364 = vrot.lane.b32.xlu0 %v1242, 56
      %v1365 = vpop.permute.xlu0 %1364
      %1366 = vrot.lane.b32.xlu0 %v1251, 56
      %v1367 = vpop.permute.xlu0 %1366
      %1368 = vrot.lane.b32.xlu0 %v1260, 56
      %v1369 = vpop.permute.xlu0 %1368
      %1370 = vrot.lane.b32.xlu0 %v1267, 56
      %v1371 = vpop.permute.xlu0 %1370
      %1372 = vrot.lane.b32.xlu0 %v1271, 56
      %v1373 = vpop.permute.xlu0 %1372
      %1374 = vrot.lane.b32.xlu0 %v1275, 56
      %v1375 = vpop.permute.xlu0 %1374
      %1376 = vrot.lane.b32.xlu0 %v1284, 56
      %v1377 = vpop.permute.xlu0 %1376
      %1378 = vrot.lane.b32.xlu0 %v1293, 56
      %v1379 = vpop.permute.xlu0 %1378
      %1380 = vrot.lane.b32.xlu0 %v1300, 56
      %v1381 = vpop.permute.xlu0 %1380
      %1382 = vrot.lane.b32.xlu0 %v1304, 56
      %v1383 = vpop.permute.xlu0 %1382
      %1384 = vrot.lane.b32.xlu0 %v1308, 56
      %v1385 = vpop.permute.xlu0 %1384
      %1386 = vrot.lane.b32.xlu0 %v1317, 56
      %v1387 = vpop.permute.xlu0 %1386
      %1388 = vrot.lane.b32.xlu0 %v1326, 56
      %v1389 = vpop.permute.xlu0 %1388
      %1390 = vrot.lane.b32.xlu0 %v1333, 56
      %v1391 = vpop.permute.xlu0 %1390
      %1392 = vrot.lane.b32.xlu0 %v1337, 56
      %v1393 = vpop.permute.xlu0 %1392
      %1394 = vrot.lane.b32.xlu0 %v1341, 56
      %v1395 = vpop.permute.xlu0 %1394
      %1396 = vrot.lane.b32.xlu0 %v1350, 56
      %v1397 = vpop.permute.xlu0 %1396
      %1398 = vrot.lane.b32.xlu0 %v1359, 56
      %v1399 = vpop.permute.xlu0 %1398
      %vm1400 = vcmask 1044480
      %v1401 = vrot.slane %v340, 3
      %v1402 = vrot.slane %v341, 3
      %v1403 = vsel %vm1400, %v1401, %v1402
      %v1404 = vrot.slane %v342, 3
      %v1405 = vsel %vm1400, %v1402, %v1404
      %v1406 = vrot.slane %v343, 3
      %v1407 = vsel %vm1400, %v1404, %v1406
      %v1408 = vrot.slane %v1135, 3
      %v1409 = vsel %vm1400, %v1406, %v1408
      %v1410 = vrot.slane %v1136, 3
      %v1411 = vsel %vm1400, %v1408, %v1410
      %v1412 = vrot.slane %v345, 3
      %v1413 = vrot.slane %v346, 3
      %v1414 = vsel %vm1400, %v1412, %v1413
      %v1415 = vrot.slane %v347, 3
      %v1416 = vsel %vm1400, %v1413, %v1415
      %v1417 = vrot.slane %v348, 3
      %v1418 = vsel %vm1400, %v1415, %v1417
      %v1419 = vrot.slane %v1137, 3
      %v1420 = vsel %vm1400, %v1417, %v1419
      %v1421 = vrot.slane %v1138, 3
      %v1422 = vsel %vm1400, %v1419, %v1421
      %v1423 = vrot.slane %v350, 3
      %v1424 = vrot.slane %v351, 3
      %v1425 = vsel %vm1400, %v1423, %v1424
      %v1426 = vrot.slane %v352, 3
      %v1427 = vsel %vm1400, %v1424, %v1426
      %v1428 = vrot.slane %v353, 3
      %v1429 = vsel %vm1400, %v1426, %v1428
      %v1430 = vrot.slane %v1139, 3
      %v1431 = vsel %vm1400, %v1428, %v1430
      %v1432 = vrot.slane %v1140, 3
      %v1433 = vsel %vm1400, %v1430, %v1432
      %v1434 = vrot.slane %v355, 3
      %v1435 = vrot.slane %v356, 3
      %v1436 = vsel %vm1400, %v1434, %v1435
      %v1437 = vrot.slane %v357, 3
      %v1438 = vsel %vm1400, %v1435, %v1437
      %v1439 = vrot.slane %v358, 3
      %v1440 = vsel %vm1400, %v1437, %v1439
      %v1441 = vrot.slane %v1141, 3
      %v1442 = vsel %vm1400, %v1439, %v1441
      %v1443 = vrot.slane %v1142, 3
      %v1444 = vsel %vm1400, %v1441, %v1443
      %1445 = vrot.lane.b32.xlu0 %v1403, 64
      %v1446 = vpop.permute.xlu0 %1445
      %1447 = vrot.lane.b32.xlu0 %v1405, 64
      %v1448 = vpop.permute.xlu0 %1447
      %1449 = vrot.lane.b32.xlu0 %v1407, 64
      %v1450 = vpop.permute.xlu0 %1449
      %1451 = vrot.lane.b32.xlu0 %v1409, 64
      %v1452 = vpop.permute.xlu0 %1451
      %1453 = vrot.lane.b32.xlu0 %v1411, 64
      %v1454 = vpop.permute.xlu0 %1453
      %1455 = vrot.lane.b32.xlu0 %v1414, 64
      %v1456 = vpop.permute.xlu0 %1455
      %1457 = vrot.lane.b32.xlu0 %v1416, 64
      %v1458 = vpop.permute.xlu0 %1457
      %1459 = vrot.lane.b32.xlu0 %v1418, 64
      %v1460 = vpop.permute.xlu0 %1459
      %1461 = vrot.lane.b32.xlu0 %v1420, 64
      %v1462 = vpop.permute.xlu0 %1461
      %1463 = vrot.lane.b32.xlu0 %v1422, 64
      %v1464 = vpop.permute.xlu0 %1463
      %1465 = vrot.lane.b32.xlu0 %v1425, 64
      %v1466 = vpop.permute.xlu0 %1465
      %1467 = vrot.lane.b32.xlu0 %v1427, 64
      %v1468 = vpop.permute.xlu0 %1467
      %1469 = vrot.lane.b32.xlu0 %v1429, 64
      %v1470 = vpop.permute.xlu0 %1469
      %1471 = vrot.lane.b32.xlu0 %v1431, 64
      %v1472 = vpop.permute.xlu0 %1471
      %1473 = vrot.lane.b32.xlu0 %v1433, 64
      %v1474 = vpop.permute.xlu0 %1473
      %1475 = vrot.lane.b32.xlu0 %v1436, 64
      %v1476 = vpop.permute.xlu0 %1475
      %1477 = vrot.lane.b32.xlu0 %v1438, 64
      %v1478 = vpop.permute.xlu0 %1477
      %1479 = vrot.lane.b32.xlu0 %v1440, 64
      %v1480 = vpop.permute.xlu0 %1479
      %1481 = vrot.lane.b32.xlu0 %v1442, 64
      %v1482 = vpop.permute.xlu0 %1481
      %1483 = vrot.lane.b32.xlu0 %v1444, 64
      %v1484 = vpop.permute.xlu0 %1483
      %vm1485 = vcmask 64512
      %v1487 = vsel %vm1485, %v339, %v549
      %v1489 = vsel %vm1485, %v340, %v551
      %v1491 = vsel %vm1485, %v341, %v553
      %v1493 = vsel %vm1485, %v342, %v555
      %v1495 = vsel %vm1485, %v343, %v557
      %v1497 = vsel %vm1485, %v344, %v559
      %v1499 = vsel %vm1485, %v345, %v561
      %v1501 = vsel %vm1485, %v346, %v563
      %v1503 = vsel %vm1485, %v347, %v565
      %v1505 = vsel %vm1485, %v348, %v567
      %v1507 = vsel %vm1485, %v349, %v569
      %v1509 = vsel %vm1485, %v350, %v571
      %v1511 = vsel %vm1485, %v351, %v573
      %v1513 = vsel %vm1485, %v352, %v575
      %v1515 = vsel %vm1485, %v353, %v577
      %v1517 = vsel %vm1485, %v354, %v579
      %v1519 = vsel %vm1485, %v355, %v581
      %v1521 = vsel %vm1485, %v356, %v583
      %v1523 = vsel %vm1485, %v357, %v585
      %v1525 = vsel %vm1485, %v358, %v587
      %vm1526 = vcmask 130048
      %v1528 = vsel %vm1526, %v1487, %v634
      %v1530 = vsel %vm1526, %v1489, %v636
      %v1532 = vsel %vm1526, %v1491, %v638
      %v1534 = vsel %vm1526, %v1493, %v640
      %v1536 = vsel %vm1526, %v1495, %v642
      %v1538 = vsel %vm1526, %v1497, %v644
      %v1540 = vsel %vm1526, %v1499, %v646
      %v1542 = vsel %vm1526, %v1501, %v648
      %v1544 = vsel %vm1526, %v1503, %v650
      %v1546 = vsel %vm1526, %v1505, %v652
      %v1548 = vsel %vm1526, %v1507, %v654
      %v1550 = vsel %vm1526, %v1509, %v656
      %v1552 = vsel %vm1526, %v1511, %v658
      %v1554 = vsel %vm1526, %v1513, %v660
      %v1556 = vsel %vm1526, %v1515, %v662
      %v1558 = vsel %vm1526, %v1517, %v664
      %v1560 = vsel %vm1526, %v1519, %v666
      %v1562 = vsel %vm1526, %v1521, %v668
      %v1564 = vsel %vm1526, %v1523, %v670
      %v1566 = vsel %vm1526, %v1525, %v672
      %vm1567 = vcmask 195584
      %v1569 = vsel %vm1567, %v1528, %v750
      %v1571 = vsel %vm1567, %v1530, %v752
      %v1573 = vsel %vm1567, %v1532, %v754
      %v1575 = vsel %vm1567, %v1534, %v756
      %v1577 = vsel %vm1567, %v1536, %v758
      %v1579 = vsel %vm1567, %v1538, %v760
      %v1581 = vsel %vm1567, %v1540, %v762
      %v1583 = vsel %vm1567, %v1542, %v764
      %v1585 = vsel %vm1567, %v1544, %v766
      %v1587 = vsel %vm1567, %v1546, %v768
      %v1589 = vsel %vm1567, %v1548, %v770
      %v1591 = vsel %vm1567, %v1550, %v772
      %v1593 = vsel %vm1567, %v1552, %v774
      %v1595 = vsel %vm1567, %v1554, %v776
      %v1597 = vsel %vm1567, %v1556, %v778
      %v1599 = vsel %vm1567, %v1558, %v780
      %v1601 = vsel %vm1567, %v1560, %v782
      %v1603 = vsel %vm1567, %v1562, %v784
      %v1605 = vsel %vm1567, %v1564, %v786
      %v1607 = vsel %vm1567, %v1566, %v788
      %vm1608 = vcmask 261120
      %v1610 = vsel %vm1608, %v1569, %v1003
      %v1612 = vsel %vm1608, %v1571, %v1005
      %v1614 = vsel %vm1608, %v1573, %v1007
      %v1616 = vsel %vm1608, %v1575, %v1009
      %v1618 = vsel %vm1608, %v1577, %v1011
      %v1620 = vsel %vm1608, %v1579, %v1013
      %v1622 = vsel %vm1608, %v1581, %v1015
      %v1624 = vsel %vm1608, %v1583, %v1017
      %v1626 = vsel %vm1608, %v1585, %v1019
      %v1628 = vsel %vm1608, %v1587, %v1021
      %v1630 = vsel %vm1608, %v1589, %v1023
      %v1632 = vsel %vm1608, %v1591, %v1025
      %v1634 = vsel %vm1608, %v1593, %v1027
      %v1636 = vsel %vm1608, %v1595, %v1029
      %v1638 = vsel %vm1608, %v1597, %v1031
      %v1640 = vsel %vm1608, %v1599, %v1033
      %v1642 = vsel %vm1608, %v1601, %v1035
      %v1644 = vsel %vm1608, %v1603, %v1037
      %v1646 = vsel %vm1608, %v1605, %v1039
      %v1648 = vsel %vm1608, %v1607, %v1041
      %vm1649 = vcmask 326656
      %v1651 = vsel %vm1649, %v1610, %v1088
      %v1653 = vsel %vm1649, %v1612, %v1090
      %v1655 = vsel %vm1649, %v1614, %v1092
      %v1657 = vsel %vm1649, %v1616, %v1094
      %v1659 = vsel %vm1649, %v1618, %v1096
      %v1661 = vsel %vm1649, %v1620, %v1098
      %v1663 = vsel %vm1649, %v1622, %v1100
      %v1665 = vsel %vm1649, %v1624, %v1102
      %v1667 = vsel %vm1649, %v1626, %v1104
      %v1669 = vsel %vm1649, %v1628, %v1106
      %v1671 = vsel %vm1649, %v1630, %v1108
      %v1673 = vsel %vm1649, %v1632, %v1110
      %v1675 = vsel %vm1649, %v1634, %v1112
      %v1677 = vsel %vm1649, %v1636, %v1114
      %v1679 = vsel %vm1649, %v1638, %v1116
      %v1681 = vsel %vm1649, %v1640, %v1118
      %v1683 = vsel %vm1649, %v1642, %v1120
      %v1685 = vsel %vm1649, %v1644, %v1122
      %v1687 = vsel %vm1649, %v1646, %v1124
      %v1689 = vsel %vm1649, %v1648, %v1126
      %vm1690 = vcmask 392192
      %v1692 = vsel %vm1690, %v1651, %v1188
      %v1694 = vsel %vm1690, %v1653, %v1190
      %v1696 = vsel %vm1690, %v1655, %v1192
      %v1698 = vsel %vm1690, %v1657, %v1194
      %v1700 = vsel %vm1690, %v1659, %v1196
      %v1702 = vsel %vm1690, %v1661, %v1198
      %v1704 = vsel %vm1690, %v1663, %v1200
      %v1706 = vsel %vm1690, %v1665, %v1202
      %v1708 = vsel %vm1690, %v1667, %v1204
      %v1710 = vsel %vm1690, %v1669, %v1206
      %v1712 = vsel %vm1690, %v1671, %v1208
      %v1714 = vsel %vm1690, %v1673, %v1210
      %v1716 = vsel %vm1690, %v1675, %v1212
      %v1718 = vsel %vm1690, %v1677, %v1214
      %v1720 = vsel %vm1690, %v1679, %v1216
      %v1722 = vsel %vm1690, %v1681, %v1218
      %v1724 = vsel %vm1690, %v1683, %v1220
      %v1726 = vsel %vm1690, %v1685, %v1222
      %v1728 = vsel %vm1690, %v1687, %v1224
      %v1730 = vsel %vm1690, %v1689, %v1226
      %vm1731 = vcmask 457728
      %v1733 = vsel %vm1731, %v1692, %v1361
      %v1735 = vsel %vm1731, %v1694, %v1363
      %v1737 = vsel %vm1731, %v1696, %v1365
      %v1739 = vsel %vm1731, %v1698, %v1367
      %v1741 = vsel %vm1731, %v1700, %v1369
      %v1743 = vsel %vm1731, %v1702, %v1371
      %v1745 = vsel %vm1731, %v1704, %v1373
      %v1747 = vsel %vm1731, %v1706, %v1375
      %v1749 = vsel %vm1731, %v1708, %v1377
      %v1751 = vsel %vm1731, %v1710, %v1379
      %v1753 = vsel %vm1731, %v1712, %v1381
      %v1755 = vsel %vm1731, %v1714, %v1383
      %v1757 = vsel %vm1731, %v1716, %v1385
      %v1759 = vsel %vm1731, %v1718, %v1387
      %v1761 = vsel %vm1731, %v1720, %v1389
      %v1763 = vsel %vm1731, %v1722, %v1391
      %v1765 = vsel %vm1731, %v1724, %v1393
      %v1767 = vsel %vm1731, %v1726, %v1395
      %v1769 = vsel %vm1731, %v1728, %v1397
      %v1771 = vsel %vm1731, %v1730, %v1399
      %vm1772 = vcmask 523264
      %v1774 = vsel %vm1772, %v1733, %v1446
      %v1776 = vsel %vm1772, %v1735, %v1448
      %v1778 = vsel %vm1772, %v1737, %v1450
      %v1780 = vsel %vm1772, %v1739, %v1452
      %v1782 = vsel %vm1772, %v1741, %v1454
      %v1784 = vsel %vm1772, %v1743, %v1456
      %v1786 = vsel %vm1772, %v1745, %v1458
      %v1788 = vsel %vm1772, %v1747, %v1460
      %v1790 = vsel %vm1772, %v1749, %v1462
      %v1792 = vsel %vm1772, %v1751, %v1464
      %v1794 = vsel %vm1772, %v1753, %v1466
      %v1796 = vsel %vm1772, %v1755, %v1468
      %v1798 = vsel %vm1772, %v1757, %v1470
      %v1800 = vsel %vm1772, %v1759, %v1472
      %v1802 = vsel %vm1772, %v1761, %v1474
      %v1804 = vsel %vm1772, %v1763, %v1476
      %v1806 = vsel %vm1772, %v1765, %v1478
      %v1808 = vsel %vm1772, %v1767, %v1480
      %v1810 = vsel %vm1772, %v1769, %v1482
      %v1812 = vsel %vm1772, %v1771, %v1484
      %v1813 = vld [vmem:[%s1] sm:$0xf]
      %v1814 = vld [vmem:[%s1 + $0x4] sm:$0xf]
      %v1815 = vld [vmem:[%s1 + $0x8] sm:$0xf]
      %v1816 = vld [vmem:[%s1 + $0xc] sm:$0xf]
      %v1817 = vld [vmem:[%s1 + $0x10] sm:$0xf]
      %v1818 = vld [vmem:[%s1 + $0x14] sm:$0xf]
      %v1819 = vld [vmem:[%s1 + $0x18] sm:$0xf]
      %v1820 = vld [vmem:[%s1 + $0x1c] sm:$0xf]
      %v1821 = vld [vmem:[%s1 + $0x20] sm:$0xf]
      %v1822 = vld [vmem:[%s2] sm:$0x1]
      %v1824 = vlaneseq
      %v1825 = vshrl.u32 %v1824, 7
      %v1826 = vsub.s32 0, %v1825
      %v1827 = vrot.slane %v1822, %v1826
      %v1838 = vunpack.c.l.b16 %v1813
      %v1839 = vunpack.c.l.b16 %v1814
      %v1840 = vunpack.c.l.b16 %v1815
      %v1841 = vunpack.c.l.b16 %v1816
      %v1842 = vunpack.c.l.b16 %v1817
      %v1843 = vunpack.c.l.b16 %v1818
      %v1844 = vunpack.c.l.b16 %v1819
      %v1845 = vunpack.c.l.b16 %v1820
      %v1846 = vunpack.c.l.b16 %v1821
      %v1847 = vpack.c.b16 %v1839, %v1838
      %v1848 = vpack.c.b16 %v1841, %v1840
      %v1849 = vpack.c.b16 %v1843, %v1842
      %v1850 = vpack.c.b16 %v1845, %v1844
      %v1851 = vpack.c.b16 %v1846, %v1846
      %vm1856 = vcmask 588800
      %v1857 = vsel %vm1856, %v1774, 0
      %v1859 = vsel %vm1856, %v1776, 0
      %v1861 = vsel %vm1856, %v1778, 0
      %v1863 = vsel %vm1856, %v1780, 0
      %v1865 = vsel %vm1856, %v1782, 0
      %v1867 = vsel %vm1856, %v1784, 0
      %v1869 = vsel %vm1856, %v1786, 0
      %v1871 = vsel %vm1856, %v1788, 0
      %v1873 = vsel %vm1856, %v1790, 0
      %v1875 = vsel %vm1856, %v1792, 0
      %v1877 = vsel %vm1856, %v1794, 0
      %v1879 = vsel %vm1856, %v1796, 0
      %v1881 = vsel %vm1856, %v1798, 0
      %v1883 = vsel %vm1856, %v1800, 0
      %v1885 = vsel %vm1856, %v1802, 0
      %v1887 = vsel %vm1856, %v1804, 0
      %v1889 = vsel %vm1856, %v1806, 0
      %v1891 = vsel %vm1856, %v1808, 0
      %v1893 = vsel %vm1856, %v1810, 0
      %v1895 = vsel %vm1856, %v1812, 0
      %vm1897 = vcmask 1043456
      %v1899 = vsel %vm1897, %v1851, 0
      %1901 = vmatprep.subr.bf16.mxu0 0
      %1902 = vmatpush1.bf16.msra.mxu0 0
      %1903 = vmatprep.subr.bf16.mxu0 0
      %1904 = vmatpush1.bf16.msra.mxu0 0
      %1905 = vmatprep.subr.bf16.mxu0 0
      %1906 = vmatpush1.bf16.msra.mxu0 0
      %1907 = vmatprep.subr.bf16.mxu0 0
      %1908 = vmatpush1.bf16.msra.mxu0 %v1899
      %1909 = vmatprep.subr.bf16.mxu0 0
      %1910 = vmatpush1.bf16.msra.mxu0 %v1850
      %1911 = vmatprep.subr.bf16.mxu0 0
      %1912 = vmatpush1.bf16.msra.mxu0 %v1849
      %1913 = vmatprep.subr.bf16.mxu0 0
      %1914 = vmatpush1.bf16.msra.mxu0 %v1848
      %1915 = vmatprep.subr.bf16.mxu0 0
      %1916 = vmatpush1.bf16.msra.mxu0 %v1847
      %1917 = vmatprep.subr.bf16.mxu0 0
      %1918 = vmatpush2.bf16.msra.mxu0 0
      %1919 = vmatprep.subr.bf16.mxu0 0
      %1920 = vmatpush2.bf16.msra.mxu0 0
      %1921 = vmatprep.subr.bf16.mxu0 0
      %1922 = vmatpush2.bf16.msra.mxu0 0
      %1923 = vmatprep.subr.bf16.mxu0 0
      %1924 = vmatpush2.bf16.msra.mxu0 0
      %1925 = vmatprep.subr.bf16.mxu0 0
      %1926 = vmatpush2.bf16.msra.mxu0 0
      %1927 = vmatprep.subr.bf16.mxu0 0
      %1928 = vmatpush2.bf16.msra.mxu0 0
      %1929 = vmatprep.subr.bf16.mxu0 0
      %1930 = vmatpush2.bf16.msra.mxu0 0
      %1931 = vmatprep.subr.bf16.mxu0 0
      %1932 = vmatpush2.bf16.msra.mxu0 0
      %1933 = vmatprep.mubr.bf16.mxu0 0
      %1934 = vmatmul.mubr.bf16.gmra.mxu0 %v1857
      %v1935 = vpop.f32.mrf.mxu0
      %v1936 = vadd.f32 %v1827, %v1935
      %v1937 = vpop.f32.mrf.mxu0
      %v1938 = vpop.f32.mrf.mxu0
      %v1939 = vadd.f32 %v1827, %v1938
      %v1940 = vpop.f32.mrf.mxu0
      %1941 = vmatprep.mubr.bf16.mxu0 0
      %1942 = vmatmul.mubr.bf16.gmra.mxu0 %v1859
      %v1943 = vpop.f32.mrf.mxu0
      %v1944 = vadd.f32 %v1827, %v1943
      %v1945 = vpop.f32.mrf.mxu0
      %v1946 = vpop.f32.mrf.mxu0
      %v1947 = vadd.f32 %v1827, %v1946
      %v1948 = vpop.f32.mrf.mxu0
      %1949 = vmatprep.mubr.bf16.mxu0 0
      %1950 = vmatmul.mubr.bf16.gmra.mxu0 %v1861
      %v1951 = vpop.f32.mrf.mxu0
      %v1952 = vadd.f32 %v1827, %v1951
      %v1953 = vpop.f32.mrf.mxu0
      %v1954 = vpop.f32.mrf.mxu0
      %v1955 = vadd.f32 %v1827, %v1954
      %v1956 = vpop.f32.mrf.mxu0
      %1957 = vmatprep.mubr.bf16.mxu0 0
      %1958 = vmatmul.mubr.bf16.gmra.mxu0 %v1863
      %v1959 = vpop.f32.mrf.mxu0
      %v1960 = vadd.f32 %v1827, %v1959
      %v1961 = vpop.f32.mrf.mxu0
      %v1962 = vpop.f32.mrf.mxu0
      %v1963 = vadd.f32 %v1827, %v1962
      %v1964 = vpop.f32.mrf.mxu0
      %1965 = vmatprep.mubr.bf16.mxu0 0
      %1966 = vmatmul.mubr.bf16.gmra.mxu0 %v1865
      %v1967 = vpop.f32.mrf.mxu0
      %v1968 = vadd.f32 %v1827, %v1967
      %v1969 = vpop.f32.mrf.mxu0
      %v1970 = vpop.f32.mrf.mxu0
      %v1971 = vadd.f32 %v1827, %v1970
      %v1972 = vpop.f32.mrf.mxu0
      %1973 = vmatprep.mubr.bf16.mxu0 0
      %1974 = vmatmul.mubr.bf16.gmra.mxu0 %v1867
      %v1975 = vpop.f32.mrf.mxu0
      %v1976 = vadd.f32 %v1827, %v1975
      %v1977 = vpop.f32.mrf.mxu0
      %v1978 = vpop.f32.mrf.mxu0
      %v1979 = vadd.f32 %v1827, %v1978
      %v1980 = vpop.f32.mrf.mxu0
      %1981 = vmatprep.mubr.bf16.mxu0 0
      %1982 = vmatmul.mubr.bf16.gmra.mxu0 %v1869
      %v1983 = vpop.f32.mrf.mxu0
      %v1984 = vadd.f32 %v1827, %v1983
      %v1985 = vpop.f32.mrf.mxu0
      %v1986 = vpop.f32.mrf.mxu0
      %v1987 = vadd.f32 %v1827, %v1986
      %v1988 = vpop.f32.mrf.mxu0
      %1989 = vmatprep.mubr.bf16.mxu0 0
      %1990 = vmatmul.mubr.bf16.gmra.mxu0 %v1871
      %v1991 = vpop.f32.mrf.mxu0
      %v1992 = vadd.f32 %v1827, %v1991
      %v1993 = vpop.f32.mrf.mxu0
      %v1994 = vpop.f32.mrf.mxu0
      %v1995 = vadd.f32 %v1827, %v1994
      %v1996 = vpop.f32.mrf.mxu0
      %1997 = vmatprep.mubr.bf16.mxu0 0
      %1998 = vmatmul.mubr.bf16.gmra.mxu0 %v1873
      %v1999 = vpop.f32.mrf.mxu0
      %v2000 = vadd.f32 %v1827, %v1999
      %v2001 = vpop.f32.mrf.mxu0
      %v2002 = vpop.f32.mrf.mxu0
      %v2003 = vadd.f32 %v1827, %v2002
      %v2004 = vpop.f32.mrf.mxu0
      %2005 = vmatprep.mubr.bf16.mxu0 0
      %2006 = vmatmul.mubr.bf16.gmra.mxu0 %v1875
      %v2007 = vpop.f32.mrf.mxu0
      %v2008 = vadd.f32 %v1827, %v2007
      %v2009 = vpop.f32.mrf.mxu0
      %v2010 = vpop.f32.mrf.mxu0
      %v2011 = vadd.f32 %v1827, %v2010
      %v2012 = vpop.f32.mrf.mxu0
      %2013 = vmatprep.mubr.bf16.mxu0 0
      %2014 = vmatmul.mubr.bf16.gmra.mxu0 %v1877
      %v2015 = vpop.f32.mrf.mxu0
      %v2016 = vadd.f32 %v1827, %v2015
      %v2017 = vpop.f32.mrf.mxu0
      %v2018 = vpop.f32.mrf.mxu0
      %v2019 = vadd.f32 %v1827, %v2018
      %v2020 = vpop.f32.mrf.mxu0
      %2021 = vmatprep.mubr.bf16.mxu0 0
      %2022 = vmatmul.mubr.bf16.gmra.mxu0 %v1879
      %v2023 = vpop.f32.mrf.mxu0
      %v2024 = vadd.f32 %v1827, %v2023
      %v2025 = vpop.f32.mrf.mxu0
      %v2026 = vpop.f32.mrf.mxu0
      %v2027 = vadd.f32 %v1827, %v2026
      %v2028 = vpop.f32.mrf.mxu0
      %2029 = vmatprep.mubr.bf16.mxu0 0
      %2030 = vmatmul.mubr.bf16.gmra.mxu0 %v1881
      %v2031 = vpop.f32.mrf.mxu0
      %v2032 = vadd.f32 %v1827, %v2031
      %v2033 = vpop.f32.mrf.mxu0
      %v2034 = vpop.f32.mrf.mxu0
      %v2035 = vadd.f32 %v1827, %v2034
      %v2036 = vpop.f32.mrf.mxu0
      %2037 = vmatprep.mubr.bf16.mxu0 0
      %2038 = vmatmul.mubr.bf16.gmra.mxu0 %v1883
      %v2039 = vpop.f32.mrf.mxu0
      %v2040 = vadd.f32 %v1827, %v2039
      %v2041 = vpop.f32.mrf.mxu0
      %v2042 = vpop.f32.mrf.mxu0
      %v2043 = vadd.f32 %v1827, %v2042
      %v2044 = vpop.f32.mrf.mxu0
      %2045 = vmatprep.mubr.bf16.mxu0 0
      %2046 = vmatmul.mubr.bf16.gmra.mxu0 %v1885
      %v2047 = vpop.f32.mrf.mxu0
      %v2048 = vadd.f32 %v1827, %v2047
      %v2049 = vpop.f32.mrf.mxu0
      %v2050 = vpop.f32.mrf.mxu0
      %v2051 = vadd.f32 %v1827, %v2050
      %v2052 = vpop.f32.mrf.mxu0
      %2053 = vmatprep.mubr.bf16.mxu0 0
      %2054 = vmatmul.mubr.bf16.gmra.mxu0 %v1887
      %v2055 = vpop.f32.mrf.mxu0
      %v2056 = vadd.f32 %v1827, %v2055
      %v2057 = vpop.f32.mrf.mxu0
      %v2058 = vpop.f32.mrf.mxu0
      %v2059 = vadd.f32 %v1827, %v2058
      %v2060 = vpop.f32.mrf.mxu0
      %2061 = vmatprep.mubr.bf16.mxu0 0
      %2062 = vmatmul.mubr.bf16.gmra.mxu0 %v1889
      %v2063 = vpop.f32.mrf.mxu0
      %v2064 = vadd.f32 %v1827, %v2063
      %v2065 = vpop.f32.mrf.mxu0
      %v2066 = vpop.f32.mrf.mxu0
      %v2067 = vadd.f32 %v1827, %v2066
      %v2068 = vpop.f32.mrf.mxu0
      %2069 = vmatprep.mubr.bf16.mxu0 0
      %2070 = vmatmul.mubr.bf16.gmra.mxu0 %v1891
      %v2071 = vpop.f32.mrf.mxu0
      %v2072 = vadd.f32 %v1827, %v2071
      %v2073 = vpop.f32.mrf.mxu0
      %v2074 = vpop.f32.mrf.mxu0
      %v2075 = vadd.f32 %v1827, %v2074
      %v2076 = vpop.f32.mrf.mxu0
      %2077 = vmatprep.mubr.bf16.mxu0 0
      %2078 = vmatmul.mubr.bf16.gmra.mxu0 %v1893
      %v2079 = vpop.f32.mrf.mxu0
      %v2080 = vadd.f32 %v1827, %v2079
      %v2081 = vpop.f32.mrf.mxu0
      %v2082 = vpop.f32.mrf.mxu0
      %v2083 = vadd.f32 %v1827, %v2082
      %v2084 = vpop.f32.mrf.mxu0
      %2085 = vmatprep.mubr.bf16.mxu0 0
      %2086 = vmatmul.mubr.bf16.gmra.mxu0 %v1895
      %v2087 = vpop.f32.mrf.mxu0
      %v2088 = vadd.f32 %v1827, %v2087
      %v2089 = vpop.f32.mrf.mxu0
      %v2090 = vpop.f32.mrf.mxu0
      %v2091 = vadd.f32 %v1827, %v2090
      %v2092 = vpop.f32.mrf.mxu0
      %2093 = vdwg.mxu0
      %v2094 = vmax.f32 %v1936, 0.0
      %v2095 = vmax.f32 %v1939, 0.0
      %v2096 = vmax.f32 %v1944, 0.0
      %v2097 = vmax.f32 %v1947, 0.0
      %v2098 = vmax.f32 %v1952, 0.0
      %v2099 = vmax.f32 %v1955, 0.0
      %v2100 = vmax.f32 %v1960, 0.0
      %v2101 = vmax.f32 %v1963, 0.0
      %v2102 = vmax.f32 %v1968, 0.0
      %v2103 = vmax.f32 %v1971, 0.0
      %v2104 = vmax.f32 %v1976, 0.0
      %v2105 = vmax.f32 %v1979, 0.0
      %v2106 = vmax.f32 %v1984, 0.0
      %v2107 = vmax.f32 %v1987, 0.0
      %v2108 = vmax.f32 %v1992, 0.0
      %v2109 = vmax.f32 %v1995, 0.0
      %v2110 = vmax.f32 %v2000, 0.0
      %v2111 = vmax.f32 %v2003, 0.0
      %v2112 = vmax.f32 %v2008, 0.0
      %v2113 = vmax.f32 %v2011, 0.0
      %v2114 = vmax.f32 %v2016, 0.0
      %v2115 = vmax.f32 %v2019, 0.0
      %v2116 = vmax.f32 %v2024, 0.0
      %v2117 = vmax.f32 %v2027, 0.0
      %v2118 = vmax.f32 %v2032, 0.0
      %v2119 = vmax.f32 %v2035, 0.0
      %v2120 = vmax.f32 %v2040, 0.0
      %v2121 = vmax.f32 %v2043, 0.0
      %v2122 = vmax.f32 %v2048, 0.0
      %v2123 = vmax.f32 %v2051, 0.0
      %v2124 = vmax.f32 %v2056, 0.0
      %v2125 = vmax.f32 %v2059, 0.0
      %v2126 = vmax.f32 %v2064, 0.0
      %v2127 = vmax.f32 %v2067, 0.0
      %v2128 = vmax.f32 %v2072, 0.0
      %v2129 = vmax.f32 %v2075, 0.0
      %v2130 = vmax.f32 %v2080, 0.0
      %v2131 = vmax.f32 %v2083, 0.0
      %v2132 = vmax.f32 %v2088, 0.0
      %v2133 = vmax.f32 %v2091, 0.0
      %v2174 = vcombine.high %v2094, %v2094
      %v2176 = vunpack.c.l.s4 1983009808
      %v2177 = vunpack.c.0.s8 %v2176
      %v2178 = vlaneseq
      %v2179 = vshrl.u32 %v2178, 7
      %v2180 = vsub.s32 %v2177, %v2179
      %v2181 = vrot.slane %v2094, %v2180
      %v2183 = vunpack.c.l.s4 1983009808
      %v2184 = vunpack.c.0.s8 %v2183
      %v2185 = vlaneseq
      %v2186 = vshrl.u32 %v2185, 7
      %v2187 = vsub.s32 %v2184, %v2186
      %v2188 = vrot.slane %v2174, %v2187
      %v2189 = vcombine.high %v2181, %v2181
      %v2190 = vcombine.high %v2188, %v2188
      %v2191 = vcombine.high %v2095, %v2095
      %v2193 = vunpack.c.l.s4 1983009808
      %v2194 = vunpack.c.0.s8 %v2193
      %v2195 = vlaneseq
      %v2196 = vshrl.u32 %v2195, 7
      %v2197 = vsub.s32 %v2194, %v2196
      %v2198 = vrot.slane %v2095, %v2197
      %v2200 = vunpack.c.l.s4 1983009808
      %v2201 = vunpack.c.0.s8 %v2200
      %v2202 = vlaneseq
      %v2203 = vshrl.u32 %v2202, 7
      %v2204 = vsub.s32 %v2201, %v2203
      %v2205 = vrot.slane %v2191, %v2204
      %v2206 = vcombine.high %v2198, %v2198
      %v2207 = vcombine.high %v2205, %v2205
      %v2208 = vcombine.high %v2096, %v2096
      %v2210 = vunpack.c.l.s4 1983009808
      %v2211 = vunpack.c.0.s8 %v2210
      %v2212 = vlaneseq
      %v2213 = vshrl.u32 %v2212, 7
      %v2214 = vsub.s32 %v2211, %v2213
      %v2215 = vrot.slane %v2096, %v2214
      %v2217 = vunpack.c.l.s4 1983009808
      %v2218 = vunpack.c.0.s8 %v2217
      %v2219 = vlaneseq
      %v2220 = vshrl.u32 %v2219, 7
      %v2221 = vsub.s32 %v2218, %v2220
      %v2222 = vrot.slane %v2208, %v2221
      %v2223 = vcombine.high %v2222, %v2222
      %v2224 = vcombine.high %v2097, %v2097
      %v2226 = vunpack.c.l.s4 1983009808
      %v2227 = vunpack.c.0.s8 %v2226
      %v2228 = vlaneseq
      %v2229 = vshrl.u32 %v2228, 7
      %v2230 = vsub.s32 %v2227, %v2229
      %v2231 = vrot.slane %v2097, %v2230
      %v2233 = vunpack.c.l.s4 1983009808
      %v2234 = vunpack.c.0.s8 %v2233
      %v2235 = vlaneseq
      %v2236 = vshrl.u32 %v2235, 7
      %v2237 = vsub.s32 %v2234, %v2236
      %v2238 = vrot.slane %v2224, %v2237
      %v2239 = vcombine.high %v2231, %v2231
      %v2240 = vcombine.high %v2238, %v2238
      %v2241 = vcombine.high %v2098, %v2098
      %v2243 = vunpack.c.l.s4 1983009808
      %v2244 = vunpack.c.0.s8 %v2243
      %v2245 = vlaneseq
      %v2246 = vshrl.u32 %v2245, 7
      %v2247 = vsub.s32 %v2244, %v2246
      %v2248 = vrot.slane %v2098, %v2247
      %v2250 = vunpack.c.l.s4 1983009808
      %v2251 = vunpack.c.0.s8 %v2250
      %v2252 = vlaneseq
      %v2253 = vshrl.u32 %v2252, 7
      %v2254 = vsub.s32 %v2251, %v2253
      %v2255 = vrot.slane %v2241, %v2254
      %v2256 = vcombine.high %v2248, %v2248
      %v2257 = vcombine.high %v2099, %v2099
      %v2259 = vunpack.c.l.s4 1983009808
      %v2260 = vunpack.c.0.s8 %v2259
      %v2261 = vlaneseq
      %v2262 = vshrl.u32 %v2261, 7
      %v2263 = vsub.s32 %v2260, %v2262
      %v2264 = vrot.slane %v2099, %v2263
      %v2266 = vunpack.c.l.s4 1983009808
      %v2267 = vunpack.c.0.s8 %v2266
      %v2268 = vlaneseq
      %v2269 = vshrl.u32 %v2268, 7
      %v2270 = vsub.s32 %v2267, %v2269
      %v2271 = vrot.slane %v2257, %v2270
      %v2272 = vcombine.high %v2264, %v2264
      %v2273 = vcombine.high %v2271, %v2271
      %v2274 = vcombine.high %v2100, %v2100
      %v2276 = vunpack.c.l.s4 1983009808
      %v2277 = vunpack.c.0.s8 %v2276
      %v2278 = vlaneseq
      %v2279 = vshrl.u32 %v2278, 7
      %v2280 = vsub.s32 %v2277, %v2279
      %v2281 = vrot.slane %v2100, %v2280
      %v2283 = vunpack.c.l.s4 1983009808
      %v2284 = vunpack.c.0.s8 %v2283
      %v2285 = vlaneseq
      %v2286 = vshrl.u32 %v2285, 7
      %v2287 = vsub.s32 %v2284, %v2286
      %v2288 = vrot.slane %v2274, %v2287
      %v2289 = vcombine.high %v2281, %v2281
      %v2290 = vcombine.high %v2288, %v2288
      %v2291 = vcombine.high %v2101, %v2101
      %v2293 = vunpack.c.l.s4 1983009808
      %v2294 = vunpack.c.0.s8 %v2293
      %v2295 = vlaneseq
      %v2296 = vshrl.u32 %v2295, 7
      %v2297 = vsub.s32 %v2294, %v2296
      %v2298 = vrot.slane %v2101, %v2297
      %v2300 = vunpack.c.l.s4 1983009808
      %v2301 = vunpack.c.0.s8 %v2300
      %v2302 = vlaneseq
      %v2303 = vshrl.u32 %v2302, 7
      %v2304 = vsub.s32 %v2301, %v2303
      %v2305 = vrot.slane %v2291, %v2304
      %v2306 = vcombine.high %v2305, %v2305
      %v2307 = vcombine.high %v2102, %v2102
      %v2309 = vunpack.c.l.s4 1983009808
      %v2310 = vunpack.c.0.s8 %v2309
      %v2311 = vlaneseq
      %v2312 = vshrl.u32 %v2311, 7
      %v2313 = vsub.s32 %v2310, %v2312
      %v2314 = vrot.slane %v2102, %v2313
      %v2316 = vunpack.c.l.s4 1983009808
      %v2317 = vunpack.c.0.s8 %v2316
      %v2318 = vlaneseq
      %v2319 = vshrl.u32 %v2318, 7
      %v2320 = vsub.s32 %v2317, %v2319
      %v2321 = vrot.slane %v2307, %v2320
      %v2322 = vcombine.high %v2314, %v2314
      %v2323 = vcombine.high %v2321, %v2321
      %v2324 = vcombine.high %v2103, %v2103
      %v2326 = vunpack.c.l.s4 1983009808
      %v2327 = vunpack.c.0.s8 %v2326
      %v2328 = vlaneseq
      %v2329 = vshrl.u32 %v2328, 7
      %v2330 = vsub.s32 %v2327, %v2329
      %v2331 = vrot.slane %v2103, %v2330
      %v2333 = vunpack.c.l.s4 1983009808
      %v2334 = vunpack.c.0.s8 %v2333
      %v2335 = vlaneseq
      %v2336 = vshrl.u32 %v2335, 7
      %v2337 = vsub.s32 %v2334, %v2336
      %v2338 = vrot.slane %v2324, %v2337
      %v2339 = vcombine.high %v2331, %v2331
      %v2340 = vcombine.high %v2104, %v2104
      %v2342 = vunpack.c.l.s4 1983009808
      %v2343 = vunpack.c.0.s8 %v2342
      %v2344 = vlaneseq
      %v2345 = vshrl.u32 %v2344, 7
      %v2346 = vsub.s32 %v2343, %v2345
      %v2347 = vrot.slane %v2104, %v2346
      %v2349 = vunpack.c.l.s4 1983009808
      %v2350 = vunpack.c.0.s8 %v2349
      %v2351 = vlaneseq
      %v2352 = vshrl.u32 %v2351, 7
      %v2353 = vsub.s32 %v2350, %v2352
      %v2354 = vrot.slane %v2340, %v2353
      %v2355 = vcombine.high %v2347, %v2347
      %v2356 = vcombine.high %v2354, %v2354
      %v2357 = vcombine.high %v2105, %v2105
      %v2359 = vunpack.c.l.s4 1983009808
      %v2360 = vunpack.c.0.s8 %v2359
      %v2361 = vlaneseq
      %v2362 = vshrl.u32 %v2361, 7
      %v2363 = vsub.s32 %v2360, %v2362
      %v2364 = vrot.slane %v2105, %v2363
      %v2366 = vunpack.c.l.s4 1983009808
      %v2367 = vunpack.c.0.s8 %v2366
      %v2368 = vlaneseq
      %v2369 = vshrl.u32 %v2368, 7
      %v2370 = vsub.s32 %v2367, %v2369
      %v2371 = vrot.slane %v2357, %v2370
      %v2372 = vcombine.high %v2364, %v2364
      %v2373 = vcombine.high %v2371, %v2371
      %v2374 = vcombine.high %v2106, %v2106
      %v2376 = vunpack.c.l.s4 1983009808
      %v2377 = vunpack.c.0.s8 %v2376
      %v2378 = vlaneseq
      %v2379 = vshrl.u32 %v2378, 7
      %v2380 = vsub.s32 %v2377, %v2379
      %v2381 = vrot.slane %v2106, %v2380
      %v2383 = vunpack.c.l.s4 1983009808
      %v2384 = vunpack.c.0.s8 %v2383
      %v2385 = vlaneseq
      %v2386 = vshrl.u32 %v2385, 7
      %v2387 = vsub.s32 %v2384, %v2386
      %v2388 = vrot.slane %v2374, %v2387
      %v2389 = vcombine.high %v2388, %v2388
      %v2390 = vcombine.high %v2107, %v2107
      %v2392 = vunpack.c.l.s4 1983009808
      %v2393 = vunpack.c.0.s8 %v2392
      %v2394 = vlaneseq
      %v2395 = vshrl.u32 %v2394, 7
      %v2396 = vsub.s32 %v2393, %v2395
      %v2397 = vrot.slane %v2107, %v2396
      %v2399 = vunpack.c.l.s4 1983009808
      %v2400 = vunpack.c.0.s8 %v2399
      %v2401 = vlaneseq
      %v2402 = vshrl.u32 %v2401, 7
      %v2403 = vsub.s32 %v2400, %v2402
      %v2404 = vrot.slane %v2390, %v2403
      %v2405 = vcombine.high %v2397, %v2397
      %v2406 = vcombine.high %v2404, %v2404
      %v2407 = vcombine.high %v2108, %v2108
      %v2409 = vunpack.c.l.s4 1983009808
      %v2410 = vunpack.c.0.s8 %v2409
      %v2411 = vlaneseq
      %v2412 = vshrl.u32 %v2411, 7
      %v2413 = vsub.s32 %v2410, %v2412
      %v2414 = vrot.slane %v2108, %v2413
      %v2416 = vunpack.c.l.s4 1983009808
      %v2417 = vunpack.c.0.s8 %v2416
      %v2418 = vlaneseq
      %v2419 = vshrl.u32 %v2418, 7
      %v2420 = vsub.s32 %v2417, %v2419
      %v2421 = vrot.slane %v2407, %v2420
      %v2422 = vcombine.high %v2414, %v2414
      %v2423 = vcombine.high %v2109, %v2109
      %v2425 = vunpack.c.l.s4 1983009808
      %v2426 = vunpack.c.0.s8 %v2425
      %v2427 = vlaneseq
      %v2428 = vshrl.u32 %v2427, 7
      %v2429 = vsub.s32 %v2426, %v2428
      %v2430 = vrot.slane %v2109, %v2429
      %v2432 = vunpack.c.l.s4 1983009808
      %v2433 = vunpack.c.0.s8 %v2432
      %v2434 = vlaneseq
      %v2435 = vshrl.u32 %v2434, 7
      %v2436 = vsub.s32 %v2433, %v2435
      %v2437 = vrot.slane %v2423, %v2436
      %v2438 = vcombine.high %v2430, %v2430
      %v2439 = vcombine.high %v2437, %v2437
      %v2440 = vcombine.high %v2110, %v2110
      %v2442 = vunpack.c.l.s4 1983009808
      %v2443 = vunpack.c.0.s8 %v2442
      %v2444 = vlaneseq
      %v2445 = vshrl.u32 %v2444, 7
      %v2446 = vsub.s32 %v2443, %v2445
      %v2447 = vrot.slane %v2110, %v2446
      %v2449 = vunpack.c.l.s4 1983009808
      %v2450 = vunpack.c.0.s8 %v2449
      %v2451 = vlaneseq
      %v2452 = vshrl.u32 %v2451, 7
      %v2453 = vsub.s32 %v2450, %v2452
      %v2454 = vrot.slane %v2440, %v2453
      %v2455 = vcombine.high %v2447, %v2447
      %v2456 = vcombine.high %v2454, %v2454
      %v2457 = vcombine.high %v2111, %v2111
      %v2459 = vunpack.c.l.s4 1983009808
      %v2460 = vunpack.c.0.s8 %v2459
      %v2461 = vlaneseq
      %v2462 = vshrl.u32 %v2461, 7
      %v2463 = vsub.s32 %v2460, %v2462
      %v2464 = vrot.slane %v2111, %v2463
      %v2466 = vunpack.c.l.s4 1983009808
      %v2467 = vunpack.c.0.s8 %v2466
      %v2468 = vlaneseq
      %v2469 = vshrl.u32 %v2468, 7
      %v2470 = vsub.s32 %v2467, %v2469
      %v2471 = vrot.slane %v2457, %v2470
      %v2472 = vcombine.high %v2471, %v2471
      %v2473 = vcombine.high %v2112, %v2112
      %v2475 = vunpack.c.l.s4 1983009808
      %v2476 = vunpack.c.0.s8 %v2475
      %v2477 = vlaneseq
      %v2478 = vshrl.u32 %v2477, 7
      %v2479 = vsub.s32 %v2476, %v2478
      %v2480 = vrot.slane %v2112, %v2479
      %v2482 = vunpack.c.l.s4 1983009808
      %v2483 = vunpack.c.0.s8 %v2482
      %v2484 = vlaneseq
      %v2485 = vshrl.u32 %v2484, 7
      %v2486 = vsub.s32 %v2483, %v2485
      %v2487 = vrot.slane %v2473, %v2486
      %v2488 = vcombine.high %v2480, %v2480
      %v2489 = vcombine.high %v2487, %v2487
      %v2490 = vcombine.high %v2113, %v2113
      %v2492 = vunpack.c.l.s4 1983009808
      %v2493 = vunpack.c.0.s8 %v2492
      %v2494 = vlaneseq
      %v2495 = vshrl.u32 %v2494, 7
      %v2496 = vsub.s32 %v2493, %v2495
      %v2497 = vrot.slane %v2113, %v2496
      %v2499 = vunpack.c.l.s4 1983009808
      %v2500 = vunpack.c.0.s8 %v2499
      %v2501 = vlaneseq
      %v2502 = vshrl.u32 %v2501, 7
      %v2503 = vsub.s32 %v2500, %v2502
      %v2504 = vrot.slane %v2490, %v2503
      %v2505 = vcombine.high %v2497, %v2497
      %v2506 = vcombine.high %v2114, %v2114
      %v2508 = vunpack.c.l.s4 1983009808
      %v2509 = vunpack.c.0.s8 %v2508
      %v2510 = vlaneseq
      %v2511 = vshrl.u32 %v2510, 7
      %v2512 = vsub.s32 %v2509, %v2511
      %v2513 = vrot.slane %v2114, %v2512
      %v2515 = vunpack.c.l.s4 1983009808
      %v2516 = vunpack.c.0.s8 %v2515
      %v2517 = vlaneseq
      %v2518 = vshrl.u32 %v2517, 7
      %v2519 = vsub.s32 %v2516, %v2518
      %v2520 = vrot.slane %v2506, %v2519
      %v2521 = vcombine.high %v2513, %v2513
      %v2522 = vcombine.high %v2520, %v2520
      %v2523 = vcombine.high %v2115, %v2115
      %v2525 = vunpack.c.l.s4 1983009808
      %v2526 = vunpack.c.0.s8 %v2525
      %v2527 = vlaneseq
      %v2528 = vshrl.u32 %v2527, 7
      %v2529 = vsub.s32 %v2526, %v2528
      %v2530 = vrot.slane %v2115, %v2529
      %v2532 = vunpack.c.l.s4 1983009808
      %v2533 = vunpack.c.0.s8 %v2532
      %v2534 = vlaneseq
      %v2535 = vshrl.u32 %v2534, 7
      %v2536 = vsub.s32 %v2533, %v2535
      %v2537 = vrot.slane %v2523, %v2536
      %v2538 = vcombine.high %v2530, %v2530
      %v2539 = vcombine.high %v2537, %v2537
      %v2540 = vcombine.high %v2116, %v2116
      %v2542 = vunpack.c.l.s4 1983009808
      %v2543 = vunpack.c.0.s8 %v2542
      %v2544 = vlaneseq
      %v2545 = vshrl.u32 %v2544, 7
      %v2546 = vsub.s32 %v2543, %v2545
      %v2547 = vrot.slane %v2116, %v2546
      %v2549 = vunpack.c.l.s4 1983009808
      %v2550 = vunpack.c.0.s8 %v2549
      %v2551 = vlaneseq
      %v2552 = vshrl.u32 %v2551, 7
      %v2553 = vsub.s32 %v2550, %v2552
      %v2554 = vrot.slane %v2540, %v2553
      %v2555 = vcombine.high %v2554, %v2554
      %v2556 = vcombine.high %v2117, %v2117
      %v2558 = vunpack.c.l.s4 1983009808
      %v2559 = vunpack.c.0.s8 %v2558
      %v2560 = vlaneseq
      %v2561 = vshrl.u32 %v2560, 7
      %v2562 = vsub.s32 %v2559, %v2561
      %v2563 = vrot.slane %v2117, %v2562
      %v2565 = vunpack.c.l.s4 1983009808
      %v2566 = vunpack.c.0.s8 %v2565
      %v2567 = vlaneseq
      %v2568 = vshrl.u32 %v2567, 7
      %v2569 = vsub.s32 %v2566, %v2568
      %v2570 = vrot.slane %v2556, %v2569
      %v2571 = vcombine.high %v2563, %v2563
      %v2572 = vcombine.high %v2570, %v2570
      %v2573 = vcombine.high %v2118, %v2118
      %v2575 = vunpack.c.l.s4 1983009808
      %v2576 = vunpack.c.0.s8 %v2575
      %v2577 = vlaneseq
      %v2578 = vshrl.u32 %v2577, 7
      %v2579 = vsub.s32 %v2576, %v2578
      %v2580 = vrot.slane %v2118, %v2579
      %v2582 = vunpack.c.l.s4 1983009808
      %v2583 = vunpack.c.0.s8 %v2582
      %v2584 = vlaneseq
      %v2585 = vshrl.u32 %v2584, 7
      %v2586 = vsub.s32 %v2583, %v2585
      %v2587 = vrot.slane %v2573, %v2586
      %v2588 = vcombine.high %v2580, %v2580
      %v2589 = vcombine.high %v2119, %v2119
      %v2591 = vunpack.c.l.s4 1983009808
      %v2592 = vunpack.c.0.s8 %v2591
      %v2593 = vlaneseq
      %v2594 = vshrl.u32 %v2593, 7
      %v2595 = vsub.s32 %v2592, %v2594
      %v2596 = vrot.slane %v2119, %v2595
      %v2598 = vunpack.c.l.s4 1983009808
      %v2599 = vunpack.c.0.s8 %v2598
      %v2600 = vlaneseq
      %v2601 = vshrl.u32 %v2600, 7
      %v2602 = vsub.s32 %v2599, %v2601
      %v2603 = vrot.slane %v2589, %v2602
      %v2604 = vcombine.high %v2596, %v2596
      %v2605 = vcombine.high %v2603, %v2603
      %v2606 = vcombine.high %v2120, %v2120
      %v2608 = vunpack.c.l.s4 1983009808
      %v2609 = vunpack.c.0.s8 %v2608
      %v2610 = vlaneseq
      %v2611 = vshrl.u32 %v2610, 7
      %v2612 = vsub.s32 %v2609, %v2611
      %v2613 = vrot.slane %v2120, %v2612
      %v2615 = vunpack.c.l.s4 1983009808
      %v2616 = vunpack.c.0.s8 %v2615
      %v2617 = vlaneseq
      %v2618 = vshrl.u32 %v2617, 7
      %v2619 = vsub.s32 %v2616, %v2618
      %v2620 = vrot.slane %v2606, %v2619
      %v2621 = vcombine.high %v2613, %v2613
      %v2622 = vcombine.high %v2620, %v2620
      %v2623 = vcombine.high %v2121, %v2121
      %v2625 = vunpack.c.l.s4 1983009808
      %v2626 = vunpack.c.0.s8 %v2625
      %v2627 = vlaneseq
      %v2628 = vshrl.u32 %v2627, 7
      %v2629 = vsub.s32 %v2626, %v2628
      %v2630 = vrot.slane %v2121, %v2629
      %v2632 = vunpack.c.l.s4 1983009808
      %v2633 = vunpack.c.0.s8 %v2632
      %v2634 = vlaneseq
      %v2635 = vshrl.u32 %v2634, 7
      %v2636 = vsub.s32 %v2633, %v2635
      %v2637 = vrot.slane %v2623, %v2636
      %v2638 = vcombine.high %v2637, %v2637
      %v2639 = vcombine.high %v2122, %v2122
      %v2641 = vunpack.c.l.s4 1983009808
      %v2642 = vunpack.c.0.s8 %v2641
      %v2643 = vlaneseq
      %v2644 = vshrl.u32 %v2643, 7
      %v2645 = vsub.s32 %v2642, %v2644
      %v2646 = vrot.slane %v2122, %v2645
      %v2648 = vunpack.c.l.s4 1983009808
      %v2649 = vunpack.c.0.s8 %v2648
      %v2650 = vlaneseq
      %v2651 = vshrl.u32 %v2650, 7
      %v2652 = vsub.s32 %v2649, %v2651
      %v2653 = vrot.slane %v2639, %v2652
      %v2654 = vcombine.high %v2646, %v2646
      %v2655 = vcombine.high %v2653, %v2653
      %v2656 = vcombine.high %v2123, %v2123
      %v2658 = vunpack.c.l.s4 1983009808
      %v2659 = vunpack.c.0.s8 %v2658
      %v2660 = vlaneseq
      %v2661 = vshrl.u32 %v2660, 7
      %v2662 = vsub.s32 %v2659, %v2661
      %v2663 = vrot.slane %v2123, %v2662
      %v2665 = vunpack.c.l.s4 1983009808
      %v2666 = vunpack.c.0.s8 %v2665
      %v2667 = vlaneseq
      %v2668 = vshrl.u32 %v2667, 7
      %v2669 = vsub.s32 %v2666, %v2668
      %v2670 = vrot.slane %v2656, %v2669
      %v2671 = vcombine.high %v2663, %v2663
      %v2672 = vcombine.high %v2124, %v2124
      %v2674 = vunpack.c.l.s4 1983009808
      %v2675 = vunpack.c.0.s8 %v2674
      %v2676 = vlaneseq
      %v2677 = vshrl.u32 %v2676, 7
      %v2678 = vsub.s32 %v2675, %v2677
      %v2679 = vrot.slane %v2124, %v2678
      %v2681 = vunpack.c.l.s4 1983009808
      %v2682 = vunpack.c.0.s8 %v2681
      %v2683 = vlaneseq
      %v2684 = vshrl.u32 %v2683, 7
      %v2685 = vsub.s32 %v2682, %v2684
      %v2686 = vrot.slane %v2672, %v2685
      %v2687 = vcombine.high %v2679, %v2679
      %v2688 = vcombine.high %v2686, %v2686
      %v2689 = vcombine.high %v2125, %v2125
      %v2691 = vunpack.c.l.s4 1983009808
      %v2692 = vunpack.c.0.s8 %v2691
      %v2693 = vlaneseq
      %v2694 = vshrl.u32 %v2693, 7
      %v2695 = vsub.s32 %v2692, %v2694
      %v2696 = vrot.slane %v2125, %v2695
      %v2698 = vunpack.c.l.s4 1983009808
      %v2699 = vunpack.c.0.s8 %v2698
      %v2700 = vlaneseq
      %v2701 = vshrl.u32 %v2700, 7
      %v2702 = vsub.s32 %v2699, %v2701
      %v2703 = vrot.slane %v2689, %v2702
      %v2704 = vcombine.high %v2696, %v2696
      %v2705 = vcombine.high %v2703, %v2703
      %v2706 = vcombine.high %v2126, %v2126
      %v2708 = vunpack.c.l.s4 1983009808
      %v2709 = vunpack.c.0.s8 %v2708
      %v2710 = vlaneseq
      %v2711 = vshrl.u32 %v2710, 7
      %v2712 = vsub.s32 %v2709, %v2711
      %v2713 = vrot.slane %v2126, %v2712
      %v2715 = vunpack.c.l.s4 1983009808
      %v2716 = vunpack.c.0.s8 %v2715
      %v2717 = vlaneseq
      %v2718 = vshrl.u32 %v2717, 7
      %v2719 = vsub.s32 %v2716, %v2718
      %v2720 = vrot.slane %v2706, %v2719
      %v2721 = vcombine.high %v2720, %v2720
      %v2722 = vcombine.high %v2127, %v2127
      %v2724 = vunpack.c.l.s4 1983009808
      %v2725 = vunpack.c.0.s8 %v2724
      %v2726 = vlaneseq
      %v2727 = vshrl.u32 %v2726, 7
      %v2728 = vsub.s32 %v2725, %v2727
      %v2729 = vrot.slane %v2127, %v2728
      %v2731 = vunpack.c.l.s4 1983009808
      %v2732 = vunpack.c.0.s8 %v2731
      %v2733 = vlaneseq
      %v2734 = vshrl.u32 %v2733, 7
      %v2735 = vsub.s32 %v2732, %v2734
      %v2736 = vrot.slane %v2722, %v2735
      %v2737 = vcombine.high %v2729, %v2729
      %v2738 = vcombine.high %v2736, %v2736
      %v2739 = vcombine.high %v2128, %v2128
      %v2741 = vunpack.c.l.s4 1983009808
      %v2742 = vunpack.c.0.s8 %v2741
      %v2743 = vlaneseq
      %v2744 = vshrl.u32 %v2743, 7
      %v2745 = vsub.s32 %v2742, %v2744
      %v2746 = vrot.slane %v2128, %v2745
      %v2748 = vunpack.c.l.s4 1983009808
      %v2749 = vunpack.c.0.s8 %v2748
      %v2750 = vlaneseq
      %v2751 = vshrl.u32 %v2750, 7
      %v2752 = vsub.s32 %v2749, %v2751
      %v2753 = vrot.slane %v2739, %v2752
      %v2754 = vcombine.high %v2746, %v2746
      %v2755 = vcombine.high %v2129, %v2129
      %v2757 = vunpack.c.l.s4 1983009808
      %v2758 = vunpack.c.0.s8 %v2757
      %v2759 = vlaneseq
      %v2760 = vshrl.u32 %v2759, 7
      %v2761 = vsub.s32 %v2758, %v2760
      %v2762 = vrot.slane %v2129, %v2761
      %v2764 = vunpack.c.l.s4 1983009808
      %v2765 = vunpack.c.0.s8 %v2764
      %v2766 = vlaneseq
      %v2767 = vshrl.u32 %v2766, 7
      %v2768 = vsub.s32 %v2765, %v2767
      %v2769 = vrot.slane %v2755, %v2768
      %v2770 = vcombine.high %v2762, %v2762
      %v2771 = vcombine.high %v2769, %v2769
      %v2772 = vcombine.high %v2130, %v2130
      %v2774 = vunpack.c.l.s4 1983009808
      %v2775 = vunpack.c.0.s8 %v2774
      %v2776 = vlaneseq
      %v2777 = vshrl.u32 %v2776, 7
      %v2778 = vsub.s32 %v2775, %v2777
      %v2779 = vrot.slane %v2130, %v2778
      %v2781 = vunpack.c.l.s4 1983009808
      %v2782 = vunpack.c.0.s8 %v2781
      %v2783 = vlaneseq
      %v2784 = vshrl.u32 %v2783, 7
      %v2785 = vsub.s32 %v2782, %v2784
      %v2786 = vrot.slane %v2772, %v2785
      %v2787 = vcombine.high %v2779, %v2779
      %v2788 = vcombine.high %v2786, %v2786
      %v2789 = vcombine.high %v2131, %v2131
      %v2791 = vunpack.c.l.s4 1983009808
      %v2792 = vunpack.c.0.s8 %v2791
      %v2793 = vlaneseq
      %v2794 = vshrl.u32 %v2793, 7
      %v2795 = vsub.s32 %v2792, %v2794
      %v2796 = vrot.slane %v2131, %v2795
      %v2798 = vunpack.c.l.s4 1983009808
      %v2799 = vunpack.c.0.s8 %v2798
      %v2800 = vlaneseq
      %v2801 = vshrl.u32 %v2800, 7
      %v2802 = vsub.s32 %v2799, %v2801
      %v2803 = vrot.slane %v2789, %v2802
      %v2804 = vcombine.high %v2803, %v2803
      %v2805 = vcombine.high %v2132, %v2132
      %v2807 = vunpack.c.l.s4 1983009808
      %v2808 = vunpack.c.0.s8 %v2807
      %v2809 = vlaneseq
      %v2810 = vshrl.u32 %v2809, 7
      %v2811 = vsub.s32 %v2808, %v2810
      %v2812 = vrot.slane %v2132, %v2811
      %v2814 = vunpack.c.l.s4 1983009808
      %v2815 = vunpack.c.0.s8 %v2814
      %v2816 = vlaneseq
      %v2817 = vshrl.u32 %v2816, 7
      %v2818 = vsub.s32 %v2815, %v2817
      %v2819 = vrot.slane %v2805, %v2818
      %v2820 = vcombine.high %v2812, %v2812
      %v2821 = vcombine.high %v2819, %v2819
      %v2822 = vcombine.high %v2133, %v2133
      %v2824 = vunpack.c.l.s4 1983009808
      %v2825 = vunpack.c.0.s8 %v2824
      %v2826 = vlaneseq
      %v2827 = vshrl.u32 %v2826, 7
      %v2828 = vsub.s32 %v2825, %v2827
      %v2829 = vrot.slane %v2133, %v2828
      %v2831 = vunpack.c.l.s4 1983009808
      %v2832 = vunpack.c.0.s8 %v2831
      %v2833 = vlaneseq
      %v2834 = vshrl.u32 %v2833, 7
      %v2835 = vsub.s32 %v2832, %v2834
      %v2836 = vrot.slane %v2822, %v2835
      %v2837 = vcombine.high %v2829, %v2829
      %v2966 = vrot.slane %v2181, 7
      %v2967 = vrot.slane %v2966, 2
      %v2968 = vrot.slane %v2189, 7
      %v2969 = vrot.slane %v2968, 2
      %v2970 = vrot.slane %v2188, 7
      %v2971 = vrot.slane %v2970, 2
      %v2972 = vrot.slane %v2190, 7
      %v2973 = vrot.slane %v2972, 2
      %v2974 = vrot.slane %v2206, 7
      %v2975 = vrot.slane %v2974, 2
      %v2976 = vrot.slane %v2205, 7
      %v2977 = vrot.slane %v2976, 2
      %v2978 = vrot.slane %v2207, 7
      %v2979 = vrot.slane %v2978, 2
      %v2980 = vrot.slane %v2215, 7
      %v2981 = vrot.slane %v2980, 2
      %v2982 = vrot.slane %v2222, 7
      %v2983 = vrot.slane %v2982, 2
      %v2984 = vrot.slane %v2223, 7
      %v2985 = vrot.slane %v2984, 2
      %v2986 = vrot.slane %v2231, 7
      %v2987 = vrot.slane %v2986, 2
      %v2988 = vrot.slane %v2239, 7
      %v2989 = vrot.slane %v2988, 2
      %v2990 = vrot.slane %v2240, 7
      %v2991 = vrot.slane %v2990, 2
      %v2992 = vrot.slane %v2248, 7
      %v2993 = vrot.slane %v2992, 2
      %v2994 = vrot.slane %v2256, 7
      %v2995 = vrot.slane %v2994, 2
      %v2996 = vrot.slane %v2255, 7
      %v2997 = vrot.slane %v2996, 2
      %v2998 = vrot.slane %v2264, 7
      %v2999 = vrot.slane %v2998, 2
      %v3000 = vrot.slane %v2272, 7
      %v3001 = vrot.slane %v3000, 2
      %v3002 = vrot.slane %v2271, 7
      %v3003 = vrot.slane %v3002, 2
      %v3004 = vrot.slane %v2273, 7
      %v3005 = vrot.slane %v3004, 2
      %v3006 = vrot.slane %v2289, 7
      %v3007 = vrot.slane %v3006, 2
      %v3008 = vrot.slane %v2288, 7
      %v3009 = vrot.slane %v3008, 2
      %v3010 = vrot.slane %v2290, 7
      %v3011 = vrot.slane %v3010, 2
      %v3012 = vrot.slane %v2298, 7
      %v3013 = vrot.slane %v3012, 2
      %v3014 = vrot.slane %v2305, 7
      %v3015 = vrot.slane %v3014, 2
      %v3016 = vrot.slane %v2306, 7
      %v3017 = vrot.slane %v3016, 2
      %v3018 = vrot.slane %v2314, 7
      %v3019 = vrot.slane %v3018, 2
      %v3020 = vrot.slane %v2322, 7
      %v3021 = vrot.slane %v3020, 2
      %v3022 = vrot.slane %v2323, 7
      %v3023 = vrot.slane %v3022, 2
      %v3024 = vrot.slane %v2331, 7
      %v3025 = vrot.slane %v3024, 2
      %v3026 = vrot.slane %v2339, 7
      %v3027 = vrot.slane %v3026, 2
      %v3028 = vrot.slane %v2338, 7
      %v3029 = vrot.slane %v3028, 2
      %v3030 = vrot.slane %v2347, 7
      %v3031 = vrot.slane %v3030, 2
      %v3032 = vrot.slane %v2355, 7
      %v3033 = vrot.slane %v3032, 2
      %v3034 = vrot.slane %v2354, 7
      %v3035 = vrot.slane %v3034, 2
      %v3036 = vrot.slane %v2356, 7
      %v3037 = vrot.slane %v3036, 2
      %v3038 = vrot.slane %v2372, 7
      %v3039 = vrot.slane %v3038, 2
      %v3040 = vrot.slane %v2371, 7
      %v3041 = vrot.slane %v3040, 2
      %v3042 = vrot.slane %v2373, 7
      %v3043 = vrot.slane %v3042, 2
      %v3044 = vrot.slane %v2381, 7
      %v3045 = vrot.slane %v3044, 2
      %v3046 = vrot.slane %v2388, 7
      %v3047 = vrot.slane %v3046, 2
      %v3048 = vrot.slane %v2389, 7
      %v3049 = vrot.slane %v3048, 2
      %v3050 = vrot.slane %v2397, 7
      %v3051 = vrot.slane %v3050, 2
      %v3052 = vrot.slane %v2405, 7
      %v3053 = vrot.slane %v3052, 2
      %v3054 = vrot.slane %v2406, 7
      %v3055 = vrot.slane %v3054, 2
      %v3056 = vrot.slane %v2414, 7
      %v3057 = vrot.slane %v3056, 2
      %v3058 = vrot.slane %v2422, 7
      %v3059 = vrot.slane %v3058, 2
      %v3060 = vrot.slane %v2421, 7
      %v3061 = vrot.slane %v3060, 2
      %v3062 = vrot.slane %v2430, 7
      %v3063 = vrot.slane %v3062, 2
      %v3064 = vrot.slane %v2438, 7
      %v3065 = vrot.slane %v3064, 2
      %v3066 = vrot.slane %v2437, 7
      %v3067 = vrot.slane %v3066, 2
      %v3068 = vrot.slane %v2439, 7
      %v3069 = vrot.slane %v3068, 2
      %v3070 = vrot.slane %v2455, 7
      %v3071 = vrot.slane %v3070, 2
      %v3072 = vrot.slane %v2454, 7
      %v3073 = vrot.slane %v3072, 2
      %v3074 = vrot.slane %v2456, 7
      %v3075 = vrot.slane %v3074, 2
      %v3076 = vrot.slane %v2464, 7
      %v3077 = vrot.slane %v3076, 2
      %v3078 = vrot.slane %v2471, 7
      %v3079 = vrot.slane %v3078, 2
      %v3080 = vrot.slane %v2472, 7
      %v3081 = vrot.slane %v3080, 2
      %v3082 = vrot.slane %v2480, 7
      %v3083 = vrot.slane %v3082, 2
      %v3084 = vrot.slane %v2488, 7
      %v3085 = vrot.slane %v3084, 2
      %v3086 = vrot.slane %v2489, 7
      %v3087 = vrot.slane %v3086, 2
      %v3088 = vrot.slane %v2497, 7
      %v3089 = vrot.slane %v3088, 2
      %v3090 = vrot.slane %v2505, 7
      %v3091 = vrot.slane %v3090, 2
      %v3092 = vrot.slane %v2504, 7
      %v3093 = vrot.slane %v3092, 2
      %v3094 = vrot.slane %v2513, 7
      %v3095 = vrot.slane %v3094, 2
      %v3096 = vrot.slane %v2521, 7
      %v3097 = vrot.slane %v3096, 2
      %v3098 = vrot.slane %v2520, 7
      %v3099 = vrot.slane %v3098, 2
      %v3100 = vrot.slane %v2522, 7
      %v3101 = vrot.slane %v3100, 2
      %v3102 = vrot.slane %v2538, 7
      %v3103 = vrot.slane %v3102, 2
      %v3104 = vrot.slane %v2537, 7
      %v3105 = vrot.slane %v3104, 2
      %v3106 = vrot.slane %v2539, 7
      %v3107 = vrot.slane %v3106, 2
      %v3108 = vrot.slane %v2547, 7
      %v3109 = vrot.slane %v3108, 2
      %v3110 = vrot.slane %v2554, 7
      %v3111 = vrot.slane %v3110, 2
      %v3112 = vrot.slane %v2555, 7
      %v3113 = vrot.slane %v3112, 2
      %v3114 = vrot.slane %v2563, 7
      %v3115 = vrot.slane %v3114, 2
      %v3116 = vrot.slane %v2571, 7
      %v3117 = vrot.slane %v3116, 2
      %v3118 = vrot.slane %v2572, 7
      %v3119 = vrot.slane %v3118, 2
      %v3120 = vrot.slane %v2580, 7
      %v3121 = vrot.slane %v3120, 2
      %v3122 = vrot.slane %v2588, 7
      %v3123 = vrot.slane %v3122, 2
      %v3124 = vrot.slane %v2587, 7
      %v3125 = vrot.slane %v3124, 2
      %v3126 = vrot.slane %v2596, 7
      %v3127 = vrot.slane %v3126, 2
      %v3128 = vrot.slane %v2604, 7
      %v3129 = vrot.slane %v3128, 2
      %v3130 = vrot.slane %v2603, 7
      %v3131 = vrot.slane %v3130, 2
      %v3132 = vrot.slane %v2605, 7
      %v3133 = vrot.slane %v3132, 2
      %v3134 = vrot.slane %v2621, 7
      %v3135 = vrot.slane %v3134, 2
      %v3136 = vrot.slane %v2620, 7
      %v3137 = vrot.slane %v3136, 2
      %v3138 = vrot.slane %v2622, 7
      %v3139 = vrot.slane %v3138, 2
      %v3140 = vrot.slane %v2630, 7
      %v3141 = vrot.slane %v3140, 2
      %v3142 = vrot.slane %v2637, 7
      %v3143 = vrot.slane %v3142, 2
      %v3144 = vrot.slane %v2638, 7
      %v3145 = vrot.slane %v3144, 2
      %v3146 = vrot.slane %v2646, 7
      %v3147 = vrot.slane %v3146, 2
      %v3148 = vrot.slane %v2654, 7
      %v3149 = vrot.slane %v3148, 2
      %v3150 = vrot.slane %v2655, 7
      %v3151 = vrot.slane %v3150, 2
      %v3152 = vrot.slane %v2663, 7
      %v3153 = vrot.slane %v3152, 2
      %v3154 = vrot.slane %v2671, 7
      %v3155 = vrot.slane %v3154, 2
      %v3156 = vrot.slane %v2670, 7
      %v3157 = vrot.slane %v3156, 2
      %v3158 = vrot.slane %v2679, 7
      %v3159 = vrot.slane %v3158, 2
      %v3160 = vrot.slane %v2687, 7
      %v3161 = vrot.slane %v3160, 2
      %v3162 = vrot.slane %v2686, 7
      %v3163 = vrot.slane %v3162, 2
      %v3164 = vrot.slane %v2688, 7
      %v3165 = vrot.slane %v3164, 2
      %v3166 = vrot.slane %v2704, 7
      %v3167 = vrot.slane %v3166, 2
      %v3168 = vrot.slane %v2703, 7
      %v3169 = vrot.slane %v3168, 2
      %v3170 = vrot.slane %v2705, 7
      %v3171 = vrot.slane %v3170, 2
      %v3172 = vrot.slane %v2713, 7
      %v3173 = vrot.slane %v3172, 2
      %v3174 = vrot.slane %v2720, 7
      %v3175 = vrot.slane %v3174, 2
      %v3176 = vrot.slane %v2721, 7
      %v3177 = vrot.slane %v3176, 2
      %v3178 = vrot.slane %v2729, 7
      %v3179 = vrot.slane %v3178, 2
      %v3180 = vrot.slane %v2737, 7
      %v3181 = vrot.slane %v3180, 2
      %v3182 = vrot.slane %v2738, 7
      %v3183 = vrot.slane %v3182, 2
      %v3184 = vrot.slane %v2746, 7
      %v3185 = vrot.slane %v3184, 2
      %v3186 = vrot.slane %v2754, 7
      %v3187 = vrot.slane %v3186, 2
      %v3188 = vrot.slane %v2753, 7
      %v3189 = vrot.slane %v3188, 2
      %v3190 = vrot.slane %v2762, 7
      %v3191 = vrot.slane %v3190, 2
      %v3192 = vrot.slane %v2770, 7
      %v3193 = vrot.slane %v3192, 2
      %v3194 = vrot.slane %v2769, 7
      %v3195 = vrot.slane %v3194, 2
      %v3196 = vrot.slane %v2771, 7
      %v3197 = vrot.slane %v3196, 2
      %v3198 = vrot.slane %v2787, 7
      %v3199 = vrot.slane %v3198, 2
      %v3200 = vrot.slane %v2786, 7
      %v3201 = vrot.slane %v3200, 2
      %v3202 = vrot.slane %v2788, 7
      %v3203 = vrot.slane %v3202, 2
      %v3204 = vrot.slane %v2796, 7
      %v3205 = vrot.slane %v3204, 2
      %v3206 = vrot.slane %v2803, 7
      %v3207 = vrot.slane %v3206, 2
      %v3208 = vrot.slane %v2804, 7
      %v3209 = vrot.slane %v3208, 2
      %v3210 = vrot.slane %v2812, 7
      %v3211 = vrot.slane %v3210, 2
      %v3212 = vrot.slane %v2820, 7
      %v3213 = vrot.slane %v3212, 2
      %v3214 = vrot.slane %v2821, 7
      %v3215 = vrot.slane %v3214, 2
      %v3216 = vrot.slane %v2829, 7
      %v3217 = vrot.slane %v3216, 2
      %v3218 = vrot.slane %v2837, 7
      %v3219 = vrot.slane %v3218, 2
      %v3220 = vrot.slane %v2836, 7
      %v3221 = vrot.slane %v3220, 2
      %v3350 = vmax.f32 %v2181, %v2967
      %v3351 = vmax.f32 %v2189, %v2969
      %v3352 = vmax.f32 %v2188, %v2971
      %v3353 = vmax.f32 %v2190, %v2973
      %v3354 = vmax.f32 %v2206, %v2975
      %v3355 = vmax.f32 %v2205, %v2977
      %v3356 = vmax.f32 %v2207, %v2979
      %v3357 = vmax.f32 %v2215, %v2981
      %v3358 = vmax.f32 %v2222, %v2983
      %v3359 = vmax.f32 %v2223, %v2985
      %v3360 = vmax.f32 %v2231, %v2987
      %v3361 = vmax.f32 %v2239, %v2989
      %v3362 = vmax.f32 %v2240, %v2991
      %v3363 = vmax.f32 %v2248, %v2993
      %v3364 = vmax.f32 %v2256, %v2995
      %v3365 = vmax.f32 %v2255, %v2997
      %v3366 = vmax.f32 %v2264, %v2999
      %v3367 = vmax.f32 %v2272, %v3001
      %v3368 = vmax.f32 %v2271, %v3003
      %v3369 = vmax.f32 %v2273, %v3005
      %v3370 = vmax.f32 %v2289, %v3007
      %v3371 = vmax.f32 %v2288, %v3009
      %v3372 = vmax.f32 %v2290, %v3011
      %v3373 = vmax.f32 %v2298, %v3013
      %v3374 = vmax.f32 %v2305, %v3015
      %v3375 = vmax.f32 %v2306, %v3017
      %v3376 = vmax.f32 %v2314, %v3019
      %v3377 = vmax.f32 %v2322, %v3021
      %v3378 = vmax.f32 %v2323, %v3023
      %v3379 = vmax.f32 %v2331, %v3025
      %v3380 = vmax.f32 %v2339, %v3027
      %v3381 = vmax.f32 %v2338, %v3029
      %v3382 = vmax.f32 %v2347, %v3031
      %v3383 = vmax.f32 %v2355, %v3033
      %v3384 = vmax.f32 %v2354, %v3035
      %v3385 = vmax.f32 %v2356, %v3037
      %v3386 = vmax.f32 %v2372, %v3039
      %v3387 = vmax.f32 %v2371, %v3041
      %v3388 = vmax.f32 %v2373, %v3043
      %v3389 = vmax.f32 %v2381, %v3045
      %v3390 = vmax.f32 %v2388, %v3047
      %v3391 = vmax.f32 %v2389, %v3049
      %v3392 = vmax.f32 %v2397, %v3051
      %v3393 = vmax.f32 %v2405, %v3053
      %v3394 = vmax.f32 %v2406, %v3055
      %v3395 = vmax.f32 %v2414, %v3057
      %v3396 = vmax.f32 %v2422, %v3059
      %v3397 = vmax.f32 %v2421, %v3061
      %v3398 = vmax.f32 %v2430, %v3063
      %v3399 = vmax.f32 %v2438, %v3065
      %v3400 = vmax.f32 %v2437, %v3067
      %v3401 = vmax.f32 %v2439, %v3069
      %v3402 = vmax.f32 %v2455, %v3071
      %v3403 = vmax.f32 %v2454, %v3073
      %v3404 = vmax.f32 %v2456, %v3075
      %v3405 = vmax.f32 %v2464, %v3077
      %v3406 = vmax.f32 %v2471, %v3079
      %v3407 = vmax.f32 %v2472, %v3081
      %v3408 = vmax.f32 %v2480, %v3083
      %v3409 = vmax.f32 %v2488, %v3085
      %v3410 = vmax.f32 %v2489, %v3087
      %v3411 = vmax.f32 %v2497, %v3089
      %v3412 = vmax.f32 %v2505, %v3091
      %v3413 = vmax.f32 %v2504, %v3093
      %v3414 = vmax.f32 %v2513, %v3095
      %v3415 = vmax.f32 %v2521, %v3097
      %v3416 = vmax.f32 %v2520, %v3099
      %v3417 = vmax.f32 %v2522, %v3101
      %v3418 = vmax.f32 %v2538, %v3103
      %v3419 = vmax.f32 %v2537, %v3105
      %v3420 = vmax.f32 %v2539, %v3107
      %v3421 = vmax.f32 %v2547, %v3109
      %v3422 = vmax.f32 %v2554, %v3111
      %v3423 = vmax.f32 %v2555, %v3113
      %v3424 = vmax.f32 %v2563, %v3115
      %v3425 = vmax.f32 %v2571, %v3117
      %v3426 = vmax.f32 %v2572, %v3119
      %v3427 = vmax.f32 %v2580, %v3121
      %v3428 = vmax.f32 %v2588, %v3123
      %v3429 = vmax.f32 %v2587, %v3125
      %v3430 = vmax.f32 %v2596, %v3127
      %v3431 = vmax.f32 %v2604, %v3129
      %v3432 = vmax.f32 %v2603, %v3131
      %v3433 = vmax.f32 %v2605, %v3133
      %v3434 = vmax.f32 %v2621, %v3135
      %v3435 = vmax.f32 %v2620, %v3137
      %v3436 = vmax.f32 %v2622, %v3139
      %v3437 = vmax.f32 %v2630, %v3141
      %v3438 = vmax.f32 %v2637, %v3143
      %v3439 = vmax.f32 %v2638, %v3145
      %v3440 = vmax.f32 %v2646, %v3147
      %v3441 = vmax.f32 %v2654, %v3149
      %v3442 = vmax.f32 %v2655, %v3151
      %v3443 = vmax.f32 %v2663, %v3153
      %v3444 = vmax.f32 %v2671, %v3155
      %v3445 = vmax.f32 %v2670, %v3157
      %v3446 = vmax.f32 %v2679, %v3159
      %v3447 = vmax.f32 %v2687, %v3161
      %v3448 = vmax.f32 %v2686, %v3163
      %v3449 = vmax.f32 %v2688, %v3165
      %v3450 = vmax.f32 %v2704, %v3167
      %v3451 = vmax.f32 %v2703, %v3169
      %v3452 = vmax.f32 %v2705, %v3171
      %v3453 = vmax.f32 %v2713, %v3173
      %v3454 = vmax.f32 %v2720, %v3175
      %v3455 = vmax.f32 %v2721, %v3177
      %v3456 = vmax.f32 %v2729, %v3179
      %v3457 = vmax.f32 %v2737, %v3181
      %v3458 = vmax.f32 %v2738, %v3183
      %v3459 = vmax.f32 %v2746, %v3185
      %v3460 = vmax.f32 %v2754, %v3187
      %v3461 = vmax.f32 %v2753, %v3189
      %v3462 = vmax.f32 %v2762, %v3191
      %v3463 = vmax.f32 %v2770, %v3193
      %v3464 = vmax.f32 %v2769, %v3195
      %v3465 = vmax.f32 %v2771, %v3197
      %v3466 = vmax.f32 %v2787, %v3199
      %v3467 = vmax.f32 %v2786, %v3201
      %v3468 = vmax.f32 %v2788, %v3203
      %v3469 = vmax.f32 %v2796, %v3205
      %v3470 = vmax.f32 %v2803, %v3207
      %v3471 = vmax.f32 %v2804, %v3209
      %v3472 = vmax.f32 %v2812, %v3211
      %v3473 = vmax.f32 %v2820, %v3213
      %v3474 = vmax.f32 %v2821, %v3215
      %v3475 = vmax.f32 %v2829, %v3217
      %v3476 = vmax.f32 %v2837, %v3219
      %v3477 = vmax.f32 %v2836, %v3221
      %v3478 = vmax.f32 %v3350, %v3354
      %v3479 = vmax.f32 %v3351, %v3355
      %v3480 = vmax.f32 %v3352, %v3356
      %v3481 = vmax.f32 %v3353, %v3357
      %v3482 = vmax.f32 %v3358, %v3362
      %v3483 = vmax.f32 %v3359, %v3363
      %v3484 = vmax.f32 %v3360, %v3364
      %v3485 = vmax.f32 %v3361, %v3365
      %v3486 = vmax.f32 %v3366, %v3370
      %v3487 = vmax.f32 %v3367, %v3371
      %v3488 = vmax.f32 %v3368, %v3372
      %v3489 = vmax.f32 %v3369, %v3373
      %v3490 = vmax.f32 %v3374, %v3378
      %v3491 = vmax.f32 %v3375, %v3379
      %v3492 = vmax.f32 %v3376, %v3380
      %v3493 = vmax.f32 %v3377, %v3381
      %v3494 = vmax.f32 %v3382, %v3386
      %v3495 = vmax.f32 %v3383, %v3387
      %v3496 = vmax.f32 %v3384, %v3388
      %v3497 = vmax.f32 %v3385, %v3389
      %v3498 = vmax.f32 %v3390, %v3394
      %v3499 = vmax.f32 %v3391, %v3395
      %v3500 = vmax.f32 %v3392, %v3396
      %v3501 = vmax.f32 %v3393, %v3397
      %v3502 = vmax.f32 %v3398, %v3402
      %v3503 = vmax.f32 %v3399, %v3403
      %v3504 = vmax.f32 %v3400, %v3404
      %v3505 = vmax.f32 %v3401, %v3405
      %v3506 = vmax.f32 %v3406, %v3410
      %v3507 = vmax.f32 %v3407, %v3411
      %v3508 = vmax.f32 %v3408, %v3412
      %v3509 = vmax.f32 %v3409, %v3413
      %v3510 = vmax.f32 %v3414, %v3418
      %v3511 = vmax.f32 %v3415, %v3419
      %v3512 = vmax.f32 %v3416, %v3420
      %v3513 = vmax.f32 %v3417, %v3421
      %v3514 = vmax.f32 %v3422, %v3426
      %v3515 = vmax.f32 %v3423, %v3427
      %v3516 = vmax.f32 %v3424, %v3428
      %v3517 = vmax.f32 %v3425, %v3429
      %v3518 = vmax.f32 %v3430, %v3434
      %v3519 = vmax.f32 %v3431, %v3435
      %v3520 = vmax.f32 %v3432, %v3436
      %v3521 = vmax.f32 %v3433, %v3437
      %v3522 = vmax.f32 %v3438, %v3442
      %v3523 = vmax.f32 %v3439, %v3443
      %v3524 = vmax.f32 %v3440, %v3444
      %v3525 = vmax.f32 %v3441, %v3445
      %v3526 = vmax.f32 %v3446, %v3450
      %v3527 = vmax.f32 %v3447, %v3451
      %v3528 = vmax.f32 %v3448, %v3452
      %v3529 = vmax.f32 %v3449, %v3453
      %v3530 = vmax.f32 %v3454, %v3458
      %v3531 = vmax.f32 %v3455, %v3459
      %v3532 = vmax.f32 %v3456, %v3460
      %v3533 = vmax.f32 %v3457, %v3461
      %v3534 = vmax.f32 %v3462, %v3466
      %v3535 = vmax.f32 %v3463, %v3467
      %v3536 = vmax.f32 %v3464, %v3468
      %v3537 = vmax.f32 %v3465, %v3469
      %v3538 = vmax.f32 %v3470, %v3474
      %v3539 = vmax.f32 %v3471, %v3475
      %v3540 = vmax.f32 %v3472, %v3476
      %v3541 = vmax.f32 %v3473, %v3477
      %v3542 = vpack.c.bf16 %v3478, %v3478
      %v3543 = vpack.c.bf16 %v3479, %v3479
      %v3544 = vpack.c.bf16 %v3480, %v3480
      %v3545 = vpack.c.bf16 %v3481, %v3481
      %v3546 = vpack.c.bf16 %v3482, %v3482
      %v3547 = vpack.c.bf16 %v3483, %v3483
      %v3548 = vpack.c.bf16 %v3484, %v3484
      %v3549 = vpack.c.bf16 %v3485, %v3485
      %v3550 = vpack.c.bf16 %v3486, %v3486
      %v3551 = vpack.c.bf16 %v3487, %v3487
      %v3552 = vpack.c.bf16 %v3488, %v3488
      %v3553 = vpack.c.bf16 %v3489, %v3489
      %v3554 = vpack.c.bf16 %v3490, %v3490
      %v3555 = vpack.c.bf16 %v3491, %v3491
      %v3556 = vpack.c.bf16 %v3492, %v3492
      %v3557 = vpack.c.bf16 %v3493, %v3493
      %v3558 = vpack.c.bf16 %v3494, %v3494
      %v3559 = vpack.c.bf16 %v3495, %v3495
      %v3560 = vpack.c.bf16 %v3496, %v3496
      %v3561 = vpack.c.bf16 %v3497, %v3497
      %v3562 = vpack.c.bf16 %v3498, %v3498
      %v3563 = vpack.c.bf16 %v3499, %v3499
      %v3564 = vpack.c.bf16 %v3500, %v3500
      %v3565 = vpack.c.bf16 %v3501, %v3501
      %v3566 = vpack.c.bf16 %v3502, %v3502
      %v3567 = vpack.c.bf16 %v3503, %v3503
      %v3568 = vpack.c.bf16 %v3504, %v3504
      %v3569 = vpack.c.bf16 %v3505, %v3505
      %v3570 = vpack.c.bf16 %v3506, %v3506
      %v3571 = vpack.c.bf16 %v3507, %v3507
      %v3572 = vpack.c.bf16 %v3508, %v3508
      %v3573 = vpack.c.bf16 %v3509, %v3509
      %v3574 = vpack.c.bf16 %v3510, %v3510
      %v3575 = vpack.c.bf16 %v3511, %v3511
      %v3576 = vpack.c.bf16 %v3512, %v3512
      %v3577 = vpack.c.bf16 %v3513, %v3513
      %v3578 = vpack.c.bf16 %v3514, %v3514
      %v3579 = vpack.c.bf16 %v3515, %v3515
      %v3580 = vpack.c.bf16 %v3516, %v3516
      %v3581 = vpack.c.bf16 %v3517, %v3517
      %v3582 = vpack.c.bf16 %v3518, %v3518
      %v3583 = vpack.c.bf16 %v3519, %v3519
      %v3584 = vpack.c.bf16 %v3520, %v3520
      %v3585 = vpack.c.bf16 %v3521, %v3521
      %v3586 = vpack.c.bf16 %v3522, %v3522
      %v3587 = vpack.c.bf16 %v3523, %v3523
      %v3588 = vpack.c.bf16 %v3524, %v3524
      %v3589 = vpack.c.bf16 %v3525, %v3525
      %v3590 = vpack.c.bf16 %v3526, %v3526
      %v3591 = vpack.c.bf16 %v3527, %v3527
      %v3592 = vpack.c.bf16 %v3528, %v3528
      %v3593 = vpack.c.bf16 %v3529, %v3529
      %v3594 = vpack.c.bf16 %v3530, %v3530
      %v3595 = vpack.c.bf16 %v3531, %v3531
      %v3596 = vpack.c.bf16 %v3532, %v3532
      %v3597 = vpack.c.bf16 %v3533, %v3533
      %v3598 = vpack.c.bf16 %v3534, %v3534
      %v3599 = vpack.c.bf16 %v3535, %v3535
      %v3600 = vpack.c.bf16 %v3536, %v3536
      %v3601 = vpack.c.bf16 %v3537, %v3537
      %v3602 = vpack.c.bf16 %v3538, %v3538
      %v3603 = vpack.c.bf16 %v3539, %v3539
      %v3604 = vpack.c.bf16 %v3540, %v3540
      %v3605 = vpack.c.bf16 %v3541, %v3541
      %v3670 = vunpack.c.l.b16 %v3542
      %v3671 = vunpack.c.l.b16 %v3543
      %v3672 = vunpack.c.l.b16 %v3544
      %v3673 = vunpack.c.l.b16 %v3545
      %v3674 = vunpack.c.l.b16 %v3546
      %v3675 = vunpack.c.l.b16 %v3547
      %v3676 = vunpack.c.l.b16 %v3548
      %v3677 = vunpack.c.l.b16 %v3549
      %v3678 = vunpack.c.l.b16 %v3550
      %v3679 = vunpack.c.l.b16 %v3551
      %v3680 = vunpack.c.l.b16 %v3552
      %v3681 = vunpack.c.l.b16 %v3553
      %v3682 = vunpack.c.l.b16 %v3554
      %v3683 = vunpack.c.l.b16 %v3555
      %v3684 = vunpack.c.l.b16 %v3556
      %v3685 = vunpack.c.l.b16 %v3557
      %v3686 = vunpack.c.l.b16 %v3558
      %v3687 = vunpack.c.l.b16 %v3559
      %v3688 = vunpack.c.l.b16 %v3560
      %v3689 = vunpack.c.l.b16 %v3561
      %v3690 = vunpack.c.l.b16 %v3562
      %v3691 = vunpack.c.l.b16 %v3563
      %v3692 = vunpack.c.l.b16 %v3564
      %v3693 = vunpack.c.l.b16 %v3565
      %v3694 = vunpack.c.l.b16 %v3566
      %v3695 = vunpack.c.l.b16 %v3567
      %v3696 = vunpack.c.l.b16 %v3568
      %v3697 = vunpack.c.l.b16 %v3569
      %v3698 = vunpack.c.l.b16 %v3570
      %v3699 = vunpack.c.l.b16 %v3571
      %v3700 = vunpack.c.l.b16 %v3572
      %v3701 = vunpack.c.l.b16 %v3573
      %v3702 = vunpack.c.l.b16 %v3574
      %v3703 = vunpack.c.l.b16 %v3575
      %v3704 = vunpack.c.l.b16 %v3576
      %v3705 = vunpack.c.l.b16 %v3577
      %v3706 = vunpack.c.l.b16 %v3578
      %v3707 = vunpack.c.l.b16 %v3579
      %v3708 = vunpack.c.l.b16 %v3580
      %v3709 = vunpack.c.l.b16 %v3581
      %v3710 = vunpack.c.l.b16 %v3582
      %v3711 = vunpack.c.l.b16 %v3583
      %v3712 = vunpack.c.l.b16 %v3584
      %v3713 = vunpack.c.l.b16 %v3585
      %v3714 = vunpack.c.l.b16 %v3586
      %v3715 = vunpack.c.l.b16 %v3587
      %v3716 = vunpack.c.l.b16 %v3588
      %v3717 = vunpack.c.l.b16 %v3589
      %v3718 = vunpack.c.l.b16 %v3590
      %v3719 = vunpack.c.l.b16 %v3591
      %v3720 = vunpack.c.l.b16 %v3592
      %v3721 = vunpack.c.l.b16 %v3593
      %v3722 = vunpack.c.l.b16 %v3594
      %v3723 = vunpack.c.l.b16 %v3595
      %v3724 = vunpack.c.l.b16 %v3596
      %v3725 = vunpack.c.l.b16 %v3597
      %v3726 = vunpack.c.l.b16 %v3598
      %v3727 = vunpack.c.l.b16 %v3599
      %v3728 = vunpack.c.l.b16 %v3600
      %v3729 = vunpack.c.l.b16 %v3601
      %v3730 = vunpack.c.l.b16 %v3602
      %v3731 = vunpack.c.l.b16 %v3603
      %v3732 = vunpack.c.l.b16 %v3604
      %v3733 = vunpack.c.l.b16 %v3605
      %v3734 = vpack.c.b16 %v3670, %v3670
      %v3735 = vpack.c.b16 %v3671, %v3671
      %v3736 = vpack.c.b16 %v3672, %v3672
      %v3737 = vpack.c.b16 %v3673, %v3673
      %v3738 = vpack.c.b16 %v3674, %v3674
      %v3739 = vpack.c.b16 %v3675, %v3675
      %v3740 = vpack.c.b16 %v3676, %v3676
      %v3741 = vpack.c.b16 %v3677, %v3677
      %v3742 = vpack.c.b16 %v3678, %v3678
      %v3743 = vpack.c.b16 %v3679, %v3679
      %v3744 = vpack.c.b16 %v3680, %v3680
      %v3745 = vpack.c.b16 %v3681, %v3681
      %v3746 = vpack.c.b16 %v3682, %v3682
      %v3747 = vpack.c.b16 %v3683, %v3683
      %v3748 = vpack.c.b16 %v3684, %v3684
      %v3749 = vpack.c.b16 %v3685, %v3685
      %v3750 = vpack.c.b16 %v3686, %v3686
      %v3751 = vpack.c.b16 %v3687, %v3687
      %v3752 = vpack.c.b16 %v3688, %v3688
      %v3753 = vpack.c.b16 %v3689, %v3689
      %v3754 = vpack.c.b16 %v3690, %v3690
      %v3755 = vpack.c.b16 %v3691, %v3691
      %v3756 = vpack.c.b16 %v3692, %v3692
      %v3757 = vpack.c.b16 %v3693, %v3693
      %v3758 = vpack.c.b16 %v3694, %v3694
      %v3759 = vpack.c.b16 %v3695, %v3695
      %v3760 = vpack.c.b16 %v3696, %v3696
      %v3761 = vpack.c.b16 %v3697, %v3697
      %v3762 = vpack.c.b16 %v3698, %v3698
      %v3763 = vpack.c.b16 %v3699, %v3699
      %v3764 = vpack.c.b16 %v3700, %v3700
      %v3765 = vpack.c.b16 %v3701, %v3701
      %v3766 = vpack.c.b16 %v3702, %v3702
      %v3767 = vpack.c.b16 %v3703, %v3703
      %v3768 = vpack.c.b16 %v3704, %v3704
      %v3769 = vpack.c.b16 %v3705, %v3705
      %v3770 = vpack.c.b16 %v3706, %v3706
      %v3771 = vpack.c.b16 %v3707, %v3707
      %v3772 = vpack.c.b16 %v3708, %v3708
      %v3773 = vpack.c.b16 %v3709, %v3709
      %v3774 = vpack.c.b16 %v3710, %v3710
      %v3775 = vpack.c.b16 %v3711, %v3711
      %v3776 = vpack.c.b16 %v3712, %v3712
      %v3777 = vpack.c.b16 %v3713, %v3713
      %v3778 = vpack.c.b16 %v3714, %v3714
      %v3779 = vpack.c.b16 %v3715, %v3715
      %v3780 = vpack.c.b16 %v3716, %v3716
      %v3781 = vpack.c.b16 %v3717, %v3717
      %v3782 = vpack.c.b16 %v3718, %v3718
      %v3783 = vpack.c.b16 %v3719, %v3719
      %v3784 = vpack.c.b16 %v3720, %v3720
      %v3785 = vpack.c.b16 %v3721, %v3721
      %v3786 = vpack.c.b16 %v3722, %v3722
      %v3787 = vpack.c.b16 %v3723, %v3723
      %v3788 = vpack.c.b16 %v3724, %v3724
      %v3789 = vpack.c.b16 %v3725, %v3725
      %v3790 = vpack.c.b16 %v3726, %v3726
      %v3791 = vpack.c.b16 %v3727, %v3727
      %v3792 = vpack.c.b16 %v3728, %v3728
      %v3793 = vpack.c.b16 %v3729, %v3729
      %v3794 = vpack.c.b16 %v3730, %v3730
      %v3795 = vpack.c.b16 %v3731, %v3731
      %v3796 = vpack.c.b16 %v3732, %v3732
      %v3797 = vpack.c.b16 %v3733, %v3733
      %v3798 = vunpack.c.l.b16 %v3734
      %v3799 = vunpack.c.l.b16 %v3735
      %v3800 = vunpack.c.l.b16 %v3736
      %v3801 = vunpack.c.l.b16 %v3737
      %v3802 = vunpack.c.l.b16 %v3738
      %v3803 = vunpack.c.l.b16 %v3739
      %v3804 = vunpack.c.l.b16 %v3740
      %v3805 = vunpack.c.l.b16 %v3741
      %v3806 = vunpack.c.l.b16 %v3742
      %v3807 = vunpack.c.l.b16 %v3743
      %v3808 = vunpack.c.l.b16 %v3744
      %v3809 = vunpack.c.l.b16 %v3745
      %v3810 = vunpack.c.l.b16 %v3746
      %v3811 = vunpack.c.l.b16 %v3747
      %v3812 = vunpack.c.l.b16 %v3748
      %v3813 = vunpack.c.l.b16 %v3749
      %v3814 = vunpack.c.l.b16 %v3750
      %v3815 = vunpack.c.l.b16 %v3751
      %v3816 = vunpack.c.l.b16 %v3752
      %v3817 = vunpack.c.l.b16 %v3753
      %v3818 = vunpack.c.l.b16 %v3754
      %v3819 = vunpack.c.l.b16 %v3755
      %v3820 = vunpack.c.l.b16 %v3756
      %v3821 = vunpack.c.l.b16 %v3757
      %v3822 = vunpack.c.l.b16 %v3758
      %v3823 = vunpack.c.l.b16 %v3759
      %v3824 = vunpack.c.l.b16 %v3760
      %v3825 = vunpack.c.l.b16 %v3761
      %v3826 = vunpack.c.l.b16 %v3762
      %v3827 = vunpack.c.l.b16 %v3763
      %v3828 = vunpack.c.l.b16 %v3764
      %v3829 = vunpack.c.l.b16 %v3765
      %v3830 = vunpack.c.l.b16 %v3766
      %v3831 = vunpack.c.l.b16 %v3767
      %v3832 = vunpack.c.l.b16 %v3768
      %v3833 = vunpack.c.l.b16 %v3769
      %v3834 = vunpack.c.l.b16 %v3770
      %v3835 = vunpack.c.l.b16 %v3771
      %v3836 = vunpack.c.l.b16 %v3772
      %v3837 = vunpack.c.l.b16 %v3773
      %v3838 = vunpack.c.l.b16 %v3774
      %v3839 = vunpack.c.l.b16 %v3775
      %v3840 = vunpack.c.l.b16 %v3776
      %v3841 = vunpack.c.l.b16 %v3777
      %v3842 = vunpack.c.l.b16 %v3778
      %v3843 = vunpack.c.l.b16 %v3779
      %v3844 = vunpack.c.l.b16 %v3780
      %v3845 = vunpack.c.l.b16 %v3781
      %v3846 = vunpack.c.l.b16 %v3782
      %v3847 = vunpack.c.l.b16 %v3783
      %v3848 = vunpack.c.l.b16 %v3784
      %v3849 = vunpack.c.l.b16 %v3785
      %v3850 = vunpack.c.l.b16 %v3786
      %v3851 = vunpack.c.l.b16 %v3787
      %v3852 = vunpack.c.l.b16 %v3788
      %v3853 = vunpack.c.l.b16 %v3789
      %v3854 = vunpack.c.l.b16 %v3790
      %v3855 = vunpack.c.l.b16 %v3791
      %v3856 = vunpack.c.l.b16 %v3792
      %v3857 = vunpack.c.l.b16 %v3793
      %v3858 = vunpack.c.l.b16 %v3794
      %v3859 = vunpack.c.l.b16 %v3795
      %v3860 = vunpack.c.l.b16 %v3796
      %v3861 = vunpack.c.l.b16 %v3797
      %v3862 = vrot.slane %v3799, 7
      %vm3863 = vcmask 1041409
      %v3864 = vsel %vm3863, %v3862, %v3798
      %v3865 = vrot.slane %v3800, 6
      %vm3866 = vcmask 1042434
      %v3867 = vsel %vm3866, %v3865, %v3864
      %v3868 = vrot.slane %v3801, 5
      %vm3869 = vcmask 1043459
      %v3870 = vsel %vm3869, %v3868, %v3867
      %v3871 = vrot.slane %v3802, 4
      %vm3872 = vcmask 1044484
      %v3873 = vsel %vm3872, %v3871, %v3870
      %v3874 = vrot.slane %v3803, 3
      %vm3875 = vcmask 1045509
      %v3876 = vsel %vm3875, %v3874, %v3873
      %v3877 = vrot.slane %v3804, 2
      %vm3878 = vcmask 1046534
      %v3879 = vsel %vm3878, %v3877, %v3876
      %v3880 = vrot.slane %v3805, 1
      %vm3881 = vcmask 1047559
      %v3882 = vsel %vm3881, %v3880, %v3879
      %v3883 = vrot.slane %v3807, 7
      %v3884 = vsel %vm3863, %v3883, %v3806
      %v3885 = vrot.slane %v3808, 6
      %v3886 = vsel %vm3866, %v3885, %v3884
      %v3887 = vrot.slane %v3809, 5
      %v3888 = vsel %vm3869, %v3887, %v3886
      %v3889 = vrot.slane %v3810, 4
      %v3890 = vsel %vm3872, %v3889, %v3888
      %v3891 = vrot.slane %v3811, 3
      %v3892 = vsel %vm3875, %v3891, %v3890
      %v3893 = vrot.slane %v3812, 2
      %v3894 = vsel %vm3878, %v3893, %v3892
      %v3895 = vrot.slane %v3813, 1
      %v3896 = vsel %vm3881, %v3895, %v3894
      %v3897 = vrot.slane %v3815, 7
      %v3898 = vsel %vm3863, %v3897, %v3814
      %v3899 = vrot.slane %v3816, 6
      %v3900 = vsel %vm3866, %v3899, %v3898
      %v3901 = vrot.slane %v3817, 5
      %v3902 = vsel %vm3869, %v3901, %v3900
      %v3903 = vrot.slane %v3818, 4
      %v3904 = vsel %vm3872, %v3903, %v3902
      %v3905 = vrot.slane %v3819, 3
      %v3906 = vsel %vm3875, %v3905, %v3904
      %v3907 = vrot.slane %v3820, 2
      %v3908 = vsel %vm3878, %v3907, %v3906
      %v3909 = vrot.slane %v3821, 1
      %v3910 = vsel %vm3881, %v3909, %v3908
      %v3911 = vrot.slane %v3823, 7
      %v3912 = vsel %vm3863, %v3911, %v3822
      %v3913 = vrot.slane %v3824, 6
      %v3914 = vsel %vm3866, %v3913, %v3912
      %v3915 = vrot.slane %v3825, 5
      %v3916 = vsel %vm3869, %v3915, %v3914
      %v3917 = vrot.slane %v3826, 4
      %v3918 = vsel %vm3872, %v3917, %v3916
      %v3919 = vrot.slane %v3827, 3
      %v3920 = vsel %vm3875, %v3919, %v3918
      %v3921 = vrot.slane %v3828, 2
      %v3922 = vsel %vm3878, %v3921, %v3920
      %v3923 = vrot.slane %v3829, 1
      %v3924 = vsel %vm3881, %v3923, %v3922
      %v3925 = vrot.slane %v3831, 7
      %v3926 = vsel %vm3863, %v3925, %v3830
      %v3927 = vrot.slane %v3832, 6
      %v3928 = vsel %vm3866, %v3927, %v3926
      %v3929 = vrot.slane %v3833, 5
      %v3930 = vsel %vm3869, %v3929, %v3928
      %v3931 = vrot.slane %v3834, 4
      %v3932 = vsel %vm3872, %v3931, %v3930
      %v3933 = vrot.slane %v3835, 3
      %v3934 = vsel %vm3875, %v3933, %v3932
      %v3935 = vrot.slane %v3836, 2
      %v3936 = vsel %vm3878, %v3935, %v3934
      %v3937 = vrot.slane %v3837, 1
      %v3938 = vsel %vm3881, %v3937, %v3936
      %v3939 = vrot.slane %v3839, 7
      %v3940 = vsel %vm3863, %v3939, %v3838
      %v3941 = vrot.slane %v3840, 6
      %v3942 = vsel %vm3866, %v3941, %v3940
      %v3943 = vrot.slane %v3841, 5
      %v3944 = vsel %vm3869, %v3943, %v3942
      %v3945 = vrot.slane %v3842, 4
      %v3946 = vsel %vm3872, %v3945, %v3944
      %v3947 = vrot.slane %v3843, 3
      %v3948 = vsel %vm3875, %v3947, %v3946
      %v3949 = vrot.slane %v3844, 2
      %v3950 = vsel %vm3878, %v3949, %v3948
      %v3951 = vrot.slane %v3845, 1
      %v3952 = vsel %vm3881, %v3951, %v3950
      %v3953 = vrot.slane %v3847, 7
      %v3954 = vsel %vm3863, %v3953, %v3846
      %v3955 = vrot.slane %v3848, 6
      %v3956 = vsel %vm3866, %v3955, %v3954
      %v3957 = vrot.slane %v3849, 5
      %v3958 = vsel %vm3869, %v3957, %v3956
      %v3959 = vrot.slane %v3850, 4
      %v3960 = vsel %vm3872, %v3959, %v3958
      %v3961 = vrot.slane %v3851, 3
      %v3962 = vsel %vm3875, %v3961, %v3960
      %v3963 = vrot.slane %v3852, 2
      %v3964 = vsel %vm3878, %v3963, %v3962
      %v3965 = vrot.slane %v3853, 1
      %v3966 = vsel %vm3881, %v3965, %v3964
      %v3967 = vrot.slane %v3855, 7
      %v3968 = vsel %vm3863, %v3967, %v3854
      %v3969 = vrot.slane %v3856, 6
      %v3970 = vsel %vm3866, %v3969, %v3968
      %v3971 = vrot.slane %v3857, 5
      %v3972 = vsel %vm3869, %v3971, %v3970
      %v3973 = vrot.slane %v3858, 4
      %v3974 = vsel %vm3872, %v3973, %v3972
      %v3975 = vrot.slane %v3859, 3
      %v3976 = vsel %vm3875, %v3975, %v3974
      %v3977 = vrot.slane %v3860, 2
      %v3978 = vsel %vm3878, %v3977, %v3976
      %v3979 = vrot.slane %v3861, 1
      %v3980 = vsel %vm3881, %v3979, %v3978
      %v3981 = vpack.c.b16 %v3882, %v3882
      %v3982 = vpack.c.b16 %v3896, %v3896
      %v3983 = vpack.c.b16 %v3910, %v3910
      %v3984 = vpack.c.b16 %v3924, %v3924
      %v3985 = vpack.c.b16 %v3938, %v3938
      %v3986 = vpack.c.b16 %v3952, %v3952
      %v3987 = vpack.c.b16 %v3966, %v3966
      %v3988 = vpack.c.b16 %v3980, %v3980
      %vm3997 = vcmask 257024
      %3998 = vst.msk [vmem:[%s204] sm:$0xf] %vm3997, %v3981
      %3999 = vst.msk [vmem:[%s204 + $0x4] sm:$0xf] %vm3997, %v3982
      %4000 = vst.msk [vmem:[%s204 + $0x8] sm:$0xf] %vm3997, %v3983
      %4001 = vst.msk [vmem:[%s204 + $0xc] sm:$0xf] %vm3997, %v3984
      %4002 = vst.msk [vmem:[%s204 + $0x10] sm:$0xf] %vm3997, %v3985
      %4003 = vst.msk [vmem:[%s204 + $0x14] sm:$0xf] %vm3997, %v3986
      %4004 = vst.msk [vmem:[%s204 + $0x18] sm:$0xf] %vm3997, %v3987
      %4005 = vst.msk [vmem:[%s204 + $0x1c] sm:$0xf] %vm3997, %v3988
      %s4006 = smul.u32 4, %s15
      %p4007 = scmp.lt.s32.totalorder %s4006, 7
      %s4008 = scalar_select %p4007, %s4006, 7
      %s4009 = smul.addr %s4008, 2
      %s4010 = smul.addr %s4009, 4
      %s4011 = scalar_lea.vmem %s4, %s4010
      // Predicated region
      $region37: #{patchnet_forward.5} parent=35 // pred_check
        %p4012 = pneg %p122
      $region38: #{patchnet_forward.5} parent=35 // pred_check_branch
        %4014 = sbr.rel (%p4012) target = $region40
      $region39: #{patchnet_forward.5} parent=35 // pred_region
        %s4015 = smul.u32 4, %s15
      $region40: #{patchnet_forward.5} parent=35 // pred_fallthru
        _
    $region36: #{patchnet_forward.5} parent=5 // pred_fallthru
      _
    %p4016 = scmp.le.s32.totalorder 2, %s10
    // Predicated region
    $region41: #{patchnet_forward.5} parent=5 // pred_check
      %p4017 = pneg %p4016
    $region42: #{patchnet_forward.5} parent=5 // pred_check_branch
      %4019 = sbr.rel (%p4017) target = $region44
    $region43: #{patchnet_forward.5} parent=5 // pred_region
      %s4020 = ssub.s32 %s10, 2
      // Predicated region
      $region45: #{patchnet_forward.5} parent=43 // pred_check
        %p4021 = pneg %p128
      $region46: #{patchnet_forward.5} parent=43 // pred_check_branch
        %4023 = sbr.rel (%p4021) target = $region48
      $region47: #{patchnet_forward.5} parent=43 // pred_region
        %s4024 = smul.u32 4, %s16
        %p4025 = scmp.lt.s32.totalorder %s4024, 7
        %s4026 = scalar_select %p4025, %s4024, 7
        %s4027 = smul.addr %s4026, 2
        %s4028 = smul.addr %s4027, 4
        %s4029 = scalar_lea.vmem %s4, %s4028
      $region48: #{patchnet_forward.5} parent=43 // pred_fallthru
        _
    $region44: #{patchnet_forward.5} parent=5 // pred_fallthru
      _
  $region6: #{patchnet_forward.5} parent=0 // loop_footer
    %s14 = sadd.s32 1, %s10
  $region7: #{patchnet_forward.5} parent=0 // loop_footer_branch
    %9 = sbr.rel target = $region3
  $region8: #{patchnet_forward.5} parent=0 // loop_exit
    _

// kernel: patchnet_forward.9
$region0: #{patchnet_forward.9}
  #allocation0 [shape = 'u32[]', space=smem, size = 0x4, offset = 0x4, fixed_abs, tag = 'smem constant byte address 0x4 - core index']
  #allocation1 [shape = 'u32[144,128]{1,0:T(1,128)}', space=vmem, size = 0x12000, scoped, tag = 'internal scratch']
  %s0 = inlined_call_operand.vmem [shape: f32[2,4,128], index: 0, kind: input, shape index: {}]
  %s1 = inlined_call_operand.vmem [shape: f32[2,32], index: 1, kind: input, shape index: {}]
  %s2 = inlined_call_operand.vmem [shape: bf16[32,64], index: 2, kind: input, shape index: {}]
  %s3 = inlined_call_operand.vmem [shape: f32[1,64], index: 3, kind: input, shape index: {}]
  %s4 = inlined_call_operand.vmem [shape: bf16[128,128], index: 4, kind: input, shape index: {}]
  %s5 = inlined_call_operand.vmem [shape: bf16[64,128], index: 5, kind: input, shape index: {}]
  %s6 = inlined_call_operand.vmem [shape: f32[1,128], index: 6, kind: input, shape index: {}]
  %s7 = inlined_call_operand.vmem [shape: bf16[128,4], index: 7, kind: input, shape index: {}]
  %s8 = inlined_call_operand.vmem [shape: f32[1,4], index: 8, kind: input, shape index: {}]
  %s9 = inlined_call_operand.hbm [shape: f32[2,4], index: 9, kind: output, shape index: {}]
  %s10 = sld [smem:[#allocation0]]
  $region46: #{patchnet_forward.9} parent=0
    _
  %s12 = ssub.s32 1, %s10
  %s13 = scalar_select 0, %s12, %s10
  $region1: #{patchnet_forward.9} parent=0
    #allocation2 [shape = 'u8[1024]{0}', space=vmem, size = 0x400, scoped, tag = 'output window, operand 0, single buffered']
    #allocation3 [shape = 's32[1]{0}', space=sflag, size = 0x4, scoped, tag = 'scoped memory for patchnet_forward.9']
    %14 = vsyncpa [#allocation3], 0
    // Predicated region
    $region2: #{patchnet_forward.9} parent=1 // pred_check
      _
    $region3: #{patchnet_forward.9} parent=1 // pred_check_branch
      %16 = sbr.rel (0) target = $region5
    $region4: #{patchnet_forward.9} parent=1 // pred_region
      _
    $region5: #{patchnet_forward.9} parent=1 // pred_fallthru
      _
    // Predicated region
    $region6: #{patchnet_forward.9} parent=1 // pred_check
      _
    $region7: #{patchnet_forward.9} parent=1 // pred_check_branch
      %18 = sbr.rel (0) target = $region9
    $region8: #{patchnet_forward.9} parent=1 // pred_region
      _
    $region9: #{patchnet_forward.9} parent=1 // pred_fallthru
      _
    // Predicated region
    $region10: #{patchnet_forward.9} parent=1 // pred_check
      _
    $region11: #{patchnet_forward.9} parent=1 // pred_check_branch
      %20 = sbr.rel (0) target = $region13
    $region12: #{patchnet_forward.9} parent=1 // pred_region
      _
    $region13: #{patchnet_forward.9} parent=1 // pred_fallthru
      _
    // Predicated region
    $region14: #{patchnet_forward.9} parent=1 // pred_check
      _
    $region15: #{patchnet_forward.9} parent=1 // pred_check_branch
      %22 = sbr.rel (0) target = $region17
    $region16: #{patchnet_forward.9} parent=1 // pred_region
      _
    $region17: #{patchnet_forward.9} parent=1 // pred_fallthru
      _
    // Predicated region
    $region18: #{patchnet_forward.9} parent=1 // pred_check
      _
    $region19: #{patchnet_forward.9} parent=1 // pred_check_branch
      %24 = sbr.rel (0) target = $region21
    $region20: #{patchnet_forward.9} parent=1 // pred_region
      _
    $region21: #{patchnet_forward.9} parent=1 // pred_fallthru
      _
    // Predicated region
    $region22: #{patchnet_forward.9} parent=1 // pred_check
      _
    $region23: #{patchnet_forward.9} parent=1 // pred_check_branch
      %26 = sbr.rel (0) target = $region25
    $region24: #{patchnet_forward.9} parent=1 // pred_region
      _
    $region25: #{patchnet_forward.9} parent=1 // pred_fallthru
      _
    // Predicated region
    $region26: #{patchnet_forward.9} parent=1 // pred_check
      _
    $region27: #{patchnet_forward.9} parent=1 // pred_check_branch
      %28 = sbr.rel (0) target = $region29
    $region28: #{patchnet_forward.9} parent=1 // pred_region
      _
    $region29: #{patchnet_forward.9} parent=1 // pred_fallthru
      _
    // Predicated region
    $region30: #{patchnet_forward.9} parent=1 // pred_check
      _
    $region31: #{patchnet_forward.9} parent=1 // pred_check_branch
      %30 = sbr.rel (0) target = $region33
    $region32: #{patchnet_forward.9} parent=1 // pred_region
      _
    $region33: #{patchnet_forward.9} parent=1 // pred_fallthru
      _
    // Predicated region
    $region34: #{patchnet_forward.9} parent=1 // pred_check
      _
    $region35: #{patchnet_forward.9} parent=1 // pred_check_branch
      %32 = sbr.rel (0) target = $region37
    $region36: #{patchnet_forward.9} parent=1 // pred_region
      _
    $region37: #{patchnet_forward.9} parent=1 // pred_fallthru
      _
    %v34 = vld [vmem:[%s0] sm:$0xf]
    %v35 = vld [vmem:[%s0 + $0x4] sm:$0xf]
    %vm36 = vcmask 1043456
    %v37 = vsel %vm36, %v34, 0.0
    %v38 = vrot.slane %v37, 4
    %v39 = vadd.f32 %v37, %v38
    %v40 = vrot.slane %v39, 2
    %v41 = vadd.f32 %v39, %v40
    %v42 = vrot.slane %v41, 1
    %v43 = vadd.f32 %v41, %v42
    %v44 = vsel %vm36, %v35, 0.0
    %v45 = vrot.slane %v44, 4
    %v46 = vadd.f32 %v44, %v45
    %v47 = vrot.slane %v46, 2
    %v48 = vadd.f32 %v46, %v47
    %v49 = vrot.slane %v48, 1
    %v50 = vadd.f32 %v48, %v49
    %v51 = vrcp.pop 4.0
    %v52 = vmul.f32 %v43, %v51
    %v53 = vmul.f32 %v50, %v51
    %v54 = vld [vmem:[%s1] sm:$0x3]
    %v55 = vpack.c.bf16 %v54, %v54
    %v56 = vld [vmem:[%s2] sm:$0xf]
    %v57 = vld [vmem:[%s2 + $0x4] sm:$0xf]
    %v58 = vld [vmem:[%s2 + $0x8] sm:$0xf]
    %v59 = vld [vmem:[%s2 + $0xc] sm:$0xf]
    %v60 = vld [vmem:[%s3] sm:$0x1]
    %v62 = vlaneseq
    %v63 = vshrl.u32 %v62, 7
    %v64 = vsub.s32 0, %v63
    %v65 = vrot.slane %v60, %v64
    %v71 = vunpack.c.l.b16 %v56
    %v72 = vunpack.c.l.b16 %v57
    %v73 = vunpack.c.l.b16 %v58
    %v74 = vunpack.c.l.b16 %v59
    %v75 = vpack.c.b16 %v72, %v71
    %v76 = vpack.c.b16 %v74, %v73
    %vm79 = vcmask 261120
    %v81 = vsel %vm79, %v55, 0
    %83 = vmatprep.subr.bf16.mxu0 0
    %84 = vmatpush1.bf16.msra.mxu0 0
    %85 = vmatprep.subr.bf16.mxu0 0
    %86 = vmatpush1.bf16.msra.mxu0 0
    %87 = vmatprep.subr.bf16.mxu0 0
    %88 = vmatpush1.bf16.msra.mxu0 0
    %89 = vmatprep.subr.bf16.mxu0 0
    %90 = vmatpush1.bf16.msra.mxu0 0
    %91 = vmatprep.subr.bf16.mxu0 0
    %92 = vmatpush1.bf16.msra.mxu0 0
    %93 = vmatprep.subr.bf16.mxu0 0
    %94 = vmatpush1.bf16.msra.mxu0 0
    %95 = vmatprep.subr.bf16.mxu0 0
    %96 = vmatpush1.bf16.msra.mxu0 %v76
    %97 = vmatprep.subr.bf16.mxu0 0
    %98 = vmatpush1.bf16.msra.mxu0 %v75
    %99 = vmatprep.subr.bf16.mxu0 0
    %100 = vmatpush2.bf16.msra.mxu0 0
    %101 = vmatprep.subr.bf16.mxu0 0
    %102 = vmatpush2.bf16.msra.mxu0 0
    %103 = vmatprep.subr.bf16.mxu0 0
    %104 = vmatpush2.bf16.msra.mxu0 0
    %105 = vmatprep.subr.bf16.mxu0 0
    %106 = vmatpush2.bf16.msra.mxu0 0
    %107 = vmatprep.subr.bf16.mxu0 0
    %108 = vmatpush2.bf16.msra.mxu0 0
    %109 = vmatprep.subr.bf16.mxu0 0
    %110 = vmatpush2.bf16.msra.mxu0 0
    %111 = vmatprep.subr.bf16.mxu0 0
    %112 = vmatpush2.bf16.msra.mxu0 0
    %113 = vmatprep.subr.bf16.mxu0 0
    %114 = vmatpush2.bf16.msra.mxu0 0
    %115 = vmatprep.mubr.bf16.mxu0 0
    %116 = vmatmul.mubr.bf16.gmra.mxu0 %v81
    %v117 = vpop.f32.mrf.mxu0
    %v118 = vadd.f32 %v65, %v117
    %v119 = vpop.f32.mrf.mxu0
    %v120 = vpop.f32.mrf.mxu0
    %v121 = vpop.f32.mrf.mxu0
    %122 = vdwg.mxu0
    %v123 = vpack.c.bf16 %v52, %v52
    %v124 = vpack.c.bf16 %v53, %v53
    %v125 = vld [vmem:[%s4] sm:$0xf]
    %v126 = vld [vmem:[%s4 + $0x4] sm:$0xf]
    %v127 = vld [vmem:[%s4 + $0x8] sm:$0xf]
    %v128 = vld [vmem:[%s4 + $0xc] sm:$0xf]
    %v129 = vld [vmem:[%s4 + $0x10] sm:$0xf]
    %v130 = vld [vmem:[%s4 + $0x14] sm:$0xf]
    %v131 = vld [vmem:[%s4 + $0x18] sm:$0xf]
    %v132 = vld [vmem:[%s4 + $0x1c] sm:$0xf]
    %v133 = vld [vmem:[%s4 + $0x20] sm:$0xf]
    %v134 = vld [vmem:[%s4 + $0x24] sm:$0xf]
    %v135 = vld [vmem:[%s4 + $0x28] sm:$0xf]
    %v136 = vld [vmem:[%s4 + $0x2c] sm:$0xf]
    %v137 = vld [vmem:[%s4 + $0x30] sm:$0xf]
    %v138 = vld [vmem:[%s4 + $0x34] sm:$0xf]
    %v139 = vld [vmem:[%s4 + $0x38] sm:$0xf]
    %v140 = vld [vmem:[%s4 + $0x3c] sm:$0xf]
    %v141 = vpack.c.bf16 %v118, %v118
    %v142 = vld [vmem:[%s5] sm:$0xf]
    %v143 = vld [vmem:[%s5 + $0x4] sm:$0xf]
    %v144 = vld [vmem:[%s5 + $0x8] sm:$0xf]
    %v145 = vld [vmem:[%s5 + $0xc] sm:$0xf]
    %v146 = vld [vmem:[%s5 + $0x10] sm:$0xf]
    %v147 = vld [vmem:[%s5 + $0x14] sm:$0xf]
    %v148 = vld [vmem:[%s5 + $0x18] sm:$0xf]
    %v149 = vld [vmem:[%s5 + $0x1c] sm:$0xf]
    %v158 = vunpack.c.l.b16 %v142
    %v159 = vunpack.c.l.b16 %v143
    %v160 = vunpack.c.l.b16 %v144
    %v161 = vunpack.c.l.b16 %v145
    %v162 = vunpack.c.l.b16 %v146
    %v163 = vunpack.c.l.b16 %v147
    %v164 = vunpack.c.l.b16 %v148
    %v165 = vunpack.c.l.b16 %v149
    %v166 = vpack.c.b16 %v159, %v158
    %v167 = vpack.c.b16 %v161, %v160
    %v168 = vpack.c.b16 %v163, %v162
    %v169 = vpack.c.b16 %v165, %v164
    %vm174 = vcmask 523264
    %v176 = vsel %vm174, %v141, 0
    %178 = vmatprep.subr.bf16.mxu0 0
    %179 = vmatpush1.bf16.msra.mxu0 0
    %180 = vmatprep.subr.bf16.mxu0 0
    %181 = vmatpush1.bf16.msra.mxu0 0
    %182 = vmatprep.subr.bf16.mxu0 0
    %183 = vmatpush1.bf16.msra.mxu0 0
    %184 = vmatprep.subr.bf16.mxu0 0
    %185 = vmatpush1.bf16.msra.mxu0 0
    %186 = vmatprep.subr.bf16.mxu0 0
    %187 = vmatpush1.bf16.msra.mxu0 %v169
    %188 = vmatprep.subr.bf16.mxu0 0
    %189 = vmatpush1.bf16.msra.mxu0 %v168
    %190 = vmatprep.subr.bf16.mxu0 0
    %191 = vmatpush1.bf16.msra.mxu0 %v167
    %192 = vmatprep.subr.bf16.mxu0 0
    %193 = vmatpush1.bf16.msra.mxu0 %v166
    %194 = vmatprep.subr.bf16.mxu0 0
    %195 = vmatpush2.bf16.msra.mxu0 0
    %196 = vmatprep.subr.bf16.mxu0 0
    %197 = vmatpush2.bf16.msra.mxu0 0
    %198 = vmatprep.subr.bf16.mxu0 0
    %199 = vmatpush2.bf16.msra.mxu0 0
    %200 = vmatprep.subr.bf16.mxu0 0
    %201 = vmatpush2.bf16.msra.mxu0 0
    %202 = vmatprep.subr.bf16.mxu0 0
    %203 = vmatpush2.bf16.msra.mxu0 0
    %204 = vmatprep.subr.bf16.mxu0 0
    %205 = vmatpush2.bf16.msra.mxu0 0
    %206 = vmatprep.subr.bf16.mxu0 0
    %207 = vmatpush2.bf16.msra.mxu0 0
    %208 = vmatprep.subr.bf16.mxu0 0
    %209 = vmatpush2.bf16.msra.mxu0 0
    %210 = vmatprep.mubr.bf16.mxu0 0
    %211 = vmatmul.mubr.bf16.gmra.mxu0 %v176
    %v212 = vpop.f32.mrf.mxu0
    %v213 = vadd.f32 0.0, %v212
    %v214 = vpop.f32.mrf.mxu0
    %v215 = vpop.f32.mrf.mxu0
    %v216 = vpop.f32.mrf.mxu0
    %217 = vdwg.mxu0
    %v220 = vunpack.c.l.b16 %v123
    %v221 = vunpack.c.l.b16 %v124
    %vm222 = vcmask 1041409
    %v223 = vsel %vm222, %v221, %v220
    %v224 = vpack.c.b16 %v223, %v223
    %v242 = vunpack.c.l.b16 %v125
    %v243 = vunpack.c.l.b16 %v126
    %v244 = vunpack.c.l.b16 %v127
    %v245 = vunpack.c.l.b16 %v128
    %v246 = vunpack.c.l.b16 %v129
    %v247 = vunpack.c.l.b16 %v130
    %v248 = vunpack.c.l.b16 %v131
    %v249 = vunpack.c.l.b16 %v132
    %v250 = vunpack.c.l.b16 %v133
    %v251 = vunpack.c.l.b16 %v134
    %v252 = vunpack.c.l.b16 %v135
    %v253 = vunpack.c.l.b16 %v136
    %v254 = vunpack.c.l.b16 %v137
    %v255 = vunpack.c.l.b16 %v138
    %v256 = vunpack.c.l.b16 %v139
    %v257 = vunpack.c.l.b16 %v140
    %v258 = vpack.c.b16 %v243, %v242
    %v259 = vpack.c.b16 %v245, %v244
    %v260 = vpack.c.b16 %v247, %v246
    %v261 = vpack.c.b16 %v249, %v248
    %v262 = vpack.c.b16 %v251, %v250
    %v263 = vpack.c.b16 %v253, %v252
    %v264 = vpack.c.b16 %v255, %v254
    %v265 = vpack.c.b16 %v257, %v256
    %274 = vmatprep.subr.bf16.mxu0 0
    %275 = vmatpush1.bf16.msra.mxu0 %v265
    %276 = vmatprep.subr.bf16.mxu0 0
    %277 = vmatpush1.bf16.msra.mxu0 %v264
    %278 = vmatprep.subr.bf16.mxu0 0
    %279 = vmatpush1.bf16.msra.mxu0 %v263
    %280 = vmatprep.subr.bf16.mxu0 0
    %281 = vmatpush1.bf16.msra.mxu0 %v262
    %282 = vmatprep.subr.bf16.mxu0 0
    %283 = vmatpush1.bf16.msra.mxu0 %v261
    %284 = vmatprep.subr.bf16.mxu0 0
    %285 = vmatpush1.bf16.msra.mxu0 %v260
    %286 = vmatprep.subr.bf16.mxu0 0
    %287 = vmatpush1.bf16.msra.mxu0 %v259
    %288 = vmatprep.subr.bf16.mxu0 0
    %289 = vmatpush1.bf16.msra.mxu0 %v258
    %290 = vmatprep.subr.bf16.mxu0 0
    %291 = vmatpush2.bf16.msra.mxu0 0
    %292 = vmatprep.subr.bf16.mxu0 0
    %293 = vmatpush2.bf16.msra.mxu0 0
    %294 = vmatprep.subr.bf16.mxu0 0
    %295 = vmatpush2.bf16.msra.mxu0 0
    %296 = vmatprep.subr.bf16.mxu0 0
    %297 = vmatpush2.bf16.msra.mxu0 0
    %298 = vmatprep.subr.bf16.mxu0 0
    %299 = vmatpush2.bf16.msra.mxu0 0
    %300 = vmatprep.subr.bf16.mxu0 0
    %301 = vmatpush2.bf16.msra.mxu0 0
    %302 = vmatprep.subr.bf16.mxu0 0
    %303 = vmatpush2.bf16.msra.mxu0 0
    %304 = vmatprep.subr.bf16.mxu0 0
    %305 = vmatpush2.bf16.msra.mxu0 0
    %306 = vmatprep.mubr.bf16.mxu0 0
    %307 = vmatmul.mubr.bf16.gmra.mxu0 %v224
    %v308 = vpop.f32.mrf.mxu0
    %v309 = vadd.f32 %v213, %v308
    %v310 = vpop.f32.mrf.mxu0
    %v311 = vpop.f32.mrf.mxu0
    %v312 = vpop.f32.mrf.mxu0
    %313 = vdwg.mxu0
    %v314 = vld [vmem:[%s6] sm:$0x1]
    %v316 = vlaneseq
    %v317 = vshrl.u32 %v316, 7
    %v318 = vsub.s32 0, %v317
    %v319 = vrot.slane %v314, %v318
    %v321 = vadd.f32 %v309, %v319
    %v322 = vmax.f32 %v321, 0.0
    %v323 = vpack.c.bf16 %v322, %v322
    %v324 = vld [vmem:[%s7] sm:$0xf]
    %v325 = vld [vmem:[%s7 + $0x4] sm:$0xf]
    %v326 = vld [vmem:[%s7 + $0x8] sm:$0xf]
    %v327 = vld [vmem:[%s7 + $0xc] sm:$0xf]
    %v328 = vld [vmem:[%s7 + $0x10] sm:$0xf]
    %v329 = vld [vmem:[%s7 + $0x14] sm:$0xf]
    %v330 = vld [vmem:[%s7 + $0x18] sm:$0xf]
    %v331 = vld [vmem:[%s7 + $0x1c] sm:$0xf]
    %v332 = vld [vmem:[%s7 + $0x20] sm:$0xf]
    %v333 = vld [vmem:[%s7 + $0x24] sm:$0xf]
    %v334 = vld [vmem:[%s7 + $0x28] sm:$0xf]
    %v335 = vld [vmem:[%s7 + $0x2c] sm:$0xf]
    %v336 = vld [vmem:[%s7 + $0x30] sm:$0xf]
    %v337 = vld [vmem:[%s7 + $0x34] sm:$0xf]
    %v338 = vld [vmem:[%s7 + $0x38] sm:$0xf]
    %v339 = vld [vmem:[%s7 + $0x3c] sm:$0xf]
    %v340 = vld [vmem:[%s8] sm:$0x1]
    %v342 = vlaneseq
    %v343 = vshrl.u32 %v342, 7
    %v344 = vsub.s32 0, %v343
    %v345 = vrot.slane %v340, %v344
    %v363 = vunpack.c.l.b16 %v324
    %v364 = vunpack.c.l.b16 %v325
    %v365 = vunpack.c.l.b16 %v326
    %v366 = vunpack.c.l.b16 %v327
    %v367 = vunpack.c.l.b16 %v328
    %v368 = vunpack.c.l.b16 %v329
    %v369 = vunpack.c.l.b16 %v330
    %v370 = vunpack.c.l.b16 %v331
    %v371 = vunpack.c.l.b16 %v332
    %v372 = vunpack.c.l.b16 %v333
    %v373 = vunpack.c.l.b16 %v334
    %v374 = vunpack.c.l.b16 %v335
    %v375 = vunpack.c.l.b16 %v336
    %v376 = vunpack.c.l.b16 %v337
    %v377 = vunpack.c.l.b16 %v338
    %v378 = vunpack.c.l.b16 %v339
    %v379 = vpack.c.b16 %v364, %v363
    %v380 = vpack.c.b16 %v366, %v365
    %v381 = vpack.c.b16 %v368, %v367
    %v382 = vpack.c.b16 %v370, %v369
    %v383 = vpack.c.b16 %v372, %v371
    %v384 = vpack.c.b16 %v374, %v373
    %v385 = vpack.c.b16 %v376, %v375
    %v386 = vpack.c.b16 %v378, %v377
    %395 = vmatprep.subr.bf16.mxu0 0
    %396 = vmatpush1.bf16.msra.mxu0 %v386
    %397 = vmatprep.subr.bf16.mxu0 0
    %398 = vmatpush1.bf16.msra.mxu0 %v385
    %399 = vmatprep.subr.bf16.mxu0 0
    %400 = vmatpush1.bf16.msra.mxu0 %v384
    %401 = vmatprep.subr.bf16.mxu0 0
    %402 = vmatpush1.bf16.msra.mxu0 %v383
    %403 = vmatprep.subr.bf16.mxu0 0
    %404 = vmatpush1.bf16.msra.mxu0 %v382
    %405 = vmatprep.subr.bf16.mxu0 0
    %406 = vmatpush1.bf16.msra.mxu0 %v381
    %407 = vmatprep.subr.bf16.mxu0 0
    %408 = vmatpush1.bf16.msra.mxu0 %v380
    %409 = vmatprep.subr.bf16.mxu0 0
    %410 = vmatpush1.bf16.msra.mxu0 %v379
    %411 = vmatprep.subr.bf16.mxu0 0
    %412 = vmatpush2.bf16.msra.mxu0 0
    %413 = vmatprep.subr.bf16.mxu0 0
    %414 = vmatpush2.bf16.msra.mxu0 0
    %415 = vmatprep.subr.bf16.mxu0 0
    %416 = vmatpush2.bf16.msra.mxu0 0
    %417 = vmatprep.subr.bf16.mxu0 0
    %418 = vmatpush2.bf16.msra.mxu0 0
    %419 = vmatprep.subr.bf16.mxu0 0
    %420 = vmatpush2.bf16.msra.mxu0 0
    %421 = vmatprep.subr.bf16.mxu0 0
    %422 = vmatpush2.bf16.msra.mxu0 0
    %423 = vmatprep.subr.bf16.mxu0 0
    %424 = vmatpush2.bf16.msra.mxu0 0
    %425 = vmatprep.subr.bf16.mxu0 0
    %426 = vmatpush2.bf16.msra.mxu0 0
    %427 = vmatprep.mubr.bf16.mxu0 0
    %428 = vmatmul.mubr.bf16.gmra.mxu0 %v323
    %v429 = vpop.f32.mrf.mxu0
    %v430 = vadd.f32 %v345, %v429
    %v431 = vpop.f32.mrf.mxu0
    %v432 = vpop.f32.mrf.mxu0
    %v433 = vpop.f32.mrf.mxu0
    %434 = vdwg.mxu0
    %vm435 = vcmask 25600
    %436 = vst.msk [vmem:[#allocation2] sm:$0x3] %vm435, %v430
    // Predicated region
    $region38: #{patchnet_forward.9} parent=1 // pred_check
      _
    $region39: #{patchnet_forward.9} parent=1 // pred_check_branch
      %438 = sbr.rel (0) target = $region41
    $region40: #{patchnet_forward.9} parent=1 // pred_region
      %s440 = ssub.s32 32, 32
      %441 = vsyncadd [#allocation3], %s440
      %s443 = sshll.u32 [#allocation2], 4
      %s444 = int_to_ptr.vmem [resolvable:$true] %s443
      %446 = dma.vmem_to_hbm [thread:$0]  %s444, 32, %s9, [#allocation3]
    $region41: #{patchnet_forward.9} parent=1 // pred_fallthru
      _
    // Predicated region
    $region42: #{patchnet_forward.9} parent=1 // pred_check
      _
    $region43: #{patchnet_forward.9} parent=1 // pred_check_branch
      %448 = sbr.rel (0) target = $region45
    $region44: #{patchnet_forward.9} parent=1 // pred_region
      %449 = dma.done [#allocation3], 32
    $region45: #{patchnet_forward.9} parent=1 // pred_fallthru
      _
    %450 = vsyncpa [#allocation3], 1

// kernel: patchnet_forward.8
$region0: #{patchnet_forward.8}
  #allocation0 [shape = 'u32[]', space=smem, size = 0x4, offset = 0x4, fixed_abs, tag = 'smem constant byte address 0x4 - core index']
  #allocation1 [shape = 'u32[144,128]{1,0:T(1,128)}', space=vmem, size = 0x12000, scoped, tag = 'internal scratch']
  %s0 = inlined_call_operand.vmem [shape: bf16[2,328,8], index: 0, kind: input, shape index: {}]
  %s1 = inlined_call_operand.vmem [shape: bf16[72,32], index: 1, kind: input, shape index: {}]
  %s2 = inlined_call_operand.vmem [shape: f32[1,32], index: 2, kind: input, shape index: {}]
  %s3 = inlined_call_operand.vmem [shape: f32[8,1], index: 3, kind: input, shape index: {}]
  %s4 = inlined_call_operand.vmem [shape: f32[2,1,32], index: 4, kind: output, shape index: {}]
  %s5 = sld [smem:[#allocation0]]
  $region49: #{patchnet_forward.8} parent=0
    _
  %s7 = ssub.s32 1, %s5
  %s8 = scalar_select 0, %s7, %s5
  loop: start=0, step=1, limit=4
  $region2: #{patchnet_forward.8} parent=0 // loop_pre_header
    _
  $region3: #{patchnet_forward.8} parent=0 // loop_header
    %s10 = sphi 0, %s14
    %p11 = scmp.ge.s32.totalorder %s10, 4
    %s20 = sphi 0, %s22
    %s23 = sphi 0, %s20
    %s24 = sphi 0, %s23
    %s40 = sphi 0, %s24
    %s44 = sphi 0, %s44
    %s46 = sphi 0, %s44
    %s47 = sphi 0, %s46
    %s61 = sphi 0, %s47
    %s65 = sphi 0, %s65
    %s67 = sphi 0, %s65
    %s68 = sphi 0, %s67
    %s82 = sphi 0, %s68
    %s86 = sphi 0, %s86
    %s88 = sphi 0, %s86
    %s89 = sphi 0, %s88
    %s103 = sphi 0, %s89
    %s109 = sphi 0, %s111
    %s112 = sphi 0, %s109
    %s113 = sphi 0, %s112
    %s129 = sphi 0, %s113
  $region4: #{patchnet_forward.8} parent=0 // loop_header_branch
    %13 = sbr.rel (%p11) target = $region8
  $region5: #{patchnet_forward.8} parent=0 // loop_body
    %s15 = ssub.s32 %s10, 1
    %s16 = ssub.s32 %s10, 2
    %s17 = sadd.s32 %s10, 1
    %s18 = ssub.s32 %s10, %s17
    %p19 = scmp.eq.s32.totalorder %s18, 0
    %s21 = sadd.s32 %s20, 1
    %s22 = scalar_select %p19, %s20, %s21
    %p25 = pneg %p19
    %p26 = scmp.eq.s32.totalorder %s10, 1
    %p27 = por %p25, %p26
    %p28 = scmp.ne.s32.totalorder %s20, %s23
    %p29 = scmp.eq.s32.totalorder %s10, 0
    %p30 = por %p28, %p29
    %p31 = scmp.ne.s32.totalorder %s20, %s23
    %p32 = scmp.eq.s32.totalorder %s15, 1
    %p33 = por %p31, %p32
    %p34 = scmp.ne.s32.totalorder %s23, %s24
    %p35 = scmp.eq.s32.totalorder %s15, 0
    %p36 = por %p34, %p35
    %p37 = scmp.ne.s32.totalorder %s23, %s24
    %p38 = scmp.eq.s32.totalorder %s16, 1
    %p39 = por %p37, %p38
    %p41 = scmp.ne.s32.totalorder %s24, %s40
    %p42 = scmp.eq.s32.totalorder %s16, 0
    %p43 = por %p41, %p42
    %s45 = sadd.s32 %s44, 1
    %p48 = scmp.eq.s32.totalorder %s10, 1
    %p49 = scmp.ne.s32.totalorder %s44, %s46
    %p50 = scmp.eq.s32.totalorder %s10, 0
    %p51 = por %p49, %p50
    %p52 = scmp.ne.s32.totalorder %s44, %s46
    %p53 = scmp.eq.s32.totalorder %s15, 1
    %p54 = por %p52, %p53
    %p55 = scmp.ne.s32.totalorder %s46, %s47
    %p56 = scmp.eq.s32.totalorder %s15, 0
    %p57 = por %p55, %p56
    %p58 = scmp.ne.s32.totalorder %s46, %s47
    %p59 = scmp.eq.s32.totalorder %s16, 1
    %p60 = por %p58, %p59
    %p62 = scmp.ne.s32.totalorder %s47, %s61
    %p63 = scmp.eq.s32.totalorder %s16, 0
    %p64 = por %p62, %p63
    %s66 = sadd.s32 %s65, 1
    %p69 = scmp.eq.s32.totalorder %s10, 1
    %p70 = scmp.ne.s32.totalorder %s65, %s67
    %p71 = scmp.eq.s32.totalorder %s10, 0
    %p72 = por %p70, %p71
    %p73 = scmp.ne.s32.totalorder %s65, %s67
    %p74 = scmp.eq.s32.totalorder %s15, 1
    %p75 = por %p73, %p74
    %p76 = scmp.ne.s32.totalorder %s67, %s68
    %p77 = scmp.eq.s32.totalorder %s15, 0
    %p78 = por %p76, %p77
    %p79 = scmp.ne.s32.totalorder %s67, %s68
    %p80 = scmp.eq.s32.totalorder %s16, 1
    %p81 = por %p79, %p80
    %p83 = scmp.ne.s32.totalorder %s68, %s82
    %p84 = scmp.eq.s32.totalorder %s16, 0
    %p85 = por %p83, %p84
    %s87 = sadd.s32 %s86, 1
    %p90 = scmp.eq.s32.totalorder %s10, 1
    %p91 = scmp.ne.s32.totalorder %s86, %s88
    %p92 = scmp.eq.s32.totalorder %s10, 0
    %p93 = por %p91, %p92
    %p94 = scmp.ne.s32.totalorder %s86, %s88
    %p95 = scmp.eq.s32.totalorder %s15, 1
    %p96 = por %p94, %p95
    %p97 = scmp.ne.s32.totalorder %s88, %s89
    %p98 = scmp.eq.s32.totalorder %s15, 0
    %p99 = por %p97, %p98
    %p100 = scmp.ne.s32.totalorder %s88, %s89
    %p101 = scmp.eq.s32.totalorder %s16, 1
    %p102 = por %p100, %p101
    %p104 = scmp.ne.s32.totalorder %s89, %s103
    %p105 = scmp.eq.s32.totalorder %s16, 0
    %p106 = por %p104, %p105
    %s107 = ssub.s32 %s10, %s17
    %p108 = scmp.eq.s32.totalorder %s107, 0
    %s110 = sadd.s32 %s109, 1
    %s111 = scalar_select %p108, %s109, %s110
    %p114 = pneg %p108
    %p115 = scmp.eq.s32.totalorder %s10, 1
    %p116 = por %p114, %p115
    %p117 = scmp.ne.s32.totalorder %s109, %s112
    %p118 = scmp.eq.s32.totalorder %s10, 0
    %p119 = por %p117, %p118
    %p120 = scmp.ne.s32.totalorder %s109, %s112
    %p121 = scmp.eq.s32.totalorder %s15, 1
    %p122 = por %p120, %p121
    %p123 = scmp.ne.s32.totalorder %s112, %s113
    %p124 = scmp.eq.s32.totalorder %s15, 0
    %p125 = por %p123, %p124
    %p126 = scmp.ne.s32.totalorder %s112, %s113
    %p127 = scmp.eq.s32.totalorder %s16, 1
    %p128 = por %p126, %p127
    %p130 = scmp.ne.s32.totalorder %s113, %s129
    %p131 = scmp.eq.s32.totalorder %s16, 0
    %p132 = por %p130, %p131
    %p133 = scmp.le.s32.totalorder 1, %s10
    %p134 = scmp.lt.s32.totalorder %s10, 3
    %p135 = pnand %p133, %p134
    %p136 = pneg %p135
    // Predicated region
    $region9: #{patchnet_forward.8} parent=5 // pred_check
      _
    $region10: #{patchnet_forward.8} parent=5 // pred_check_branch
      %138 = sbr.rel (%p135) target = $region12
    $region11: #{patchnet_forward.8} parent=5 // pred_region
      %s139 = ssub.s32 %s10, 1
      // Predicated region
      $region13: #{patchnet_forward.8} parent=11 // pred_check
        %p140 = pneg %p57
      $region14: #{patchnet_forward.8} parent=11 // pred_check_branch
        %142 = sbr.rel (%p140) target = $region16
      $region15: #{patchnet_forward.8} parent=11 // pred_region
        _
      $region16: #{patchnet_forward.8} parent=11 // pred_fallthru
        _
      // Predicated region
      $region17: #{patchnet_forward.8} parent=11 // pred_check
        %p143 = pneg %p78
      $region18: #{patchnet_forward.8} parent=11 // pred_check_branch
        %145 = sbr.rel (%p143) target = $region20
      $region19: #{patchnet_forward.8} parent=11 // pred_region
        _
      $region20: #{patchnet_forward.8} parent=11 // pred_fallthru
        _
      // Predicated region
      $region21: #{patchnet_forward.8} parent=11 // pred_check
        %p146 = pneg %p99
      $region22: #{patchnet_forward.8} parent=11 // pred_check_branch
        %148 = sbr.rel (%p146) target = $region24
      $region23: #{patchnet_forward.8} parent=11 // pred_region
        _
      $region24: #{patchnet_forward.8} parent=11 // pred_fallthru
        _
    $region12: #{patchnet_forward.8} parent=5 // pred_fallthru
      _
    %p149 = scmp.lt.s32.totalorder %s10, 2
    // Predicated region
    $region25: #{patchnet_forward.8} parent=5 // pred_check
      %p150 = pneg %p149
    $region26: #{patchnet_forward.8} parent=5 // pred_check_branch
      %152 = sbr.rel (%p150) target = $region28
    $region27: #{patchnet_forward.8} parent=5 // pred_region
      // Predicated region
      $region29: #{patchnet_forward.8} parent=27 // pred_check
        %p153 = pneg %p30
      $region30: #{patchnet_forward.8} parent=27 // pred_check_branch
        %155 = sbr.rel (%p153) target = $region32
      $region31: #{patchnet_forward.8} parent=27 // pred_region
        %p156 = scmp.lt.s32.totalorder %s10, 1
        %s157 = scalar_select %p156, %s10, 1
        %s158 = smul.addr %s157, 41
        %s159 = smul.addr %s158, 4
        %s160 = scalar_lea.vmem %s0, %s159
      $region32: #{patchnet_forward.8} parent=27 // pred_fallthru
        _
    $region28: #{patchnet_forward.8} parent=5 // pred_fallthru
      _
    %p161 = scmp.le.s32.totalorder 1, %s10
    %p162 = scmp.lt.s32.totalorder %s10, 3
    %p163 = pnand %p161, %p162
    %p164 = pneg %p163
    // Predicated region
    $region33: #{patchnet_forward.8} parent=5 // pred_check
      _
    $region34: #{patchnet_forward.8} parent=5 // pred_check_branch
      %166 = sbr.rel (%p163) target = $region36
    $region35: #{patchnet_forward.8} parent=5 // pred_region
      %s167 = ssub.s32 %s10, 1
      %p168 = scmp.lt.s32.totalorder %s15, 1
      %s169 = scalar_select %p168, %s15, 1
      %s170 = smul.addr %s169, 41
      %s171 = smul.addr %s170, 4
      %s172 = scalar_lea.vmem %s0, %s171
      %p173 = pneg %p36
      %p174 = pneg %p33
      %p175 = pneg %p57
      %p176 = pneg %p54
      %p177 = pneg %p78
      %p178 = pneg %p75
      %p179 = pneg %p99
      %p180 = pneg %p96
      %p181 = pneg %p125
      %p182 = pneg %p122
      %p183 = scmp.lt.s32.totalorder %s15, 1
      %s184 = scalar_select %p183, %s15, 1
      %s185 = scalar_lea.vmem %s4, %s184
      %p186 = scmp.lt.s32.totalorder %s15, 1
      %s187 = scalar_select %p186, %s15, 1
      %s188 = smul.addr %s187, 41
      %s189 = smul.addr %s188, 4
      %s190 = scalar_lea.vmem %s0, %s189
      %p191 = scmp.lt.s32.totalorder %s15, 1
      %s192 = scalar_select %p191, %s15, 1
      %s193 = scalar_lea.vmem %s4, %s192
      %v195 = vld [vmem:[%s190] sm:$0xf]
      %v196 = vld [vmem:[%s190 + $0x4] sm:$0xf]
      %v197 = vld [vmem:[%s190 + $0x8] sm:$0xf]
      %v198 = vld [vmem:[%s190 + $0xc] sm:$0xf]
      %v199 = vld [vmem:[%s190 + $0x10] sm:$0xf]
      %v200 = vld [vmem:[%s190 + $0x14] sm:$0xf]
      %v201 = vld [vmem:[%s190 + $0x18] sm:$0xf]
      %v202 = vld [vmem:[%s190 + $0x1c] sm:$0xf]
      %v203 = vld [vmem:[%s190 + $0x20] sm:$0xf]
      %v204 = vld [vmem:[%s190 + $0x24] sm:$0xf]
      %v205 = vld [vmem:[%s190 + $0x28] sm:$0xf]
      %v206 = vld [vmem:[%s190 + $0x2c] sm:$0xf]
      %v207 = vld [vmem:[%s190 + $0x30] sm:$0xf]
      %v208 = vld [vmem:[%s190 + $0x34] sm:$0xf]
      %v209 = vld [vmem:[%s190 + $0x38] sm:$0xf]
      %v210 = vld [vmem:[%s190 + $0x3c] sm:$0xf]
      %v211 = vld [vmem:[%s190 + $0x40] sm:$0xf]
      %v212 = vld [vmem:[%s190 + $0x44] sm:$0xf]
      %v213 = vld [vmem:[%s190 + $0x48] sm:$0xf]
      %v214 = vld [vmem:[%s190 + $0x4c] sm:$0xf]
      %v215 = vld [vmem:[%s190 + $0x50] sm:$0xf]
      %v216 = vld [vmem:[%s190 + $0x54] sm:$0xf]
      %v217 = vld [vmem:[%s190 + $0x58] sm:$0xf]
      %v218 = vld [vmem:[%s190 + $0x5c] sm:$0xf]
      %v219 = vld [vmem:[%s190 + $0x60] sm:$0xf]
      %v220 = vld [vmem:[%s190 + $0x64] sm:$0xf]
      %v221 = vld [vmem:[%s190 + $0x68] sm:$0xf]
      %v222 = vld [vmem:[%s190 + $0x6c] sm:$0xf]
      %v223 = vld [vmem:[%s190 + $0x70] sm:$0xf]
      %v224 = vld [vmem:[%s190 + $0x74] sm:$0xf]
      %v225 = vld [vmem:[%s190 + $0x78] sm:$0xf]
      %v226 = vld [vmem:[%s190 + $0x7c] sm:$0xf]
      %v227 = vld [vmem:[%s190 + $0x80] sm:$0xf]
      %v228 = vld [vmem:[%s190 + $0x84] sm:$0xf]
      %v229 = vld [vmem:[%s190 + $0x88] sm:$0xf]
      %v230 = vld [vmem:[%s190 + $0x8c] sm:$0xf]
      %v231 = vld [vmem:[%s190 + $0x90] sm:$0xf]
      %v232 = vld [vmem:[%s190 + $0x94] sm:$0xf]
      %v233 = vld [vmem:[%s190 + $0x98] sm:$0xf]
      %v234 = vld [vmem:[%s190 + $0x9c] sm:$0xf]
      %v235 = vld [vmem:[%s190 + $0xa0] sm:$0xf]
      %v272 = vunpack.c.l.b16 %v195
      %v273 = vunpack.c.l.b16 %v196
      %v274 = vunpack.c.l.b16 %v197
      %v275 = vunpack.c.l.b16 %v198
      %v276 = vunpack.c.l.b16 %v199
      %v277 = vunpack.c.l.b16 %v200
      %v278 = vunpack.c.l.b16 %v201
      %v279 = vunpack.c.l.b16 %v202
      %v280 = vunpack.c.l.b16 %v203
      %v281 = vunpack.c.l.b16 %v204
      %v282 = vunpack.c.l.b16 %v205
      %v283 = vunpack.c.l.b16 %v206
      %v284 = vunpack.c.l.b16 %v207
      %v285 = vunpack.c.l.b16 %v208
      %v286 = vunpack.c.l.b16 %v209
      %v287 = vunpack.c.l.b16 %v210
      %v288 = vunpack.c.l.b16 %v211
      %v289 = vunpack.c.l.b16 %v212
      %v290 = vunpack.c.l.b16 %v213
      %v291 = vunpack.c.l.b16 %v214
      %v292 = vunpack.c.l.b16 %v215
      %v293 = vunpack.c.l.b16 %v216
      %v294 = vunpack.c.l.b16 %v217
      %v295 = vunpack.c.l.b16 %v218
      %v296 = vunpack.c.l.b16 %v219
      %v297 = vunpack.c.l.b16 %v220
      %v298 = vunpack.c.l.b16 %v221
      %v299 = vunpack.c.l.b16 %v222
      %v300 = vunpack.c.l.b16 %v223
      %v301 = vunpack.c.l.b16 %v224
      %v302 = vunpack.c.l.b16 %v225
      %v303 = vunpack.c.l.b16 %v226
      %v304 = vunpack.c.l.b16 %v227
      %v305 = vunpack.c.l.b16 %v228
      %v306 = vunpack.c.l.b16 %v229
      %v307 = vunpack.c.l.b16 %v230
      %v308 = vpack.c.b16 %v273, %v272
      %v309 = vpack.c.b16 %v275, %v274
      %v310 = vpack.c.b16 %v277, %v276
      %v311 = vpack.c.b16 %v279, %v278
      %v312 = vpack.c.b16 %v281, %v280
      %v313 = vpack.c.b16 %v283, %v282
      %v314 = vpack.c.b16 %v285, %v284
      %v315 = vpack.c.b16 %v287, %v286
      %v316 = vpack.c.b16 %v289, %v288
      %v317 = vpack.c.b16 %v291, %v290
      %v318 = vpack.c.b16 %v293, %v292
      %v319 = vpack.c.b16 %v295, %v294
      %v320 = vpack.c.b16 %v297, %v296
      %v321 = vpack.c.b16 %v299, %v298
      %v322 = vpack.c.b16 %v301, %v300
      %v323 = vpack.c.b16 %v303, %v302
      %v324 = vpack.c.b16 %v305, %v304
      %v325 = vpack.c.b16 %v307, %v306
      %v327 = vunpack.c.l.b16 %v231
      %v328 = vpack.c.b16 %v327, %v327
      %vm329 = vsmask.f32 7424
      %v331 = vshrl.u32 %v308, 16
      %v333 = vshll.u32 %v308, 16
      %v335 = vrot.slane %v333, 1
      %v336 = vor.u32 %v331, %v335
      %v338 = vshll.u32 %v309, 16
      %v340 = vrot.slane %v338, 1
      %v341 = vsel %vm329, %v336, %v340
      %v342 = vshrl.u32 %v309, 16
      %v344 = vor.u32 %v342, %v340
      %v346 = vshll.u32 %v310, 16
      %v348 = vrot.slane %v346, 1
      %v349 = vsel %vm329, %v344, %v348
      %v350 = vshrl.u32 %v310, 16
      %v352 = vor.u32 %v350, %v348
      %v354 = vshll.u32 %v311, 16
      %v356 = vrot.slane %v354, 1
      %v357 = vsel %vm329, %v352, %v356
      %v358 = vshrl.u32 %v311, 16
      %v360 = vor.u32 %v358, %v356
      %v362 = vshll.u32 %v312, 16
      %v364 = vrot.slane %v362, 1
      %v365 = vsel %vm329, %v360, %v364
      %v366 = vshrl.u32 %v312, 16
      %v368 = vor.u32 %v366, %v364
      %v370 = vshll.u32 %v313, 16
      %v372 = vrot.slane %v370, 1
      %v373 = vsel %vm329, %v368, %v372
      %v374 = vshrl.u32 %v313, 16
      %v376 = vor.u32 %v374, %v372
      %v378 = vshll.u32 %v314, 16
      %v380 = vrot.slane %v378, 1
      %v381 = vsel %vm329, %v376, %v380
      %v382 = vshrl.u32 %v314, 16
      %v384 = vor.u32 %v382, %v380
      %v386 = vshll.u32 %v315, 16
      %v388 = vrot.slane %v386, 1
      %v389 = vsel %vm329, %v384, %v388
      %v390 = vshrl.u32 %v315, 16
      %v392 = vor.u32 %v390, %v388
      %v394 = vshll.u32 %v316, 16
      %v396 = vrot.slane %v394, 1
      %v397 = vsel %vm329, %v392, %v396
      %v398 = vshrl.u32 %v316, 16
      %v400 = vor.u32 %v398, %v396
      %v402 = vshll.u32 %v317, 16
      %v404 = vrot.slane %v402, 1
      %v405 = vsel %vm329, %v400, %v404
      %v406 = vshrl.u32 %v317, 16
      %v408 = vor.u32 %v406, %v404
      %v410 = vshll.u32 %v318, 16
      %v412 = vrot.slane %v410, 1
      %v413 = vsel %vm329, %v408, %v412
      %v414 = vshrl.u32 %v318, 16
      %v416 = vor.u32 %v414, %v412
      %v418 = vshll.u32 %v319, 16
      %v420 = vrot.slane %v418, 1
      %v421 = vsel %vm329, %v416, %v420
      %v422 = vshrl.u32 %v319, 16
      %v424 = vor.u32 %v422, %v420
      %v426 = vshll.u32 %v320, 16
      %v428 = vrot.slane %v426, 1
      %v429 = vsel %vm329, %v424, %v428
      %v430 = vshrl.u32 %v320, 16
      %v432 = vor.u32 %v430, %v428
      %v434 = vshll.u32 %v321, 16
      %v436 = vrot.slane %v434, 1
      %v437 = vsel %vm329, %v432, %v436
      %v438 = vshrl.u32 %v321, 16
      %v440 = vor.u32 %v438, %v436
      %v442 = vshll.u32 %v322, 16
      %v444 = vrot.slane %v442, 1
      %v445 = vsel %vm329, %v440, %v444
      %v446 = vshrl.u32 %v322, 16
      %v448 = vor.u32 %v446, %v444
      %v450 = vshll.u32 %v323, 16
      %v452 = vrot.slane %v450, 1
      %v453 = vsel %vm329, %v448, %v452
      %v454 = vshrl.u32 %v323, 16
      %v456 = vor.u32 %v454, %v452
      %v458 = vshll.u32 %v324, 16
      %v460 = vrot.slane %v458, 1
      %v461 = vsel %vm329, %v456, %v460
      %v462 = vshrl.u32 %v324, 16
      %v464 = vor.u32 %v462, %v460
      %v466 = vshll.u32 %v325, 16
      %v468 = vrot.slane %v466, 1
      %v469 = vsel %vm329, %v464, %v468
      %v470 = vshrl.u32 %v325, 16
      %v472 = vor.u32 %v470, %v468
      %v474 = vshll.u32 %v328, 16
      %v476 = vrot.slane %v474, 1
      %v477 = vsel %vm329, %v472, %v476
      %478 = vrot.lane.b32.xlu0 %v341, 8
      %v479 = vpop.permute.xlu0 %478
      %480 = vrot.lane.b32.xlu0 %v349, 8
      %v481 = vpop.permute.xlu0 %480
      %482 = vrot.lane.b32.xlu0 %v357, 8
      %v483 = vpop.permute.xlu0 %482
      %484 = vrot.lane.b32.xlu0 %v365, 8
      %v485 = vpop.permute.xlu0 %484
      %486 = vrot.lane.b32.xlu0 %v373, 8
      %v487 = vpop.permute.xlu0 %486
      %488 = vrot.lane.b32.xlu0 %v381, 8
      %v489 = vpop.permute.xlu0 %488
      %490 = vrot.lane.b32.xlu0 %v389, 8
      %v491 = vpop.permute.xlu0 %490
      %492 = vrot.lane.b32.xlu0 %v397, 8
      %v493 = vpop.permute.xlu0 %492
      %494 = vrot.lane.b32.xlu0 %v405, 8
      %v495 = vpop.permute.xlu0 %494
      %496 = vrot.lane.b32.xlu0 %v413, 8
      %v497 = vpop.permute.xlu0 %496
      %498 = vrot.lane.b32.xlu0 %v421, 8
      %v499 = vpop.permute.xlu0 %498
      %500 = vrot.lane.b32.xlu0 %v429, 8
      %v501 = vpop.permute.xlu0 %500
      %502 = vrot.lane.b32.xlu0 %v437, 8
      %v503 = vpop.permute.xlu0 %502
      %504 = vrot.lane.b32.xlu0 %v445, 8
      %v505 = vpop.permute.xlu0 %504
      %506 = vrot.lane.b32.xlu0 %v453, 8
      %v507 = vpop.permute.xlu0 %506
      %508 = vrot.lane.b32.xlu0 %v461, 8
      %v509 = vpop.permute.xlu0 %508
      %510 = vrot.lane.b32.xlu0 %v469, 8
      %v511 = vpop.permute.xlu0 %510
      %512 = vrot.lane.b32.xlu0 %v477, 8
      %v513 = vpop.permute.xlu0 %512
      %vm514 = vcmask 1046528
      %v515 = vrot.slane %v308, 1
      %v516 = vrot.slane %v309, 1
      %v517 = vsel %vm514, %v515, %v516
      %v518 = vrot.slane %v310, 1
      %v519 = vsel %vm514, %v516, %v518
      %v520 = vrot.slane %v311, 1
      %v521 = vsel %vm514, %v518, %v520
      %v522 = vrot.slane %v312, 1
      %v523 = vsel %vm514, %v520, %v522
      %v524 = vrot.slane %v313, 1
      %v525 = vsel %vm514, %v522, %v524
      %v526 = vrot.slane %v314, 1
      %v527 = vsel %vm514, %v524, %v526
      %v528 = vrot.slane %v315, 1
      %v529 = vsel %vm514, %v526, %v528
      %v530 = vrot.slane %v316, 1
      %v531 = vsel %vm514, %v528, %v530
      %v532 = vrot.slane %v317, 1
      %v533 = vsel %vm514, %v530, %v532
      %v534 = vrot.slane %v318, 1
      %v535 = vsel %vm514, %v532, %v534
      %v536 = vrot.slane %v319, 1
      %v537 = vsel %vm514, %v534, %v536
      %v538 = vrot.slane %v320, 1
      %v539 = vsel %vm514, %v536, %v538
      %v540 = vrot.slane %v321, 1
      %v541 = vsel %vm514, %v538, %v540
      %v542 = vrot.slane %v322, 1
      %v543 = vsel %vm514, %v540, %v542
      %v544 = vrot.slane %v323, 1
      %v545 = vsel %vm514, %v542, %v544
      %v546 = vrot.slane %v324, 1
      %v547 = vsel %vm514, %v544, %v546
      %v548 = vrot.slane %v325, 1
      %v549 = vsel %vm514, %v546, %v548
      %v550 = vrot.slane %v328, 1
      %v551 = vsel %vm514, %v548, %v550
      %552 = vrot.lane.b32.xlu0 %v517, 16
      %v553 = vpop.permute.xlu0 %552
      %554 = vrot.lane.b32.xlu0 %v519, 16
      %v555 = vpop.permute.xlu0 %554
      %556 = vrot.lane.b32.xlu0 %v521, 16
      %v557 = vpop.permute.xlu0 %556
      %558 = vrot.lane.b32.xlu0 %v523, 16
      %v559 = vpop.permute.xlu0 %558
      %560 = vrot.lane.b32.xlu0 %v525, 16
      %v561 = vpop.permute.xlu0 %560
      %562 = vrot.lane.b32.xlu0 %v527, 16
      %v563 = vpop.permute.xlu0 %562
      %564 = vrot.lane.b32.xlu0 %v529, 16
      %v565 = vpop.permute.xlu0 %564
      %566 = vrot.lane.b32.xlu0 %v531, 16
      %v567 = vpop.permute.xlu0 %566
      %568 = vrot.lane.b32.xlu0 %v533, 16
      %v569 = vpop.permute.xlu0 %568
      %570 = vrot.lane.b32.xlu0 %v535, 16
      %v571 = vpop.permute.xlu0 %570
      %572 = vrot.lane.b32.xlu0 %v537, 16
      %v573 = vpop.permute.xlu0 %572
      %574 = vrot.lane.b32.xlu0 %v539, 16
      %v575 = vpop.permute.xlu0 %574
      %576 = vrot.lane.b32.xlu0 %v541, 16
      %v577 = vpop.permute.xlu0 %576
      %578 = vrot.lane.b32.xlu0 %v543, 16
      %v579 = vpop.permute.xlu0 %578
      %580 = vrot.lane.b32.xlu0 %v545, 16
      %v581 = vpop.permute.xlu0 %580
      %582 = vrot.lane.b32.xlu0 %v547, 16
      %v583 = vpop.permute.xlu0 %582
      %584 = vrot.lane.b32.xlu0 %v549, 16
      %v585 = vpop.permute.xlu0 %584
      %586 = vrot.lane.b32.xlu0 %v551, 16
      %v587 = vpop.permute.xlu0 %586
      %v590 = vunpack.c.l.b16 %v232
      %v591 = vunpack.c.l.b16 %v233
      %v592 = vpack.c.b16 %v590, %v327
      %v593 = vpack.c.b16 %v591, %v591
      %v594 = vrot.slane %v592, 1
      %v595 = vsel %vm514, %v548, %v594
      %v596 = vrot.slane %v593, 1
      %v597 = vsel %vm514, %v594, %v596
      %598 = vrot.lane.b32.xlu0 %v519, 24
      %v599 = vpop.permute.xlu0 %598
      %600 = vrot.lane.b32.xlu0 %v521, 24
      %v601 = vpop.permute.xlu0 %600
      %602 = vrot.lane.b32.xlu0 %v523, 24
      %v603 = vpop.permute.xlu0 %602
      %604 = vrot.lane.b32.xlu0 %v525, 24
      %v605 = vpop.permute.xlu0 %604
      %606 = vrot.lane.b32.xlu0 %v527, 24
      %v607 = vpop.permute.xlu0 %606
      %608 = vrot.lane.b32.xlu0 %v529, 24
      %v609 = vpop.permute.xlu0 %608
      %610 = vrot.lane.b32.xlu0 %v531, 24
      %v611 = vpop.permute.xlu0 %610
      %612 = vrot.lane.b32.xlu0 %v533, 24
      %v613 = vpop.permute.xlu0 %612
      %614 = vrot.lane.b32.xlu0 %v535, 24
      %v615 = vpop.permute.xlu0 %614
      %616 = vrot.lane.b32.xlu0 %v537, 24
      %v617 = vpop.permute.xlu0 %616
      %618 = vrot.lane.b32.xlu0 %v539, 24
      %v619 = vpop.permute.xlu0 %618
      %620 = vrot.lane.b32.xlu0 %v541, 24
      %v621 = vpop.permute.xlu0 %620
      %622 = vrot.lane.b32.xlu0 %v543, 24
      %v623 = vpop.permute.xlu0 %622
      %624 = vrot.lane.b32.xlu0 %v545, 24
      %v625 = vpop.permute.xlu0 %624
      %626 = vrot.lane.b32.xlu0 %v547, 24
      %v627 = vpop.permute.xlu0 %626
      %628 = vrot.lane.b32.xlu0 %v549, 24
      %v629 = vpop.permute.xlu0 %628
      %630 = vrot.lane.b32.xlu0 %v595, 24
      %v631 = vpop.permute.xlu0 %630
      %632 = vrot.lane.b32.xlu0 %v597, 24
      %v633 = vpop.permute.xlu0 %632
      %vm634 = vsmask.f32 6400
      %v635 = vrot.slane %v342, 1
      %v636 = vrot.slane %v338, 2
      %v637 = vor.u32 %v635, %v636
      %v638 = vrot.slane %v350, 1
      %v639 = vrot.slane %v346, 2
      %v640 = vor.u32 %v638, %v639
      %v641 = vsel %vm634, %v637, %v640
      %v642 = vrot.slane %v358, 1
      %v643 = vrot.slane %v354, 2
      %v644 = vor.u32 %v642, %v643
      %v645 = vsel %vm634, %v640, %v644
      %v646 = vrot.slane %v366, 1
      %v647 = vrot.slane %v362, 2
      %v648 = vor.u32 %v646, %v647
      %v649 = vsel %vm634, %v644, %v648
      %v650 = vrot.slane %v374, 1
      %v651 = vrot.slane %v370, 2
      %v652 = vor.u32 %v650, %v651
      %v653 = vsel %vm634, %v648, %v652
      %v654 = vrot.slane %v382, 1
      %v655 = vrot.slane %v378, 2
      %v656 = vor.u32 %v654, %v655
      %v657 = vsel %vm634, %v652, %v656
      %v658 = vrot.slane %v390, 1
      %v659 = vrot.slane %v386, 2
      %v660 = vor.u32 %v658, %v659
      %v661 = vsel %vm634, %v656, %v660
      %v662 = vrot.slane %v398, 1
      %v663 = vrot.slane %v394, 2
      %v664 = vor.u32 %v662, %v663
      %v665 = vsel %vm634, %v660, %v664
      %v666 = vrot.slane %v406, 1
      %v667 = vrot.slane %v402, 2
      %v668 = vor.u32 %v666, %v667
      %v669 = vsel %vm634, %v664, %v668
      %v670 = vrot.slane %v414, 1
      %v671 = vrot.slane %v410, 2
      %v672 = vor.u32 %v670, %v671
      %v673 = vsel %vm634, %v668, %v672
      %v674 = vrot.slane %v422, 1
      %v675 = vrot.slane %v418, 2
      %v676 = vor.u32 %v674, %v675
      %v677 = vsel %vm634, %v672, %v676
      %v678 = vrot.slane %v430, 1
      %v679 = vrot.slane %v426, 2
      %v680 = vor.u32 %v678, %v679
      %v681 = vsel %vm634, %v676, %v680
      %v682 = vrot.slane %v438, 1
      %v683 = vrot.slane %v434, 2
      %v684 = vor.u32 %v682, %v683
      %v685 = vsel %vm634, %v680, %v684
      %v686 = vrot.slane %v446, 1
      %v687 = vrot.slane %v442, 2
      %v688 = vor.u32 %v686, %v687
      %v689 = vsel %vm634, %v684, %v688
      %v690 = vrot.slane %v454, 1
      %v691 = vrot.slane %v450, 2
      %v692 = vor.u32 %v690, %v691
      %v693 = vsel %vm634, %v688, %v692
      %v694 = vrot.slane %v462, 1
      %v695 = vrot.slane %v458, 2
      %v696 = vor.u32 %v694, %v695
      %v697 = vsel %vm634, %v692, %v696
      %v698 = vrot.slane %v470, 1
      %v699 = vrot.slane %v466, 2
      %v700 = vor.u32 %v698, %v699
      %v701 = vsel %vm634, %v696, %v700
      %v703 = vshrl.u32 %v592, 16
      %v705 = vrot.slane %v703, 1
      %v706 = vshll.u32 %v592, 16
      %v708 = vrot.slane %v706, 2
      %v709 = vor.u32 %v705, %v708
      %v710 = vsel %vm634, %v700, %v709
      %v712 = vshrl.u32 %v593, 16
      %v714 = vrot.slane %v712, 1
      %v715 = vshll.u32 %v593, 16
      %v717 = vrot.slane %v715, 2
      %v718 = vor.u32 %v714, %v717
      %v719 = vsel %vm634, %v709, %v718
      %720 = vrot.lane.b32.xlu0 %v641, 32
      %v721 = vpop.permute.xlu0 %720
      %722 = vrot.lane.b32.xlu0 %v645, 32
      %v723 = vpop.permute.xlu0 %722
      %724 = vrot.lane.b32.xlu0 %v649, 32
      %v725 = vpop.permute.xlu0 %724
      %726 = vrot.lane.b32.xlu0 %v653, 32
      %v727 = vpop.permute.xlu0 %726
      %728 = vrot.lane.b32.xlu0 %v657, 32
      %v729 = vpop.permute.xlu0 %728
      %730 = vrot.lane.b32.xlu0 %v661, 32
      %v731 = vpop.permute.xlu0 %730
      %732 = vrot.lane.b32.xlu0 %v665, 32
      %v733 = vpop.permute.xlu0 %732
      %734 = vrot.lane.b32.xlu0 %v669, 32
      %v735 = vpop.permute.xlu0 %734
      %736 = vrot.lane.b32.xlu0 %v673, 32
      %v737 = vpop.permute.xlu0 %736
      %738 = vrot.lane.b32.xlu0 %v677, 32
      %v739 = vpop.permute.xlu0 %738
      %740 = vrot.lane.b32.xlu0 %v681, 32
      %v741 = vpop.permute.xlu0 %740
      %742 = vrot.lane.b32.xlu0 %v685, 32
      %v743 = vpop.permute.xlu0 %742
      %744 = vrot.lane.b32.xlu0 %v689, 32
      %v745 = vpop.permute.xlu0 %744
      %746 = vrot.lane.b32.xlu0 %v693, 32
      %v747 = vpop.permute.xlu0 %746
      %748 = vrot.lane.b32.xlu0 %v697, 32
      %v749 = vpop.permute.xlu0 %748
      %750 = vrot.lane.b32.xlu0 %v701, 32
      %v751 = vpop.permute.xlu0 %750
      %752 = vrot.lane.b32.xlu0 %v710, 32
      %v753 = vpop.permute.xlu0 %752
      %754 = vrot.lane.b32.xlu0 %v719, 32
      %v755 = vpop.permute.xlu0 %754
      %vm756 = vcmask 1045504
      %v757 = vrot.slane %v309, 2
      %v758 = vrot.slane %v310, 2
      %v759 = vsel %vm756, %v757, %v758
      %v760 = vrot.slane %v311, 2
      %v761 = vsel %vm756, %v758, %v760
      %v762 = vrot.slane %v312, 2
      %v763 = vsel %vm756, %v760, %v762
      %v764 = vrot.slane %v313, 2
      %v765 = vsel %vm756, %v762, %v764
      %v766 = vrot.slane %v314, 2
      %v767 = vsel %vm756, %v764, %v766
      %v768 = vrot.slane %v315, 2
      %v769 = vsel %vm756, %v766, %v768
      %v770 = vrot.slane %v316, 2
      %v771 = vsel %vm756, %v768, %v770
      %v772 = vrot.slane %v317, 2
      %v773 = vsel %vm756, %v770, %v772
      %v774 = vrot.slane %v318, 2
      %v775 = vsel %vm756, %v772, %v774
      %v776 = vrot.slane %v319, 2
      %v777 = vsel %vm756, %v774, %v776
      %v778 = vrot.slane %v320, 2
      %v779 = vsel %vm756, %v776, %v778
      %v780 = vrot.slane %v321, 2
      %v781 = vsel %vm756, %v778, %v780
      %v782 = vrot.slane %v322, 2
      %v783 = vsel %vm756, %v780, %v782
      %v784 = vrot.slane %v323, 2
      %v785 = vsel %vm756, %v782, %v784
      %v786 = vrot.slane %v324, 2
      %v787 = vsel %vm756, %v784, %v786
      %v788 = vrot.slane %v325, 2
      %v789 = vsel %vm756, %v786, %v788
      %v790 = vrot.slane %v592, 2
      %v791 = vsel %vm756, %v788, %v790
      %v792 = vrot.slane %v593, 2
      %v793 = vsel %vm756, %v790, %v792
      %794 = vrot.lane.b32.xlu0 %v759, 40
      %v795 = vpop.permute.xlu0 %794
      %796 = vrot.lane.b32.xlu0 %v761, 40
      %v797 = vpop.permute.xlu0 %796
      %798 = vrot.lane.b32.xlu0 %v763, 40
      %v799 = vpop.permute.xlu0 %798
      %800 = vrot.lane.b32.xlu0 %v765, 40
      %v801 = vpop.permute.xlu0 %800
      %802 = vrot.lane.b32.xlu0 %v767, 40
      %v803 = vpop.permute.xlu0 %802
      %804 = vrot.lane.b32.xlu0 %v769, 40
      %v805 = vpop.permute.xlu0 %804
      %806 = vrot.lane.b32.xlu0 %v771, 40
      %v807 = vpop.permute.xlu0 %806
      %808 = vrot.lane.b32.xlu0 %v773, 40
      %v809 = vpop.permute.xlu0 %808
      %810 = vrot.lane.b32.xlu0 %v775, 40
      %v811 = vpop.permute.xlu0 %810
      %812 = vrot.lane.b32.xlu0 %v777, 40
      %v813 = vpop.permute.xlu0 %812
      %814 = vrot.lane.b32.xlu0 %v779, 40
      %v815 = vpop.permute.xlu0 %814
      %816 = vrot.lane.b32.xlu0 %v781, 40
      %v817 = vpop.permute.xlu0 %816
      %818 = vrot.lane.b32.xlu0 %v783, 40
      %v819 = vpop.permute.xlu0 %818
      %820 = vrot.lane.b32.xlu0 %v785, 40
      %v821 = vpop.permute.xlu0 %820
      %822 = vrot.lane.b32.xlu0 %v787, 40
      %v823 = vpop.permute.xlu0 %822
      %824 = vrot.lane.b32.xlu0 %v789, 40
      %v825 = vpop.permute.xlu0 %824
      %826 = vrot.lane.b32.xlu0 %v791, 40
      %v827 = vpop.permute.xlu0 %826
      %828 = vrot.lane.b32.xlu0 %v793, 40
      %v829 = vpop.permute.xlu0 %828
      %v832 = vunpack.c.l.b16 %v234
      %v833 = vunpack.c.l.b16 %v235
      %v834 = vpack.c.b16 %v832, %v591
      %v835 = vpack.c.b16 %v833, %v833
      %v836 = vrot.slane %v834, 2
      %v837 = vsel %vm756, %v790, %v836
      %v838 = vrot.slane %v835, 2
      %v839 = vsel %vm756, %v836, %v838
      %840 = vrot.lane.b32.xlu0 %v761, 48
      %v841 = vpop.permute.xlu0 %840
      %842 = vrot.lane.b32.xlu0 %v763, 48
      %v843 = vpop.permute.xlu0 %842
      %844 = vrot.lane.b32.xlu0 %v765, 48
      %v845 = vpop.permute.xlu0 %844
      %846 = vrot.lane.b32.xlu0 %v767, 48
      %v847 = vpop.permute.xlu0 %846
      %848 = vrot.lane.b32.xlu0 %v769, 48
      %v849 = vpop.permute.xlu0 %848
      %850 = vrot.lane.b32.xlu0 %v771, 48
      %v851 = vpop.permute.xlu0 %850
      %852 = vrot.lane.b32.xlu0 %v773, 48
      %v853 = vpop.permute.xlu0 %852
      %854 = vrot.lane.b32.xlu0 %v775, 48
      %v855 = vpop.permute.xlu0 %854
      %856 = vrot.lane.b32.xlu0 %v777, 48
      %v857 = vpop.permute.xlu0 %856
      %858 = vrot.lane.b32.xlu0 %v779, 48
      %v859 = vpop.permute.xlu0 %858
      %860 = vrot.lane.b32.xlu0 %v781, 48
      %v861 = vpop.permute.xlu0 %860
      %862 = vrot.lane.b32.xlu0 %v783, 48
      %v863 = vpop.permute.xlu0 %862
      %864 = vrot.lane.b32.xlu0 %v785, 48
      %v865 = vpop.permute.xlu0 %864
      %866 = vrot.lane.b32.xlu0 %v787, 48
      %v867 = vpop.permute.xlu0 %866
      %868 = vrot.lane.b32.xlu0 %v789, 48
      %v869 = vpop.permute.xlu0 %868
      %870 = vrot.lane.b32.xlu0 %v791, 48
      %v871 = vpop.permute.xlu0 %870
      %872 = vrot.lane.b32.xlu0 %v837, 48
      %v873 = vpop.permute.xlu0 %872
      %874 = vrot.lane.b32.xlu0 %v839, 48
      %v875 = vpop.permute.xlu0 %874
      %vm876 = vsmask.f32 5376
      %v877 = vrot.slane %v350, 2
      %v878 = vrot.slane %v346, 3
      %v879 = vor.u32 %v877, %v878
      %v880 = vrot.slane %v358, 2
      %v881 = vrot.slane %v354, 3
      %v882 = vor.u32 %v880, %v881
      %v883 = vsel %vm876, %v879, %v882
      %v884 = vrot.slane %v366, 2
      %v885 = vrot.slane %v362, 3
      %v886 = vor.u32 %v884, %v885
      %v887 = vsel %vm876, %v882, %v886
      %v888 = vrot.slane %v374, 2
      %v889 = vrot.slane %v370, 3
      %v890 = vor.u32 %v888, %v889
      %v891 = vsel %vm876, %v886, %v890
      %v892 = vrot.slane %v382, 2
      %v893 = vrot.slane %v378, 3
      %v894 = vor.u32 %v892, %v893
      %v895 = vsel %vm876, %v890, %v894
      %v896 = vrot.slane %v390, 2
      %v897 = vrot.slane %v386, 3
      %v898 = vor.u32 %v896, %v897
      %v899 = vsel %vm876, %v894, %v898
      %v900 = vrot.slane %v398, 2
      %v901 = vrot.slane %v394, 3
      %v902 = vor.u32 %v900, %v901
      %v903 = vsel %vm876, %v898, %v902
      %v904 = vrot.slane %v406, 2
      %v905 = vrot.slane %v402, 3
      %v906 = vor.u32 %v904, %v905
      %v907 = vsel %vm876, %v902, %v906
      %v908 = vrot.slane %v414, 2
      %v909 = vrot.slane %v410, 3
      %v910 = vor.u32 %v908, %v909
      %v911 = vsel %vm876, %v906, %v910
      %v912 = vrot.slane %v422, 2
      %v913 = vrot.slane %v418, 3
      %v914 = vor.u32 %v912, %v913
      %v915 = vsel %vm876, %v910, %v914
      %v916 = vrot.slane %v430, 2
      %v917 = vrot.slane %v426, 3
      %v918 = vor.u32 %v916, %v917
      %v919 = vsel %vm876, %v914, %v918
      %v920 = vrot.slane %v438, 2
      %v921 = vrot.slane %v434, 3
      %v922 = vor.u32 %v920, %v921
      %v923 = vsel %vm876, %v918, %v922
      %v924 = vrot.slane %v446, 2
      %v925 = vrot.slane %v442, 3
      %v926 = vor.u32 %v924, %v925
      %v927 = vsel %vm876, %v922, %v926
      %v928 = vrot.slane %v454, 2
      %v929 = vrot.slane %v450, 3
      %v930 = vor.u32 %v928, %v929
      %v931 = vsel %vm876, %v926, %v930
      %v932 = vrot.slane %v462, 2
      %v933 = vrot.slane %v458, 3
      %v934 = vor.u32 %v932, %v933
      %v935 = vsel %vm876, %v930, %v934
      %v936 = vrot.slane %v470, 2
      %v937 = vrot.slane %v466, 3
      %v938 = vor.u32 %v936, %v937
      %v939 = vsel %vm876, %v934, %v938
      %v940 = vrot.slane %v703, 2
      %v941 = vrot.slane %v706, 3
      %v942 = vor.u32 %v940, %v941
      %v943 = vsel %vm876, %v938, %v942
      %v945 = vshrl.u32 %v834, 16
      %v947 = vrot.slane %v945, 2
      %v948 = vshll.u32 %v834, 16
      %v950 = vrot.slane %v948, 3
      %v951 = vor.u32 %v947, %v950
      %v952 = vsel %vm876, %v942, %v951
      %v954 = vshrl.u32 %v835, 16
      %v956 = vrot.slane %v954, 2
      %v957 = vshll.u32 %v835, 16
      %v959 = vrot.slane %v957, 3
      %v960 = vor.u32 %v956, %v959
      %v961 = vsel %vm876, %v951, %v960
      %962 = vrot.lane.b32.xlu0 %v883, 56
      %v963 = vpop.permute.xlu0 %962
      %964 = vrot.lane.b32.xlu0 %v887, 56
      %v965 = vpop.permute.xlu0 %964
      %966 = vrot.lane.b32.xlu0 %v891, 56
      %v967 = vpop.permute.xlu0 %966
      %968 = vrot.lane.b32.xlu0 %v895, 56
      %v969 = vpop.permute.xlu0 %968
      %970 = vrot.lane.b32.xlu0 %v899, 56
      %v971 = vpop.permute.xlu0 %970
      %972 = vrot.lane.b32.xlu0 %v903, 56
      %v973 = vpop.permute.xlu0 %972
      %974 = vrot.lane.b32.xlu0 %v907, 56
      %v975 = vpop.permute.xlu0 %974
      %976 = vrot.lane.b32.xlu0 %v911, 56
      %v977 = vpop.permute.xlu0 %976
      %978 = vrot.lane.b32.xlu0 %v915, 56
      %v979 = vpop.permute.xlu0 %978
      %980 = vrot.lane.b32.xlu0 %v919, 56
      %v981 = vpop.permute.xlu0 %980
      %982 = vrot.lane.b32.xlu0 %v923, 56
      %v983 = vpop.permute.xlu0 %982
      %984 = vrot.lane.b32.xlu0 %v927, 56
      %v985 = vpop.permute.xlu0 %984
      %986 = vrot.lane.b32.xlu0 %v931, 56
      %v987 = vpop.permute.xlu0 %986
      %988 = vrot.lane.b32.xlu0 %v935, 56
      %v989 = vpop.permute.xlu0 %988
      %990 = vrot.lane.b32.xlu0 %v939, 56
      %v991 = vpop.permute.xlu0 %990
      %992 = vrot.lane.b32.xlu0 %v943, 56
      %v993 = vpop.permute.xlu0 %992
      %994 = vrot.lane.b32.xlu0 %v952, 56
      %v995 = vpop.permute.xlu0 %994
      %996 = vrot.lane.b32.xlu0 %v961, 56
      %v997 = vpop.permute.xlu0 %996
      %vm998 = vcmask 1044480
      %v999 = vrot.slane %v310, 3
      %v1000 = vrot.slane %v311, 3
      %v1001 = vsel %vm998, %v999, %v1000
      %v1002 = vrot.slane %v312, 3
      %v1003 = vsel %vm998, %v1000, %v1002
      %v1004 = vrot.slane %v313, 3
      %v1005 = vsel %vm998, %v1002, %v1004
      %v1006 = vrot.slane %v314, 3
      %v1007 = vsel %vm998, %v1004, %v1006
      %v1008 = vrot.slane %v315, 3
      %v1009 = vsel %vm998, %v1006, %v1008
      %v1010 = vrot.slane %v316, 3
      %v1011 = vsel %vm998, %v1008, %v1010
      %v1012 = vrot.slane %v317, 3
      %v1013 = vsel %vm998, %v1010, %v1012
      %v1014 = vrot.slane %v318, 3
      %v1015 = vsel %vm998, %v1012, %v1014
      %v1016 = vrot.slane %v319, 3
      %v1017 = vsel %vm998, %v1014, %v1016
      %v1018 = vrot.slane %v320, 3
      %v1019 = vsel %vm998, %v1016, %v1018
      %v1020 = vrot.slane %v321, 3
      %v1021 = vsel %vm998, %v1018, %v1020
      %v1022 = vrot.slane %v322, 3
      %v1023 = vsel %vm998, %v1020, %v1022
      %v1024 = vrot.slane %v323, 3
      %v1025 = vsel %vm998, %v1022, %v1024
      %v1026 = vrot.slane %v324, 3
      %v1027 = vsel %vm998, %v1024, %v1026
      %v1028 = vrot.slane %v325, 3
      %v1029 = vsel %vm998, %v1026, %v1028
      %v1030 = vrot.slane %v592, 3
      %v1031 = vsel %vm998, %v1028, %v1030
      %v1032 = vrot.slane %v834, 3
      %v1033 = vsel %vm998, %v1030, %v1032
      %v1034 = vrot.slane %v835, 3
      %v1035 = vsel %vm998, %v1032, %v1034
      %1036 = vrot.lane.b32.xlu0 %v1001, 64
      %v1037 = vpop.permute.xlu0 %1036
      %1038 = vrot.lane.b32.xlu0 %v1003, 64
      %v1039 = vpop.permute.xlu0 %1038
      %1040 = vrot.lane.b32.xlu0 %v1005, 64
      %v1041 = vpop.permute.xlu0 %1040
      %1042 = vrot.lane.b32.xlu0 %v1007, 64
      %v1043 = vpop.permute.xlu0 %1042
      %1044 = vrot.lane.b32.xlu0 %v1009, 64
      %v1045 = vpop.permute.xlu0 %1044
      %1046 = vrot.lane.b32.xlu0 %v1011, 64
      %v1047 = vpop.permute.xlu0 %1046
      %1048 = vrot.lane.b32.xlu0 %v1013, 64
      %v1049 = vpop.permute.xlu0 %1048
      %1050 = vrot.lane.b32.xlu0 %v1015, 64
      %v1051 = vpop.permute.xlu0 %1050
      %1052 = vrot.lane.b32.xlu0 %v1017, 64
      %v1053 = vpop.permute.xlu0 %1052
      %1054 = vrot.lane.b32.xlu0 %v1019, 64
      %v1055 = vpop.permute.xlu0 %1054
      %1056 = vrot.lane.b32.xlu0 %v1021, 64
      %v1057 = vpop.permute.xlu0 %1056
      %1058 = vrot.lane.b32.xlu0 %v1023, 64
      %v1059 = vpop.permute.xlu0 %1058
      %1060 = vrot.lane.b32.xlu0 %v1025, 64
      %v1061 = vpop.permute.xlu0 %1060
      %1062 = vrot.lane.b32.xlu0 %v1027, 64
      %v1063 = vpop.permute.xlu0 %1062
      %1064 = vrot.lane.b32.xlu0 %v1029, 64
      %v1065 = vpop.permute.xlu0 %1064
      %1066 = vrot.lane.b32.xlu0 %v1031, 64
      %v1067 = vpop.permute.xlu0 %1066
      %1068 = vrot.lane.b32.xlu0 %v1033, 64
      %v1069 = vpop.permute.xlu0 %1068
      %1070 = vrot.lane.b32.xlu0 %v1035, 64
      %v1071 = vpop.permute.xlu0 %1070
      %vm1072 = vcmask 64512
      %v1074 = vsel %vm1072, %v308, %v479
      %v1076 = vsel %vm1072, %v309, %v481
      %v1078 = vsel %vm1072, %v310, %v483
      %v1080 = vsel %vm1072, %v311, %v485
      %v1082 = vsel %vm1072, %v312, %v487
      %v1084 = vsel %vm1072, %v313, %v489
      %v1086 = vsel %vm1072, %v314, %v491
      %v1088 = vsel %vm1072, %v315, %v493
      %v1090 = vsel %vm1072, %v316, %v495
      %v1092 = vsel %vm1072, %v317, %v497
      %v1094 = vsel %vm1072, %v318, %v499
      %v1096 = vsel %vm1072, %v319, %v501
      %v1098 = vsel %vm1072, %v320, %v503
      %v1100 = vsel %vm1072, %v321, %v505
      %v1102 = vsel %vm1072, %v322, %v507
      %v1104 = vsel %vm1072, %v323, %v509
      %v1106 = vsel %vm1072, %v324, %v511
      %v1108 = vsel %vm1072, %v325, %v513
      %vm1109 = vcmask 130048
      %v1111 = vsel %vm1109, %v1074, %v553
      %v1113 = vsel %vm1109, %v1076, %v555
      %v1115 = vsel %vm1109, %v1078, %v557
      %v1117 = vsel %vm1109, %v1080, %v559
      %v1119 = vsel %vm1109, %v1082, %v561
      %v1121 = vsel %vm1109, %v1084, %v563
      %v1123 = vsel %vm1109, %v1086, %v565
      %v1125 = vsel %vm1109, %v1088, %v567
      %v1127 = vsel %vm1109, %v1090, %v569
      %v1129 = vsel %vm1109, %v1092, %v571
      %v1131 = vsel %vm1109, %v1094, %v573
      %v1133 = vsel %vm1109, %v1096, %v575
      %v1135 = vsel %vm1109, %v1098, %v577
      %v1137 = vsel %vm1109, %v1100, %v579
      %v1139 = vsel %vm1109, %v1102, %v581
      %v1141 = vsel %vm1109, %v1104, %v583
      %v1143 = vsel %vm1109, %v1106, %v585
      %v1145 = vsel %vm1109, %v1108, %v587
      %vm1146 = vcmask 195584
      %v1148 = vsel %vm1146, %v1111, %v599
      %v1150 = vsel %vm1146, %v1113, %v601
      %v1152 = vsel %vm1146, %v1115, %v603
      %v1154 = vsel %vm1146, %v1117, %v605
      %v1156 = vsel %vm1146, %v1119, %v607
      %v1158 = vsel %vm1146, %v1121, %v609
      %v1160 = vsel %vm1146, %v1123, %v611
      %v1162 = vsel %vm1146, %v1125, %v613
      %v1164 = vsel %vm1146, %v1127, %v615
      %v1166 = vsel %vm1146, %v1129, %v617
      %v1168 = vsel %vm1146, %v1131, %v619
      %v1170 = vsel %vm1146, %v1133, %v621
      %v1172 = vsel %vm1146, %v1135, %v623
      %v1174 = vsel %vm1146, %v1137, %v625
      %v1176 = vsel %vm1146, %v1139, %v627
      %v1178 = vsel %vm1146, %v1141, %v629
      %v1180 = vsel %vm1146, %v1143, %v631
      %v1182 = vsel %vm1146, %v1145, %v633
      %vm1183 = vcmask 261120
      %v1185 = vsel %vm1183, %v1148, %v721
      %v1187 = vsel %vm1183, %v1150, %v723
      %v1189 = vsel %vm1183, %v1152, %v725
      %v1191 = vsel %vm1183, %v1154, %v727
      %v1193 = vsel %vm1183, %v1156, %v729
      %v1195 = vsel %vm1183, %v1158, %v731
      %v1197 = vsel %vm1183, %v1160, %v733
      %v1199 = vsel %vm1183, %v1162, %v735
      %v1201 = vsel %vm1183, %v1164, %v737
      %v1203 = vsel %vm1183, %v1166, %v739
      %v1205 = vsel %vm1183, %v1168, %v741
      %v1207 = vsel %vm1183, %v1170, %v743
      %v1209 = vsel %vm1183, %v1172, %v745
      %v1211 = vsel %vm1183, %v1174, %v747
      %v1213 = vsel %vm1183, %v1176, %v749
      %v1215 = vsel %vm1183, %v1178, %v751
      %v1217 = vsel %vm1183, %v1180, %v753
      %v1219 = vsel %vm1183, %v1182, %v755
      %vm1220 = vcmask 326656
      %v1222 = vsel %vm1220, %v1185, %v795
      %v1224 = vsel %vm1220, %v1187, %v797
      %v1226 = vsel %vm1220, %v1189, %v799
      %v1228 = vsel %vm1220, %v1191, %v801
      %v1230 = vsel %vm1220, %v1193, %v803
      %v1232 = vsel %vm1220, %v1195, %v805
      %v1234 = vsel %vm1220, %v1197, %v807
      %v1236 = vsel %vm1220, %v1199, %v809
      %v1238 = vsel %vm1220, %v1201, %v811
      %v1240 = vsel %vm1220, %v1203, %v813
      %v1242 = vsel %vm1220, %v1205, %v815
      %v1244 = vsel %vm1220, %v1207, %v817
      %v1246 = vsel %vm1220, %v1209, %v819
      %v1248 = vsel %vm1220, %v1211, %v821
      %v1250 = vsel %vm1220, %v1213, %v823
      %v1252 = vsel %vm1220, %v1215, %v825
      %v1254 = vsel %vm1220, %v1217, %v827
      %v1256 = vsel %vm1220, %v1219, %v829
      %vm1257 = vcmask 392192
      %v1259 = vsel %vm1257, %v1222, %v841
      %v1261 = vsel %vm1257, %v1224, %v843
      %v1263 = vsel %vm1257, %v1226, %v845
      %v1265 = vsel %vm1257, %v1228, %v847
      %v1267 = vsel %vm1257, %v1230, %v849
      %v1269 = vsel %vm1257, %v1232, %v851
      %v1271 = vsel %vm1257, %v1234, %v853
      %v1273 = vsel %vm1257, %v1236, %v855
      %v1275 = vsel %vm1257, %v1238, %v857
      %v1277 = vsel %vm1257, %v1240, %v859
      %v1279 = vsel %vm1257, %v1242, %v861
      %v1281 = vsel %vm1257, %v1244, %v863
      %v1283 = vsel %vm1257, %v1246, %v865
      %v1285 = vsel %vm1257, %v1248, %v867
      %v1287 = vsel %vm1257, %v1250, %v869
      %v1289 = vsel %vm1257, %v1252, %v871
      %v1291 = vsel %vm1257, %v1254, %v873
      %v1293 = vsel %vm1257, %v1256, %v875
      %vm1294 = vcmask 457728
      %v1296 = vsel %vm1294, %v1259, %v963
      %v1298 = vsel %vm1294, %v1261, %v965
      %v1300 = vsel %vm1294, %v1263, %v967
      %v1302 = vsel %vm1294, %v1265, %v969
      %v1304 = vsel %vm1294, %v1267, %v971
      %v1306 = vsel %vm1294, %v1269, %v973
      %v1308 = vsel %vm1294, %v1271, %v975
      %v1310 = vsel %vm1294, %v1273, %v977
      %v1312 = vsel %vm1294, %v1275, %v979
      %v1314 = vsel %vm1294, %v1277, %v981
      %v1316 = vsel %vm1294, %v1279, %v983
      %v1318 = vsel %vm1294, %v1281, %v985
      %v1320 = vsel %vm1294, %v1283, %v987
      %v1322 = vsel %vm1294, %v1285, %v989
      %v1324 = vsel %vm1294, %v1287, %v991
      %v1326 = vsel %vm1294, %v1289, %v993
      %v1328 = vsel %vm1294, %v1291, %v995
      %v1330 = vsel %vm1294, %v1293, %v997
      %vm1331 = vcmask 523264
      %v1333 = vsel %vm1331, %v1296, %v1037
      %v1335 = vsel %vm1331, %v1298, %v1039
      %v1337 = vsel %vm1331, %v1300, %v1041
      %v1339 = vsel %vm1331, %v1302, %v1043
      %v1341 = vsel %vm1331, %v1304, %v1045
      %v1343 = vsel %vm1331, %v1306, %v1047
      %v1345 = vsel %vm1331, %v1308, %v1049
      %v1347 = vsel %vm1331, %v1310, %v1051
      %v1349 = vsel %vm1331, %v1312, %v1053
      %v1351 = vsel %vm1331, %v1314, %v1055
      %v1353 = vsel %vm1331, %v1316, %v1057
      %v1355 = vsel %vm1331, %v1318, %v1059
      %v1357 = vsel %vm1331, %v1320, %v1061
      %v1359 = vsel %vm1331, %v1322, %v1063
      %v1361 = vsel %vm1331, %v1324, %v1065
      %v1363 = vsel %vm1331, %v1326, %v1067
      %v1365 = vsel %vm1331, %v1328, %v1069
      %v1367 = vsel %vm1331, %v1330, %v1071
      %v1368 = vld [vmem:[%s1] sm:$0xf]
      %v1369 = vld [vmem:[%s1 + $0x4] sm:$0xf]
      %v1370 = vld [vmem:[%s1 + $0x8] sm:$0xf]
      %v1371 = vld [vmem:[%s1 + $0xc] sm:$0xf]
      %v1372 = vld [vmem:[%s1 + $0x10] sm:$0xf]
      %v1373 = vld [vmem:[%s1 + $0x14] sm:$0xf]
      %v1374 = vld [vmem:[%s1 + $0x18] sm:$0xf]
      %v1375 = vld [vmem:[%s1 + $0x1c] sm:$0xf]
      %v1376 = vld [vmem:[%s1 + $0x20] sm:$0xf]
      %v1377 = vld [vmem:[%s2] sm:$0x1]
      %v1379 = vlaneseq
      %v1380 = vshrl.u32 %v1379, 7
      %v1381 = vsub.s32 0, %v1380
      %v1382 = vrot.slane %v1377, %v1381
      %v1393 = vunpack.c.l.b16 %v1368
      %v1394 = vunpack.c.l.b16 %v1369
      %v1395 = vunpack.c.l.b16 %v1370
      %v1396 = vunpack.c.l.b16 %v1371
      %v1397 = vunpack.c.l.b16 %v1372
      %v1398 = vunpack.c.l.b16 %v1373
      %v1399 = vunpack.c.l.b16 %v1374
      %v1400 = vunpack.c.l.b16 %v1375
      %v1401 = vunpack.c.l.b16 %v1376
      %v1402 = vpack.c.b16 %v1394, %v1393
      %v1403 = vpack.c.b16 %v1396, %v1395
      %v1404 = vpack.c.b16 %v1398, %v1397
      %v1405 = vpack.c.b16 %v1400, %v1399
      %v1406 = vpack.c.b16 %v1401, %v1401
      %vm1411 = vcmask 588800
      %v1412 = vsel %vm1411, %v1333, 0
      %v1414 = vsel %vm1411, %v1335, 0
      %v1416 = vsel %vm1411, %v1337, 0
      %v1418 = vsel %vm1411, %v1339, 0
      %v1420 = vsel %vm1411, %v1341, 0
      %v1422 = vsel %vm1411, %v1343, 0
      %v1424 = vsel %vm1411, %v1345, 0
      %v1426 = vsel %vm1411, %v1347, 0
      %v1428 = vsel %vm1411, %v1349, 0
      %v1430 = vsel %vm1411, %v1351, 0
      %v1432 = vsel %vm1411, %v1353, 0
      %v1434 = vsel %vm1411, %v1355, 0
      %v1436 = vsel %vm1411, %v1357, 0
      %v1438 = vsel %vm1411, %v1359, 0
      %v1440 = vsel %vm1411, %v1361, 0
      %v1442 = vsel %vm1411, %v1363, 0
      %v1444 = vsel %vm1411, %v1365, 0
      %v1446 = vsel %vm1411, %v1367, 0
      %vm1448 = vcmask 1043456
      %v1450 = vsel %vm1448, %v1406, 0
      %1452 = vmatprep.subr.bf16.mxu0 0
      %1453 = vmatpush1.bf16.msra.mxu0 0
      %1454 = vmatprep.subr.bf16.mxu0 0
      %1455 = vmatpush1.bf16.msra.mxu0 0
      %1456 = vmatprep.subr.bf16.mxu0 0
      %1457 = vmatpush1.bf16.msra.mxu0 0
      %1458 = vmatprep.subr.bf16.mxu0 0
      %1459 = vmatpush1.bf16.msra.mxu0 %v1450
      %1460 = vmatprep.subr.bf16.mxu0 0
      %1461 = vmatpush1.bf16.msra.mxu0 %v1405
      %1462 = vmatprep.subr.bf16.mxu0 0
      %1463 = vmatpush1.bf16.msra.mxu0 %v1404
      %1464 = vmatprep.subr.bf16.mxu0 0
      %1465 = vmatpush1.bf16.msra.mxu0 %v1403
      %1466 = vmatprep.subr.bf16.mxu0 0
      %1467 = vmatpush1.bf16.msra.mxu0 %v1402
      %1468 = vmatprep.subr.bf16.mxu0 0
      %1469 = vmatpush2.bf16.msra.mxu0 0
      %1470 = vmatprep.subr.bf16.mxu0 0
      %1471 = vmatpush2.bf16.msra.mxu0 0
      %1472 = vmatprep.subr.bf16.mxu0 0
      %1473 = vmatpush2.bf16.msra.mxu0 0
      %1474 = vmatprep.subr.bf16.mxu0 0
      %1475 = vmatpush2.bf16.msra.mxu0 0
      %1476 = vmatprep.subr.bf16.mxu0 0
      %1477 = vmatpush2.bf16.msra.mxu0 0
      %1478 = vmatprep.subr.bf16.mxu0 0
      %1479 = vmatpush2.bf16.msra.mxu0 0
      %1480 = vmatprep.subr.bf16.mxu0 0
      %1481 = vmatpush2.bf16.msra.mxu0 0
      %1482 = vmatprep.subr.bf16.mxu0 0
      %1483 = vmatpush2.bf16.msra.mxu0 0
      %1484 = vmatprep.mubr.bf16.mxu0 0
      %1485 = vmatmul.mubr.bf16.gmra.mxu0 %v1412
      %v1486 = vpop.f32.mrf.mxu0
      %v1487 = vadd.f32 %v1382, %v1486
      %v1488 = vpop.f32.mrf.mxu0
      %v1489 = vpop.f32.mrf.mxu0
      %v1490 = vadd.f32 %v1382, %v1489
      %v1491 = vpop.f32.mrf.mxu0
      %1492 = vmatprep.mubr.bf16.mxu0 0
      %1493 = vmatmul.mubr.bf16.gmra.mxu0 %v1414
      %v1494 = vpop.f32.mrf.mxu0
      %v1495 = vadd.f32 %v1382, %v1494
      %v1496 = vpop.f32.mrf.mxu0
      %v1497 = vpop.f32.mrf.mxu0
      %v1498 = vadd.f32 %v1382, %v1497
      %v1499 = vpop.f32.mrf.mxu0
      %1500 = vmatprep.mubr.bf16.mxu0 0
      %1501 = vmatmul.mubr.bf16.gmra.mxu0 %v1416
      %v1502 = vpop.f32.mrf.mxu0
      %v1503 = vadd.f32 %v1382, %v1502
      %v1504 = vpop.f32.mrf.mxu0
      %v1505 = vpop.f32.mrf.mxu0
      %v1506 = vadd.f32 %v1382, %v1505
      %v1507 = vpop.f32.mrf.mxu0
      %1508 = vmatprep.mubr.bf16.mxu0 0
      %1509 = vmatmul.mubr.bf16.gmra.mxu0 %v1418
      %v1510 = vpop.f32.mrf.mxu0
      %v1511 = vadd.f32 %v1382, %v1510
      %v1512 = vpop.f32.mrf.mxu0
      %v1513 = vpop.f32.mrf.mxu0
      %v1514 = vadd.f32 %v1382, %v1513
      %v1515 = vpop.f32.mrf.mxu0
      %1516 = vmatprep.mubr.bf16.mxu0 0
      %1517 = vmatmul.mubr.bf16.gmra.mxu0 %v1420
      %v1518 = vpop.f32.mrf.mxu0
      %v1519 = vadd.f32 %v1382, %v1518
      %v1520 = vpop.f32.mrf.mxu0
      %v1521 = vpop.f32.mrf.mxu0
      %v1522 = vadd.f32 %v1382, %v1521
      %v1523 = vpop.f32.mrf.mxu0
      %1524 = vmatprep.mubr.bf16.mxu0 0
      %1525 = vmatmul.mubr.bf16.gmra.mxu0 %v1422
      %v1526 = vpop.f32.mrf.mxu0
      %v1527 = vadd.f32 %v1382, %v1526
      %v1528 = vpop.f32.mrf.mxu0
      %v1529 = vpop.f32.mrf.mxu0
      %v1530 = vadd.f32 %v1382, %v1529
      %v1531 = vpop.f32.mrf.mxu0
      %1532 = vmatprep.mubr.bf16.mxu0 0
      %1533 = vmatmul.mubr.bf16.gmra.mxu0 %v1424
      %v1534 = vpop.f32.mrf.mxu0
      %v1535 = vadd.f32 %v1382, %v1534
      %v1536 = vpop.f32.mrf.mxu0
      %v1537 = vpop.f32.mrf.mxu0
      %v1538 = vadd.f32 %v1382, %v1537
      %v1539 = vpop.f32.mrf.mxu0
      %1540 = vmatprep.mubr.bf16.mxu0 0
      %1541 = vmatmul.mubr.bf16.gmra.mxu0 %v1426
      %v1542 = vpop.f32.mrf.mxu0
      %v1543 = vadd.f32 %v1382, %v1542
      %v1544 = vpop.f32.mrf.mxu0
      %v1545 = vpop.f32.mrf.mxu0
      %v1546 = vadd.f32 %v1382, %v1545
      %v1547 = vpop.f32.mrf.mxu0
      %1548 = vmatprep.mubr.bf16.mxu0 0
      %1549 = vmatmul.mubr.bf16.gmra.mxu0 %v1428
      %v1550 = vpop.f32.mrf.mxu0
      %v1551 = vadd.f32 %v1382, %v1550
      %v1552 = vpop.f32.mrf.mxu0
      %v1553 = vpop.f32.mrf.mxu0
      %v1554 = vadd.f32 %v1382, %v1553
      %v1555 = vpop.f32.mrf.mxu0
      %1556 = vmatprep.mubr.bf16.mxu0 0
      %1557 = vmatmul.mubr.bf16.gmra.mxu0 %v1430
      %v1558 = vpop.f32.mrf.mxu0
      %v1559 = vadd.f32 %v1382, %v1558
      %v1560 = vpop.f32.mrf.mxu0
      %v1561 = vpop.f32.mrf.mxu0
      %v1562 = vadd.f32 %v1382, %v1561
      %v1563 = vpop.f32.mrf.mxu0
      %1564 = vmatprep.mubr.bf16.mxu0 0
      %1565 = vmatmul.mubr.bf16.gmra.mxu0 %v1432
      %v1566 = vpop.f32.mrf.mxu0
      %v1567 = vadd.f32 %v1382, %v1566
      %v1568 = vpop.f32.mrf.mxu0
      %v1569 = vpop.f32.mrf.mxu0
      %v1570 = vadd.f32 %v1382, %v1569
      %v1571 = vpop.f32.mrf.mxu0
      %1572 = vmatprep.mubr.bf16.mxu0 0
      %1573 = vmatmul.mubr.bf16.gmra.mxu0 %v1434
      %v1574 = vpop.f32.mrf.mxu0
      %v1575 = vadd.f32 %v1382, %v1574
      %v1576 = vpop.f32.mrf.mxu0
      %v1577 = vpop.f32.mrf.mxu0
      %v1578 = vadd.f32 %v1382, %v1577
      %v1579 = vpop.f32.mrf.mxu0
      %1580 = vmatprep.mubr.bf16.mxu0 0
      %1581 = vmatmul.mubr.bf16.gmra.mxu0 %v1436
      %v1582 = vpop.f32.mrf.mxu0
      %v1583 = vadd.f32 %v1382, %v1582
      %v1584 = vpop.f32.mrf.mxu0
      %v1585 = vpop.f32.mrf.mxu0
      %v1586 = vadd.f32 %v1382, %v1585
      %v1587 = vpop.f32.mrf.mxu0
      %1588 = vmatprep.mubr.bf16.mxu0 0
      %1589 = vmatmul.mubr.bf16.gmra.mxu0 %v1438
      %v1590 = vpop.f32.mrf.mxu0
      %v1591 = vadd.f32 %v1382, %v1590
      %v1592 = vpop.f32.mrf.mxu0
      %v1593 = vpop.f32.mrf.mxu0
      %v1594 = vadd.f32 %v1382, %v1593
      %v1595 = vpop.f32.mrf.mxu0
      %1596 = vmatprep.mubr.bf16.mxu0 0
      %1597 = vmatmul.mubr.bf16.gmra.mxu0 %v1440
      %v1598 = vpop.f32.mrf.mxu0
      %v1599 = vadd.f32 %v1382, %v1598
      %v1600 = vpop.f32.mrf.mxu0
      %v1601 = vpop.f32.mrf.mxu0
      %v1602 = vadd.f32 %v1382, %v1601
      %v1603 = vpop.f32.mrf.mxu0
      %1604 = vmatprep.mubr.bf16.mxu0 0
      %1605 = vmatmul.mubr.bf16.gmra.mxu0 %v1442
      %v1606 = vpop.f32.mrf.mxu0
      %v1607 = vadd.f32 %v1382, %v1606
      %v1608 = vpop.f32.mrf.mxu0
      %v1609 = vpop.f32.mrf.mxu0
      %v1610 = vadd.f32 %v1382, %v1609
      %v1611 = vpop.f32.mrf.mxu0
      %1612 = vmatprep.mubr.bf16.mxu0 0
      %1613 = vmatmul.mubr.bf16.gmra.mxu0 %v1444
      %v1614 = vpop.f32.mrf.mxu0
      %v1615 = vadd.f32 %v1382, %v1614
      %v1616 = vpop.f32.mrf.mxu0
      %v1617 = vpop.f32.mrf.mxu0
      %v1618 = vadd.f32 %v1382, %v1617
      %v1619 = vpop.f32.mrf.mxu0
      %1620 = vmatprep.mubr.bf16.mxu0 0
      %1621 = vmatmul.mubr.bf16.gmra.mxu0 %v1446
      %v1622 = vpop.f32.mrf.mxu0
      %v1623 = vadd.f32 %v1382, %v1622
      %v1624 = vpop.f32.mrf.mxu0
      %v1625 = vpop.f32.mrf.mxu0
      %v1626 = vadd.f32 %v1382, %v1625
      %v1627 = vpop.f32.mrf.mxu0
      %1628 = vdwg.mxu0
      %v1629 = vmax.f32 %v1487, 0.0
      %v1630 = vmax.f32 %v1490, 0.0
      %v1631 = vmax.f32 %v1495, 0.0
      %v1632 = vmax.f32 %v1498, 0.0
      %v1633 = vmax.f32 %v1503, 0.0
      %v1634 = vmax.f32 %v1506, 0.0
      %v1635 = vmax.f32 %v1511, 0.0
      %v1636 = vmax.f32 %v1514, 0.0
      %v1637 = vmax.f32 %v1519, 0.0
      %v1638 = vmax.f32 %v1522, 0.0
      %v1639 = vmax.f32 %v1527, 0.0
      %v1640 = vmax.f32 %v1530, 0.0
      %v1641 = vmax.f32 %v1535, 0.0
      %v1642 = vmax.f32 %v1538, 0.0
      %v1643 = vmax.f32 %v1543, 0.0
      %v1644 = vmax.f32 %v1546, 0.0
      %v1645 = vmax.f32 %v1551, 0.0
      %v1646 = vmax.f32 %v1554, 0.0
      %v1647 = vmax.f32 %v1559, 0.0
      %v1648 = vmax.f32 %v1562, 0.0
      %v1649 = vmax.f32 %v1567, 0.0
      %v1650 = vmax.f32 %v1570, 0.0
      %v1651 = vmax.f32 %v1575, 0.0
      %v1652 = vmax.f32 %v1578, 0.0
      %v1653 = vmax.f32 %v1583, 0.0
      %v1654 = vmax.f32 %v1586, 0.0
      %v1655 = vmax.f32 %v1591, 0.0
      %v1656 = vmax.f32 %v1594, 0.0
      %v1657 = vmax.f32 %v1599, 0.0
      %v1658 = vmax.f32 %v1602, 0.0
      %v1659 = vmax.f32 %v1607, 0.0
      %v1660 = vmax.f32 %v1610, 0.0
      %v1661 = vmax.f32 %v1615, 0.0
      %v1662 = vmax.f32 %v1618, 0.0
      %v1663 = vmax.f32 %v1623, 0.0
      %v1664 = vmax.f32 %v1626, 0.0
      %v1701 = vcombine.high %v1629, %v1629
      %v1703 = vunpack.c.l.s4 1983009808
      %v1704 = vunpack.c.0.s8 %v1703
      %v1705 = vlaneseq
      %v1706 = vshrl.u32 %v1705, 7
      %v1707 = vsub.s32 %v1704, %v1706
      %v1708 = vrot.slane %v1629, %v1707
      %v1710 = vunpack.c.l.s4 1983009808
      %v1711 = vunpack.c.0.s8 %v1710
      %v1712 = vlaneseq
      %v1713 = vshrl.u32 %v1712, 7
      %v1714 = vsub.s32 %v1711, %v1713
      %v1715 = vrot.slane %v1701, %v1714
      %v1716 = vcombine.high %v1708, %v1708
      %v1717 = vcombine.high %v1715, %v1715
      %v1718 = vcombine.high %v1630, %v1630
      %v1720 = vunpack.c.l.s4 1983009808
      %v1721 = vunpack.c.0.s8 %v1720
      %v1722 = vlaneseq
      %v1723 = vshrl.u32 %v1722, 7
      %v1724 = vsub.s32 %v1721, %v1723
      %v1725 = vrot.slane %v1630, %v1724
      %v1727 = vunpack.c.l.s4 1983009808
      %v1728 = vunpack.c.0.s8 %v1727
      %v1729 = vlaneseq
      %v1730 = vshrl.u32 %v1729, 7
      %v1731 = vsub.s32 %v1728, %v1730
      %v1732 = vrot.slane %v1718, %v1731
      %v1733 = vcombine.high %v1725, %v1725
      %v1734 = vcombine.high %v1732, %v1732
      %v1735 = vcombine.high %v1631, %v1631
      %v1737 = vunpack.c.l.s4 1983009808
      %v1738 = vunpack.c.0.s8 %v1737
      %v1739 = vlaneseq
      %v1740 = vshrl.u32 %v1739, 7
      %v1741 = vsub.s32 %v1738, %v1740
      %v1742 = vrot.slane %v1631, %v1741
      %v1744 = vunpack.c.l.s4 1983009808
      %v1745 = vunpack.c.0.s8 %v1744
      %v1746 = vlaneseq
      %v1747 = vshrl.u32 %v1746, 7
      %v1748 = vsub.s32 %v1745, %v1747
      %v1749 = vrot.slane %v1735, %v1748
      %v1750 = vcombine.high %v1742, %v1742
      %v1751 = vcombine.high %v1749, %v1749
      %v1752 = vcombine.high %v1632, %v1632
      %v1754 = vunpack.c.l.s4 1983009808
      %v1755 = vunpack.c.0.s8 %v1754
      %v1756 = vlaneseq
      %v1757 = vshrl.u32 %v1756, 7
      %v1758 = vsub.s32 %v1755, %v1757
      %v1759 = vrot.slane %v1632, %v1758
      %v1761 = vunpack.c.l.s4 1983009808
      %v1762 = vunpack.c.0.s8 %v1761
      %v1763 = vlaneseq
      %v1764 = vshrl.u32 %v1763, 7
      %v1765 = vsub.s32 %v1762, %v1764
      %v1766 = vrot.slane %v1752, %v1765
      %v1767 = vcombine.high %v1759, %v1759
      %v1768 = vcombine.high %v1766, %v1766
      %v1769 = vcombine.high %v1633, %v1633
      %v1771 = vunpack.c.l.s4 1983009808
      %v1772 = vunpack.c.0.s8 %v1771
      %v1773 = vlaneseq
      %v1774 = vshrl.u32 %v1773, 7
      %v1775 = vsub.s32 %v1772, %v1774
      %v1776 = vrot.slane %v1633, %v1775
      %v1778 = vunpack.c.l.s4 1983009808
      %v1779 = vunpack.c.0.s8 %v1778
      %v1780 = vlaneseq
      %v1781 = vshrl.u32 %v1780, 7
      %v1782 = vsub.s32 %v1779, %v1781
      %v1783 = vrot.slane %v1769, %v1782
      %v1784 = vcombine.high %v1783, %v1783
      %v1785 = vcombine.high %v1634, %v1634
      %v1787 = vunpack.c.l.s4 1983009808
      %v1788 = vunpack.c.0.s8 %v1787
      %v1789 = vlaneseq
      %v1790 = vshrl.u32 %v1789, 7
      %v1791 = vsub.s32 %v1788, %v1790
      %v1792 = vrot.slane %v1634, %v1791
      %v1794 = vunpack.c.l.s4 1983009808
      %v1795 = vunpack.c.0.s8 %v1794
      %v1796 = vlaneseq
      %v1797 = vshrl.u32 %v1796, 7
      %v1798 = vsub.s32 %v1795, %v1797
      %v1799 = vrot.slane %v1785, %v1798
      %v1800 = vcombine.high %v1792, %v1792
      %v1801 = vcombine.high %v1799, %v1799
      %v1802 = vcombine.high %v1635, %v1635
      %v1804 = vunpack.c.l.s4 1983009808
      %v1805 = vunpack.c.0.s8 %v1804
      %v1806 = vlaneseq
      %v1807 = vshrl.u32 %v1806, 7
      %v1808 = vsub.s32 %v1805, %v1807
      %v1809 = vrot.slane %v1635, %v1808
      %v1811 = vunpack.c.l.s4 1983009808
      %v1812 = vunpack.c.0.s8 %v1811
      %v1813 = vlaneseq
      %v1814 = vshrl.u32 %v1813, 7
      %v1815 = vsub.s32 %v1812, %v1814
      %v1816 = vrot.slane %v1802, %v1815
      %v1817 = vcombine.high %v1809, %v1809
      %v1818 = vcombine.high %v1816, %v1816
      %v1819 = vcombine.high %v1636, %v1636
      %v1821 = vunpack.c.l.s4 1983009808
      %v1822 = vunpack.c.0.s8 %v1821
      %v1823 = vlaneseq
      %v1824 = vshrl.u32 %v1823, 7
      %v1825 = vsub.s32 %v1822, %v1824
      %v1826 = vrot.slane %v1636, %v1825
      %v1828 = vunpack.c.l.s4 1983009808
      %v1829 = vunpack.c.0.s8 %v1828
      %v1830 = vlaneseq
      %v1831 = vshrl.u32 %v1830, 7
      %v1832 = vsub.s32 %v1829, %v1831
      %v1833 = vrot.slane %v1819, %v1832
      %v1834 = vcombine.high %v1826, %v1826
      %v1835 = vcombine.high %v1833, %v1833
      %v1836 = vcombine.high %v1637, %v1637
      %v1838 = vunpack.c.l.s4 1983009808
      %v1839 = vunpack.c.0.s8 %v1838
      %v1840 = vlaneseq
      %v1841 = vshrl.u32 %v1840, 7
      %v1842 = vsub.s32 %v1839, %v1841
      %v1843 = vrot.slane %v1637, %v1842
      %v1845 = vunpack.c.l.s4 1983009808
      %v1846 = vunpack.c.0.s8 %v1845
      %v1847 = vlaneseq
      %v1848 = vshrl.u32 %v1847, 7
      %v1849 = vsub.s32 %v1846, %v1848
      %v1850 = vrot.slane %v1836, %v1849
      %v1851 = vcombine.high %v1843, %v1843
      %v1852 = vcombine.high %v1638, %v1638
      %v1854 = vunpack.c.l.s4 1983009808
      %v1855 = vunpack.c.0.s8 %v1854
      %v1856 = vlaneseq
      %v1857 = vshrl.u32 %v1856, 7
      %v1858 = vsub.s32 %v1855, %v1857
      %v1859 = vrot.slane %v1638, %v1858
      %v1861 = vunpack.c.l.s4 1983009808
      %v1862 = vunpack.c.0.s8 %v1861
      %v1863 = vlaneseq
      %v1864 = vshrl.u32 %v1863, 7
      %v1865 = vsub.s32 %v1862, %v1864
      %v1866 = vrot.slane %v1852, %v1865
      %v1867 = vcombine.high %v1859, %v1859
      %v1868 = vcombine.high %v1866, %v1866
      %v1869 = vcombine.high %v1639, %v1639
      %v1871 = vunpack.c.l.s4 1983009808
      %v1872 = vunpack.c.0.s8 %v1871
      %v1873 = vlaneseq
      %v1874 = vshrl.u32 %v1873, 7
      %v1875 = vsub.s32 %v1872, %v1874
      %v1876 = vrot.slane %v1639, %v1875
      %v1878 = vunpack.c.l.s4 1983009808
      %v1879 = vunpack.c.0.s8 %v1878
      %v1880 = vlaneseq
      %v1881 = vshrl.u32 %v1880, 7
      %v1882 = vsub.s32 %v1879, %v1881
      %v1883 = vrot.slane %v1869, %v1882
      %v1884 = vcombine.high %v1876, %v1876
      %v1885 = vcombine.high %v1883, %v1883
      %v1886 = vcombine.high %v1640, %v1640
      %v1888 = vunpack.c.l.s4 1983009808
      %v1889 = vunpack.c.0.s8 %v1888
      %v1890 = vlaneseq
      %v1891 = vshrl.u32 %v1890, 7
      %v1892 = vsub.s32 %v1889, %v1891
      %v1893 = vrot.slane %v1640, %v1892
      %v1895 = vunpack.c.l.s4 1983009808
      %v1896 = vunpack.c.0.s8 %v1895
      %v1897 = vlaneseq
      %v1898 = vshrl.u32 %v1897, 7
      %v1899 = vsub.s32 %v1896, %v1898
      %v1900 = vrot.slane %v1886, %v1899
      %v1901 = vcombine.high %v1893, %v1893
      %v1902 = vcombine.high %v1900, %v1900
      %v1903 = vcombine.high %v1641, %v1641
      %v1905 = vunpack.c.l.s4 1983009808
      %v1906 = vunpack.c.0.s8 %v1905
      %v1907 = vlaneseq
      %v1908 = vshrl.u32 %v1907, 7
      %v1909 = vsub.s32 %v1906, %v1908
      %v1910 = vrot.slane %v1641, %v1909
      %v1912 = vunpack.c.l.s4 1983009808
      %v1913 = vunpack.c.0.s8 %v1912
      %v1914 = vlaneseq
      %v1915 = vshrl.u32 %v1914, 7
      %v1916 = vsub.s32 %v1913, %v1915
      %v1917 = vrot.slane %v1903, %v1916
      %v1918 = vcombine.high %v1910, %v1910
      %v1919 = vcombine.high %v1917, %v1917
      %v1920 = vcombine.high %v1642, %v1642
      %v1922 = vunpack.c.l.s4 1983009808
      %v1923 = vunpack.c.0.s8 %v1922
      %v1924 = vlaneseq
      %v1925 = vshrl.u32 %v1924, 7
      %v1926 = vsub.s32 %v1923, %v1925
      %v1927 = vrot.slane %v1642, %v1926
      %v1929 = vunpack.c.l.s4 1983009808
      %v1930 = vunpack.c.0.s8 %v1929
      %v1931 = vlaneseq
      %v1932 = vshrl.u32 %v1931, 7
      %v1933 = vsub.s32 %v1930, %v1932
      %v1934 = vrot.slane %v1920, %v1933
      %v1935 = vcombine.high %v1934, %v1934
      %v1936 = vcombine.high %v1643, %v1643
      %v1938 = vunpack.c.l.s4 1983009808
      %v1939 = vunpack.c.0.s8 %v1938
      %v1940 = vlaneseq
      %v1941 = vshrl.u32 %v1940, 7
      %v1942 = vsub.s32 %v1939, %v1941
      %v1943 = vrot.slane %v1643, %v1942
      %v1945 = vunpack.c.l.s4 1983009808
      %v1946 = vunpack.c.0.s8 %v1945
      %v1947 = vlaneseq
      %v1948 = vshrl.u32 %v1947, 7
      %v1949 = vsub.s32 %v1946, %v1948
      %v1950 = vrot.slane %v1936, %v1949
      %v1951 = vcombine.high %v1943, %v1943
      %v1952 = vcombine.high %v1950, %v1950
      %v1953 = vcombine.high %v1644, %v1644
      %v1955 = vunpack.c.l.s4 1983009808
      %v1956 = vunpack.c.0.s8 %v1955
      %v1957 = vlaneseq
      %v1958 = vshrl.u32 %v1957, 7
      %v1959 = vsub.s32 %v1956, %v1958
      %v1960 = vrot.slane %v1644, %v1959
      %v1962 = vunpack.c.l.s4 1983009808
      %v1963 = vunpack.c.0.s8 %v1962
      %v1964 = vlaneseq
      %v1965 = vshrl.u32 %v1964, 7
      %v1966 = vsub.s32 %v1963, %v1965
      %v1967 = vrot.slane %v1953, %v1966
      %v1968 = vcombine.high %v1960, %v1960
      %v1969 = vcombine.high %v1967, %v1967
      %v1970 = vcombine.high %v1645, %v1645
      %v1972 = vunpack.c.l.s4 1983009808
      %v1973 = vunpack.c.0.s8 %v1972
      %v1974 = vlaneseq
      %v1975 = vshrl.u32 %v1974, 7
      %v1976 = vsub.s32 %v1973, %v1975
      %v1977 = vrot.slane %v1645, %v1976
      %v1979 = vunpack.c.l.s4 1983009808
      %v1980 = vunpack.c.0.s8 %v1979
      %v1981 = vlaneseq
      %v1982 = vshrl.u32 %v1981, 7
      %v1983 = vsub.s32 %v1980, %v1982
      %v1984 = vrot.slane %v1970, %v1983
      %v1985 = vcombine.high %v1977, %v1977
      %v1986 = vcombine.high %v1984, %v1984
      %v1987 = vcombine.high %v1646, %v1646
      %v1989 = vunpack.c.l.s4 1983009808
      %v1990 = vunpack.c.0.s8 %v1989
      %v1991 = vlaneseq
      %v1992 = vshrl.u32 %v1991, 7
      %v1993 = vsub.s32 %v1990, %v1992
      %v1994 = vrot.slane %v1646, %v1993
      %v1996 = vunpack.c.l.s4 1983009808
      %v1997 = vunpack.c.0.s8 %v1996
      %v1998 = vlaneseq
      %v1999 = vshrl.u32 %v1998, 7
      %v2000 = vsub.s32 %v1997, %v1999
      %v2001 = vrot.slane %v1987, %v2000
      %v2002 = vcombine.high %v1994, %v1994
      %v2003 = vcombine.high %v1647, %v1647
      %v2005 = vunpack.c.l.s4 1983009808
      %v2006 = vunpack.c.0.s8 %v2005
      %v2007 = vlaneseq
      %v2008 = vshrl.u32 %v2007, 7
      %v2009 = vsub.s32 %v2006, %v2008
      %v2010 = vrot.slane %v1647, %v2009
      %v2012 = vunpack.c.l.s4 1983009808
      %v2013 = vunpack.c.0.s8 %v2012
      %v2014 = vlaneseq
      %v2015 = vshrl.u32 %v2014, 7
      %v2016 = vsub.s32 %v2013, %v2015
      %v2017 = vrot.slane %v2003, %v2016
      %v2018 = vcombine.high %v2010, %v2010
      %v2019 = vcombine.high %v2017, %v2017
      %v2020 = vcombine.high %v1648, %v1648
      %v2022 = vunpack.c.l.s4 1983009808
      %v2023 = vunpack.c.0.s8 %v2022
      %v2024 = vlaneseq
      %v2025 = vshrl.u32 %v2024, 7
      %v2026 = vsub.s32 %v2023, %v2025
      %v2027 = vrot.slane %v1648, %v2026
      %v2029 = vunpack.c.l.s4 1983009808
      %v2030 = vunpack.c.0.s8 %v2029
      %v2031 = vlaneseq
      %v2032 = vshrl.u32 %v2031, 7
      %v2033 = vsub.s32 %v2030, %v2032
      %v2034 = vrot.slane %v2020, %v2033
      %v2035 = vcombine.high %v2027, %v2027
      %v2036 = vcombine.high %v2034, %v2034
      %v2037 = vcombine.high %v1649, %v1649
      %v2039 = vunpack.c.l.s4 1983009808
      %v2040 = vunpack.c.0.s8 %v2039
      %v2041 = vlaneseq
      %v2042 = vshrl.u32 %v2041, 7
      %v2043 = vsub.s32 %v2040, %v2042
      %v2044 = vrot.slane %v1649, %v2043
      %v2046 = vunpack.c.l.s4 1983009808
      %v2047 = vunpack.c.0.s8 %v2046
      %v2048 = vlaneseq
      %v2049 = vshrl.u32 %v2048, 7
      %v2050 = vsub.s32 %v2047, %v2049
      %v2051 = vrot.slane %v2037, %v2050
      %v2052 = vcombine.high %v2044, %v2044
      %v2053 = vcombine.high %v2051, %v2051
      %v2054 = vcombine.high %v1650, %v1650
      %v2056 = vunpack.c.l.s4 1983009808
      %v2057 = vunpack.c.0.s8 %v2056
      %v2058 = vlaneseq
      %v2059 = vshrl.u32 %v2058, 7
      %v2060 = vsub.s32 %v2057, %v2059
      %v2061 = vrot.slane %v1650, %v2060
      %v2063 = vunpack.c.l.s4 1983009808
      %v2064 = vunpack.c.0.s8 %v2063
      %v2065 = vlaneseq
      %v2066 = vshrl.u32 %v2065, 7
      %v2067 = vsub.s32 %v2064, %v2066
      %v2068 = vrot.slane %v2054, %v2067
      %v2069 = vcombine.high %v2061, %v2061
      %v2070 = vcombine.high %v2068, %v2068
      %v2071 = vcombine.high %v1651, %v1651
      %v2073 = vunpack.c.l.s4 1983009808
      %v2074 = vunpack.c.0.s8 %v2073
      %v2075 = vlaneseq
      %v2076 = vshrl.u32 %v2075, 7
      %v2077 = vsub.s32 %v2074, %v2076
      %v2078 = vrot.slane %v1651, %v2077
      %v2080 = vunpack.c.l.s4 1983009808
      %v2081 = vunpack.c.0.s8 %v2080
      %v2082 = vlaneseq
      %v2083 = vshrl.u32 %v2082, 7
      %v2084 = vsub.s32 %v2081, %v2083
      %v2085 = vrot.slane %v2071, %v2084
      %v2086 = vcombine.high %v2085, %v2085
      %v2087 = vcombine.high %v1652, %v1652
      %v2089 = vunpack.c.l.s4 1983009808
      %v2090 = vunpack.c.0.s8 %v2089
      %v2091 = vlaneseq
      %v2092 = vshrl.u32 %v2091, 7
      %v2093 = vsub.s32 %v2090, %v2092
      %v2094 = vrot.slane %v1652, %v2093
      %v2096 = vunpack.c.l.s4 1983009808
      %v2097 = vunpack.c.0.s8 %v2096
      %v2098 = vlaneseq
      %v2099 = vshrl.u32 %v2098, 7
      %v2100 = vsub.s32 %v2097, %v2099
      %v2101 = vrot.slane %v2087, %v2100
      %v2102 = vcombine.high %v2094, %v2094
      %v2103 = vcombine.high %v2101, %v2101
      %v2104 = vcombine.high %v1653, %v1653
      %v2106 = vunpack.c.l.s4 1983009808
      %v2107 = vunpack.c.0.s8 %v2106
      %v2108 = vlaneseq
      %v2109 = vshrl.u32 %v2108, 7
      %v2110 = vsub.s32 %v2107, %v2109
      %v2111 = vrot.slane %v1653, %v2110
      %v2113 = vunpack.c.l.s4 1983009808
      %v2114 = vunpack.c.0.s8 %v2113
      %v2115 = vlaneseq
      %v2116 = vshrl.u32 %v2115, 7
      %v2117 = vsub.s32 %v2114, %v2116
      %v2118 = vrot.slane %v2104, %v2117
      %v2119 = vcombine.high %v2111, %v2111
      %v2120 = vcombine.high %v2118, %v2118
      %v2121 = vcombine.high %v1654, %v1654
      %v2123 = vunpack.c.l.s4 1983009808
      %v2124 = vunpack.c.0.s8 %v2123
      %v2125 = vlaneseq
      %v2126 = vshrl.u32 %v2125, 7
      %v2127 = vsub.s32 %v2124, %v2126
      %v2128 = vrot.slane %v1654, %v2127
      %v2130 = vunpack.c.l.s4 1983009808
      %v2131 = vunpack.c.0.s8 %v2130
      %v2132 = vlaneseq
      %v2133 = vshrl.u32 %v2132, 7
      %v2134 = vsub.s32 %v2131, %v2133
      %v2135 = vrot.slane %v2121, %v2134
      %v2136 = vcombine.high %v2128, %v2128
      %v2137 = vcombine.high %v2135, %v2135
      %v2138 = vcombine.high %v1655, %v1655
      %v2140 = vunpack.c.l.s4 1983009808
      %v2141 = vunpack.c.0.s8 %v2140
      %v2142 = vlaneseq
      %v2143 = vshrl.u32 %v2142, 7
      %v2144 = vsub.s32 %v2141, %v2143
      %v2145 = vrot.slane %v1655, %v2144
      %v2147 = vunpack.c.l.s4 1983009808
      %v2148 = vunpack.c.0.s8 %v2147
      %v2149 = vlaneseq
      %v2150 = vshrl.u32 %v2149, 7
      %v2151 = vsub.s32 %v2148, %v2150
      %v2152 = vrot.slane %v2138, %v2151
      %v2153 = vcombine.high %v2145, %v2145
      %v2154 = vcombine.high %v1656, %v1656
      %v2156 = vunpack.c.l.s4 1983009808
      %v2157 = vunpack.c.0.s8 %v2156
      %v2158 = vlaneseq
      %v2159 = vshrl.u32 %v2158, 7
      %v2160 = vsub.s32 %v2157, %v2159
      %v2161 = vrot.slane %v1656, %v2160
      %v2163 = vunpack.c.l.s4 1983009808
      %v2164 = vunpack.c.0.s8 %v2163
      %v2165 = vlaneseq
      %v2166 = vshrl.u32 %v2165, 7
      %v2167 = vsub.s32 %v2164, %v2166
      %v2168 = vrot.slane %v2154, %v2167
      %v2169 = vcombine.high %v2161, %v2161
      %v2170 = vcombine.high %v2168, %v2168
      %v2171 = vcombine.high %v1657, %v1657
      %v2173 = vunpack.c.l.s4 1983009808
      %v2174 = vunpack.c.0.s8 %v2173
      %v2175 = vlaneseq
      %v2176 = vshrl.u32 %v2175, 7
      %v2177 = vsub.s32 %v2174, %v2176
      %v2178 = vrot.slane %v1657, %v2177
      %v2180 = vunpack.c.l.s4 1983009808
      %v2181 = vunpack.c.0.s8 %v2180
      %v2182 = vlaneseq
      %v2183 = vshrl.u32 %v2182, 7
      %v2184 = vsub.s32 %v2181, %v2183
      %v2185 = vrot.slane %v2171, %v2184
      %v2186 = vcombine.high %v2178, %v2178
      %v2187 = vcombine.high %v2185, %v2185
      %v2188 = vcombine.high %v1658, %v1658
      %v2190 = vunpack.c.l.s4 1983009808
      %v2191 = vunpack.c.0.s8 %v2190
      %v2192 = vlaneseq
      %v2193 = vshrl.u32 %v2192, 7
      %v2194 = vsub.s32 %v2191, %v2193
      %v2195 = vrot.slane %v1658, %v2194
      %v2197 = vunpack.c.l.s4 1983009808
      %v2198 = vunpack.c.0.s8 %v2197
      %v2199 = vlaneseq
      %v2200 = vshrl.u32 %v2199, 7
      %v2201 = vsub.s32 %v2198, %v2200
      %v2202 = vrot.slane %v2188, %v2201
      %v2203 = vcombine.high %v2195, %v2195
      %v2204 = vcombine.high %v2202, %v2202
      %v2205 = vcombine.high %v1659, %v1659
      %v2207 = vunpack.c.l.s4 1983009808
      %v2208 = vunpack.c.0.s8 %v2207
      %v2209 = vlaneseq
      %v2210 = vshrl.u32 %v2209, 7
      %v2211 = vsub.s32 %v2208, %v2210
      %v2212 = vrot.slane %v1659, %v2211
      %v2214 = vunpack.c.l.s4 1983009808
      %v2215 = vunpack.c.0.s8 %v2214
      %v2216 = vlaneseq
      %v2217 = vshrl.u32 %v2216, 7
      %v2218 = vsub.s32 %v2215, %v2217
      %v2219 = vrot.slane %v2205, %v2218
      %v2220 = vcombine.high %v2212, %v2212
      %v2221 = vcombine.high %v2219, %v2219
      %v2222 = vcombine.high %v1660, %v1660
      %v2224 = vunpack.c.l.s4 1983009808
      %v2225 = vunpack.c.0.s8 %v2224
      %v2226 = vlaneseq
      %v2227 = vshrl.u32 %v2226, 7
      %v2228 = vsub.s32 %v2225, %v2227
      %v2229 = vrot.slane %v1660, %v2228
      %v2231 = vunpack.c.l.s4 1983009808
      %v2232 = vunpack.c.0.s8 %v2231
      %v2233 = vlaneseq
      %v2234 = vshrl.u32 %v2233, 7
      %v2235 = vsub.s32 %v2232, %v2234
      %v2236 = vrot.slane %v2222, %v2235
      %v2237 = vcombine.high %v2236, %v2236
      %v2238 = vcombine.high %v1661, %v1661
      %v2240 = vunpack.c.l.s4 1983009808
      %v2241 = vunpack.c.0.s8 %v2240
      %v2242 = vlaneseq
      %v2243 = vshrl.u32 %v2242, 7
      %v2244 = vsub.s32 %v2241, %v2243
      %v2245 = vrot.slane %v1661, %v2244
      %v2247 = vunpack.c.l.s4 1983009808
      %v2248 = vunpack.c.0.s8 %v2247
      %v2249 = vlaneseq
      %v2250 = vshrl.u32 %v2249, 7
      %v2251 = vsub.s32 %v2248, %v2250
      %v2252 = vrot.slane %v2238, %v2251
      %v2253 = vcombine.high %v2245, %v2245
      %v2254 = vcombine.high %v2252, %v2252
      %v2255 = vcombine.high %v1662, %v1662
      %v2257 = vunpack.c.l.s4 1983009808
      %v2258 = vunpack.c.0.s8 %v2257
      %v2259 = vlaneseq
      %v2260 = vshrl.u32 %v2259, 7
      %v2261 = vsub.s32 %v2258, %v2260
      %v2262 = vrot.slane %v1662, %v2261
      %v2264 = vunpack.c.l.s4 1983009808
      %v2265 = vunpack.c.0.s8 %v2264
      %v2266 = vlaneseq
      %v2267 = vshrl.u32 %v2266, 7
      %v2268 = vsub.s32 %v2265, %v2267
      %v2269 = vrot.slane %v2255, %v2268
      %v2270 = vcombine.high %v2262, %v2262
      %v2271 = vcombine.high %v2269, %v2269
      %v2272 = vcombine.high %v1663, %v1663
      %v2274 = vunpack.c.l.s4 1983009808
      %v2275 = vunpack.c.0.s8 %v2274
      %v2276 = vlaneseq
      %v2277 = vshrl.u32 %v2276, 7
      %v2278 = vsub.s32 %v2275, %v2277
      %v2279 = vrot.slane %v1663, %v2278
      %v2281 = vunpack.c.l.s4 1983009808
      %v2282 = vunpack.c.0.s8 %v2281
      %v2283 = vlaneseq
      %v2284 = vshrl.u32 %v2283, 7
      %v2285 = vsub.s32 %v2282, %v2284
      %v2286 = vrot.slane %v2272, %v2285
      %v2287 = vcombine.high %v2279, %v2279
      %v2288 = vcombine.high %v2286, %v2286
      %v2289 = vcombine.high %v1664, %v1664
      %v2291 = vunpack.c.l.s4 1983009808
      %v2292 = vunpack.c.0.s8 %v2291
      %v2293 = vlaneseq
      %v2294 = vshrl.u32 %v2293, 7
      %v2295 = vsub.s32 %v2292, %v2294
      %v2296 = vrot.slane %v1664, %v2295
      %v2298 = vunpack.c.l.s4 1983009808
      %v2299 = vunpack.c.0.s8 %v2298
      %v2300 = vlaneseq
      %v2301 = vshrl.u32 %v2300, 7
      %v2302 = vsub.s32 %v2299, %v2301
      %v2303 = vrot.slane %v2289, %v2302
      %v2304 = vcombine.high %v2296, %v2296
      %v2433 = vrot.slane %v1708, 7
      %v2434 = vrot.slane %v2433, 2
      %v2435 = vrot.slane %v1716, 7
      %v2436 = vrot.slane %v2435, 2
      %v2437 = vrot.slane %v1715, 7
      %v2438 = vrot.slane %v2437, 2
      %v2439 = vrot.slane %v1717, 7
      %v2440 = vrot.slane %v2439, 2
      %v2441 = vrot.slane %v1725, 7
      %v2442 = vrot.slane %v2441, 2
      %v2443 = vrot.slane %v1733, 7
      %v2444 = vrot.slane %v2443, 2
      %v2445 = vrot.slane %v1732, 7
      %v2446 = vrot.slane %v2445, 2
      %v2447 = vrot.slane %v1734, 7
      %v2448 = vrot.slane %v2447, 2
      %v2449 = vrot.slane %v1750, 7
      %v2450 = vrot.slane %v2449, 2
      %v2451 = vrot.slane %v1749, 7
      %v2452 = vrot.slane %v2451, 2
      %v2453 = vrot.slane %v1751, 7
      %v2454 = vrot.slane %v2453, 2
      %v2455 = vrot.slane %v1759, 7
      %v2456 = vrot.slane %v2455, 2
      %v2457 = vrot.slane %v1767, 7
      %v2458 = vrot.slane %v2457, 2
      %v2459 = vrot.slane %v1766, 7
      %v2460 = vrot.slane %v2459, 2
      %v2461 = vrot.slane %v1768, 7
      %v2462 = vrot.slane %v2461, 2
      %v2463 = vrot.slane %v1776, 7
      %v2464 = vrot.slane %v2463, 2
      %v2465 = vrot.slane %v1783, 7
      %v2466 = vrot.slane %v2465, 2
      %v2467 = vrot.slane %v1784, 7
      %v2468 = vrot.slane %v2467, 2
      %v2469 = vrot.slane %v1792, 7
      %v2470 = vrot.slane %v2469, 2
      %v2471 = vrot.slane %v1800, 7
      %v2472 = vrot.slane %v2471, 2
      %v2473 = vrot.slane %v1799, 7
      %v2474 = vrot.slane %v2473, 2
      %v2475 = vrot.slane %v1801, 7
      %v2476 = vrot.slane %v2475, 2
      %v2477 = vrot.slane %v1809, 7
      %v2478 = vrot.slane %v2477, 2
      %v2479 = vrot.slane %v1817, 7
      %v2480 = vrot.slane %v2479, 2
      %v2481 = vrot.slane %v1818, 7
      %v2482 = vrot.slane %v2481, 2
      %v2483 = vrot.slane %v1826, 7
      %v2484 = vrot.slane %v2483, 2
      %v2485 = vrot.slane %v1834, 7
      %v2486 = vrot.slane %v2485, 2
      %v2487 = vrot.slane %v1833, 7
      %v2488 = vrot.slane %v2487, 2
      %v2489 = vrot.slane %v1835, 7
      %v2490 = vrot.slane %v2489, 2
      %v2491 = vrot.slane %v1843, 7
      %v2492 = vrot.slane %v2491, 2
      %v2493 = vrot.slane %v1851, 7
      %v2494 = vrot.slane %v2493, 2
      %v2495 = vrot.slane %v1850, 7
      %v2496 = vrot.slane %v2495, 2
      %v2497 = vrot.slane %v1859, 7
      %v2498 = vrot.slane %v2497, 2
      %v2499 = vrot.slane %v1867, 7
      %v2500 = vrot.slane %v2499, 2
      %v2501 = vrot.slane %v1866, 7
      %v2502 = vrot.slane %v2501, 2
      %v2503 = vrot.slane %v1868, 7
      %v2504 = vrot.slane %v2503, 2
      %v2505 = vrot.slane %v1876, 7
      %v2506 = vrot.slane %v2505, 2
      %v2507 = vrot.slane %v1884, 7
      %v2508 = vrot.slane %v2507, 2
      %v2509 = vrot.slane %v1883, 7
      %v2510 = vrot.slane %v2509, 2
      %v2511 = vrot.slane %v1885, 7
      %v2512 = vrot.slane %v2511, 2
      %v2513 = vrot.slane %v1901, 7
      %v2514 = vrot.slane %v2513, 2
      %v2515 = vrot.slane %v1900, 7
      %v2516 = vrot.slane %v2515, 2
      %v2517 = vrot.slane %v1902, 7
      %v2518 = vrot.slane %v2517, 2
      %v2519 = vrot.slane %v1910, 7
      %v2520 = vrot.slane %v2519, 2
      %v2521 = vrot.slane %v1918, 7
      %v2522 = vrot.slane %v2521, 2
      %v2523 = vrot.slane %v1917, 7
      %v2524 = vrot.slane %v2523, 2
      %v2525 = vrot.slane %v1919, 7
      %v2526 = vrot.slane %v2525, 2
      %v2527 = vrot.slane %v1927, 7
      %v2528 = vrot.slane %v2527, 2
      %v2529 = vrot.slane %v1934, 7
      %v2530 = vrot.slane %v2529, 2
      %v2531 = vrot.slane %v1935, 7
      %v2532 = vrot.slane %v2531, 2
      %v2533 = vrot.slane %v1943, 7
      %v2534 = vrot.slane %v2533, 2
      %v2535 = vrot.slane %v1951, 7
      %v2536 = vrot.slane %v2535, 2
      %v2537 = vrot.slane %v1950, 7
      %v2538 = vrot.slane %v2537, 2
      %v2539 = vrot.slane %v1952, 7
      %v2540 = vrot.slane %v2539, 2
      %v2541 = vrot.slane %v1960, 7
      %v2542 = vrot.slane %v2541, 2
      %v2543 = vrot.slane %v1968, 7
      %v2544 = vrot.slane %v2543, 2
      %v2545 = vrot.slane %v1969, 7
      %v2546 = vrot.slane %v2545, 2
      %v2547 = vrot.slane %v1977, 7
      %v2548 = vrot.slane %v2547, 2
      %v2549 = vrot.slane %v1985, 7
      %v2550 = vrot.slane %v2549, 2
      %v2551 = vrot.slane %v1984, 7
      %v2552 = vrot.slane %v2551, 2
      %v2553 = vrot.slane %v1986, 7
      %v2554 = vrot.slane %v2553, 2
      %v2555 = vrot.slane %v1994, 7
      %v2556 = vrot.slane %v2555, 2
      %v2557 = vrot.slane %v2002, 7
      %v2558 = vrot.slane %v2557, 2
      %v2559 = vrot.slane %v2001, 7
      %v2560 = vrot.slane %v2559, 2
      %v2561 = vrot.slane %v2010, 7
      %v2562 = vrot.slane %v2561, 2
      %v2563 = vrot.slane %v2018, 7
      %v2564 = vrot.slane %v2563, 2
      %v2565 = vrot.slane %v2017, 7
      %v2566 = vrot.slane %v2565, 2
      %v2567 = vrot.slane %v2019, 7
      %v2568 = vrot.slane %v2567, 2
      %v2569 = vrot.slane %v2027, 7
      %v2570 = vrot.slane %v2569, 2
      %v2571 = vrot.slane %v2035, 7
      %v2572 = vrot.slane %v2571, 2
      %v2573 = vrot.slane %v2034, 7
      %v2574 = vrot.slane %v2573, 2
      %v2575 = vrot.slane %v2036, 7
      %v2576 = vrot.slane %v2575, 2
      %v2577 = vrot.slane %v2052, 7
      %v2578 = vrot.slane %v2577, 2
      %v2579 = vrot.slane %v2051, 7
      %v2580 = vrot.slane %v2579, 2
      %v2581 = vrot.slane %v2053, 7
      %v2582 = vrot.slane %v2581, 2
      %v2583 = vrot.slane %v2061, 7
      %v2584 = vrot.slane %v2583, 2
      %v2585 = vrot.slane %v2069, 7
      %v2586 = vrot.slane %v2585, 2
      %v2587 = vrot.slane %v2068, 7
      %v2588 = vrot.slane %v2587, 2
      %v2589 = vrot.slane %v2070, 7
      %v2590 = vrot.slane %v2589, 2
      %v2591 = vrot.slane %v2078, 7
      %v2592 = vrot.slane %v2591, 2
      %v2593 = vrot.slane %v2085, 7
      %v2594 = vrot.slane %v2593, 2
      %v2595 = vrot.slane %v2086, 7
      %v2596 = vrot.slane %v2595, 2
      %v2597 = vrot.slane %v2094, 7
      %v2598 = vrot.slane %v2597, 2
      %v2599 = vrot.slane %v2102, 7
      %v2600 = vrot.slane %v2599, 2
      %v2601 = vrot.slane %v2101, 7
      %v2602 = vrot.slane %v2601, 2
      %v2603 = vrot.slane %v2103, 7
      %v2604 = vrot.slane %v2603, 2
      %v2605 = vrot.slane %v2111, 7
      %v2606 = vrot.slane %v2605, 2
      %v2607 = vrot.slane %v2119, 7
      %v2608 = vrot.slane %v2607, 2
      %v2609 = vrot.slane %v2120, 7
      %v2610 = vrot.slane %v2609, 2
      %v2611 = vrot.slane %v2128, 7
      %v2612 = vrot.slane %v2611, 2
      %v2613 = vrot.slane %v2136, 7
      %v2614 = vrot.slane %v2613, 2
      %v2615 = vrot.slane %v2135, 7
      %v2616 = vrot.slane %v2615, 2
      %v2617 = vrot.slane %v2137, 7
      %v2618 = vrot.slane %v2617, 2
      %v2619 = vrot.slane %v2145, 7
      %v2620 = vrot.slane %v2619, 2
      %v2621 = vrot.slane %v2153, 7
      %v2622 = vrot.slane %v2621, 2
      %v2623 = vrot.slane %v2152, 7
      %v2624 = vrot.slane %v2623, 2
      %v2625 = vrot.slane %v2161, 7
      %v2626 = vrot.slane %v2625, 2
      %v2627 = vrot.slane %v2169, 7
      %v2628 = vrot.slane %v2627, 2
      %v2629 = vrot.slane %v2168, 7
      %v2630 = vrot.slane %v2629, 2
      %v2631 = vrot.slane %v2170, 7
      %v2632 = vrot.slane %v2631, 2
      %v2633 = vrot.slane %v2178, 7
      %v2634 = vrot.slane %v2633, 2
      %v2635 = vrot.slane %v2186, 7
      %v2636 = vrot.slane %v2635, 2
      %v2637 = vrot.slane %v2185, 7
      %v2638 = vrot.slane %v2637, 2
      %v2639 = vrot.slane %v2187, 7
      %v2640 = vrot.slane %v2639, 2
      %v2641 = vrot.slane %v2203, 7
      %v2642 = vrot.slane %v2641, 2
      %v2643 = vrot.slane %v2202, 7
      %v2644 = vrot.slane %v2643, 2
      %v2645 = vrot.slane %v2204, 7
      %v2646 = vrot.slane %v2645, 2
      %v2647 = vrot.slane %v2212, 7
      %v2648 = vrot.slane %v2647, 2
      %v2649 = vrot.slane %v2220, 7
      %v2650 = vrot.slane %v2649, 2
      %v2651 = vrot.slane %v2219, 7
      %v2652 = vrot.slane %v2651, 2
      %v2653 = vrot.slane %v2221, 7
      %v2654 = vrot.slane %v2653, 2
      %v2655 = vrot.slane %v2229, 7
      %v2656 = vrot.slane %v2655, 2
      %v2657 = vrot.slane %v2236, 7
      %v2658 = vrot.slane %v2657, 2
      %v2659 = vrot.slane %v2237, 7
      %v2660 = vrot.slane %v2659, 2
      %v2661 = vrot.slane %v2245, 7
      %v2662 = vrot.slane %v2661, 2
      %v2663 = vrot.slane %v2253, 7
      %v2664 = vrot.slane %v2663, 2
      %v2665 = vrot.slane %v2252, 7
      %v2666 = vrot.slane %v2665, 2
      %v2667 = vrot.slane %v2254, 7
      %v2668 = vrot.slane %v2667, 2
      %v2669 = vrot.slane %v2262, 7
      %v2670 = vrot.slane %v2669, 2
      %v2671 = vrot.slane %v2270, 7
      %v2672 = vrot.slane %v2671, 2
      %v2673 = vrot.slane %v2271, 7
      %v2674 = vrot.slane %v2673, 2
      %v2675 = vrot.slane %v2279, 7
      %v2676 = vrot.slane %v2675, 2
      %v2677 = vrot.slane %v2287, 7
      %v2678 = vrot.slane %v2677, 2
      %v2679 = vrot.slane %v2286, 7
      %v2680 = vrot.slane %v2679, 2
      %v2681 = vrot.slane %v2288, 7
      %v2682 = vrot.slane %v2681, 2
      %v2683 = vrot.slane %v2296, 7
      %v2684 = vrot.slane %v2683, 2
      %v2685 = vrot.slane %v2304, 7
      %v2686 = vrot.slane %v2685, 2
      %v2687 = vrot.slane %v2303, 7
      %v2688 = vrot.slane %v2687, 2
      %v2817 = vmax.f32 %v1708, %v2434
      %v2818 = vmax.f32 %v1716, %v2436
      %v2819 = vmax.f32 %v1715, %v2438
      %v2820 = vmax.f32 %v1717, %v2440
      %v2821 = vmax.f32 %v1725, %v2442
      %v2822 = vmax.f32 %v1733, %v2444
      %v2823 = vmax.f32 %v1732, %v2446
      %v2824 = vmax.f32 %v1734, %v2448
      %v2825 = vmax.f32 %v1750, %v2450
      %v2826 = vmax.f32 %v1749, %v2452
      %v2827 = vmax.f32 %v1751, %v2454
      %v2828 = vmax.f32 %v1759, %v2456
      %v2829 = vmax.f32 %v1767, %v2458
      %v2830 = vmax.f32 %v1766, %v2460
      %v2831 = vmax.f32 %v1768, %v2462
      %v2832 = vmax.f32 %v1776, %v2464
      %v2833 = vmax.f32 %v1783, %v2466
      %v2834 = vmax.f32 %v1784, %v2468
      %v2835 = vmax.f32 %v1792, %v2470
      %v2836 = vmax.f32 %v1800, %v2472
      %v2837 = vmax.f32 %v1799, %v2474
      %v2838 = vmax.f32 %v1801, %v2476
      %v2839 = vmax.f32 %v1809, %v2478
      %v2840 = vmax.f32 %v1817, %v2480
      %v2841 = vmax.f32 %v1818, %v2482
      %v2842 = vmax.f32 %v1826, %v2484
      %v2843 = vmax.f32 %v1834, %v2486
      %v2844 = vmax.f32 %v1833, %v2488
      %v2845 = vmax.f32 %v1835, %v2490
      %v2846 = vmax.f32 %v1843, %v2492
      %v2847 = vmax.f32 %v1851, %v2494
      %v2848 = vmax.f32 %v1850, %v2496
      %v2849 = vmax.f32 %v1859, %v2498
      %v2850 = vmax.f32 %v1867, %v2500
      %v2851 = vmax.f32 %v1866, %v2502
      %v2852 = vmax.f32 %v1868, %v2504
      %v2853 = vmax.f32 %v1876, %v2506
      %v2854 = vmax.f32 %v1884, %v2508
      %v2855 = vmax.f32 %v1883, %v2510
      %v2856 = vmax.f32 %v1885, %v2512
      %v2857 = vmax.f32 %v1901, %v2514
      %v2858 = vmax.f32 %v1900, %v2516
      %v2859 = vmax.f32 %v1902, %v2518
      %v2860 = vmax.f32 %v1910, %v2520
      %v2861 = vmax.f32 %v1918, %v2522
      %v2862 = vmax.f32 %v1917, %v2524
      %v2863 = vmax.f32 %v1919, %v2526
      %v2864 = vmax.f32 %v1927, %v2528
      %v2865 = vmax.f32 %v1934, %v2530
      %v2866 = vmax.f32 %v1935, %v2532
      %v2867 = vmax.f32 %v1943, %v2534
      %v2868 = vmax.f32 %v1951, %v2536
      %v2869 = vmax.f32 %v1950, %v2538
      %v2870 = vmax.f32 %v1952, %v2540
      %v2871 = vmax.f32 %v1960, %v2542
      %v2872 = vmax.f32 %v1968, %v2544
      %v2873 = vmax.f32 %v1969, %v2546
      %v2874 = vmax.f32 %v1977, %v2548
      %v2875 = vmax.f32 %v1985, %v2550
      %v2876 = vmax.f32 %v1984, %v2552
      %v2877 = vmax.f32 %v1986, %v2554
      %v2878 = vmax.f32 %v1994, %v2556
      %v2879 = vmax.f32 %v2002, %v2558
      %v2880 = vmax.f32 %v2001, %v2560
      %v2881 = vmax.f32 %v2010, %v2562
      %v2882 = vmax.f32 %v2018, %v2564
      %v2883 = vmax.f32 %v2017, %v2566
      %v2884 = vmax.f32 %v2019, %v2568
      %v2885 = vmax.f32 %v2027, %v2570
      %v2886 = vmax.f32 %v2035, %v2572
      %v2887 = vmax.f32 %v2034, %v2574
      %v2888 = vmax.f32 %v2036, %v2576
      %v2889 = vmax.f32 %v2052, %v2578
      %v2890 = vmax.f32 %v2051, %v2580
      %v2891 = vmax.f32 %v2053, %v2582
      %v2892 = vmax.f32 %v2061, %v2584
      %v2893 = vmax.f32 %v2069, %v2586
      %v2894 = vmax.f32 %v2068, %v2588
      %v2895 = vmax.f32 %v2070, %v2590
      %v2896 = vmax.f32 %v2078, %v2592
      %v2897 = vmax.f32 %v2085, %v2594
      %v2898 = vmax.f32 %v2086, %v2596
      %v2899 = vmax.f32 %v2094, %v2598
      %v2900 = vmax.f32 %v2102, %v2600
      %v2901 = vmax.f32 %v2101, %v2602
      %v2902 = vmax.f32 %v2103, %v2604
      %v2903 = vmax.f32 %v2111, %v2606
      %v2904 = vmax.f32 %v2119, %v2608
      %v2905 = vmax.f32 %v2120, %v2610
      %v2906 = vmax.f32 %v2128, %v2612
      %v2907 = vmax.f32 %v2136, %v2614
      %v2908 = vmax.f32 %v2135, %v2616
      %v2909 = vmax.f32 %v2137, %v2618
      %v2910 = vmax.f32 %v2145, %v2620
      %v2911 = vmax.f32 %v2153, %v2622
      %v2912 = vmax.f32 %v2152, %v2624
      %v2913 = vmax.f32 %v2161, %v2626
      %v2914 = vmax.f32 %v2169, %v2628
      %v2915 = vmax.f32 %v2168, %v2630
      %v2916 = vmax.f32 %v2170, %v2632
      %v2917 = vmax.f32 %v2178, %v2634
      %v2918 = vmax.f32 %v2186, %v2636
      %v2919 = vmax.f32 %v2185, %v2638
      %v2920 = vmax.f32 %v2187, %v2640
      %v2921 = vmax.f32 %v2203, %v2642
      %v2922 = vmax.f32 %v2202, %v2644
      %v2923 = vmax.f32 %v2204, %v2646
      %v2924 = vmax.f32 %v2212, %v2648
      %v2925 = vmax.f32 %v2220, %v2650
      %v2926 = vmax.f32 %v2219, %v2652
      %v2927 = vmax.f32 %v2221, %v2654
      %v2928 = vmax.f32 %v2229, %v2656
      %v2929 = vmax.f32 %v2236, %v2658
      %v2930 = vmax.f32 %v2237, %v2660
      %v2931 = vmax.f32 %v2245, %v2662
      %v2932 = vmax.f32 %v2253, %v2664
      %v2933 = vmax.f32 %v2252, %v2666
      %v2934 = vmax.f32 %v2254, %v2668
      %v2935 = vmax.f32 %v2262, %v2670
      %v2936 = vmax.f32 %v2270, %v2672
      %v2937 = vmax.f32 %v2271, %v2674
      %v2938 = vmax.f32 %v2279, %v2676
      %v2939 = vmax.f32 %v2287, %v2678
      %v2940 = vmax.f32 %v2286, %v2680
      %v2941 = vmax.f32 %v2288, %v2682
      %v2942 = vmax.f32 %v2296, %v2684
      %v2943 = vmax.f32 %v2304, %v2686
      %v2944 = vmax.f32 %v2303, %v2688
      %v2945 = vmax.f32 %v2817, %v2825
      %v2946 = vmax.f32 %v2818, %v2826
      %v2947 = vmax.f32 %v2819, %v2827
      %v2948 = vmax.f32 %v2820, %v2828
      %v2949 = vmax.f32 %v2821, %v2829
      %v2950 = vmax.f32 %v2822, %v2830
      %v2951 = vmax.f32 %v2823, %v2831
      %v2952 = vmax.f32 %v2824, %v2832
      %v2953 = vmax.f32 %v2833, %v2841
      %v2954 = vmax.f32 %v2834, %v2842
      %v2955 = vmax.f32 %v2835, %v2843
      %v2956 = vmax.f32 %v2836, %v2844
      %v2957 = vmax.f32 %v2837, %v2845
      %v2958 = vmax.f32 %v2838, %v2846
      %v2959 = vmax.f32 %v2839, %v2847
      %v2960 = vmax.f32 %v2840, %v2848
      %v2961 = vmax.f32 %v2849, %v2857
      %v2962 = vmax.f32 %v2850, %v2858
      %v2963 = vmax.f32 %v2851, %v2859
      %v2964 = vmax.f32 %v2852, %v2860
      %v2965 = vmax.f32 %v2853, %v2861
      %v2966 = vmax.f32 %v2854, %v2862
      %v2967 = vmax.f32 %v2855, %v2863
      %v2968 = vmax.f32 %v2856, %v2864
      %v2969 = vmax.f32 %v2865, %v2873
      %v2970 = vmax.f32 %v2866, %v2874
      %v2971 = vmax.f32 %v2867, %v2875
      %v2972 = vmax.f32 %v2868, %v2876
      %v2973 = vmax.f32 %v2869, %v2877
      %v2974 = vmax.f32 %v2870, %v2878
      %v2975 = vmax.f32 %v2871, %v2879
      %v2976 = vmax.f32 %v2872, %v2880
      %v2977 = vmax.f32 %v2881, %v2889
      %v2978 = vmax.f32 %v2882, %v2890
      %v2979 = vmax.f32 %v2883, %v2891
      %v2980 = vmax.f32 %v2884, %v2892
      %v2981 = vmax.f32 %v2885, %v2893
      %v2982 = vmax.f32 %v2886, %v2894
      %v2983 = vmax.f32 %v2887, %v2895
      %v2984 = vmax.f32 %v2888, %v2896
      %v2985 = vmax.f32 %v2897, %v2905
      %v2986 = vmax.f32 %v2898, %v2906
      %v2987 = vmax.f32 %v2899, %v2907
      %v2988 = vmax.f32 %v2900, %v2908
      %v2989 = vmax.f32 %v2901, %v2909
      %v2990 = vmax.f32 %v2902, %v2910
      %v2991 = vmax.f32 %v2903, %v2911
      %v2992 = vmax.f32 %v2904, %v2912
      %v2993 = vmax.f32 %v2913, %v2921
      %v2994 = vmax.f32 %v2914, %v2922
      %v2995 = vmax.f32 %v2915, %v2923
      %v2996 = vmax.f32 %v2916, %v2924
      %v2997 = vmax.f32 %v2917, %v2925
      %v2998 = vmax.f32 %v2918, %v2926
      %v2999 = vmax.f32 %v2919, %v2927
      %v3000 = vmax.f32 %v2920, %v2928
      %v3001 = vmax.f32 %v2929, %v2937
      %v3002 = vmax.f32 %v2930, %v2938
      %v3003 = vmax.f32 %v2931, %v2939
      %v3004 = vmax.f32 %v2932, %v2940
      %v3005 = vmax.f32 %v2933, %v2941
      %v3006 = vmax.f32 %v2934, %v2942
      %v3007 = vmax.f32 %v2935, %v2943
      %v3008 = vmax.f32 %v2936, %v2944
      %v3073 = vlaneseq
      %v3074 = vshrl.u32 %v3073, 7
      %v3075 = vsub.s32 0, %v3074
      %v3076 = vrot.slane %v2945, %v3075
      %v3077 = vlaneseq
      %v3078 = vshrl.u32 %v3077, 7
      %v3079 = vsub.s32 0, %v3078
      %v3080 = vrot.slane %v2946, %v3079
      %v3081 = vlaneseq
      %v3082 = vshrl.u32 %v3081, 7
      %v3083 = vsub.s32 0, %v3082
      %v3084 = vrot.slane %v2947, %v3083
      %v3085 = vlaneseq
      %v3086 = vshrl.u32 %v3085, 7
      %v3087 = vsub.s32 0, %v3086
      %v3088 = vrot.slane %v2948, %v3087
      %v3089 = vlaneseq
      %v3090 = vshrl.u32 %v3089, 7
      %v3091 = vsub.s32 0, %v3090
      %v3092 = vrot.slane %v2949, %v3091
      %v3093 = vlaneseq
      %v3094 = vshrl.u32 %v3093, 7
      %v3095 = vsub.s32 0, %v3094
      %v3096 = vrot.slane %v2950, %v3095
      %v3097 = vlaneseq
      %v3098 = vshrl.u32 %v3097, 7
      %v3099 = vsub.s32 0, %v3098
      %v3100 = vrot.slane %v2951, %v3099
      %v3101 = vlaneseq
      %v3102 = vshrl.u32 %v3101, 7
      %v3103 = vsub.s32 0, %v3102
      %v3104 = vrot.slane %v2952, %v3103
      %v3105 = vlaneseq
      %v3106 = vshrl.u32 %v3105, 7
      %v3107 = vsub.s32 0, %v3106
      %v3108 = vrot.slane %v2953, %v3107
      %v3109 = vlaneseq
      %v3110 = vshrl.u32 %v3109, 7
      %v3111 = vsub.s32 0, %v3110
      %v3112 = vrot.slane %v2954, %v3111
      %v3113 = vlaneseq
      %v3114 = vshrl.u32 %v3113, 7
      %v3115 = vsub.s32 0, %v3114
      %v3116 = vrot.slane %v2955, %v3115
      %v3117 = vlaneseq
      %v3118 = vshrl.u32 %v3117, 7
      %v3119 = vsub.s32 0, %v3118
      %v3120 = vrot.slane %v2956, %v3119
      %v3121 = vlaneseq
      %v3122 = vshrl.u32 %v3121, 7
      %v3123 = vsub.s32 0, %v3122
      %v3124 = vrot.slane %v2957, %v3123
      %v3125 = vlaneseq
      %v3126 = vshrl.u32 %v3125, 7
      %v3127 = vsub.s32 0, %v3126
      %v3128 = vrot.slane %v2958, %v3127
      %v3129 = vlaneseq
      %v3130 = vshrl.u32 %v3129, 7
      %v3131 = vsub.s32 0, %v3130
      %v3132 = vrot.slane %v2959, %v3131
      %v3133 = vlaneseq
      %v3134 = vshrl.u32 %v3133, 7
      %v3135 = vsub.s32 0, %v3134
      %v3136 = vrot.slane %v2960, %v3135
      %v3137 = vlaneseq
      %v3138 = vshrl.u32 %v3137, 7
      %v3139 = vsub.s32 0, %v3138
      %v3140 = vrot.slane %v2961, %v3139
      %v3141 = vlaneseq
      %v3142 = vshrl.u32 %v3141, 7
      %v3143 = vsub.s32 0, %v3142
      %v3144 = vrot.slane %v2962, %v3143
      %v3145 = vlaneseq
      %v3146 = vshrl.u32 %v3145, 7
      %v3147 = vsub.s32 0, %v3146
      %v3148 = vrot.slane %v2963, %v3147
      %v3149 = vlaneseq
      %v3150 = vshrl.u32 %v3149, 7
      %v3151 = vsub.s32 0, %v3150
      %v3152 = vrot.slane %v2964, %v3151
      %v3153 = vlaneseq
      %v3154 = vshrl.u32 %v3153, 7
      %v3155 = vsub.s32 0, %v3154
      %v3156 = vrot.slane %v2965, %v3155
      %v3157 = vlaneseq
      %v3158 = vshrl.u32 %v3157, 7
      %v3159 = vsub.s32 0, %v3158
      %v3160 = vrot.slane %v2966, %v3159
      %v3161 = vlaneseq
      %v3162 = vshrl.u32 %v3161, 7
      %v3163 = vsub.s32 0, %v3162
      %v3164 = vrot.slane %v2967, %v3163
      %v3165 = vlaneseq
      %v3166 = vshrl.u32 %v3165, 7
      %v3167 = vsub.s32 0, %v3166
      %v3168 = vrot.slane %v2968, %v3167
      %v3169 = vlaneseq
      %v3170 = vshrl.u32 %v3169, 7
      %v3171 = vsub.s32 0, %v3170
      %v3172 = vrot.slane %v2969, %v3171
      %v3173 = vlaneseq
      %v3174 = vshrl.u32 %v3173, 7
      %v3175 = vsub.s32 0, %v3174
      %v3176 = vrot.slane %v2970, %v3175
      %v3177 = vlaneseq
      %v3178 = vshrl.u32 %v3177, 7
      %v3179 = vsub.s32 0, %v3178
      %v3180 = vrot.slane %v2971, %v3179
      %v3181 = vlaneseq
      %v3182 = vshrl.u32 %v3181, 7
      %v3183 = vsub.s32 0, %v3182
      %v3184 = vrot.slane %v2972, %v3183
      %v3185 = vlaneseq
      %v3186 = vshrl.u32 %v3185, 7
      %v3187 = vsub.s32 0, %v3186
      %v3188 = vrot.slane %v2973, %v3187
      %v3189 = vlaneseq
      %v3190 = vshrl.u32 %v3189, 7
      %v3191 = vsub.s32 0, %v3190
      %v3192 = vrot.slane %v2974, %v3191
      %v3193 = vlaneseq
      %v3194 = vshrl.u32 %v3193, 7
      %v3195 = vsub.s32 0, %v3194
      %v3196 = vrot.slane %v2975, %v3195
      %v3197 = vlaneseq
      %v3198 = vshrl.u32 %v3197, 7
      %v3199 = vsub.s32 0, %v3198
      %v3200 = vrot.slane %v2976, %v3199
      %v3201 = vlaneseq
      %v3202 = vshrl.u32 %v3201, 7
      %v3203 = vsub.s32 0, %v3202
      %v3204 = vrot.slane %v2977, %v3203
      %v3205 = vlaneseq
      %v3206 = vshrl.u32 %v3205, 7
      %v3207 = vsub.s32 0, %v3206
      %v3208 = vrot.slane %v2978, %v3207
      %v3209 = vlaneseq
      %v3210 = vshrl.u32 %v3209, 7
      %v3211 = vsub.s32 0, %v3210
      %v3212 = vrot.slane %v2979, %v3211
      %v3213 = vlaneseq
      %v3214 = vshrl.u32 %v3213, 7
      %v3215 = vsub.s32 0, %v3214
      %v3216 = vrot.slane %v2980, %v3215
      %v3217 = vlaneseq
      %v3218 = vshrl.u32 %v3217, 7
      %v3219 = vsub.s32 0, %v3218
      %v3220 = vrot.slane %v2981, %v3219
      %v3221 = vlaneseq
      %v3222 = vshrl.u32 %v3221, 7
      %v3223 = vsub.s32 0, %v3222
      %v3224 = vrot.slane %v2982, %v3223
      %v3225 = vlaneseq
      %v3226 = vshrl.u32 %v3225, 7
      %v3227 = vsub.s32 0, %v3226
      %v3228 = vrot.slane %v2983, %v3227
      %v3229 = vlaneseq
      %v3230 = vshrl.u32 %v3229, 7
      %v3231 = vsub.s32 0, %v3230
      %v3232 = vrot.slane %v2984, %v3231
      %v3233 = vlaneseq
      %v3234 = vshrl.u32 %v3233, 7
      %v3235 = vsub.s32 0, %v3234
      %v3236 = vrot.slane %v2985, %v3235
      %v3237 = vlaneseq
      %v3238 = vshrl.u32 %v3237, 7
      %v3239 = vsub.s32 0, %v3238
      %v3240 = vrot.slane %v2986, %v3239
      %v3241 = vlaneseq
      %v3242 = vshrl.u32 %v3241, 7
      %v3243 = vsub.s32 0, %v3242
      %v3244 = vrot.slane %v2987, %v3243
      %v3245 = vlaneseq
      %v3246 = vshrl.u32 %v3245, 7
      %v3247 = vsub.s32 0, %v3246
      %v3248 = vrot.slane %v2988, %v3247
      %v3249 = vlaneseq
      %v3250 = vshrl.u32 %v3249, 7
      %v3251 = vsub.s32 0, %v3250
      %v3252 = vrot.slane %v2989, %v3251
      %v3253 = vlaneseq
      %v3254 = vshrl.u32 %v3253, 7
      %v3255 = vsub.s32 0, %v3254
      %v3256 = vrot.slane %v2990, %v3255
      %v3257 = vlaneseq
      %v3258 = vshrl.u32 %v3257, 7
      %v3259 = vsub.s32 0, %v3258
      %v3260 = vrot.slane %v2991, %v3259
      %v3261 = vlaneseq
      %v3262 = vshrl.u32 %v3261, 7
      %v3263 = vsub.s32 0, %v3262
      %v3264 = vrot.slane %v2992, %v3263
      %v3265 = vlaneseq
      %v3266 = vshrl.u32 %v3265, 7
      %v3267 = vsub.s32 0, %v3266
      %v3268 = vrot.slane %v2993, %v3267
      %v3269 = vlaneseq
      %v3270 = vshrl.u32 %v3269, 7
      %v3271 = vsub.s32 0, %v3270
      %v3272 = vrot.slane %v2994, %v3271
      %v3273 = vlaneseq
      %v3274 = vshrl.u32 %v3273, 7
      %v3275 = vsub.s32 0, %v3274
      %v3276 = vrot.slane %v2995, %v3275
      %v3277 = vlaneseq
      %v3278 = vshrl.u32 %v3277, 7
      %v3279 = vsub.s32 0, %v3278
      %v3280 = vrot.slane %v2996, %v3279
      %v3281 = vlaneseq
      %v3282 = vshrl.u32 %v3281, 7
      %v3283 = vsub.s32 0, %v3282
      %v3284 = vrot.slane %v2997, %v3283
      %v3285 = vlaneseq
      %v3286 = vshrl.u32 %v3285, 7
      %v3287 = vsub.s32 0, %v3286
      %v3288 = vrot.slane %v2998, %v3287
      %v3289 = vlaneseq
      %v3290 = vshrl.u32 %v3289, 7
      %v3291 = vsub.s32 0, %v3290
      %v3292 = vrot.slane %v2999, %v3291
      %v3293 = vlaneseq
      %v3294 = vshrl.u32 %v3293, 7
      %v3295 = vsub.s32 0, %v3294
      %v3296 = vrot.slane %v3000, %v3295
      %v3297 = vlaneseq
      %v3298 = vshrl.u32 %v3297, 7
      %v3299 = vsub.s32 0, %v3298
      %v3300 = vrot.slane %v3001, %v3299
      %v3301 = vlaneseq
      %v3302 = vshrl.u32 %v3301, 7
      %v3303 = vsub.s32 0, %v3302
      %v3304 = vrot.slane %v3002, %v3303
      %v3305 = vlaneseq
      %v3306 = vshrl.u32 %v3305, 7
      %v3307 = vsub.s32 0, %v3306
      %v3308 = vrot.slane %v3003, %v3307
      %v3309 = vlaneseq
      %v3310 = vshrl.u32 %v3309, 7
      %v3311 = vsub.s32 0, %v3310
      %v3312 = vrot.slane %v3004, %v3311
      %v3313 = vlaneseq
      %v3314 = vshrl.u32 %v3313, 7
      %v3315 = vsub.s32 0, %v3314
      %v3316 = vrot.slane %v3005, %v3315
      %v3317 = vlaneseq
      %v3318 = vshrl.u32 %v3317, 7
      %v3319 = vsub.s32 0, %v3318
      %v3320 = vrot.slane %v3006, %v3319
      %v3321 = vlaneseq
      %v3322 = vshrl.u32 %v3321, 7
      %v3323 = vsub.s32 0, %v3322
      %v3324 = vrot.slane %v3007, %v3323
      %v3325 = vlaneseq
      %v3326 = vshrl.u32 %v3325, 7
      %v3327 = vsub.s32 0, %v3326
      %v3328 = vrot.slane %v3008, %v3327
      %vm3329 = vcmask 1041409
      %v3330 = vsel %vm3329, %v3080, %v3076
      %vm3331 = vcmask 1042434
      %v3332 = vsel %vm3331, %v3084, %v3330
      %vm3333 = vcmask 1043459
      %v3334 = vsel %vm3333, %v3088, %v3332
      %vm3335 = vcmask 1044484
      %v3336 = vsel %vm3335, %v3092, %v3334
      %vm3337 = vcmask 1045509
      %v3338 = vsel %vm3337, %v3096, %v3336
      %vm3339 = vcmask 1046534
      %v3340 = vsel %vm3339, %v3100, %v3338
      %vm3341 = vcmask 1047559
      %v3342 = vsel %vm3341, %v3104, %v3340
      %v3343 = vsel %vm3329, %v3112, %v3108
      %v3344 = vsel %vm3331, %v3116, %v3343
      %v3345 = vsel %vm3333, %v3120, %v3344
      %v3346 = vsel %vm3335, %v3124, %v3345
      %v3347 = vsel %vm3337, %v3128, %v3346
      %v3348 = vsel %vm3339, %v3132, %v3347
      %v3349 = vsel %vm3341, %v3136, %v3348
      %v3350 = vsel %vm3329, %v3144, %v3140
      %v3351 = vsel %vm3331, %v3148, %v3350
      %v3352 = vsel %vm3333, %v3152, %v3351
      %v3353 = vsel %vm3335, %v3156, %v3352
      %v3354 = vsel %vm3337, %v3160, %v3353
      %v3355 = vsel %vm3339, %v3164, %v3354
      %v3356 = vsel %vm3341, %v3168, %v3355
      %v3357 = vsel %vm3329, %v3176, %v3172
      %v3358 = vsel %vm3331, %v3180, %v3357
      %v3359 = vsel %vm3333, %v3184, %v3358
      %v3360 = vsel %vm3335, %v3188, %v3359
      %v3361 = vsel %vm3337, %v3192, %v3360
      %v3362 = vsel %vm3339, %v3196, %v3361
      %v3363 = vsel %vm3341, %v3200, %v3362
      %v3364 = vsel %vm3329, %v3208, %v3204
      %v3365 = vsel %vm3331, %v3212, %v3364
      %v3366 = vsel %vm3333, %v3216, %v3365
      %v3367 = vsel %vm3335, %v3220, %v3366
      %v3368 = vsel %vm3337, %v3224, %v3367
      %v3369 = vsel %vm3339, %v3228, %v3368
      %v3370 = vsel %vm3341, %v3232, %v3369
      %v3371 = vsel %vm3329, %v3240, %v3236
      %v3372 = vsel %vm3331, %v3244, %v3371
      %v3373 = vsel %vm3333, %v3248, %v3372
      %v3374 = vsel %vm3335, %v3252, %v3373
      %v3375 = vsel %vm3337, %v3256, %v3374
      %v3376 = vsel %vm3339, %v3260, %v3375
      %v3377 = vsel %vm3341, %v3264, %v3376
      %v3378 = vsel %vm3329, %v3272, %v3268
      %v3379 = vsel %vm3331, %v3276, %v3378
      %v3380 = vsel %vm3333, %v3280, %v3379
      %v3381 = vsel %vm3335, %v3284, %v3380
      %v3382 = vsel %vm3337, %v3288, %v3381
      %v3383 = vsel %vm3339, %v3292, %v3382
      %v3384 = vsel %vm3341, %v3296, %v3383
      %v3385 = vsel %vm3329, %v3304, %v3300
      %v3386 = vsel %vm3331, %v3308, %v3385
      %v3387 = vsel %vm3333, %v3312, %v3386
      %v3388 = vsel %vm3335, %v3316, %v3387
      %v3389 = vsel %vm3337, %v3320, %v3388
      %v3390 = vsel %vm3339, %v3324, %v3389
      %v3391 = vsel %vm3341, %v3328, %v3390
      %v3400 = vsel %vm1183, %v3342, 0.0
      %v3401 = vsel %vm1183, %v3349, 0.0
      %v3402 = vadd.f32 %v3400, %v3401
      %v3403 = vsel %vm1183, %v3356, 0.0
      %v3404 = vadd.f32 %v3402, %v3403
      %v3405 = vsel %vm1183, %v3363, 0.0
      %v3406 = vadd.f32 %v3404, %v3405
      %v3407 = vsel %vm1183, %v3370, 0.0
      %v3408 = vadd.f32 %v3406, %v3407
      %v3409 = vsel %vm1183, %v3377, 0.0
      %v3410 = vadd.f32 %v3408, %v3409
      %v3411 = vsel %vm1183, %v3384, 0.0
      %v3412 = vadd.f32 %v3410, %v3411
      %v3413 = vsel %vm1183, %v3391, 0.0
      %v3414 = vadd.f32 %v3412, %v3413
      %v3415 = vrot.slane %v3414, 4
      %v3416 = vadd.f32 %v3414, %v3415
      %v3417 = vrot.slane %v3416, 2
      %v3418 = vadd.f32 %v3416, %v3417
      %v3419 = vrot.slane %v3418, 1
      %v3420 = vadd.f32 %v3418, %v3419
      %v3421 = vrcp.pop 64.0
      %v3422 = vmul.f32 %v3420, %v3421
      %vm3423 = vcmask 253952
      %3424 = vst.msk [vmem:[%s193] sm:$0x1] %vm3423, %v3422
      %p3425 = scmp.lt.s32.totalorder %s15, 1
      %s3426 = scalar_select %p3425, %s15, 1
      %s3427 = scalar_lea.vmem %s4, %s3426
      // Predicated region
      $region37: #{patchnet_forward.8} parent=35 // pred_check
        %p3428 = pneg %p122
      $region38: #{patchnet_forward.8} parent=35 // pred_check_branch
        %3430 = sbr.rel (%p3428) target = $region40
      $region39: #{patchnet_forward.8} parent=35 // pred_region
        _
      $region40: #{patchnet_forward.8} parent=35 // pred_fallthru
        _
    $region36: #{patchnet_forward.8} parent=5 // pred_fallthru
      _
    %p3431 = scmp.le.s32.totalorder 2, %s10
    // Predicated region
    $region41: #{patchnet_forward.8} parent=5 // pred_check
      %p3432 = pneg %p3431
    $region42: #{patchnet_forward.8} parent=5 // pred_check_branch
      %3434 = sbr.rel (%p3432) target = $region44
    $region43: #{patchnet_forward.8} parent=5 // pred_region
      %s3435 = ssub.s32 %s10, 2
      // Predicated region
      $region45: #{patchnet_forward.8} parent=43 // pred_check
        %p3436 = pneg %p128
      $region46: #{patchnet_forward.8} parent=43 // pred_check_branch
        %3438 = sbr.rel (%p3436) target = $region48
      $region47: #{patchnet_forward.8} parent=43 // pred_region
        %p3439 = scmp.lt.s32.totalorder %s16, 1
        %s3440 = scalar_select %p3439, %s16, 1
        %s3441 = scalar_lea.vmem %s4, %s3440
      $region48: #{patchnet_forward.8} parent=43 // pred_fallthru
        _
    $region44: #{patchnet_forward.8} parent=5 // pred_fallthru
      _
  $region6: #{patchnet_forward.8} parent=0 // loop_footer
    %s14 = sadd.s32 1, %s10
  $region7: #{patchnet_forward.8} parent=0 // loop_footer_branch
    %9 = sbr.rel target = $region3
  $region8: #{patchnet_forward.8} parent=0 // loop_exit
    _

</llo_original>
